<compile_context>
chip_gen: v5e
topology: v5e:2x2
jax: 0.10.0
libtpu: 0.0.40
codegen_flags: <defaults>
</compile_context>

<pallas_src>
import jax
import jax.numpy as jnp
from jax.experimental import pallas as pl
from jax.experimental.pallas import tpu as pltpu


def _leaky_relu(x, slope=0.2):
    return jnp.where(x > 0, x, slope * x)


def d2_mlp_kernel(flat_ref, emb_ref,
                  w1a_ref, w1b_ref, b1_ref,
                  w2_ref, b2_ref,
                  w3_ref, b3_ref,
                  w4_ref, b4_ref,
                  o_ref):
    # Layer 1: Linear(4196 -> 512), split as flat@w1a + emb@w1b so K=4096 is
    # lane-aligned and there is no concatenated-x HBM round trip.
    h = jnp.dot(flat_ref[...], w1a_ref[...], preferred_element_type=jnp.float32)
    h = h + jnp.dot(emb_ref[...], w1b_ref[...], preferred_element_type=jnp.float32)
    h = _leaky_relu(h + b1_ref[...])

    # Layer 2: Linear(512 -> 512) + Dropout(0.4)[eval: identity] + LeakyReLU
    h = jnp.dot(h.astype(jnp.bfloat16), w2_ref[...],
                preferred_element_type=jnp.float32)
    h = _leaky_relu(h + b2_ref[...])

    # Layer 3: Linear(512 -> 512) + Dropout(0.4)[eval: identity] + LeakyReLU
    h = jnp.dot(h.astype(jnp.bfloat16), w3_ref[...],
                preferred_element_type=jnp.float32)
    h = _leaky_relu(h + b3_ref[...])

    # Layer 4: Linear(512 -> 1) + Sigmoid.  N=1 wastes 255/256 MXU lanes, so
    # use a VPU broadcast-multiply + lane reduction instead of a matmul.
    logits = jnp.sum(h * w4_ref[...].astype(jnp.float32), axis=-1, keepdims=True)
    logits = logits + b4_ref[...]
    o_ref[...] = jax.nn.sigmoid(logits)


def d2_forward(image, label, params, *, block_b=None):
    """image: (B, nc, 64, 64) float32, label: (B,) int32."""
    B = image.shape[0]
    # Glue in plain JAX: flatten (same as .view(B, -1)) + embedding gather.
    flat = image.reshape(B, -1).astype(jnp.bfloat16)              # (B, 4096)
    emb = params["emb"][label].astype(jnp.bfloat16)               # (B, 100)

    if block_b is None:
        block_b = min(256, ((B + 7) // 8) * 8)                    # sublane-aligned tile
    n_blocks = pl.cdiv(B, block_b)
    Bp = n_blocks * block_b
    if Bp != B:
        flat = jnp.pad(flat, ((0, Bp - B), (0, 0)))
        emb = jnp.pad(emb, ((0, Bp - B), (0, 0)))

    img_dim = flat.shape[1]
    emb_dim = emb.shape[1]

    def resident(arr):
        # Full-extent block with a constant index_map: Pallas keeps it in VMEM
        # across all batch tiles (loaded once, never re-DMA'd).
        return pl.BlockSpec(arr.shape, lambda i: (0, 0))

    out = pl.pallas_call(
        d2_mlp_kernel,
        out_shape=jax.ShapeDtypeStruct((Bp, 1), jnp.float32),
        grid=(n_blocks,),
        in_specs=[
            pl.BlockSpec((block_b, img_dim), lambda i: (i, 0)),   # image tile
            pl.BlockSpec((block_b, emb_dim), lambda i: (i, 0)),   # embedding tile
            resident(params["w1a"]), resident(params["w1b"]), resident(params["b1"]),
            resident(params["w2"]), resident(params["b2"]),
            resident(params["w3"]), resident(params["b3"]),
            resident(params["w4"]), resident(params["b4"]),
        ],
        out_specs=pl.BlockSpec((block_b, 1), lambda i: (i, 0)),
        compiler_params=pltpu.CompilerParams(
            dimension_semantics=("parallel",),
            vmem_limit_bytes=32 << 20,
        ),
    )(flat, emb,
      params["w1a"], params["w1b"], params["b1"],
      params["w2"], params["b2"],
      params["w3"], params["b3"],
      params["w4"], params["b4"])
    return out[:B]


def init_params(key, nc, opt_class):
    img_dim = nc * 64 * 64      # spec's Linear(64*64+100, 512) implies nc == 1
    emb_dim = 100
    fan1 = img_dim + emb_dim
    ks = jax.random.split(key, 10)

    def lin(k, fi, fo, fan=None):
        scale = 1.0 / jnp.sqrt(jnp.float32(fan if fan is not None else fi))
        return (scale * jax.random.normal(k, (fi, fo), jnp.float32)).astype(jnp.bfloat16)

    return {
        "emb": 0.1 * jax.random.normal(ks[0], (opt_class, emb_dim), jnp.float32),
        "w1a": lin(ks[1], img_dim, 512, fan1),
        "w1b": lin(ks[2], emb_dim, 512, fan1),
        "b1": 0.01 * jax.random.normal(ks[3], (1, 512), jnp.float32),
        "w2": lin(ks[4], 512, 512),
        "b2": 0.01 * jax.random.normal(ks[5], (1, 512), jnp.float32),
        "w3": lin(ks[6], 512, 512),
        "b3": 0.01 * jax.random.normal(ks[7], (1, 512), jnp.float32),
        # Final layer stored as a (1, 512) row so the kernel's VPU reduce can
        # broadcast it directly (equivalent to the (512, 1) column weight).
        "w4": lin(ks[8], 1, 512, 512),
        "b4": 0.01 * jax.random.normal(ks[9], (1, 1), jnp.float32),
    }


def d2_reference(image, label, params):
    """Pure-JAX reference (f32 activations, same bf16 weights)."""
    B = image.shape[0]
    f32 = lambda a: a.astype(jnp.float32)
    flat = image.reshape(B, -1).astype(jnp.bfloat16).astype(jnp.float32)
    emb = params["emb"][label].astype(jnp.bfloat16).astype(jnp.float32)
    h = _leaky_relu(flat @ f32(params["w1a"]) + emb @ f32(params["w1b"]) + params["b1"])
    h = _leaky_relu(h @ f32(params["w2"]) + params["b2"])
    h = _leaky_relu(h @ f32(params["w3"]) + params["b3"])
    logits = jnp.sum(h * f32(params["w4"]), axis=-1, keepdims=True) + params["b4"]
    return jax.nn.sigmoid(logits)


if __name__ == "__main__":
    nc, ndf, opt_class = 1, 64, 10   # nc*64*64 must equal 4096 for Linear(64*64+100, ...)
    B = 8

    key = jax.random.PRNGKey(0)
    k_img, k_lbl, k_par = jax.random.split(key, 3)
    image = jax.random.normal(k_img, (B, nc, 64, 64), jnp.float32)
    label = jax.random.randint(k_lbl, (B,), 0, opt_class, jnp.int32)
    params = init_params(k_par, nc, opt_class)

    out = jax.block_until_ready(d2_forward(image, label, params))
    ref = jax.block_until_ready(d2_reference(image, label, params))

    assert out.shape == (B, 1), out.shape
    # bf16 weights + bf16 inter-layer activations -> relaxed tolerance.
    assert jnp.allclose(out, ref, atol=2e-2, rtol=2e-2), (out, ref)
    print("KERNEL_OK")
</pallas_src>

<mosaic_0001>
module attributes {stable_mosaic.version = 11 : i64} {
  func.func @d2_mlp_kernel(%arg0: i32, %arg1: memref<8x4096xbf16, #tpu.memory_space<vmem>>, %arg2: memref<8x100xbf16, #tpu.memory_space<vmem>>, %arg3: memref<4096x512xbf16, #tpu.memory_space<vmem>>, %arg4: memref<100x512xbf16, #tpu.memory_space<vmem>>, %arg5: memref<1x512xf32, #tpu.memory_space<vmem>>, %arg6: memref<512x512xbf16, #tpu.memory_space<vmem>>, %arg7: memref<1x512xf32, #tpu.memory_space<vmem>>, %arg8: memref<512x512xbf16, #tpu.memory_space<vmem>>, %arg9: memref<1x512xf32, #tpu.memory_space<vmem>>, %arg10: memref<1x512xbf16, #tpu.memory_space<vmem>>, %arg11: memref<1x1xf32, #tpu.memory_space<vmem>>, %arg12: memref<8x1xf32, #tpu.memory_space<vmem>>) attributes {dimension_semantics = [#tpu.dimension_semantics<parallel>], iteration_bounds = array<i64: 1>, scalar_prefetch = 0 : i64, scratch_operands = 0 : i64, tpu.core_type = #tpu.core_type<tc>, window_params = [{transform_indices = @transform_0, window_bounds = array<i64: 8, 4096>}, {transform_indices = @transform_1, window_bounds = array<i64: 8, 100>}, {pipeline_mode = #tpu.pipeline_mode<synchronous>, transform_indices = @transform_2, window_bounds = array<i64: 4096, 512>}, {pipeline_mode = #tpu.pipeline_mode<synchronous>, transform_indices = @transform_3, window_bounds = array<i64: 100, 512>}, {pipeline_mode = #tpu.pipeline_mode<synchronous>, transform_indices = @transform_4, window_bounds = array<i64: 1, 512>}, {pipeline_mode = #tpu.pipeline_mode<synchronous>, transform_indices = @transform_5, window_bounds = array<i64: 512, 512>}, {pipeline_mode = #tpu.pipeline_mode<synchronous>, transform_indices = @transform_6, window_bounds = array<i64: 1, 512>}, {pipeline_mode = #tpu.pipeline_mode<synchronous>, transform_indices = @transform_7, window_bounds = array<i64: 512, 512>}, {pipeline_mode = #tpu.pipeline_mode<synchronous>, transform_indices = @transform_8, window_bounds = array<i64: 1, 512>}, {pipeline_mode = #tpu.pipeline_mode<synchronous>, transform_indices = @transform_9, window_bounds = array<i64: 1, 512>}, {pipeline_mode = #tpu.pipeline_mode<synchronous>, transform_indices = @transform_10, window_bounds = array<i64: 1, 1>}, {transform_indices = @transform_11, window_bounds = array<i64: 8, 1>}]} {
    %c0 = arith.constant 0 : index
    %c0_0 = arith.constant 0 : index
    %0 = vector.load %arg1[%c0, %c0_0] : memref<8x4096xbf16, #tpu.memory_space<vmem>>, vector<8x4096xbf16>
    %c0_1 = arith.constant 0 : index
    %c0_2 = arith.constant 0 : index
    %1 = vector.load %arg3[%c0_1, %c0_2] : memref<4096x512xbf16, #tpu.memory_space<vmem>>, vector<4096x512xbf16>
    %cst = arith.constant dense<0.000000e+00> : vector<8x512xf32>
    %2 = tpu.matmul %0, %1, %cst {dimension_numbers = #tpu.dot_dimension_numbers<[1], [0], [0], [1], [0, 0, 1, 1], [], []>} : vector<8x4096xbf16>, vector<4096x512xbf16>, vector<8x512xf32> -> vector<8x512xf32>
    %c0_3 = arith.constant 0 : index
    %c0_4 = arith.constant 0 : index
    %3 = vector.load %arg2[%c0_3, %c0_4] : memref<8x100xbf16, #tpu.memory_space<vmem>>, vector<8x100xbf16>
    %c0_5 = arith.constant 0 : index
    %c0_6 = arith.constant 0 : index
    %4 = vector.load %arg4[%c0_5, %c0_6] : memref<100x512xbf16, #tpu.memory_space<vmem>>, vector<100x512xbf16>
    %cst_7 = arith.constant dense<0.000000e+00> : vector<8x512xf32>
    %5 = tpu.matmul %3, %4, %cst_7 {dimension_numbers = #tpu.dot_dimension_numbers<[1], [0], [0], [1], [0, 0, 1, 1], [], []>} : vector<8x100xbf16>, vector<100x512xbf16>, vector<8x512xf32> -> vector<8x512xf32>
    %6 = arith.addf %2, %5 : vector<8x512xf32>
    %c0_8 = arith.constant 0 : index
    %c0_9 = arith.constant 0 : index
    %7 = vector.load %arg5[%c0_8, %c0_9] : memref<1x512xf32, #tpu.memory_space<vmem>>, vector<1x512xf32>
    %8 = vector.broadcast %7 : vector<1x512xf32> to vector<8x512xf32>
    %9 = arith.addf %6, %8 : vector<8x512xf32>
    %cst_10 = arith.constant 0.000000e+00 : f32
    %10 = vector.broadcast %cst_10 : f32 to vector<8x512xf32>
    %11 = arith.cmpf ogt, %9, %10 : vector<8x512xf32>
    %cst_11 = arith.constant 2.000000e-01 : f32
    %12 = vector.broadcast %cst_11 : f32 to vector<8x512xf32>
    %13 = arith.mulf %12, %9 : vector<8x512xf32>
    %14 = arith.select %11, %9, %13 : vector<8x512xi1>, vector<8x512xf32>
    %15 = arith.truncf %14 : vector<8x512xf32> to vector<8x512xbf16>
    %c0_12 = arith.constant 0 : index
    %c0_13 = arith.constant 0 : index
    %16 = vector.load %arg6[%c0_12, %c0_13] : memref<512x512xbf16, #tpu.memory_space<vmem>>, vector<512x512xbf16>
    %cst_14 = arith.constant dense<0.000000e+00> : vector<8x512xf32>
    %17 = tpu.matmul %15, %16, %cst_14 {dimension_numbers = #tpu.dot_dimension_numbers<[1], [0], [0], [1], [0, 0, 1, 1], [], []>} : vector<8x512xbf16>, vector<512x512xbf16>, vector<8x512xf32> -> vector<8x512xf32>
    %c0_15 = arith.constant 0 : index
    %c0_16 = arith.constant 0 : index
    %18 = vector.load %arg7[%c0_15, %c0_16] : memref<1x512xf32, #tpu.memory_space<vmem>>, vector<1x512xf32>
    %19 = vector.broadcast %18 : vector<1x512xf32> to vector<8x512xf32>
    %20 = arith.addf %17, %19 : vector<8x512xf32>
    %cst_17 = arith.constant 0.000000e+00 : f32
    %21 = vector.broadcast %cst_17 : f32 to vector<8x512xf32>
    %22 = arith.cmpf ogt, %20, %21 : vector<8x512xf32>
    %cst_18 = arith.constant 2.000000e-01 : f32
    %23 = vector.broadcast %cst_18 : f32 to vector<8x512xf32>
    %24 = arith.mulf %23, %20 : vector<8x512xf32>
    %25 = arith.select %22, %20, %24 : vector<8x512xi1>, vector<8x512xf32>
    %26 = arith.truncf %25 : vector<8x512xf32> to vector<8x512xbf16>
    %c0_19 = arith.constant 0 : index
    %c0_20 = arith.constant 0 : index
    %27 = vector.load %arg8[%c0_19, %c0_20] : memref<512x512xbf16, #tpu.memory_space<vmem>>, vector<512x512xbf16>
    %cst_21 = arith.constant dense<0.000000e+00> : vector<8x512xf32>
    %28 = tpu.matmul %26, %27, %cst_21 {dimension_numbers = #tpu.dot_dimension_numbers<[1], [0], [0], [1], [0, 0, 1, 1], [], []>} : vector<8x512xbf16>, vector<512x512xbf16>, vector<8x512xf32> -> vector<8x512xf32>
    %c0_22 = arith.constant 0 : index
    %c0_23 = arith.constant 0 : index
    %29 = vector.load %arg9[%c0_22, %c0_23] : memref<1x512xf32, #tpu.memory_space<vmem>>, vector<1x512xf32>
    %30 = vector.broadcast %29 : vector<1x512xf32> to vector<8x512xf32>
    %31 = arith.addf %28, %30 : vector<8x512xf32>
    %cst_24 = arith.constant 0.000000e+00 : f32
    %32 = vector.broadcast %cst_24 : f32 to vector<8x512xf32>
    %33 = arith.cmpf ogt, %31, %32 : vector<8x512xf32>
    %cst_25 = arith.constant 2.000000e-01 : f32
    %34 = vector.broadcast %cst_25 : f32 to vector<8x512xf32>
    %35 = arith.mulf %34, %31 : vector<8x512xf32>
    %36 = arith.select %33, %31, %35 : vector<8x512xi1>, vector<8x512xf32>
    %c0_26 = arith.constant 0 : index
    %c0_27 = arith.constant 0 : index
    %37 = vector.load %arg10[%c0_26, %c0_27] : memref<1x512xbf16, #tpu.memory_space<vmem>>, vector<1x512xbf16>
    %38 = arith.extf %37 : vector<1x512xbf16> to vector<1x512xf32>
    %39 = vector.broadcast %38 : vector<1x512xf32> to vector<8x512xf32>
    %40 = arith.mulf %36, %39 : vector<8x512xf32>
    %cst_28 = arith.constant dense<0.000000e+00> : vector<8xf32>
    %41 = vector.multi_reduction <add>, %40, %cst_28 [1] : vector<8x512xf32> to vector<8xf32>
    %42 = vector.shape_cast %41 : vector<8xf32> to vector<8x1xf32>
    %c0_29 = arith.constant 0 : index
    %c0_30 = arith.constant 0 : index
    %43 = vector.load %arg11[%c0_29, %c0_30] : memref<1x1xf32, #tpu.memory_space<vmem>>, vector<1x1xf32>
    %44 = vector.broadcast %43 : vector<1x1xf32> to vector<8x1xf32>
    %45 = arith.addf %42, %44 : vector<8x1xf32>
    %46 = arith.negf %45 : vector<8x1xf32>
    %47 = math.exp %46 : vector<8x1xf32>
    %cst_31 = arith.constant 1.000000e+00 : f32
    %48 = vector.broadcast %cst_31 : f32 to vector<8x1xf32>
    %49 = arith.addf %48, %47 : vector<8x1xf32>
    %50 = arith.divf %48, %49 : vector<8x1xf32>
    %c0_32 = arith.constant 0 : index
    %c0_33 = arith.constant 0 : index
    %51 = vector.load %arg12[%c0_32, %c0_33] : memref<8x1xf32, #tpu.memory_space<vmem>>, vector<8x1xf32>
    tpu.vector_store %arg12[%c0_32, %c0_33], %50 {strides = array<i32>} : memref<8x1xf32, #tpu.memory_space<vmem>>, vector<8x1xf32>,
    return
  }
  func.func @transform_0(%arg0: i32) -> (i32, i32) {
    %c0_i32 = arith.constant 0 : i32
    %c0_i32_0 = arith.constant 0 : i32
    return %arg0, %c0_i32 : i32, i32
  }
  func.func @transform_1(%arg0: i32) -> (i32, i32) {
    %c0_i32 = arith.constant 0 : i32
    %c0_i32_0 = arith.constant 0 : i32
    return %arg0, %c0_i32 : i32, i32
  }
  func.func @transform_2(%arg0: i32) -> (i32, i32) {
    %c0_i32 = arith.constant 0 : i32
    %c0_i32_0 = arith.constant 0 : i32
    %c0_i32_1 = arith.constant 0 : i32
    return %c0_i32, %c0_i32_0 : i32, i32
  }
  func.func @transform_3(%arg0: i32) -> (i32, i32) {
    %c0_i32 = arith.constant 0 : i32
    %c0_i32_0 = arith.constant 0 : i32
    %c0_i32_1 = arith.constant 0 : i32
    return %c0_i32, %c0_i32_0 : i32, i32
  }
  func.func @transform_4(%arg0: i32) -> (i32, i32) {
    %c0_i32 = arith.constant 0 : i32
    %c0_i32_0 = arith.constant 0 : i32
    %c0_i32_1 = arith.constant 0 : i32
    return %c0_i32, %c0_i32_0 : i32, i32
  }
  func.func @transform_5(%arg0: i32) -> (i32, i32) {
    %c0_i32 = arith.constant 0 : i32
    %c0_i32_0 = arith.constant 0 : i32
    %c0_i32_1 = arith.constant 0 : i32
    return %c0_i32, %c0_i32_0 : i32, i32
  }
  func.func @transform_6(%arg0: i32) -> (i32, i32) {
    %c0_i32 = arith.constant 0 : i32
    %c0_i32_0 = arith.constant 0 : i32
    %c0_i32_1 = arith.constant 0 : i32
    return %c0_i32, %c0_i32_0 : i32, i32
  }
  func.func @transform_7(%arg0: i32) -> (i32, i32) {
    %c0_i32 = arith.constant 0 : i32
    %c0_i32_0 = arith.constant 0 : i32
    %c0_i32_1 = arith.constant 0 : i32
    return %c0_i32, %c0_i32_0 : i32, i32
  }
  func.func @transform_8(%arg0: i32) -> (i32, i32) {
    %c0_i32 = arith.constant 0 : i32
    %c0_i32_0 = arith.constant 0 : i32
    %c0_i32_1 = arith.constant 0 : i32
    return %c0_i32, %c0_i32_0 : i32, i32
  }
  func.func @transform_9(%arg0: i32) -> (i32, i32) {
    %c0_i32 = arith.constant 0 : i32
    %c0_i32_0 = arith.constant 0 : i32
    %c0_i32_1 = arith.constant 0 : i32
    return %c0_i32, %c0_i32_0 : i32, i32
  }
  func.func @transform_10(%arg0: i32) -> (i32, i32) {
    %c0_i32 = arith.constant 0 : i32
    %c0_i32_0 = arith.constant 0 : i32
    %c0_i32_1 = arith.constant 0 : i32
    return %c0_i32, %c0_i32_0 : i32, i32
  }
  func.func @transform_11(%arg0: i32) -> (i32, i32) {
    %c0_i32 = arith.constant 0 : i32
    %c0_i32_0 = arith.constant 0 : i32
    return %arg0, %c0_i32 : i32, i32
  }
}

</mosaic_0001>

<llo_original>
// kernel: tpu_custom_call.1
$region0: #{tpu_custom_call.1}
  #allocation0 [shape = 'u32[]', space=smem, size = 0x4, offset = 0x4, fixed_abs, tag = 'smem constant byte address 0x4 - core index']
  #allocation1 [shape = 'u32[72,128]{1,0:T(1,128)}', space=vmem, size = 0x9000, scoped, tag = 'internal scratch']
  #allocation2 [shape = 'f32[1,1]{1,0:T(1,128)S(1)}', space=vmem, size = 0x200, scoped, tag = 'scoped memory for tpu_custom_call.1']
  %s0 = inlined_call_operand.hbm [shape: bf16[8,4096], index: 0, kind: input, shape index: {}]
  %s1 = inlined_call_operand.hbm [shape: bf16[8,100], index: 1, kind: input, shape index: {}]
  %s2 = inlined_call_operand.hbm [shape: bf16[4096,512], index: 2, kind: input, shape index: {}]
  %s3 = inlined_call_operand.hbm [shape: bf16[100,512], index: 3, kind: input, shape index: {}]
  %s4 = inlined_call_operand.hbm [shape: f32[1,512], index: 4, kind: input, shape index: {}]
  %s5 = inlined_call_operand.hbm [shape: bf16[512,512], index: 5, kind: input, shape index: {}]
  %s6 = inlined_call_operand.hbm [shape: f32[1,512], index: 6, kind: input, shape index: {}]
  %s7 = inlined_call_operand.hbm [shape: bf16[512,512], index: 7, kind: input, shape index: {}]
  %s8 = inlined_call_operand.hbm [shape: f32[1,512], index: 8, kind: input, shape index: {}]
  %s9 = inlined_call_operand.hbm [shape: bf16[1,512], index: 9, kind: input, shape index: {}]
  %s10 = inlined_call_operand.<no memory space> [shape: f32[1,1], index: 10, kind: input, shape index: {}]
  %s11 = inlined_call_operand.vmem [shape: f32[8,1], index: 11, kind: output, shape index: {}]
  %s12 = sld [smem:[#allocation0]]
  $region94: #{tpu_custom_call.1} parent=0
    _
  %s14 = ssub.s32 1, %s12
  %s15 = scalar_select 0, %s14, %s12
  %v16 = vstv %s10
  %17 = vst [vmem:[#allocation2] sm:$0x1] %v16
  $region1: #{tpu_custom_call.1} parent=0
    #allocation3 [shape = 'u8[65536]{0}', space=vmem, size = 0x10000, scoped, tag = 'input window, operand 0, single buffered']
    #allocation4 [shape = 's32[1]{0}', space=sflag, size = 0x4, scoped, tag = 'scoped memory for tpu_custom_call.1']
    #allocation5 [shape = 'u8[2048]{0}', space=vmem, size = 0x800, scoped, tag = 'input window, operand 1, single buffered']
    #allocation6 [shape = 's32[1]{0}', space=sflag, size = 0x4, scoped, tag = 'scoped memory for tpu_custom_call.1']
    #allocation7 [shape = 'u8[4194304]{0}', space=vmem, size = 0x400000, scoped, tag = 'input window, operand 2, single buffered']
    #allocation8 [shape = 'u8[106496]{0}', space=vmem, size = 0x1a000, scoped, tag = 'input window, operand 3, single buffered']
    #allocation9 [shape = 's32[1]{0}', space=sflag, size = 0x4, scoped, tag = 'scoped memory for tpu_custom_call.1']
    #allocation10 [shape = 'u8[2048]{0}', space=vmem, size = 0x800, scoped, tag = 'input window, operand 4, single buffered']
    #allocation11 [shape = 'u8[524288]{0}', space=vmem, size = 0x80000, scoped, tag = 'input window, operand 5, single buffered']
    #allocation12 [shape = 's32[1]{0}', space=sflag, size = 0x4, scoped, tag = 'scoped memory for tpu_custom_call.1']
    #allocation13 [shape = 'u8[2048]{0}', space=vmem, size = 0x800, scoped, tag = 'input window, operand 6, single buffered']
    #allocation14 [shape = 'u8[524288]{0}', space=vmem, size = 0x80000, scoped, tag = 'input window, operand 7, single buffered']
    #allocation15 [shape = 's32[1]{0}', space=sflag, size = 0x4, scoped, tag = 'scoped memory for tpu_custom_call.1']
    #allocation16 [shape = 'u8[2048]{0}', space=vmem, size = 0x800, scoped, tag = 'input window, operand 8, single buffered']
    #allocation17 [shape = 'u8[2048]{0}', space=vmem, size = 0x800, scoped, tag = 'input window, operand 9, single buffered']
    #allocation18 [shape = 's32[1]{0}', space=sflag, size = 0x4, scoped, tag = 'scoped memory for tpu_custom_call.1']
    %18 = vsyncpa [#allocation4], 0
    %19 = vsyncpa [#allocation6], 0
    %20 = vsyncpa [#allocation9], 0
    %21 = vsyncpa [#allocation12], 0
    %22 = vsyncpa [#allocation15], 0
    %23 = vsyncpa [#allocation18], 0
    // Predicated region
    $region2: #{tpu_custom_call.1} parent=1 // pred_check
      _
    $region3: #{tpu_custom_call.1} parent=1 // pred_check_branch
      %25 = sbr.rel (0) target = $region5
    $region4: #{tpu_custom_call.1} parent=1 // pred_region
      %27 = vsyncadd [#allocation4], 0
      %s29 = sshll.u32 %s0, 4
      %s30 = int_to_ptr.hbm [resolvable:$true] %s29
      %s31 = sshll.u32 [#allocation3], 4
      %s32 = int_to_ptr.vmem [resolvable:$true] %s31
      %34 = dma.hbm_to_vmem [thread:$0]  %s30, 2048, %s32, [#allocation4]
    $region5: #{tpu_custom_call.1} parent=1 // pred_fallthru
      _
    // Predicated region
    $region6: #{tpu_custom_call.1} parent=1 // pred_check
      _
    $region7: #{tpu_custom_call.1} parent=1 // pred_check_branch
      %36 = sbr.rel (0) target = $region9
    $region8: #{tpu_custom_call.1} parent=1 // pred_region
      %38 = vsyncadd [#allocation6], 0
      %s40 = sshll.u32 %s1, 4
      %s41 = int_to_ptr.hbm [resolvable:$true] %s40
      %s42 = sshll.u32 [#allocation5], 4
      %s43 = int_to_ptr.vmem [resolvable:$true] %s42
      %45 = dma.hbm_to_vmem [thread:$0]  %s41, 64, %s43, [#allocation6]
    $region9: #{tpu_custom_call.1} parent=1 // pred_fallthru
      _
    // Predicated region
    $region10: #{tpu_custom_call.1} parent=1 // pred_check
      _
    $region11: #{tpu_custom_call.1} parent=1 // pred_check_branch
      %47 = sbr.rel (0) target = $region13
    $region12: #{tpu_custom_call.1} parent=1 // pred_region
      %49 = vsyncadd [#allocation6], 0
      %s50 = sshll.u32 %s2, 4
      %s51 = int_to_ptr.hbm [resolvable:$true] %s50
      %s52 = sshll.u32 [#allocation7], 4
      %s53 = int_to_ptr.vmem [resolvable:$true] %s52
      %58 = dma.hbm_to_vmem [thread:$0]  %s51, 131072, %s53, [#allocation6], 256, 256, 16
    $region13: #{tpu_custom_call.1} parent=1 // pred_fallthru
      _
    // Predicated region
    $region14: #{tpu_custom_call.1} parent=1 // pred_check
      _
    $region15: #{tpu_custom_call.1} parent=1 // pred_check_branch
      %60 = sbr.rel (0) target = $region17
    $region16: #{tpu_custom_call.1} parent=1 // pred_region
      %62 = vsyncadd [#allocation9], 0
      %s63 = sshll.u32 %s3, 4
      %s64 = int_to_ptr.hbm [resolvable:$true] %s63
      %s65 = sshll.u32 [#allocation8], 4
      %s66 = int_to_ptr.vmem [resolvable:$true] %s65
      %71 = dma.hbm_to_vmem [thread:$0]  %s64, 3328, %s66, [#allocation9], 256, 256, 16
    $region17: #{tpu_custom_call.1} parent=1 // pred_fallthru
      _
    // Predicated region
    $region18: #{tpu_custom_call.1} parent=1 // pred_check
      _
    $region19: #{tpu_custom_call.1} parent=1 // pred_check_branch
      %73 = sbr.rel (0) target = $region21
    $region20: #{tpu_custom_call.1} parent=1 // pred_region
      %75 = vsyncadd [#allocation9], 0
      %s77 = sshll.u32 %s4, 4
      %s78 = int_to_ptr.hbm [resolvable:$true] %s77
      %s79 = sshll.u32 [#allocation10], 4
      %s80 = int_to_ptr.vmem [resolvable:$true] %s79
      %82 = dma.hbm_to_vmem [thread:$0]  %s78, 64, %s80, [#allocation9]
    $region21: #{tpu_custom_call.1} parent=1 // pred_fallthru
      _
    // Predicated region
    $region22: #{tpu_custom_call.1} parent=1 // pred_check
      _
    $region23: #{tpu_custom_call.1} parent=1 // pred_check_branch
      %84 = sbr.rel (0) target = $region25
    $region24: #{tpu_custom_call.1} parent=1 // pred_region
      %86 = vsyncadd [#allocation12], 0
      %s87 = sshll.u32 %s5, 4
      %s88 = int_to_ptr.hbm [resolvable:$true] %s87
      %s89 = sshll.u32 [#allocation11], 4
      %s90 = int_to_ptr.vmem [resolvable:$true] %s89
      %95 = dma.hbm_to_vmem [thread:$0]  %s88, 16384, %s90, [#allocation12], 256, 256, 16
    $region25: #{tpu_custom_call.1} parent=1 // pred_fallthru
      _
    // Predicated region
    $region26: #{tpu_custom_call.1} parent=1 // pred_check
      _
    $region27: #{tpu_custom_call.1} parent=1 // pred_check_branch
      %97 = sbr.rel (0) target = $region29
    $region28: #{tpu_custom_call.1} parent=1 // pred_region
      %99 = vsyncadd [#allocation12], 0
      %s101 = sshll.u32 %s6, 4
      %s102 = int_to_ptr.hbm [resolvable:$true] %s101
      %s103 = sshll.u32 [#allocation13], 4
      %s104 = int_to_ptr.vmem [resolvable:$true] %s103
      %106 = dma.hbm_to_vmem [thread:$0]  %s102, 64, %s104, [#allocation12]
    $region29: #{tpu_custom_call.1} parent=1 // pred_fallthru
      _
    // Predicated region
    $region30: #{tpu_custom_call.1} parent=1 // pred_check
      _
    $region31: #{tpu_custom_call.1} parent=1 // pred_check_branch
      %108 = sbr.rel (0) target = $region33
    $region32: #{tpu_custom_call.1} parent=1 // pred_region
      %110 = vsyncadd [#allocation15], 0
      %s111 = sshll.u32 %s7, 4
      %s112 = int_to_ptr.hbm [resolvable:$true] %s111
      %s113 = sshll.u32 [#allocation14], 4
      %s114 = int_to_ptr.vmem [resolvable:$true] %s113
      %119 = dma.hbm_to_vmem [thread:$0]  %s112, 16384, %s114, [#allocation15], 256, 256, 16
    $region33: #{tpu_custom_call.1} parent=1 // pred_fallthru
      _
    // Predicated region
    $region34: #{tpu_custom_call.1} parent=1 // pred_check
      _
    $region35: #{tpu_custom_call.1} parent=1 // pred_check_branch
      %121 = sbr.rel (0) target = $region37
    $region36: #{tpu_custom_call.1} parent=1 // pred_region
      %123 = vsyncadd [#allocation15], 0
      %s125 = sshll.u32 %s8, 4
      %s126 = int_to_ptr.hbm [resolvable:$true] %s125
      %s127 = sshll.u32 [#allocation16], 4
      %s128 = int_to_ptr.vmem [resolvable:$true] %s127
      %130 = dma.hbm_to_vmem [thread:$0]  %s126, 64, %s128, [#allocation15]
    $region37: #{tpu_custom_call.1} parent=1 // pred_fallthru
      _
    // Predicated region
    $region38: #{tpu_custom_call.1} parent=1 // pred_check
      _
    $region39: #{tpu_custom_call.1} parent=1 // pred_check_branch
      %132 = sbr.rel (0) target = $region41
    $region40: #{tpu_custom_call.1} parent=1 // pred_region
      %134 = vsyncadd [#allocation18], 0
      %s136 = sshll.u32 %s9, 4
      %s137 = int_to_ptr.hbm [resolvable:$true] %s136
      %s138 = sshll.u32 [#allocation17], 4
      %s139 = int_to_ptr.vmem [resolvable:$true] %s138
      %141 = dma.hbm_to_vmem [thread:$0]  %s137, 64, %s139, [#allocation18]
    $region41: #{tpu_custom_call.1} parent=1 // pred_fallthru
      _
    // Predicated region
    $region42: #{tpu_custom_call.1} parent=1 // pred_check
      _
    $region43: #{tpu_custom_call.1} parent=1 // pred_check_branch
      %143 = sbr.rel (0) target = $region45
    $region44: #{tpu_custom_call.1} parent=1 // pred_region
      _
    $region45: #{tpu_custom_call.1} parent=1 // pred_fallthru
      _
    // Predicated region
    $region46: #{tpu_custom_call.1} parent=1 // pred_check
      _
    $region47: #{tpu_custom_call.1} parent=1 // pred_check_branch
      %145 = sbr.rel (0) target = $region49
    $region48: #{tpu_custom_call.1} parent=1 // pred_region
      %147 = dma.done [#allocation4], 2048
    $region49: #{tpu_custom_call.1} parent=1 // pred_fallthru
      _
    // Predicated region
    $region50: #{tpu_custom_call.1} parent=1 // pred_check
      _
    $region51: #{tpu_custom_call.1} parent=1 // pred_check_branch
      %149 = sbr.rel (0) target = $region53
    $region52: #{tpu_custom_call.1} parent=1 // pred_region
      %151 = dma.done [#allocation6], 64
    $region53: #{tpu_custom_call.1} parent=1 // pred_fallthru
      _
    // Predicated region
    $region54: #{tpu_custom_call.1} parent=1 // pred_check
      _
    $region55: #{tpu_custom_call.1} parent=1 // pred_check_branch
      %153 = sbr.rel (0) target = $region57
    $region56: #{tpu_custom_call.1} parent=1 // pred_region
      %155 = dma.done [#allocation6], 131072
    $region57: #{tpu_custom_call.1} parent=1 // pred_fallthru
      _
    // Predicated region
    $region58: #{tpu_custom_call.1} parent=1 // pred_check
      _
    $region59: #{tpu_custom_call.1} parent=1 // pred_check_branch
      %157 = sbr.rel (0) target = $region61
    $region60: #{tpu_custom_call.1} parent=1 // pred_region
      %159 = dma.done [#allocation9], 3328
    $region61: #{tpu_custom_call.1} parent=1 // pred_fallthru
      _
    // Predicated region
    $region62: #{tpu_custom_call.1} parent=1 // pred_check
      _
    $region63: #{tpu_custom_call.1} parent=1 // pred_check_branch
      %161 = sbr.rel (0) target = $region65
    $region64: #{tpu_custom_call.1} parent=1 // pred_region
      %163 = dma.done [#allocation9], 64
    $region65: #{tpu_custom_call.1} parent=1 // pred_fallthru
      _
    // Predicated region
    $region66: #{tpu_custom_call.1} parent=1 // pred_check
      _
    $region67: #{tpu_custom_call.1} parent=1 // pred_check_branch
      %165 = sbr.rel (0) target = $region69
    $region68: #{tpu_custom_call.1} parent=1 // pred_region
      %167 = dma.done [#allocation12], 16384
    $region69: #{tpu_custom_call.1} parent=1 // pred_fallthru
      _
    // Predicated region
    $region70: #{tpu_custom_call.1} parent=1 // pred_check
      _
    $region71: #{tpu_custom_call.1} parent=1 // pred_check_branch
      %169 = sbr.rel (0) target = $region73
    $region72: #{tpu_custom_call.1} parent=1 // pred_region
      %171 = dma.done [#allocation12], 64
    $region73: #{tpu_custom_call.1} parent=1 // pred_fallthru
      _
    // Predicated region
    $region74: #{tpu_custom_call.1} parent=1 // pred_check
      _
    $region75: #{tpu_custom_call.1} parent=1 // pred_check_branch
      %173 = sbr.rel (0) target = $region77
    $region76: #{tpu_custom_call.1} parent=1 // pred_region
      %175 = dma.done [#allocation15], 16384
    $region77: #{tpu_custom_call.1} parent=1 // pred_fallthru
      _
    // Predicated region
    $region78: #{tpu_custom_call.1} parent=1 // pred_check
      _
    $region79: #{tpu_custom_call.1} parent=1 // pred_check_branch
      %177 = sbr.rel (0) target = $region81
    $region80: #{tpu_custom_call.1} parent=1 // pred_region
      %179 = dma.done [#allocation15], 64
    $region81: #{tpu_custom_call.1} parent=1 // pred_fallthru
      _
    // Predicated region
    $region82: #{tpu_custom_call.1} parent=1 // pred_check
      _
    $region83: #{tpu_custom_call.1} parent=1 // pred_check_branch
      %181 = sbr.rel (0) target = $region85
    $region84: #{tpu_custom_call.1} parent=1 // pred_region
      %183 = dma.done [#allocation18], 64
    $region85: #{tpu_custom_call.1} parent=1 // pred_fallthru
      _
    %v185 = vld [vmem:[#allocation3] sm:$0xff]
    %v186 = vld [vmem:[#allocation3 + $0x8] sm:$0xff]
    %v187 = vld [vmem:[#allocation3 + $0x10] sm:$0xff]
    %v188 = vld [vmem:[#allocation3 + $0x18] sm:$0xff]
    %v189 = vld [vmem:[#allocation3 + $0x20] sm:$0xff]
    %v190 = vld [vmem:[#allocation3 + $0x28] sm:$0xff]
    %v191 = vld [vmem:[#allocation3 + $0x30] sm:$0xff]
    %v192 = vld [vmem:[#allocation3 + $0x38] sm:$0xff]
    %v193 = vld [vmem:[#allocation3 + $0x40] sm:$0xff]
    %v194 = vld [vmem:[#allocation3 + $0x48] sm:$0xff]
    %v195 = vld [vmem:[#allocation3 + $0x50] sm:$0xff]
    %v196 = vld [vmem:[#allocation3 + $0x58] sm:$0xff]
    %v197 = vld [vmem:[#allocation3 + $0x60] sm:$0xff]
    %v198 = vld [vmem:[#allocation3 + $0x68] sm:$0xff]
    %v199 = vld [vmem:[#allocation3 + $0x70] sm:$0xff]
    %v200 = vld [vmem:[#allocation3 + $0x78] sm:$0xff]
    %v201 = vld [vmem:[#allocation7] sm:$0xff]
    %v202 = vld [vmem:[#allocation7 + $0x8] sm:$0xff]
    %v203 = vld [vmem:[#allocation7 + $0x10] sm:$0xff]
    %v204 = vld [vmem:[#allocation7 + $0x18] sm:$0xff]
    %v205 = vld [vmem:[#allocation7 + $0x20] sm:$0xff]
    %v206 = vld [vmem:[#allocation7 + $0x28] sm:$0xff]
    %v207 = vld [vmem:[#allocation7 + $0x30] sm:$0xff]
    %v208 = vld [vmem:[#allocation7 + $0x38] sm:$0xff]
    %v209 = vld [vmem:[#allocation7 + $0x40] sm:$0xff]
    %v210 = vld [vmem:[#allocation7 + $0x48] sm:$0xff]
    %v211 = vld [vmem:[#allocation7 + $0x50] sm:$0xff]
    %v212 = vld [vmem:[#allocation7 + $0x58] sm:$0xff]
    %v213 = vld [vmem:[#allocation7 + $0x60] sm:$0xff]
    %v214 = vld [vmem:[#allocation7 + $0x68] sm:$0xff]
    %v215 = vld [vmem:[#allocation7 + $0x70] sm:$0xff]
    %v216 = vld [vmem:[#allocation7 + $0x78] sm:$0xff]
    %v217 = vld [vmem:[#allocation7 + $0x80] sm:$0xff]
    %v218 = vld [vmem:[#allocation7 + $0x88] sm:$0xff]
    %v219 = vld [vmem:[#allocation7 + $0x90] sm:$0xff]
    %v220 = vld [vmem:[#allocation7 + $0x98] sm:$0xff]
    %v221 = vld [vmem:[#allocation7 + $0xa0] sm:$0xff]
    %v222 = vld [vmem:[#allocation7 + $0xa8] sm:$0xff]
    %v223 = vld [vmem:[#allocation7 + $0xb0] sm:$0xff]
    %v224 = vld [vmem:[#allocation7 + $0xb8] sm:$0xff]
    %v225 = vld [vmem:[#allocation7 + $0xc0] sm:$0xff]
    %v226 = vld [vmem:[#allocation7 + $0xc8] sm:$0xff]
    %v227 = vld [vmem:[#allocation7 + $0xd0] sm:$0xff]
    %v228 = vld [vmem:[#allocation7 + $0xd8] sm:$0xff]
    %v229 = vld [vmem:[#allocation7 + $0xe0] sm:$0xff]
    %v230 = vld [vmem:[#allocation7 + $0xe8] sm:$0xff]
    %v231 = vld [vmem:[#allocation7 + $0xf0] sm:$0xff]
    %v232 = vld [vmem:[#allocation7 + $0xf8] sm:$0xff]
    %v233 = vld [vmem:[#allocation7 + $0x100] sm:$0xff]
    %v234 = vld [vmem:[#allocation7 + $0x108] sm:$0xff]
    %v235 = vld [vmem:[#allocation7 + $0x110] sm:$0xff]
    %v236 = vld [vmem:[#allocation7 + $0x118] sm:$0xff]
    %v237 = vld [vmem:[#allocation7 + $0x120] sm:$0xff]
    %v238 = vld [vmem:[#allocation7 + $0x128] sm:$0xff]
    %v239 = vld [vmem:[#allocation7 + $0x130] sm:$0xff]
    %v240 = vld [vmem:[#allocation7 + $0x138] sm:$0xff]
    %v241 = vld [vmem:[#allocation7 + $0x140] sm:$0xff]
    %v242 = vld [vmem:[#allocation7 + $0x148] sm:$0xff]
    %v243 = vld [vmem:[#allocation7 + $0x150] sm:$0xff]
    %v244 = vld [vmem:[#allocation7 + $0x158] sm:$0xff]
    %v245 = vld [vmem:[#allocation7 + $0x160] sm:$0xff]
    %v246 = vld [vmem:[#allocation7 + $0x168] sm:$0xff]
    %v247 = vld [vmem:[#allocation7 + $0x170] sm:$0xff]
    %v248 = vld [vmem:[#allocation7 + $0x178] sm:$0xff]
    %v249 = vld [vmem:[#allocation7 + $0x180] sm:$0xff]
    %v250 = vld [vmem:[#allocation7 + $0x188] sm:$0xff]
    %v251 = vld [vmem:[#allocation7 + $0x190] sm:$0xff]
    %v252 = vld [vmem:[#allocation7 + $0x198] sm:$0xff]
    %v253 = vld [vmem:[#allocation7 + $0x1a0] sm:$0xff]
    %v254 = vld [vmem:[#allocation7 + $0x1a8] sm:$0xff]
    %v255 = vld [vmem:[#allocation7 + $0x1b0] sm:$0xff]
    %v256 = vld [vmem:[#allocation7 + $0x1b8] sm:$0xff]
    %v257 = vld [vmem:[#allocation7 + $0x1c0] sm:$0xff]
    %v258 = vld [vmem:[#allocation7 + $0x1c8] sm:$0xff]
    %v259 = vld [vmem:[#allocation7 + $0x1d0] sm:$0xff]
    %v260 = vld [vmem:[#allocation7 + $0x1d8] sm:$0xff]
    %v261 = vld [vmem:[#allocation7 + $0x1e0] sm:$0xff]
    %v262 = vld [vmem:[#allocation7 + $0x1e8] sm:$0xff]
    %v263 = vld [vmem:[#allocation7 + $0x1f0] sm:$0xff]
    %v264 = vld [vmem:[#allocation7 + $0x1f8] sm:$0xff]
    %v265 = vld [vmem:[#allocation7 + $0x200] sm:$0xff]
    %v266 = vld [vmem:[#allocation7 + $0x208] sm:$0xff]
    %v267 = vld [vmem:[#allocation7 + $0x210] sm:$0xff]
    %v268 = vld [vmem:[#allocation7 + $0x218] sm:$0xff]
    %v269 = vld [vmem:[#allocation7 + $0x220] sm:$0xff]
    %v270 = vld [vmem:[#allocation7 + $0x228] sm:$0xff]
    %v271 = vld [vmem:[#allocation7 + $0x230] sm:$0xff]
    %v272 = vld [vmem:[#allocation7 + $0x238] sm:$0xff]
    %v273 = vld [vmem:[#allocation7 + $0x240] sm:$0xff]
    %v274 = vld [vmem:[#allocation7 + $0x248] sm:$0xff]
    %v275 = vld [vmem:[#allocation7 + $0x250] sm:$0xff]
    %v276 = vld [vmem:[#allocation7 + $0x258] sm:$0xff]
    %v277 = vld [vmem:[#allocation7 + $0x260] sm:$0xff]
    %v278 = vld [vmem:[#allocation7 + $0x268] sm:$0xff]
    %v279 = vld [vmem:[#allocation7 + $0x270] sm:$0xff]
    %v280 = vld [vmem:[#allocation7 + $0x278] sm:$0xff]
    %v281 = vld [vmem:[#allocation7 + $0x280] sm:$0xff]
    %v282 = vld [vmem:[#allocation7 + $0x288] sm:$0xff]
    %v283 = vld [vmem:[#allocation7 + $0x290] sm:$0xff]
    %v284 = vld [vmem:[#allocation7 + $0x298] sm:$0xff]
    %v285 = vld [vmem:[#allocation7 + $0x2a0] sm:$0xff]
    %v286 = vld [vmem:[#allocation7 + $0x2a8] sm:$0xff]
    %v287 = vld [vmem:[#allocation7 + $0x2b0] sm:$0xff]
    %v288 = vld [vmem:[#allocation7 + $0x2b8] sm:$0xff]
    %v289 = vld [vmem:[#allocation7 + $0x2c0] sm:$0xff]
    %v290 = vld [vmem:[#allocation7 + $0x2c8] sm:$0xff]
    %v291 = vld [vmem:[#allocation7 + $0x2d0] sm:$0xff]
    %v292 = vld [vmem:[#allocation7 + $0x2d8] sm:$0xff]
    %v293 = vld [vmem:[#allocation7 + $0x2e0] sm:$0xff]
    %v294 = vld [vmem:[#allocation7 + $0x2e8] sm:$0xff]
    %v295 = vld [vmem:[#allocation7 + $0x2f0] sm:$0xff]
    %v296 = vld [vmem:[#allocation7 + $0x2f8] sm:$0xff]
    %v297 = vld [vmem:[#allocation7 + $0x300] sm:$0xff]
    %v298 = vld [vmem:[#allocation7 + $0x308] sm:$0xff]
    %v299 = vld [vmem:[#allocation7 + $0x310] sm:$0xff]
    %v300 = vld [vmem:[#allocation7 + $0x318] sm:$0xff]
    %v301 = vld [vmem:[#allocation7 + $0x320] sm:$0xff]
    %v302 = vld [vmem:[#allocation7 + $0x328] sm:$0xff]
    %v303 = vld [vmem:[#allocation7 + $0x330] sm:$0xff]
    %v304 = vld [vmem:[#allocation7 + $0x338] sm:$0xff]
    %v305 = vld [vmem:[#allocation7 + $0x340] sm:$0xff]
    %v306 = vld [vmem:[#allocation7 + $0x348] sm:$0xff]
    %v307 = vld [vmem:[#allocation7 + $0x350] sm:$0xff]
    %v308 = vld [vmem:[#allocation7 + $0x358] sm:$0xff]
    %v309 = vld [vmem:[#allocation7 + $0x360] sm:$0xff]
    %v310 = vld [vmem:[#allocation7 + $0x368] sm:$0xff]
    %v311 = vld [vmem:[#allocation7 + $0x370] sm:$0xff]
    %v312 = vld [vmem:[#allocation7 + $0x378] sm:$0xff]
    %v313 = vld [vmem:[#allocation7 + $0x380] sm:$0xff]
    %v314 = vld [vmem:[#allocation7 + $0x388] sm:$0xff]
    %v315 = vld [vmem:[#allocation7 + $0x390] sm:$0xff]
    %v316 = vld [vmem:[#allocation7 + $0x398] sm:$0xff]
    %v317 = vld [vmem:[#allocation7 + $0x3a0] sm:$0xff]
    %v318 = vld [vmem:[#allocation7 + $0x3a8] sm:$0xff]
    %v319 = vld [vmem:[#allocation7 + $0x3b0] sm:$0xff]
    %v320 = vld [vmem:[#allocation7 + $0x3b8] sm:$0xff]
    %v321 = vld [vmem:[#allocation7 + $0x3c0] sm:$0xff]
    %v322 = vld [vmem:[#allocation7 + $0x3c8] sm:$0xff]
    %v323 = vld [vmem:[#allocation7 + $0x3d0] sm:$0xff]
    %v324 = vld [vmem:[#allocation7 + $0x3d8] sm:$0xff]
    %v325 = vld [vmem:[#allocation7 + $0x3e0] sm:$0xff]
    %v326 = vld [vmem:[#allocation7 + $0x3e8] sm:$0xff]
    %v327 = vld [vmem:[#allocation7 + $0x3f0] sm:$0xff]
    %v328 = vld [vmem:[#allocation7 + $0x3f8] sm:$0xff]
    %v329 = vld [vmem:[#allocation7 + $0x400] sm:$0xff]
    %v330 = vld [vmem:[#allocation7 + $0x408] sm:$0xff]
    %v331 = vld [vmem:[#allocation7 + $0x410] sm:$0xff]
    %v332 = vld [vmem:[#allocation7 + $0x418] sm:$0xff]
    %v333 = vld [vmem:[#allocation7 + $0x420] sm:$0xff]
    %v334 = vld [vmem:[#allocation7 + $0x428] sm:$0xff]
    %v335 = vld [vmem:[#allocation7 + $0x430] sm:$0xff]
    %v336 = vld [vmem:[#allocation7 + $0x438] sm:$0xff]
    %v337 = vld [vmem:[#allocation7 + $0x440] sm:$0xff]
    %v338 = vld [vmem:[#allocation7 + $0x448] sm:$0xff]
    %v339 = vld [vmem:[#allocation7 + $0x450] sm:$0xff]
    %v340 = vld [vmem:[#allocation7 + $0x458] sm:$0xff]
    %v341 = vld [vmem:[#allocation7 + $0x460] sm:$0xff]
    %v342 = vld [vmem:[#allocation7 + $0x468] sm:$0xff]
    %v343 = vld [vmem:[#allocation7 + $0x470] sm:$0xff]
    %v344 = vld [vmem:[#allocation7 + $0x478] sm:$0xff]
    %v345 = vld [vmem:[#allocation7 + $0x480] sm:$0xff]
    %v346 = vld [vmem:[#allocation7 + $0x488] sm:$0xff]
    %v347 = vld [vmem:[#allocation7 + $0x490] sm:$0xff]
    %v348 = vld [vmem:[#allocation7 + $0x498] sm:$0xff]
    %v349 = vld [vmem:[#allocation7 + $0x4a0] sm:$0xff]
    %v350 = vld [vmem:[#allocation7 + $0x4a8] sm:$0xff]
    %v351 = vld [vmem:[#allocation7 + $0x4b0] sm:$0xff]
    %v352 = vld [vmem:[#allocation7 + $0x4b8] sm:$0xff]
    %v353 = vld [vmem:[#allocation7 + $0x4c0] sm:$0xff]
    %v354 = vld [vmem:[#allocation7 + $0x4c8] sm:$0xff]
    %v355 = vld [vmem:[#allocation7 + $0x4d0] sm:$0xff]
    %v356 = vld [vmem:[#allocation7 + $0x4d8] sm:$0xff]
    %v357 = vld [vmem:[#allocation7 + $0x4e0] sm:$0xff]
    %v358 = vld [vmem:[#allocation7 + $0x4e8] sm:$0xff]
    %v359 = vld [vmem:[#allocation7 + $0x4f0] sm:$0xff]
    %v360 = vld [vmem:[#allocation7 + $0x4f8] sm:$0xff]
    %v361 = vld [vmem:[#allocation7 + $0x500] sm:$0xff]
    %v362 = vld [vmem:[#allocation7 + $0x508] sm:$0xff]
    %v363 = vld [vmem:[#allocation7 + $0x510] sm:$0xff]
    %v364 = vld [vmem:[#allocation7 + $0x518] sm:$0xff]
    %v365 = vld [vmem:[#allocation7 + $0x520] sm:$0xff]
    %v366 = vld [vmem:[#allocation7 + $0x528] sm:$0xff]
    %v367 = vld [vmem:[#allocation7 + $0x530] sm:$0xff]
    %v368 = vld [vmem:[#allocation7 + $0x538] sm:$0xff]
    %v369 = vld [vmem:[#allocation7 + $0x540] sm:$0xff]
    %v370 = vld [vmem:[#allocation7 + $0x548] sm:$0xff]
    %v371 = vld [vmem:[#allocation7 + $0x550] sm:$0xff]
    %v372 = vld [vmem:[#allocation7 + $0x558] sm:$0xff]
    %v373 = vld [vmem:[#allocation7 + $0x560] sm:$0xff]
    %v374 = vld [vmem:[#allocation7 + $0x568] sm:$0xff]
    %v375 = vld [vmem:[#allocation7 + $0x570] sm:$0xff]
    %v376 = vld [vmem:[#allocation7 + $0x578] sm:$0xff]
    %v377 = vld [vmem:[#allocation7 + $0x580] sm:$0xff]
    %v378 = vld [vmem:[#allocation7 + $0x588] sm:$0xff]
    %v379 = vld [vmem:[#allocation7 + $0x590] sm:$0xff]
    %v380 = vld [vmem:[#allocation7 + $0x598] sm:$0xff]
    %v381 = vld [vmem:[#allocation7 + $0x5a0] sm:$0xff]
    %v382 = vld [vmem:[#allocation7 + $0x5a8] sm:$0xff]
    %v383 = vld [vmem:[#allocation7 + $0x5b0] sm:$0xff]
    %v384 = vld [vmem:[#allocation7 + $0x5b8] sm:$0xff]
    %v385 = vld [vmem:[#allocation7 + $0x5c0] sm:$0xff]
    %v386 = vld [vmem:[#allocation7 + $0x5c8] sm:$0xff]
    %v387 = vld [vmem:[#allocation7 + $0x5d0] sm:$0xff]
    %v388 = vld [vmem:[#allocation7 + $0x5d8] sm:$0xff]
    %v389 = vld [vmem:[#allocation7 + $0x5e0] sm:$0xff]
    %v390 = vld [vmem:[#allocation7 + $0x5e8] sm:$0xff]
    %v391 = vld [vmem:[#allocation7 + $0x5f0] sm:$0xff]
    %v392 = vld [vmem:[#allocation7 + $0x5f8] sm:$0xff]
    %v393 = vld [vmem:[#allocation7 + $0x600] sm:$0xff]
    %v394 = vld [vmem:[#allocation7 + $0x608] sm:$0xff]
    %v395 = vld [vmem:[#allocation7 + $0x610] sm:$0xff]
    %v396 = vld [vmem:[#allocation7 + $0x618] sm:$0xff]
    %v397 = vld [vmem:[#allocation7 + $0x620] sm:$0xff]
    %v398 = vld [vmem:[#allocation7 + $0x628] sm:$0xff]
    %v399 = vld [vmem:[#allocation7 + $0x630] sm:$0xff]
    %v400 = vld [vmem:[#allocation7 + $0x638] sm:$0xff]
    %v401 = vld [vmem:[#allocation7 + $0x640] sm:$0xff]
    %v402 = vld [vmem:[#allocation7 + $0x648] sm:$0xff]
    %v403 = vld [vmem:[#allocation7 + $0x650] sm:$0xff]
    %v404 = vld [vmem:[#allocation7 + $0x658] sm:$0xff]
    %v405 = vld [vmem:[#allocation7 + $0x660] sm:$0xff]
    %v406 = vld [vmem:[#allocation7 + $0x668] sm:$0xff]
    %v407 = vld [vmem:[#allocation7 + $0x670] sm:$0xff]
    %v408 = vld [vmem:[#allocation7 + $0x678] sm:$0xff]
    %v409 = vld [vmem:[#allocation7 + $0x680] sm:$0xff]
    %v410 = vld [vmem:[#allocation7 + $0x688] sm:$0xff]
    %v411 = vld [vmem:[#allocation7 + $0x690] sm:$0xff]
    %v412 = vld [vmem:[#allocation7 + $0x698] sm:$0xff]
    %v413 = vld [vmem:[#allocation7 + $0x6a0] sm:$0xff]
    %v414 = vld [vmem:[#allocation7 + $0x6a8] sm:$0xff]
    %v415 = vld [vmem:[#allocation7 + $0x6b0] sm:$0xff]
    %v416 = vld [vmem:[#allocation7 + $0x6b8] sm:$0xff]
    %v417 = vld [vmem:[#allocation7 + $0x6c0] sm:$0xff]
    %v418 = vld [vmem:[#allocation7 + $0x6c8] sm:$0xff]
    %v419 = vld [vmem:[#allocation7 + $0x6d0] sm:$0xff]
    %v420 = vld [vmem:[#allocation7 + $0x6d8] sm:$0xff]
    %v421 = vld [vmem:[#allocation7 + $0x6e0] sm:$0xff]
    %v422 = vld [vmem:[#allocation7 + $0x6e8] sm:$0xff]
    %v423 = vld [vmem:[#allocation7 + $0x6f0] sm:$0xff]
    %v424 = vld [vmem:[#allocation7 + $0x6f8] sm:$0xff]
    %v425 = vld [vmem:[#allocation7 + $0x700] sm:$0xff]
    %v426 = vld [vmem:[#allocation7 + $0x708] sm:$0xff]
    %v427 = vld [vmem:[#allocation7 + $0x710] sm:$0xff]
    %v428 = vld [vmem:[#allocation7 + $0x718] sm:$0xff]
    %v429 = vld [vmem:[#allocation7 + $0x720] sm:$0xff]
    %v430 = vld [vmem:[#allocation7 + $0x728] sm:$0xff]
    %v431 = vld [vmem:[#allocation7 + $0x730] sm:$0xff]
    %v432 = vld [vmem:[#allocation7 + $0x738] sm:$0xff]
    %v433 = vld [vmem:[#allocation7 + $0x740] sm:$0xff]
    %v434 = vld [vmem:[#allocation7 + $0x748] sm:$0xff]
    %v435 = vld [vmem:[#allocation7 + $0x750] sm:$0xff]
    %v436 = vld [vmem:[#allocation7 + $0x758] sm:$0xff]
    %v437 = vld [vmem:[#allocation7 + $0x760] sm:$0xff]
    %v438 = vld [vmem:[#allocation7 + $0x768] sm:$0xff]
    %v439 = vld [vmem:[#allocation7 + $0x770] sm:$0xff]
    %v440 = vld [vmem:[#allocation7 + $0x778] sm:$0xff]
    %v441 = vld [vmem:[#allocation7 + $0x780] sm:$0xff]
    %v442 = vld [vmem:[#allocation7 + $0x788] sm:$0xff]
    %v443 = vld [vmem:[#allocation7 + $0x790] sm:$0xff]
    %v444 = vld [vmem:[#allocation7 + $0x798] sm:$0xff]
    %v445 = vld [vmem:[#allocation7 + $0x7a0] sm:$0xff]
    %v446 = vld [vmem:[#allocation7 + $0x7a8] sm:$0xff]
    %v447 = vld [vmem:[#allocation7 + $0x7b0] sm:$0xff]
    %v448 = vld [vmem:[#allocation7 + $0x7b8] sm:$0xff]
    %v449 = vld [vmem:[#allocation7 + $0x7c0] sm:$0xff]
    %v450 = vld [vmem:[#allocation7 + $0x7c8] sm:$0xff]
    %v451 = vld [vmem:[#allocation7 + $0x7d0] sm:$0xff]
    %v452 = vld [vmem:[#allocation7 + $0x7d8] sm:$0xff]
    %v453 = vld [vmem:[#allocation7 + $0x7e0] sm:$0xff]
    %v454 = vld [vmem:[#allocation7 + $0x7e8] sm:$0xff]
    %v455 = vld [vmem:[#allocation7 + $0x7f0] sm:$0xff]
    %v456 = vld [vmem:[#allocation7 + $0x7f8] sm:$0xff]
    %v457 = vld [vmem:[#allocation7 + $0x800] sm:$0xff]
    %v458 = vld [vmem:[#allocation7 + $0x808] sm:$0xff]
    %v459 = vld [vmem:[#allocation7 + $0x810] sm:$0xff]
    %v460 = vld [vmem:[#allocation7 + $0x818] sm:$0xff]
    %v461 = vld [vmem:[#allocation7 + $0x820] sm:$0xff]
    %v462 = vld [vmem:[#allocation7 + $0x828] sm:$0xff]
    %v463 = vld [vmem:[#allocation7 + $0x830] sm:$0xff]
    %v464 = vld [vmem:[#allocation7 + $0x838] sm:$0xff]
    %v465 = vld [vmem:[#allocation7 + $0x840] sm:$0xff]
    %v466 = vld [vmem:[#allocation7 + $0x848] sm:$0xff]
    %v467 = vld [vmem:[#allocation7 + $0x850] sm:$0xff]
    %v468 = vld [vmem:[#allocation7 + $0x858] sm:$0xff]
    %v469 = vld [vmem:[#allocation7 + $0x860] sm:$0xff]
    %v470 = vld [vmem:[#allocation7 + $0x868] sm:$0xff]
    %v471 = vld [vmem:[#allocation7 + $0x870] sm:$0xff]
    %v472 = vld [vmem:[#allocation7 + $0x878] sm:$0xff]
    %v473 = vld [vmem:[#allocation7 + $0x880] sm:$0xff]
    %v474 = vld [vmem:[#allocation7 + $0x888] sm:$0xff]
    %v475 = vld [vmem:[#allocation7 + $0x890] sm:$0xff]
    %v476 = vld [vmem:[#allocation7 + $0x898] sm:$0xff]
    %v477 = vld [vmem:[#allocation7 + $0x8a0] sm:$0xff]
    %v478 = vld [vmem:[#allocation7 + $0x8a8] sm:$0xff]
    %v479 = vld [vmem:[#allocation7 + $0x8b0] sm:$0xff]
    %v480 = vld [vmem:[#allocation7 + $0x8b8] sm:$0xff]
    %v481 = vld [vmem:[#allocation7 + $0x8c0] sm:$0xff]
    %v482 = vld [vmem:[#allocation7 + $0x8c8] sm:$0xff]
    %v483 = vld [vmem:[#allocation7 + $0x8d0] sm:$0xff]
    %v484 = vld [vmem:[#allocation7 + $0x8d8] sm:$0xff]
    %v485 = vld [vmem:[#allocation7 + $0x8e0] sm:$0xff]
    %v486 = vld [vmem:[#allocation7 + $0x8e8] sm:$0xff]
    %v487 = vld [vmem:[#allocation7 + $0x8f0] sm:$0xff]
    %v488 = vld [vmem:[#allocation7 + $0x8f8] sm:$0xff]
    %v489 = vld [vmem:[#allocation7 + $0x900] sm:$0xff]
    %v490 = vld [vmem:[#allocation7 + $0x908] sm:$0xff]
    %v491 = vld [vmem:[#allocation7 + $0x910] sm:$0xff]
    %v492 = vld [vmem:[#allocation7 + $0x918] sm:$0xff]
    %v493 = vld [vmem:[#allocation7 + $0x920] sm:$0xff]
    %v494 = vld [vmem:[#allocation7 + $0x928] sm:$0xff]
    %v495 = vld [vmem:[#allocation7 + $0x930] sm:$0xff]
    %v496 = vld [vmem:[#allocation7 + $0x938] sm:$0xff]
    %v497 = vld [vmem:[#allocation7 + $0x940] sm:$0xff]
    %v498 = vld [vmem:[#allocation7 + $0x948] sm:$0xff]
    %v499 = vld [vmem:[#allocation7 + $0x950] sm:$0xff]
    %v500 = vld [vmem:[#allocation7 + $0x958] sm:$0xff]
    %v501 = vld [vmem:[#allocation7 + $0x960] sm:$0xff]
    %v502 = vld [vmem:[#allocation7 + $0x968] sm:$0xff]
    %v503 = vld [vmem:[#allocation7 + $0x970] sm:$0xff]
    %v504 = vld [vmem:[#allocation7 + $0x978] sm:$0xff]
    %v505 = vld [vmem:[#allocation7 + $0x980] sm:$0xff]
    %v506 = vld [vmem:[#allocation7 + $0x988] sm:$0xff]
    %v507 = vld [vmem:[#allocation7 + $0x990] sm:$0xff]
    %v508 = vld [vmem:[#allocation7 + $0x998] sm:$0xff]
    %v509 = vld [vmem:[#allocation7 + $0x9a0] sm:$0xff]
    %v510 = vld [vmem:[#allocation7 + $0x9a8] sm:$0xff]
    %v511 = vld [vmem:[#allocation7 + $0x9b0] sm:$0xff]
    %v512 = vld [vmem:[#allocation7 + $0x9b8] sm:$0xff]
    %v513 = vld [vmem:[#allocation7 + $0x9c0] sm:$0xff]
    %v514 = vld [vmem:[#allocation7 + $0x9c8] sm:$0xff]
    %v515 = vld [vmem:[#allocation7 + $0x9d0] sm:$0xff]
    %v516 = vld [vmem:[#allocation7 + $0x9d8] sm:$0xff]
    %v517 = vld [vmem:[#allocation7 + $0x9e0] sm:$0xff]
    %v518 = vld [vmem:[#allocation7 + $0x9e8] sm:$0xff]
    %v519 = vld [vmem:[#allocation7 + $0x9f0] sm:$0xff]
    %v520 = vld [vmem:[#allocation7 + $0x9f8] sm:$0xff]
    %v521 = vld [vmem:[#allocation7 + $0xa00] sm:$0xff]
    %v522 = vld [vmem:[#allocation7 + $0xa08] sm:$0xff]
    %v523 = vld [vmem:[#allocation7 + $0xa10] sm:$0xff]
    %v524 = vld [vmem:[#allocation7 + $0xa18] sm:$0xff]
    %v525 = vld [vmem:[#allocation7 + $0xa20] sm:$0xff]
    %v526 = vld [vmem:[#allocation7 + $0xa28] sm:$0xff]
    %v527 = vld [vmem:[#allocation7 + $0xa30] sm:$0xff]
    %v528 = vld [vmem:[#allocation7 + $0xa38] sm:$0xff]
    %v529 = vld [vmem:[#allocation7 + $0xa40] sm:$0xff]
    %v530 = vld [vmem:[#allocation7 + $0xa48] sm:$0xff]
    %v531 = vld [vmem:[#allocation7 + $0xa50] sm:$0xff]
    %v532 = vld [vmem:[#allocation7 + $0xa58] sm:$0xff]
    %v533 = vld [vmem:[#allocation7 + $0xa60] sm:$0xff]
    %v534 = vld [vmem:[#allocation7 + $0xa68] sm:$0xff]
    %v535 = vld [vmem:[#allocation7 + $0xa70] sm:$0xff]
    %v536 = vld [vmem:[#allocation7 + $0xa78] sm:$0xff]
    %v537 = vld [vmem:[#allocation7 + $0xa80] sm:$0xff]
    %v538 = vld [vmem:[#allocation7 + $0xa88] sm:$0xff]
    %v539 = vld [vmem:[#allocation7 + $0xa90] sm:$0xff]
    %v540 = vld [vmem:[#allocation7 + $0xa98] sm:$0xff]
    %v541 = vld [vmem:[#allocation7 + $0xaa0] sm:$0xff]
    %v542 = vld [vmem:[#allocation7 + $0xaa8] sm:$0xff]
    %v543 = vld [vmem:[#allocation7 + $0xab0] sm:$0xff]
    %v544 = vld [vmem:[#allocation7 + $0xab8] sm:$0xff]
    %v545 = vld [vmem:[#allocation7 + $0xac0] sm:$0xff]
    %v546 = vld [vmem:[#allocation7 + $0xac8] sm:$0xff]
    %v547 = vld [vmem:[#allocation7 + $0xad0] sm:$0xff]
    %v548 = vld [vmem:[#allocation7 + $0xad8] sm:$0xff]
    %v549 = vld [vmem:[#allocation7 + $0xae0] sm:$0xff]
    %v550 = vld [vmem:[#allocation7 + $0xae8] sm:$0xff]
    %v551 = vld [vmem:[#allocation7 + $0xaf0] sm:$0xff]
    %v552 = vld [vmem:[#allocation7 + $0xaf8] sm:$0xff]
    %v553 = vld [vmem:[#allocation7 + $0xb00] sm:$0xff]
    %v554 = vld [vmem:[#allocation7 + $0xb08] sm:$0xff]
    %v555 = vld [vmem:[#allocation7 + $0xb10] sm:$0xff]
    %v556 = vld [vmem:[#allocation7 + $0xb18] sm:$0xff]
    %v557 = vld [vmem:[#allocation7 + $0xb20] sm:$0xff]
    %v558 = vld [vmem:[#allocation7 + $0xb28] sm:$0xff]
    %v559 = vld [vmem:[#allocation7 + $0xb30] sm:$0xff]
    %v560 = vld [vmem:[#allocation7 + $0xb38] sm:$0xff]
    %v561 = vld [vmem:[#allocation7 + $0xb40] sm:$0xff]
    %v562 = vld [vmem:[#allocation7 + $0xb48] sm:$0xff]
    %v563 = vld [vmem:[#allocation7 + $0xb50] sm:$0xff]
    %v564 = vld [vmem:[#allocation7 + $0xb58] sm:$0xff]
    %v565 = vld [vmem:[#allocation7 + $0xb60] sm:$0xff]
    %v566 = vld [vmem:[#allocation7 + $0xb68] sm:$0xff]
    %v567 = vld [vmem:[#allocation7 + $0xb70] sm:$0xff]
    %v568 = vld [vmem:[#allocation7 + $0xb78] sm:$0xff]
    %v569 = vld [vmem:[#allocation7 + $0xb80] sm:$0xff]
    %v570 = vld [vmem:[#allocation7 + $0xb88] sm:$0xff]
    %v571 = vld [vmem:[#allocation7 + $0xb90] sm:$0xff]
    %v572 = vld [vmem:[#allocation7 + $0xb98] sm:$0xff]
    %v573 = vld [vmem:[#allocation7 + $0xba0] sm:$0xff]
    %v574 = vld [vmem:[#allocation7 + $0xba8] sm:$0xff]
    %v575 = vld [vmem:[#allocation7 + $0xbb0] sm:$0xff]
    %v576 = vld [vmem:[#allocation7 + $0xbb8] sm:$0xff]
    %v577 = vld [vmem:[#allocation7 + $0xbc0] sm:$0xff]
    %v578 = vld [vmem:[#allocation7 + $0xbc8] sm:$0xff]
    %v579 = vld [vmem:[#allocation7 + $0xbd0] sm:$0xff]
    %v580 = vld [vmem:[#allocation7 + $0xbd8] sm:$0xff]
    %v581 = vld [vmem:[#allocation7 + $0xbe0] sm:$0xff]
    %v582 = vld [vmem:[#allocation7 + $0xbe8] sm:$0xff]
    %v583 = vld [vmem:[#allocation7 + $0xbf0] sm:$0xff]
    %v584 = vld [vmem:[#allocation7 + $0xbf8] sm:$0xff]
    %v585 = vld [vmem:[#allocation7 + $0xc00] sm:$0xff]
    %v586 = vld [vmem:[#allocation7 + $0xc08] sm:$0xff]
    %v587 = vld [vmem:[#allocation7 + $0xc10] sm:$0xff]
    %v588 = vld [vmem:[#allocation7 + $0xc18] sm:$0xff]
    %v589 = vld [vmem:[#allocation7 + $0xc20] sm:$0xff]
    %v590 = vld [vmem:[#allocation7 + $0xc28] sm:$0xff]
    %v591 = vld [vmem:[#allocation7 + $0xc30] sm:$0xff]
    %v592 = vld [vmem:[#allocation7 + $0xc38] sm:$0xff]
    %v593 = vld [vmem:[#allocation7 + $0xc40] sm:$0xff]
    %v594 = vld [vmem:[#allocation7 + $0xc48] sm:$0xff]
    %v595 = vld [vmem:[#allocation7 + $0xc50] sm:$0xff]
    %v596 = vld [vmem:[#allocation7 + $0xc58] sm:$0xff]
    %v597 = vld [vmem:[#allocation7 + $0xc60] sm:$0xff]
    %v598 = vld [vmem:[#allocation7 + $0xc68] sm:$0xff]
    %v599 = vld [vmem:[#allocation7 + $0xc70] sm:$0xff]
    %v600 = vld [vmem:[#allocation7 + $0xc78] sm:$0xff]
    %v601 = vld [vmem:[#allocation7 + $0xc80] sm:$0xff]
    %v602 = vld [vmem:[#allocation7 + $0xc88] sm:$0xff]
    %v603 = vld [vmem:[#allocation7 + $0xc90] sm:$0xff]
    %v604 = vld [vmem:[#allocation7 + $0xc98] sm:$0xff]
    %v605 = vld [vmem:[#allocation7 + $0xca0] sm:$0xff]
    %v606 = vld [vmem:[#allocation7 + $0xca8] sm:$0xff]
    %v607 = vld [vmem:[#allocation7 + $0xcb0] sm:$0xff]
    %v608 = vld [vmem:[#allocation7 + $0xcb8] sm:$0xff]
    %v609 = vld [vmem:[#allocation7 + $0xcc0] sm:$0xff]
    %v610 = vld [vmem:[#allocation7 + $0xcc8] sm:$0xff]
    %v611 = vld [vmem:[#allocation7 + $0xcd0] sm:$0xff]
    %v612 = vld [vmem:[#allocation7 + $0xcd8] sm:$0xff]
    %v613 = vld [vmem:[#allocation7 + $0xce0] sm:$0xff]
    %v614 = vld [vmem:[#allocation7 + $0xce8] sm:$0xff]
    %v615 = vld [vmem:[#allocation7 + $0xcf0] sm:$0xff]
    %v616 = vld [vmem:[#allocation7 + $0xcf8] sm:$0xff]
    %v617 = vld [vmem:[#allocation7 + $0xd00] sm:$0xff]
    %v618 = vld [vmem:[#allocation7 + $0xd08] sm:$0xff]
    %v619 = vld [vmem:[#allocation7 + $0xd10] sm:$0xff]
    %v620 = vld [vmem:[#allocation7 + $0xd18] sm:$0xff]
    %v621 = vld [vmem:[#allocation7 + $0xd20] sm:$0xff]
    %v622 = vld [vmem:[#allocation7 + $0xd28] sm:$0xff]
    %v623 = vld [vmem:[#allocation7 + $0xd30] sm:$0xff]
    %v624 = vld [vmem:[#allocation7 + $0xd38] sm:$0xff]
    %v625 = vld [vmem:[#allocation7 + $0xd40] sm:$0xff]
    %v626 = vld [vmem:[#allocation7 + $0xd48] sm:$0xff]
    %v627 = vld [vmem:[#allocation7 + $0xd50] sm:$0xff]
    %v628 = vld [vmem:[#allocation7 + $0xd58] sm:$0xff]
    %v629 = vld [vmem:[#allocation7 + $0xd60] sm:$0xff]
    %v630 = vld [vmem:[#allocation7 + $0xd68] sm:$0xff]
    %v631 = vld [vmem:[#allocation7 + $0xd70] sm:$0xff]
    %v632 = vld [vmem:[#allocation7 + $0xd78] sm:$0xff]
    %v633 = vld [vmem:[#allocation7 + $0xd80] sm:$0xff]
    %v634 = vld [vmem:[#allocation7 + $0xd88] sm:$0xff]
    %v635 = vld [vmem:[#allocation7 + $0xd90] sm:$0xff]
    %v636 = vld [vmem:[#allocation7 + $0xd98] sm:$0xff]
    %v637 = vld [vmem:[#allocation7 + $0xda0] sm:$0xff]
    %v638 = vld [vmem:[#allocation7 + $0xda8] sm:$0xff]
    %v639 = vld [vmem:[#allocation7 + $0xdb0] sm:$0xff]
    %v640 = vld [vmem:[#allocation7 + $0xdb8] sm:$0xff]
    %v641 = vld [vmem:[#allocation7 + $0xdc0] sm:$0xff]
    %v642 = vld [vmem:[#allocation7 + $0xdc8] sm:$0xff]
    %v643 = vld [vmem:[#allocation7 + $0xdd0] sm:$0xff]
    %v644 = vld [vmem:[#allocation7 + $0xdd8] sm:$0xff]
    %v645 = vld [vmem:[#allocation7 + $0xde0] sm:$0xff]
    %v646 = vld [vmem:[#allocation7 + $0xde8] sm:$0xff]
    %v647 = vld [vmem:[#allocation7 + $0xdf0] sm:$0xff]
    %v648 = vld [vmem:[#allocation7 + $0xdf8] sm:$0xff]
    %v649 = vld [vmem:[#allocation7 + $0xe00] sm:$0xff]
    %v650 = vld [vmem:[#allocation7 + $0xe08] sm:$0xff]
    %v651 = vld [vmem:[#allocation7 + $0xe10] sm:$0xff]
    %v652 = vld [vmem:[#allocation7 + $0xe18] sm:$0xff]
    %v653 = vld [vmem:[#allocation7 + $0xe20] sm:$0xff]
    %v654 = vld [vmem:[#allocation7 + $0xe28] sm:$0xff]
    %v655 = vld [vmem:[#allocation7 + $0xe30] sm:$0xff]
    %v656 = vld [vmem:[#allocation7 + $0xe38] sm:$0xff]
    %v657 = vld [vmem:[#allocation7 + $0xe40] sm:$0xff]
    %v658 = vld [vmem:[#allocation7 + $0xe48] sm:$0xff]
    %v659 = vld [vmem:[#allocation7 + $0xe50] sm:$0xff]
    %v660 = vld [vmem:[#allocation7 + $0xe58] sm:$0xff]
    %v661 = vld [vmem:[#allocation7 + $0xe60] sm:$0xff]
    %v662 = vld [vmem:[#allocation7 + $0xe68] sm:$0xff]
    %v663 = vld [vmem:[#allocation7 + $0xe70] sm:$0xff]
    %v664 = vld [vmem:[#allocation7 + $0xe78] sm:$0xff]
    %v665 = vld [vmem:[#allocation7 + $0xe80] sm:$0xff]
    %v666 = vld [vmem:[#allocation7 + $0xe88] sm:$0xff]
    %v667 = vld [vmem:[#allocation7 + $0xe90] sm:$0xff]
    %v668 = vld [vmem:[#allocation7 + $0xe98] sm:$0xff]
    %v669 = vld [vmem:[#allocation7 + $0xea0] sm:$0xff]
    %v670 = vld [vmem:[#allocation7 + $0xea8] sm:$0xff]
    %v671 = vld [vmem:[#allocation7 + $0xeb0] sm:$0xff]
    %v672 = vld [vmem:[#allocation7 + $0xeb8] sm:$0xff]
    %v673 = vld [vmem:[#allocation7 + $0xec0] sm:$0xff]
    %v674 = vld [vmem:[#allocation7 + $0xec8] sm:$0xff]
    %v675 = vld [vmem:[#allocation7 + $0xed0] sm:$0xff]
    %v676 = vld [vmem:[#allocation7 + $0xed8] sm:$0xff]
    %v677 = vld [vmem:[#allocation7 + $0xee0] sm:$0xff]
    %v678 = vld [vmem:[#allocation7 + $0xee8] sm:$0xff]
    %v679 = vld [vmem:[#allocation7 + $0xef0] sm:$0xff]
    %v680 = vld [vmem:[#allocation7 + $0xef8] sm:$0xff]
    %v681 = vld [vmem:[#allocation7 + $0xf00] sm:$0xff]
    %v682 = vld [vmem:[#allocation7 + $0xf08] sm:$0xff]
    %v683 = vld [vmem:[#allocation7 + $0xf10] sm:$0xff]
    %v684 = vld [vmem:[#allocation7 + $0xf18] sm:$0xff]
    %v685 = vld [vmem:[#allocation7 + $0xf20] sm:$0xff]
    %v686 = vld [vmem:[#allocation7 + $0xf28] sm:$0xff]
    %v687 = vld [vmem:[#allocation7 + $0xf30] sm:$0xff]
    %v688 = vld [vmem:[#allocation7 + $0xf38] sm:$0xff]
    %v689 = vld [vmem:[#allocation7 + $0xf40] sm:$0xff]
    %v690 = vld [vmem:[#allocation7 + $0xf48] sm:$0xff]
    %v691 = vld [vmem:[#allocation7 + $0xf50] sm:$0xff]
    %v692 = vld [vmem:[#allocation7 + $0xf58] sm:$0xff]
    %v693 = vld [vmem:[#allocation7 + $0xf60] sm:$0xff]
    %v694 = vld [vmem:[#allocation7 + $0xf68] sm:$0xff]
    %v695 = vld [vmem:[#allocation7 + $0xf70] sm:$0xff]
    %v696 = vld [vmem:[#allocation7 + $0xf78] sm:$0xff]
    %v697 = vld [vmem:[#allocation7 + $0xf80] sm:$0xff]
    %v698 = vld [vmem:[#allocation7 + $0xf88] sm:$0xff]
    %v699 = vld [vmem:[#allocation7 + $0xf90] sm:$0xff]
    %v700 = vld [vmem:[#allocation7 + $0xf98] sm:$0xff]
    %v701 = vld [vmem:[#allocation7 + $0xfa0] sm:$0xff]
    %v702 = vld [vmem:[#allocation7 + $0xfa8] sm:$0xff]
    %v703 = vld [vmem:[#allocation7 + $0xfb0] sm:$0xff]
    %v704 = vld [vmem:[#allocation7 + $0xfb8] sm:$0xff]
    %v705 = vld [vmem:[#allocation7 + $0xfc0] sm:$0xff]
    %v706 = vld [vmem:[#allocation7 + $0xfc8] sm:$0xff]
    %v707 = vld [vmem:[#allocation7 + $0xfd0] sm:$0xff]
    %v708 = vld [vmem:[#allocation7 + $0xfd8] sm:$0xff]
    %v709 = vld [vmem:[#allocation7 + $0xfe0] sm:$0xff]
    %v710 = vld [vmem:[#allocation7 + $0xfe8] sm:$0xff]
    %v711 = vld [vmem:[#allocation7 + $0xff0] sm:$0xff]
    %v712 = vld [vmem:[#allocation7 + $0xff8] sm:$0xff]
    %v713 = vld [vmem:[#allocation7 + $0x1000] sm:$0xff]
    %v714 = vld [vmem:[#allocation7 + $0x1008] sm:$0xff]
    %v715 = vld [vmem:[#allocation7 + $0x1010] sm:$0xff]
    %v716 = vld [vmem:[#allocation7 + $0x1018] sm:$0xff]
    %v717 = vld [vmem:[#allocation7 + $0x1020] sm:$0xff]
    %v718 = vld [vmem:[#allocation7 + $0x1028] sm:$0xff]
    %v719 = vld [vmem:[#allocation7 + $0x1030] sm:$0xff]
    %v720 = vld [vmem:[#allocation7 + $0x1038] sm:$0xff]
    %v721 = vld [vmem:[#allocation7 + $0x1040] sm:$0xff]
    %v722 = vld [vmem:[#allocation7 + $0x1048] sm:$0xff]
    %v723 = vld [vmem:[#allocation7 + $0x1050] sm:$0xff]
    %v724 = vld [vmem:[#allocation7 + $0x1058] sm:$0xff]
    %v725 = vld [vmem:[#allocation7 + $0x1060] sm:$0xff]
    %v726 = vld [vmem:[#allocation7 + $0x1068] sm:$0xff]
    %v727 = vld [vmem:[#allocation7 + $0x1070] sm:$0xff]
    %v728 = vld [vmem:[#allocation7 + $0x1078] sm:$0xff]
    %v729 = vld [vmem:[#allocation7 + $0x1080] sm:$0xff]
    %v730 = vld [vmem:[#allocation7 + $0x1088] sm:$0xff]
    %v731 = vld [vmem:[#allocation7 + $0x1090] sm:$0xff]
    %v732 = vld [vmem:[#allocation7 + $0x1098] sm:$0xff]
    %v733 = vld [vmem:[#allocation7 + $0x10a0] sm:$0xff]
    %v734 = vld [vmem:[#allocation7 + $0x10a8] sm:$0xff]
    %v735 = vld [vmem:[#allocation7 + $0x10b0] sm:$0xff]
    %v736 = vld [vmem:[#allocation7 + $0x10b8] sm:$0xff]
    %v737 = vld [vmem:[#allocation7 + $0x10c0] sm:$0xff]
    %v738 = vld [vmem:[#allocation7 + $0x10c8] sm:$0xff]
    %v739 = vld [vmem:[#allocation7 + $0x10d0] sm:$0xff]
    %v740 = vld [vmem:[#allocation7 + $0x10d8] sm:$0xff]
    %v741 = vld [vmem:[#allocation7 + $0x10e0] sm:$0xff]
    %v742 = vld [vmem:[#allocation7 + $0x10e8] sm:$0xff]
    %v743 = vld [vmem:[#allocation7 + $0x10f0] sm:$0xff]
    %v744 = vld [vmem:[#allocation7 + $0x10f8] sm:$0xff]
    %v745 = vld [vmem:[#allocation7 + $0x1100] sm:$0xff]
    %v746 = vld [vmem:[#allocation7 + $0x1108] sm:$0xff]
    %v747 = vld [vmem:[#allocation7 + $0x1110] sm:$0xff]
    %v748 = vld [vmem:[#allocation7 + $0x1118] sm:$0xff]
    %v749 = vld [vmem:[#allocation7 + $0x1120] sm:$0xff]
    %v750 = vld [vmem:[#allocation7 + $0x1128] sm:$0xff]
    %v751 = vld [vmem:[#allocation7 + $0x1130] sm:$0xff]
    %v752 = vld [vmem:[#allocation7 + $0x1138] sm:$0xff]
    %v753 = vld [vmem:[#allocation7 + $0x1140] sm:$0xff]
    %v754 = vld [vmem:[#allocation7 + $0x1148] sm:$0xff]
    %v755 = vld [vmem:[#allocation7 + $0x1150] sm:$0xff]
    %v756 = vld [vmem:[#allocation7 + $0x1158] sm:$0xff]
    %v757 = vld [vmem:[#allocation7 + $0x1160] sm:$0xff]
    %v758 = vld [vmem:[#allocation7 + $0x1168] sm:$0xff]
    %v759 = vld [vmem:[#allocation7 + $0x1170] sm:$0xff]
    %v760 = vld [vmem:[#allocation7 + $0x1178] sm:$0xff]
    %v761 = vld [vmem:[#allocation7 + $0x1180] sm:$0xff]
    %v762 = vld [vmem:[#allocation7 + $0x1188] sm:$0xff]
    %v763 = vld [vmem:[#allocation7 + $0x1190] sm:$0xff]
    %v764 = vld [vmem:[#allocation7 + $0x1198] sm:$0xff]
    %v765 = vld [vmem:[#allocation7 + $0x11a0] sm:$0xff]
    %v766 = vld [vmem:[#allocation7 + $0x11a8] sm:$0xff]
    %v767 = vld [vmem:[#allocation7 + $0x11b0] sm:$0xff]
    %v768 = vld [vmem:[#allocation7 + $0x11b8] sm:$0xff]
    %v769 = vld [vmem:[#allocation7 + $0x11c0] sm:$0xff]
    %v770 = vld [vmem:[#allocation7 + $0x11c8] sm:$0xff]
    %v771 = vld [vmem:[#allocation7 + $0x11d0] sm:$0xff]
    %v772 = vld [vmem:[#allocation7 + $0x11d8] sm:$0xff]
    %v773 = vld [vmem:[#allocation7 + $0x11e0] sm:$0xff]
    %v774 = vld [vmem:[#allocation7 + $0x11e8] sm:$0xff]
    %v775 = vld [vmem:[#allocation7 + $0x11f0] sm:$0xff]
    %v776 = vld [vmem:[#allocation7 + $0x11f8] sm:$0xff]
    %v777 = vld [vmem:[#allocation7 + $0x1200] sm:$0xff]
    %v778 = vld [vmem:[#allocation7 + $0x1208] sm:$0xff]
    %v779 = vld [vmem:[#allocation7 + $0x1210] sm:$0xff]
    %v780 = vld [vmem:[#allocation7 + $0x1218] sm:$0xff]
    %v781 = vld [vmem:[#allocation7 + $0x1220] sm:$0xff]
    %v782 = vld [vmem:[#allocation7 + $0x1228] sm:$0xff]
    %v783 = vld [vmem:[#allocation7 + $0x1230] sm:$0xff]
    %v784 = vld [vmem:[#allocation7 + $0x1238] sm:$0xff]
    %v785 = vld [vmem:[#allocation7 + $0x1240] sm:$0xff]
    %v786 = vld [vmem:[#allocation7 + $0x1248] sm:$0xff]
    %v787 = vld [vmem:[#allocation7 + $0x1250] sm:$0xff]
    %v788 = vld [vmem:[#allocation7 + $0x1258] sm:$0xff]
    %v789 = vld [vmem:[#allocation7 + $0x1260] sm:$0xff]
    %v790 = vld [vmem:[#allocation7 + $0x1268] sm:$0xff]
    %v791 = vld [vmem:[#allocation7 + $0x1270] sm:$0xff]
    %v792 = vld [vmem:[#allocation7 + $0x1278] sm:$0xff]
    %v793 = vld [vmem:[#allocation7 + $0x1280] sm:$0xff]
    %v794 = vld [vmem:[#allocation7 + $0x1288] sm:$0xff]
    %v795 = vld [vmem:[#allocation7 + $0x1290] sm:$0xff]
    %v796 = vld [vmem:[#allocation7 + $0x1298] sm:$0xff]
    %v797 = vld [vmem:[#allocation7 + $0x12a0] sm:$0xff]
    %v798 = vld [vmem:[#allocation7 + $0x12a8] sm:$0xff]
    %v799 = vld [vmem:[#allocation7 + $0x12b0] sm:$0xff]
    %v800 = vld [vmem:[#allocation7 + $0x12b8] sm:$0xff]
    %v801 = vld [vmem:[#allocation7 + $0x12c0] sm:$0xff]
    %v802 = vld [vmem:[#allocation7 + $0x12c8] sm:$0xff]
    %v803 = vld [vmem:[#allocation7 + $0x12d0] sm:$0xff]
    %v804 = vld [vmem:[#allocation7 + $0x12d8] sm:$0xff]
    %v805 = vld [vmem:[#allocation7 + $0x12e0] sm:$0xff]
    %v806 = vld [vmem:[#allocation7 + $0x12e8] sm:$0xff]
    %v807 = vld [vmem:[#allocation7 + $0x12f0] sm:$0xff]
    %v808 = vld [vmem:[#allocation7 + $0x12f8] sm:$0xff]
    %v809 = vld [vmem:[#allocation7 + $0x1300] sm:$0xff]
    %v810 = vld [vmem:[#allocation7 + $0x1308] sm:$0xff]
    %v811 = vld [vmem:[#allocation7 + $0x1310] sm:$0xff]
    %v812 = vld [vmem:[#allocation7 + $0x1318] sm:$0xff]
    %v813 = vld [vmem:[#allocation7 + $0x1320] sm:$0xff]
    %v814 = vld [vmem:[#allocation7 + $0x1328] sm:$0xff]
    %v815 = vld [vmem:[#allocation7 + $0x1330] sm:$0xff]
    %v816 = vld [vmem:[#allocation7 + $0x1338] sm:$0xff]
    %v817 = vld [vmem:[#allocation7 + $0x1340] sm:$0xff]
    %v818 = vld [vmem:[#allocation7 + $0x1348] sm:$0xff]
    %v819 = vld [vmem:[#allocation7 + $0x1350] sm:$0xff]
    %v820 = vld [vmem:[#allocation7 + $0x1358] sm:$0xff]
    %v821 = vld [vmem:[#allocation7 + $0x1360] sm:$0xff]
    %v822 = vld [vmem:[#allocation7 + $0x1368] sm:$0xff]
    %v823 = vld [vmem:[#allocation7 + $0x1370] sm:$0xff]
    %v824 = vld [vmem:[#allocation7 + $0x1378] sm:$0xff]
    %v825 = vld [vmem:[#allocation7 + $0x1380] sm:$0xff]
    %v826 = vld [vmem:[#allocation7 + $0x1388] sm:$0xff]
    %v827 = vld [vmem:[#allocation7 + $0x1390] sm:$0xff]
    %v828 = vld [vmem:[#allocation7 + $0x1398] sm:$0xff]
    %v829 = vld [vmem:[#allocation7 + $0x13a0] sm:$0xff]
    %v830 = vld [vmem:[#allocation7 + $0x13a8] sm:$0xff]
    %v831 = vld [vmem:[#allocation7 + $0x13b0] sm:$0xff]
    %v832 = vld [vmem:[#allocation7 + $0x13b8] sm:$0xff]
    %v833 = vld [vmem:[#allocation7 + $0x13c0] sm:$0xff]
    %v834 = vld [vmem:[#allocation7 + $0x13c8] sm:$0xff]
    %v835 = vld [vmem:[#allocation7 + $0x13d0] sm:$0xff]
    %v836 = vld [vmem:[#allocation7 + $0x13d8] sm:$0xff]
    %v837 = vld [vmem:[#allocation7 + $0x13e0] sm:$0xff]
    %v838 = vld [vmem:[#allocation7 + $0x13e8] sm:$0xff]
    %v839 = vld [vmem:[#allocation7 + $0x13f0] sm:$0xff]
    %v840 = vld [vmem:[#allocation7 + $0x13f8] sm:$0xff]
    %v841 = vld [vmem:[#allocation7 + $0x1400] sm:$0xff]
    %v842 = vld [vmem:[#allocation7 + $0x1408] sm:$0xff]
    %v843 = vld [vmem:[#allocation7 + $0x1410] sm:$0xff]
    %v844 = vld [vmem:[#allocation7 + $0x1418] sm:$0xff]
    %v845 = vld [vmem:[#allocation7 + $0x1420] sm:$0xff]
    %v846 = vld [vmem:[#allocation7 + $0x1428] sm:$0xff]
    %v847 = vld [vmem:[#allocation7 + $0x1430] sm:$0xff]
    %v848 = vld [vmem:[#allocation7 + $0x1438] sm:$0xff]
    %v849 = vld [vmem:[#allocation7 + $0x1440] sm:$0xff]
    %v850 = vld [vmem:[#allocation7 + $0x1448] sm:$0xff]
    %v851 = vld [vmem:[#allocation7 + $0x1450] sm:$0xff]
    %v852 = vld [vmem:[#allocation7 + $0x1458] sm:$0xff]
    %v853 = vld [vmem:[#allocation7 + $0x1460] sm:$0xff]
    %v854 = vld [vmem:[#allocation7 + $0x1468] sm:$0xff]
    %v855 = vld [vmem:[#allocation7 + $0x1470] sm:$0xff]
    %v856 = vld [vmem:[#allocation7 + $0x1478] sm:$0xff]
    %v857 = vld [vmem:[#allocation7 + $0x1480] sm:$0xff]
    %v858 = vld [vmem:[#allocation7 + $0x1488] sm:$0xff]
    %v859 = vld [vmem:[#allocation7 + $0x1490] sm:$0xff]
    %v860 = vld [vmem:[#allocation7 + $0x1498] sm:$0xff]
    %v861 = vld [vmem:[#allocation7 + $0x14a0] sm:$0xff]
    %v862 = vld [vmem:[#allocation7 + $0x14a8] sm:$0xff]
    %v863 = vld [vmem:[#allocation7 + $0x14b0] sm:$0xff]
    %v864 = vld [vmem:[#allocation7 + $0x14b8] sm:$0xff]
    %v865 = vld [vmem:[#allocation7 + $0x14c0] sm:$0xff]
    %v866 = vld [vmem:[#allocation7 + $0x14c8] sm:$0xff]
    %v867 = vld [vmem:[#allocation7 + $0x14d0] sm:$0xff]
    %v868 = vld [vmem:[#allocation7 + $0x14d8] sm:$0xff]
    %v869 = vld [vmem:[#allocation7 + $0x14e0] sm:$0xff]
    %v870 = vld [vmem:[#allocation7 + $0x14e8] sm:$0xff]
    %v871 = vld [vmem:[#allocation7 + $0x14f0] sm:$0xff]
    %v872 = vld [vmem:[#allocation7 + $0x14f8] sm:$0xff]
    %v873 = vld [vmem:[#allocation7 + $0x1500] sm:$0xff]
    %v874 = vld [vmem:[#allocation7 + $0x1508] sm:$0xff]
    %v875 = vld [vmem:[#allocation7 + $0x1510] sm:$0xff]
    %v876 = vld [vmem:[#allocation7 + $0x1518] sm:$0xff]
    %v877 = vld [vmem:[#allocation7 + $0x1520] sm:$0xff]
    %v878 = vld [vmem:[#allocation7 + $0x1528] sm:$0xff]
    %v879 = vld [vmem:[#allocation7 + $0x1530] sm:$0xff]
    %v880 = vld [vmem:[#allocation7 + $0x1538] sm:$0xff]
    %v881 = vld [vmem:[#allocation7 + $0x1540] sm:$0xff]
    %v882 = vld [vmem:[#allocation7 + $0x1548] sm:$0xff]
    %v883 = vld [vmem:[#allocation7 + $0x1550] sm:$0xff]
    %v884 = vld [vmem:[#allocation7 + $0x1558] sm:$0xff]
    %v885 = vld [vmem:[#allocation7 + $0x1560] sm:$0xff]
    %v886 = vld [vmem:[#allocation7 + $0x1568] sm:$0xff]
    %v887 = vld [vmem:[#allocation7 + $0x1570] sm:$0xff]
    %v888 = vld [vmem:[#allocation7 + $0x1578] sm:$0xff]
    %v889 = vld [vmem:[#allocation7 + $0x1580] sm:$0xff]
    %v890 = vld [vmem:[#allocation7 + $0x1588] sm:$0xff]
    %v891 = vld [vmem:[#allocation7 + $0x1590] sm:$0xff]
    %v892 = vld [vmem:[#allocation7 + $0x1598] sm:$0xff]
    %v893 = vld [vmem:[#allocation7 + $0x15a0] sm:$0xff]
    %v894 = vld [vmem:[#allocation7 + $0x15a8] sm:$0xff]
    %v895 = vld [vmem:[#allocation7 + $0x15b0] sm:$0xff]
    %v896 = vld [vmem:[#allocation7 + $0x15b8] sm:$0xff]
    %v897 = vld [vmem:[#allocation7 + $0x15c0] sm:$0xff]
    %v898 = vld [vmem:[#allocation7 + $0x15c8] sm:$0xff]
    %v899 = vld [vmem:[#allocation7 + $0x15d0] sm:$0xff]
    %v900 = vld [vmem:[#allocation7 + $0x15d8] sm:$0xff]
    %v901 = vld [vmem:[#allocation7 + $0x15e0] sm:$0xff]
    %v902 = vld [vmem:[#allocation7 + $0x15e8] sm:$0xff]
    %v903 = vld [vmem:[#allocation7 + $0x15f0] sm:$0xff]
    %v904 = vld [vmem:[#allocation7 + $0x15f8] sm:$0xff]
    %v905 = vld [vmem:[#allocation7 + $0x1600] sm:$0xff]
    %v906 = vld [vmem:[#allocation7 + $0x1608] sm:$0xff]
    %v907 = vld [vmem:[#allocation7 + $0x1610] sm:$0xff]
    %v908 = vld [vmem:[#allocation7 + $0x1618] sm:$0xff]
    %v909 = vld [vmem:[#allocation7 + $0x1620] sm:$0xff]
    %v910 = vld [vmem:[#allocation7 + $0x1628] sm:$0xff]
    %v911 = vld [vmem:[#allocation7 + $0x1630] sm:$0xff]
    %v912 = vld [vmem:[#allocation7 + $0x1638] sm:$0xff]
    %v913 = vld [vmem:[#allocation7 + $0x1640] sm:$0xff]
    %v914 = vld [vmem:[#allocation7 + $0x1648] sm:$0xff]
    %v915 = vld [vmem:[#allocation7 + $0x1650] sm:$0xff]
    %v916 = vld [vmem:[#allocation7 + $0x1658] sm:$0xff]
    %v917 = vld [vmem:[#allocation7 + $0x1660] sm:$0xff]
    %v918 = vld [vmem:[#allocation7 + $0x1668] sm:$0xff]
    %v919 = vld [vmem:[#allocation7 + $0x1670] sm:$0xff]
    %v920 = vld [vmem:[#allocation7 + $0x1678] sm:$0xff]
    %v921 = vld [vmem:[#allocation7 + $0x1680] sm:$0xff]
    %v922 = vld [vmem:[#allocation7 + $0x1688] sm:$0xff]
    %v923 = vld [vmem:[#allocation7 + $0x1690] sm:$0xff]
    %v924 = vld [vmem:[#allocation7 + $0x1698] sm:$0xff]
    %v925 = vld [vmem:[#allocation7 + $0x16a0] sm:$0xff]
    %v926 = vld [vmem:[#allocation7 + $0x16a8] sm:$0xff]
    %v927 = vld [vmem:[#allocation7 + $0x16b0] sm:$0xff]
    %v928 = vld [vmem:[#allocation7 + $0x16b8] sm:$0xff]
    %v929 = vld [vmem:[#allocation7 + $0x16c0] sm:$0xff]
    %v930 = vld [vmem:[#allocation7 + $0x16c8] sm:$0xff]
    %v931 = vld [vmem:[#allocation7 + $0x16d0] sm:$0xff]
    %v932 = vld [vmem:[#allocation7 + $0x16d8] sm:$0xff]
    %v933 = vld [vmem:[#allocation7 + $0x16e0] sm:$0xff]
    %v934 = vld [vmem:[#allocation7 + $0x16e8] sm:$0xff]
    %v935 = vld [vmem:[#allocation7 + $0x16f0] sm:$0xff]
    %v936 = vld [vmem:[#allocation7 + $0x16f8] sm:$0xff]
    %v937 = vld [vmem:[#allocation7 + $0x1700] sm:$0xff]
    %v938 = vld [vmem:[#allocation7 + $0x1708] sm:$0xff]
    %v939 = vld [vmem:[#allocation7 + $0x1710] sm:$0xff]
    %v940 = vld [vmem:[#allocation7 + $0x1718] sm:$0xff]
    %v941 = vld [vmem:[#allocation7 + $0x1720] sm:$0xff]
    %v942 = vld [vmem:[#allocation7 + $0x1728] sm:$0xff]
    %v943 = vld [vmem:[#allocation7 + $0x1730] sm:$0xff]
    %v944 = vld [vmem:[#allocation7 + $0x1738] sm:$0xff]
    %v945 = vld [vmem:[#allocation7 + $0x1740] sm:$0xff]
    %v946 = vld [vmem:[#allocation7 + $0x1748] sm:$0xff]
    %v947 = vld [vmem:[#allocation7 + $0x1750] sm:$0xff]
    %v948 = vld [vmem:[#allocation7 + $0x1758] sm:$0xff]
    %v949 = vld [vmem:[#allocation7 + $0x1760] sm:$0xff]
    %v950 = vld [vmem:[#allocation7 + $0x1768] sm:$0xff]
    %v951 = vld [vmem:[#allocation7 + $0x1770] sm:$0xff]
    %v952 = vld [vmem:[#allocation7 + $0x1778] sm:$0xff]
    %v953 = vld [vmem:[#allocation7 + $0x1780] sm:$0xff]
    %v954 = vld [vmem:[#allocation7 + $0x1788] sm:$0xff]
    %v955 = vld [vmem:[#allocation7 + $0x1790] sm:$0xff]
    %v956 = vld [vmem:[#allocation7 + $0x1798] sm:$0xff]
    %v957 = vld [vmem:[#allocation7 + $0x17a0] sm:$0xff]
    %v958 = vld [vmem:[#allocation7 + $0x17a8] sm:$0xff]
    %v959 = vld [vmem:[#allocation7 + $0x17b0] sm:$0xff]
    %v960 = vld [vmem:[#allocation7 + $0x17b8] sm:$0xff]
    %v961 = vld [vmem:[#allocation7 + $0x17c0] sm:$0xff]
    %v962 = vld [vmem:[#allocation7 + $0x17c8] sm:$0xff]
    %v963 = vld [vmem:[#allocation7 + $0x17d0] sm:$0xff]
    %v964 = vld [vmem:[#allocation7 + $0x17d8] sm:$0xff]
    %v965 = vld [vmem:[#allocation7 + $0x17e0] sm:$0xff]
    %v966 = vld [vmem:[#allocation7 + $0x17e8] sm:$0xff]
    %v967 = vld [vmem:[#allocation7 + $0x17f0] sm:$0xff]
    %v968 = vld [vmem:[#allocation7 + $0x17f8] sm:$0xff]
    %v969 = vld [vmem:[#allocation7 + $0x1800] sm:$0xff]
    %v970 = vld [vmem:[#allocation7 + $0x1808] sm:$0xff]
    %v971 = vld [vmem:[#allocation7 + $0x1810] sm:$0xff]
    %v972 = vld [vmem:[#allocation7 + $0x1818] sm:$0xff]
    %v973 = vld [vmem:[#allocation7 + $0x1820] sm:$0xff]
    %v974 = vld [vmem:[#allocation7 + $0x1828] sm:$0xff]
    %v975 = vld [vmem:[#allocation7 + $0x1830] sm:$0xff]
    %v976 = vld [vmem:[#allocation7 + $0x1838] sm:$0xff]
    %v977 = vld [vmem:[#allocation7 + $0x1840] sm:$0xff]
    %v978 = vld [vmem:[#allocation7 + $0x1848] sm:$0xff]
    %v979 = vld [vmem:[#allocation7 + $0x1850] sm:$0xff]
    %v980 = vld [vmem:[#allocation7 + $0x1858] sm:$0xff]
    %v981 = vld [vmem:[#allocation7 + $0x1860] sm:$0xff]
    %v982 = vld [vmem:[#allocation7 + $0x1868] sm:$0xff]
    %v983 = vld [vmem:[#allocation7 + $0x1870] sm:$0xff]
    %v984 = vld [vmem:[#allocation7 + $0x1878] sm:$0xff]
    %v985 = vld [vmem:[#allocation7 + $0x1880] sm:$0xff]
    %v986 = vld [vmem:[#allocation7 + $0x1888] sm:$0xff]
    %v987 = vld [vmem:[#allocation7 + $0x1890] sm:$0xff]
    %v988 = vld [vmem:[#allocation7 + $0x1898] sm:$0xff]
    %v989 = vld [vmem:[#allocation7 + $0x18a0] sm:$0xff]
    %v990 = vld [vmem:[#allocation7 + $0x18a8] sm:$0xff]
    %v991 = vld [vmem:[#allocation7 + $0x18b0] sm:$0xff]
    %v992 = vld [vmem:[#allocation7 + $0x18b8] sm:$0xff]
    %v993 = vld [vmem:[#allocation7 + $0x18c0] sm:$0xff]
    %v994 = vld [vmem:[#allocation7 + $0x18c8] sm:$0xff]
    %v995 = vld [vmem:[#allocation7 + $0x18d0] sm:$0xff]
    %v996 = vld [vmem:[#allocation7 + $0x18d8] sm:$0xff]
    %v997 = vld [vmem:[#allocation7 + $0x18e0] sm:$0xff]
    %v998 = vld [vmem:[#allocation7 + $0x18e8] sm:$0xff]
    %v999 = vld [vmem:[#allocation7 + $0x18f0] sm:$0xff]
    %v1000 = vld [vmem:[#allocation7 + $0x18f8] sm:$0xff]
    %v1001 = vld [vmem:[#allocation7 + $0x1900] sm:$0xff]
    %v1002 = vld [vmem:[#allocation7 + $0x1908] sm:$0xff]
    %v1003 = vld [vmem:[#allocation7 + $0x1910] sm:$0xff]
    %v1004 = vld [vmem:[#allocation7 + $0x1918] sm:$0xff]
    %v1005 = vld [vmem:[#allocation7 + $0x1920] sm:$0xff]
    %v1006 = vld [vmem:[#allocation7 + $0x1928] sm:$0xff]
    %v1007 = vld [vmem:[#allocation7 + $0x1930] sm:$0xff]
    %v1008 = vld [vmem:[#allocation7 + $0x1938] sm:$0xff]
    %v1009 = vld [vmem:[#allocation7 + $0x1940] sm:$0xff]
    %v1010 = vld [vmem:[#allocation7 + $0x1948] sm:$0xff]
    %v1011 = vld [vmem:[#allocation7 + $0x1950] sm:$0xff]
    %v1012 = vld [vmem:[#allocation7 + $0x1958] sm:$0xff]
    %v1013 = vld [vmem:[#allocation7 + $0x1960] sm:$0xff]
    %v1014 = vld [vmem:[#allocation7 + $0x1968] sm:$0xff]
    %v1015 = vld [vmem:[#allocation7 + $0x1970] sm:$0xff]
    %v1016 = vld [vmem:[#allocation7 + $0x1978] sm:$0xff]
    %v1017 = vld [vmem:[#allocation7 + $0x1980] sm:$0xff]
    %v1018 = vld [vmem:[#allocation7 + $0x1988] sm:$0xff]
    %v1019 = vld [vmem:[#allocation7 + $0x1990] sm:$0xff]
    %v1020 = vld [vmem:[#allocation7 + $0x1998] sm:$0xff]
    %v1021 = vld [vmem:[#allocation7 + $0x19a0] sm:$0xff]
    %v1022 = vld [vmem:[#allocation7 + $0x19a8] sm:$0xff]
    %v1023 = vld [vmem:[#allocation7 + $0x19b0] sm:$0xff]
    %v1024 = vld [vmem:[#allocation7 + $0x19b8] sm:$0xff]
    %v1025 = vld [vmem:[#allocation7 + $0x19c0] sm:$0xff]
    %v1026 = vld [vmem:[#allocation7 + $0x19c8] sm:$0xff]
    %v1027 = vld [vmem:[#allocation7 + $0x19d0] sm:$0xff]
    %v1028 = vld [vmem:[#allocation7 + $0x19d8] sm:$0xff]
    %v1029 = vld [vmem:[#allocation7 + $0x19e0] sm:$0xff]
    %v1030 = vld [vmem:[#allocation7 + $0x19e8] sm:$0xff]
    %v1031 = vld [vmem:[#allocation7 + $0x19f0] sm:$0xff]
    %v1032 = vld [vmem:[#allocation7 + $0x19f8] sm:$0xff]
    %v1033 = vld [vmem:[#allocation7 + $0x1a00] sm:$0xff]
    %v1034 = vld [vmem:[#allocation7 + $0x1a08] sm:$0xff]
    %v1035 = vld [vmem:[#allocation7 + $0x1a10] sm:$0xff]
    %v1036 = vld [vmem:[#allocation7 + $0x1a18] sm:$0xff]
    %v1037 = vld [vmem:[#allocation7 + $0x1a20] sm:$0xff]
    %v1038 = vld [vmem:[#allocation7 + $0x1a28] sm:$0xff]
    %v1039 = vld [vmem:[#allocation7 + $0x1a30] sm:$0xff]
    %v1040 = vld [vmem:[#allocation7 + $0x1a38] sm:$0xff]
    %v1041 = vld [vmem:[#allocation7 + $0x1a40] sm:$0xff]
    %v1042 = vld [vmem:[#allocation7 + $0x1a48] sm:$0xff]
    %v1043 = vld [vmem:[#allocation7 + $0x1a50] sm:$0xff]
    %v1044 = vld [vmem:[#allocation7 + $0x1a58] sm:$0xff]
    %v1045 = vld [vmem:[#allocation7 + $0x1a60] sm:$0xff]
    %v1046 = vld [vmem:[#allocation7 + $0x1a68] sm:$0xff]
    %v1047 = vld [vmem:[#allocation7 + $0x1a70] sm:$0xff]
    %v1048 = vld [vmem:[#allocation7 + $0x1a78] sm:$0xff]
    %v1049 = vld [vmem:[#allocation7 + $0x1a80] sm:$0xff]
    %v1050 = vld [vmem:[#allocation7 + $0x1a88] sm:$0xff]
    %v1051 = vld [vmem:[#allocation7 + $0x1a90] sm:$0xff]
    %v1052 = vld [vmem:[#allocation7 + $0x1a98] sm:$0xff]
    %v1053 = vld [vmem:[#allocation7 + $0x1aa0] sm:$0xff]
    %v1054 = vld [vmem:[#allocation7 + $0x1aa8] sm:$0xff]
    %v1055 = vld [vmem:[#allocation7 + $0x1ab0] sm:$0xff]
    %v1056 = vld [vmem:[#allocation7 + $0x1ab8] sm:$0xff]
    %v1057 = vld [vmem:[#allocation7 + $0x1ac0] sm:$0xff]
    %v1058 = vld [vmem:[#allocation7 + $0x1ac8] sm:$0xff]
    %v1059 = vld [vmem:[#allocation7 + $0x1ad0] sm:$0xff]
    %v1060 = vld [vmem:[#allocation7 + $0x1ad8] sm:$0xff]
    %v1061 = vld [vmem:[#allocation7 + $0x1ae0] sm:$0xff]
    %v1062 = vld [vmem:[#allocation7 + $0x1ae8] sm:$0xff]
    %v1063 = vld [vmem:[#allocation7 + $0x1af0] sm:$0xff]
    %v1064 = vld [vmem:[#allocation7 + $0x1af8] sm:$0xff]
    %v1065 = vld [vmem:[#allocation7 + $0x1b00] sm:$0xff]
    %v1066 = vld [vmem:[#allocation7 + $0x1b08] sm:$0xff]
    %v1067 = vld [vmem:[#allocation7 + $0x1b10] sm:$0xff]
    %v1068 = vld [vmem:[#allocation7 + $0x1b18] sm:$0xff]
    %v1069 = vld [vmem:[#allocation7 + $0x1b20] sm:$0xff]
    %v1070 = vld [vmem:[#allocation7 + $0x1b28] sm:$0xff]
    %v1071 = vld [vmem:[#allocation7 + $0x1b30] sm:$0xff]
    %v1072 = vld [vmem:[#allocation7 + $0x1b38] sm:$0xff]
    %v1073 = vld [vmem:[#allocation7 + $0x1b40] sm:$0xff]
    %v1074 = vld [vmem:[#allocation7 + $0x1b48] sm:$0xff]
    %v1075 = vld [vmem:[#allocation7 + $0x1b50] sm:$0xff]
    %v1076 = vld [vmem:[#allocation7 + $0x1b58] sm:$0xff]
    %v1077 = vld [vmem:[#allocation7 + $0x1b60] sm:$0xff]
    %v1078 = vld [vmem:[#allocation7 + $0x1b68] sm:$0xff]
    %v1079 = vld [vmem:[#allocation7 + $0x1b70] sm:$0xff]
    %v1080 = vld [vmem:[#allocation7 + $0x1b78] sm:$0xff]
    %v1081 = vld [vmem:[#allocation7 + $0x1b80] sm:$0xff]
    %v1082 = vld [vmem:[#allocation7 + $0x1b88] sm:$0xff]
    %v1083 = vld [vmem:[#allocation7 + $0x1b90] sm:$0xff]
    %v1084 = vld [vmem:[#allocation7 + $0x1b98] sm:$0xff]
    %v1085 = vld [vmem:[#allocation7 + $0x1ba0] sm:$0xff]
    %v1086 = vld [vmem:[#allocation7 + $0x1ba8] sm:$0xff]
    %v1087 = vld [vmem:[#allocation7 + $0x1bb0] sm:$0xff]
    %v1088 = vld [vmem:[#allocation7 + $0x1bb8] sm:$0xff]
    %v1089 = vld [vmem:[#allocation7 + $0x1bc0] sm:$0xff]
    %v1090 = vld [vmem:[#allocation7 + $0x1bc8] sm:$0xff]
    %v1091 = vld [vmem:[#allocation7 + $0x1bd0] sm:$0xff]
    %v1092 = vld [vmem:[#allocation7 + $0x1bd8] sm:$0xff]
    %v1093 = vld [vmem:[#allocation7 + $0x1be0] sm:$0xff]
    %v1094 = vld [vmem:[#allocation7 + $0x1be8] sm:$0xff]
    %v1095 = vld [vmem:[#allocation7 + $0x1bf0] sm:$0xff]
    %v1096 = vld [vmem:[#allocation7 + $0x1bf8] sm:$0xff]
    %v1097 = vld [vmem:[#allocation7 + $0x1c00] sm:$0xff]
    %v1098 = vld [vmem:[#allocation7 + $0x1c08] sm:$0xff]
    %v1099 = vld [vmem:[#allocation7 + $0x1c10] sm:$0xff]
    %v1100 = vld [vmem:[#allocation7 + $0x1c18] sm:$0xff]
    %v1101 = vld [vmem:[#allocation7 + $0x1c20] sm:$0xff]
    %v1102 = vld [vmem:[#allocation7 + $0x1c28] sm:$0xff]
    %v1103 = vld [vmem:[#allocation7 + $0x1c30] sm:$0xff]
    %v1104 = vld [vmem:[#allocation7 + $0x1c38] sm:$0xff]
    %v1105 = vld [vmem:[#allocation7 + $0x1c40] sm:$0xff]
    %v1106 = vld [vmem:[#allocation7 + $0x1c48] sm:$0xff]
    %v1107 = vld [vmem:[#allocation7 + $0x1c50] sm:$0xff]
    %v1108 = vld [vmem:[#allocation7 + $0x1c58] sm:$0xff]
    %v1109 = vld [vmem:[#allocation7 + $0x1c60] sm:$0xff]
    %v1110 = vld [vmem:[#allocation7 + $0x1c68] sm:$0xff]
    %v1111 = vld [vmem:[#allocation7 + $0x1c70] sm:$0xff]
    %v1112 = vld [vmem:[#allocation7 + $0x1c78] sm:$0xff]
    %v1113 = vld [vmem:[#allocation7 + $0x1c80] sm:$0xff]
    %v1114 = vld [vmem:[#allocation7 + $0x1c88] sm:$0xff]
    %v1115 = vld [vmem:[#allocation7 + $0x1c90] sm:$0xff]
    %v1116 = vld [vmem:[#allocation7 + $0x1c98] sm:$0xff]
    %v1117 = vld [vmem:[#allocation7 + $0x1ca0] sm:$0xff]
    %v1118 = vld [vmem:[#allocation7 + $0x1ca8] sm:$0xff]
    %v1119 = vld [vmem:[#allocation7 + $0x1cb0] sm:$0xff]
    %v1120 = vld [vmem:[#allocation7 + $0x1cb8] sm:$0xff]
    %v1121 = vld [vmem:[#allocation7 + $0x1cc0] sm:$0xff]
    %v1122 = vld [vmem:[#allocation7 + $0x1cc8] sm:$0xff]
    %v1123 = vld [vmem:[#allocation7 + $0x1cd0] sm:$0xff]
    %v1124 = vld [vmem:[#allocation7 + $0x1cd8] sm:$0xff]
    %v1125 = vld [vmem:[#allocation7 + $0x1ce0] sm:$0xff]
    %v1126 = vld [vmem:[#allocation7 + $0x1ce8] sm:$0xff]
    %v1127 = vld [vmem:[#allocation7 + $0x1cf0] sm:$0xff]
    %v1128 = vld [vmem:[#allocation7 + $0x1cf8] sm:$0xff]
    %v1129 = vld [vmem:[#allocation7 + $0x1d00] sm:$0xff]
    %v1130 = vld [vmem:[#allocation7 + $0x1d08] sm:$0xff]
    %v1131 = vld [vmem:[#allocation7 + $0x1d10] sm:$0xff]
    %v1132 = vld [vmem:[#allocation7 + $0x1d18] sm:$0xff]
    %v1133 = vld [vmem:[#allocation7 + $0x1d20] sm:$0xff]
    %v1134 = vld [vmem:[#allocation7 + $0x1d28] sm:$0xff]
    %v1135 = vld [vmem:[#allocation7 + $0x1d30] sm:$0xff]
    %v1136 = vld [vmem:[#allocation7 + $0x1d38] sm:$0xff]
    %v1137 = vld [vmem:[#allocation7 + $0x1d40] sm:$0xff]
    %v1138 = vld [vmem:[#allocation7 + $0x1d48] sm:$0xff]
    %v1139 = vld [vmem:[#allocation7 + $0x1d50] sm:$0xff]
    %v1140 = vld [vmem:[#allocation7 + $0x1d58] sm:$0xff]
    %v1141 = vld [vmem:[#allocation7 + $0x1d60] sm:$0xff]
    %v1142 = vld [vmem:[#allocation7 + $0x1d68] sm:$0xff]
    %v1143 = vld [vmem:[#allocation7 + $0x1d70] sm:$0xff]
    %v1144 = vld [vmem:[#allocation7 + $0x1d78] sm:$0xff]
    %v1145 = vld [vmem:[#allocation7 + $0x1d80] sm:$0xff]
    %v1146 = vld [vmem:[#allocation7 + $0x1d88] sm:$0xff]
    %v1147 = vld [vmem:[#allocation7 + $0x1d90] sm:$0xff]
    %v1148 = vld [vmem:[#allocation7 + $0x1d98] sm:$0xff]
    %v1149 = vld [vmem:[#allocation7 + $0x1da0] sm:$0xff]
    %v1150 = vld [vmem:[#allocation7 + $0x1da8] sm:$0xff]
    %v1151 = vld [vmem:[#allocation7 + $0x1db0] sm:$0xff]
    %v1152 = vld [vmem:[#allocation7 + $0x1db8] sm:$0xff]
    %v1153 = vld [vmem:[#allocation7 + $0x1dc0] sm:$0xff]
    %v1154 = vld [vmem:[#allocation7 + $0x1dc8] sm:$0xff]
    %v1155 = vld [vmem:[#allocation7 + $0x1dd0] sm:$0xff]
    %v1156 = vld [vmem:[#allocation7 + $0x1dd8] sm:$0xff]
    %v1157 = vld [vmem:[#allocation7 + $0x1de0] sm:$0xff]
    %v1158 = vld [vmem:[#allocation7 + $0x1de8] sm:$0xff]
    %v1159 = vld [vmem:[#allocation7 + $0x1df0] sm:$0xff]
    %v1160 = vld [vmem:[#allocation7 + $0x1df8] sm:$0xff]
    %v1161 = vld [vmem:[#allocation7 + $0x1e00] sm:$0xff]
    %v1162 = vld [vmem:[#allocation7 + $0x1e08] sm:$0xff]
    %v1163 = vld [vmem:[#allocation7 + $0x1e10] sm:$0xff]
    %v1164 = vld [vmem:[#allocation7 + $0x1e18] sm:$0xff]
    %v1165 = vld [vmem:[#allocation7 + $0x1e20] sm:$0xff]
    %v1166 = vld [vmem:[#allocation7 + $0x1e28] sm:$0xff]
    %v1167 = vld [vmem:[#allocation7 + $0x1e30] sm:$0xff]
    %v1168 = vld [vmem:[#allocation7 + $0x1e38] sm:$0xff]
    %v1169 = vld [vmem:[#allocation7 + $0x1e40] sm:$0xff]
    %v1170 = vld [vmem:[#allocation7 + $0x1e48] sm:$0xff]
    %v1171 = vld [vmem:[#allocation7 + $0x1e50] sm:$0xff]
    %v1172 = vld [vmem:[#allocation7 + $0x1e58] sm:$0xff]
    %v1173 = vld [vmem:[#allocation7 + $0x1e60] sm:$0xff]
    %v1174 = vld [vmem:[#allocation7 + $0x1e68] sm:$0xff]
    %v1175 = vld [vmem:[#allocation7 + $0x1e70] sm:$0xff]
    %v1176 = vld [vmem:[#allocation7 + $0x1e78] sm:$0xff]
    %v1177 = vld [vmem:[#allocation7 + $0x1e80] sm:$0xff]
    %v1178 = vld [vmem:[#allocation7 + $0x1e88] sm:$0xff]
    %v1179 = vld [vmem:[#allocation7 + $0x1e90] sm:$0xff]
    %v1180 = vld [vmem:[#allocation7 + $0x1e98] sm:$0xff]
    %v1181 = vld [vmem:[#allocation7 + $0x1ea0] sm:$0xff]
    %v1182 = vld [vmem:[#allocation7 + $0x1ea8] sm:$0xff]
    %v1183 = vld [vmem:[#allocation7 + $0x1eb0] sm:$0xff]
    %v1184 = vld [vmem:[#allocation7 + $0x1eb8] sm:$0xff]
    %v1185 = vld [vmem:[#allocation7 + $0x1ec0] sm:$0xff]
    %v1186 = vld [vmem:[#allocation7 + $0x1ec8] sm:$0xff]
    %v1187 = vld [vmem:[#allocation7 + $0x1ed0] sm:$0xff]
    %v1188 = vld [vmem:[#allocation7 + $0x1ed8] sm:$0xff]
    %v1189 = vld [vmem:[#allocation7 + $0x1ee0] sm:$0xff]
    %v1190 = vld [vmem:[#allocation7 + $0x1ee8] sm:$0xff]
    %v1191 = vld [vmem:[#allocation7 + $0x1ef0] sm:$0xff]
    %v1192 = vld [vmem:[#allocation7 + $0x1ef8] sm:$0xff]
    %v1193 = vld [vmem:[#allocation7 + $0x1f00] sm:$0xff]
    %v1194 = vld [vmem:[#allocation7 + $0x1f08] sm:$0xff]
    %v1195 = vld [vmem:[#allocation7 + $0x1f10] sm:$0xff]
    %v1196 = vld [vmem:[#allocation7 + $0x1f18] sm:$0xff]
    %v1197 = vld [vmem:[#allocation7 + $0x1f20] sm:$0xff]
    %v1198 = vld [vmem:[#allocation7 + $0x1f28] sm:$0xff]
    %v1199 = vld [vmem:[#allocation7 + $0x1f30] sm:$0xff]
    %v1200 = vld [vmem:[#allocation7 + $0x1f38] sm:$0xff]
    %v1201 = vld [vmem:[#allocation7 + $0x1f40] sm:$0xff]
    %v1202 = vld [vmem:[#allocation7 + $0x1f48] sm:$0xff]
    %v1203 = vld [vmem:[#allocation7 + $0x1f50] sm:$0xff]
    %v1204 = vld [vmem:[#allocation7 + $0x1f58] sm:$0xff]
    %v1205 = vld [vmem:[#allocation7 + $0x1f60] sm:$0xff]
    %v1206 = vld [vmem:[#allocation7 + $0x1f68] sm:$0xff]
    %v1207 = vld [vmem:[#allocation7 + $0x1f70] sm:$0xff]
    %v1208 = vld [vmem:[#allocation7 + $0x1f78] sm:$0xff]
    %v1209 = vld [vmem:[#allocation7 + $0x1f80] sm:$0xff]
    %v1210 = vld [vmem:[#allocation7 + $0x1f88] sm:$0xff]
    %v1211 = vld [vmem:[#allocation7 + $0x1f90] sm:$0xff]
    %v1212 = vld [vmem:[#allocation7 + $0x1f98] sm:$0xff]
    %v1213 = vld [vmem:[#allocation7 + $0x1fa0] sm:$0xff]
    %v1214 = vld [vmem:[#allocation7 + $0x1fa8] sm:$0xff]
    %v1215 = vld [vmem:[#allocation7 + $0x1fb0] sm:$0xff]
    %v1216 = vld [vmem:[#allocation7 + $0x1fb8] sm:$0xff]
    %v1217 = vld [vmem:[#allocation7 + $0x1fc0] sm:$0xff]
    %v1218 = vld [vmem:[#allocation7 + $0x1fc8] sm:$0xff]
    %v1219 = vld [vmem:[#allocation7 + $0x1fd0] sm:$0xff]
    %v1220 = vld [vmem:[#allocation7 + $0x1fd8] sm:$0xff]
    %v1221 = vld [vmem:[#allocation7 + $0x1fe0] sm:$0xff]
    %v1222 = vld [vmem:[#allocation7 + $0x1fe8] sm:$0xff]
    %v1223 = vld [vmem:[#allocation7 + $0x1ff0] sm:$0xff]
    %v1224 = vld [vmem:[#allocation7 + $0x1ff8] sm:$0xff]
    %v1225 = vld [vmem:[#allocation5] sm:$0xf]
    %v1226 = vld [vmem:[#allocation8] sm:$0xff]
    %v1227 = vld [vmem:[#allocation8 + $0x8] sm:$0xff]
    %v1228 = vld [vmem:[#allocation8 + $0x10] sm:$0xff]
    %v1229 = vld [vmem:[#allocation8 + $0x18] sm:$0xff]
    %v1230 = vld [vmem:[#allocation8 + $0x20] sm:$0xff]
    %v1231 = vld [vmem:[#allocation8 + $0x28] sm:$0xff]
    %v1232 = vld [vmem:[#allocation8 + $0x30] sm:$0xff]
    %v1233 = vld [vmem:[#allocation8 + $0x38] sm:$0xff]
    %v1234 = vld [vmem:[#allocation8 + $0x40] sm:$0xff]
    %v1235 = vld [vmem:[#allocation8 + $0x48] sm:$0xff]
    %v1236 = vld [vmem:[#allocation8 + $0x50] sm:$0xff]
    %v1237 = vld [vmem:[#allocation8 + $0x58] sm:$0xff]
    %v1238 = vld [vmem:[#allocation8 + $0x60] sm:$0xff]
    %v1239 = vld [vmem:[#allocation8 + $0x68] sm:$0xff]
    %v1240 = vld [vmem:[#allocation8 + $0x70] sm:$0xff]
    %v1241 = vld [vmem:[#allocation8 + $0x78] sm:$0xff]
    %v1242 = vld [vmem:[#allocation8 + $0x80] sm:$0xff]
    %v1243 = vld [vmem:[#allocation8 + $0x88] sm:$0xff]
    %v1244 = vld [vmem:[#allocation8 + $0x90] sm:$0xff]
    %v1245 = vld [vmem:[#allocation8 + $0x98] sm:$0xff]
    %v1246 = vld [vmem:[#allocation8 + $0xa0] sm:$0xff]
    %v1247 = vld [vmem:[#allocation8 + $0xa8] sm:$0xff]
    %v1248 = vld [vmem:[#allocation8 + $0xb0] sm:$0xff]
    %v1249 = vld [vmem:[#allocation8 + $0xb8] sm:$0xff]
    %v1250 = vld [vmem:[#allocation8 + $0xc0] sm:$0x33]
    %v1251 = vld [vmem:[#allocation8 + $0xc8] sm:$0x33]
    %v1278 = vunpack.c.l.b16 %v1226
    %v1279 = vunpack.c.h.b16 %v1226
    %v1280 = vunpack.c.l.b16 %v1227
    %v1281 = vunpack.c.h.b16 %v1227
    %v1282 = vunpack.c.l.b16 %v1228
    %v1283 = vunpack.c.h.b16 %v1228
    %v1284 = vunpack.c.l.b16 %v1229
    %v1285 = vunpack.c.h.b16 %v1229
    %v1286 = vunpack.c.l.b16 %v1230
    %v1287 = vunpack.c.h.b16 %v1230
    %v1288 = vunpack.c.l.b16 %v1231
    %v1289 = vunpack.c.h.b16 %v1231
    %v1290 = vunpack.c.l.b16 %v1232
    %v1291 = vunpack.c.h.b16 %v1232
    %v1292 = vunpack.c.l.b16 %v1233
    %v1293 = vunpack.c.h.b16 %v1233
    %v1294 = vunpack.c.l.b16 %v1234
    %v1295 = vunpack.c.h.b16 %v1234
    %v1296 = vunpack.c.l.b16 %v1235
    %v1297 = vunpack.c.h.b16 %v1235
    %v1298 = vunpack.c.l.b16 %v1236
    %v1299 = vunpack.c.h.b16 %v1236
    %v1300 = vunpack.c.l.b16 %v1237
    %v1301 = vunpack.c.h.b16 %v1237
    %v1302 = vunpack.c.l.b16 %v1238
    %v1303 = vunpack.c.h.b16 %v1238
    %v1304 = vunpack.c.l.b16 %v1239
    %v1305 = vunpack.c.h.b16 %v1239
    %v1306 = vunpack.c.l.b16 %v1240
    %v1307 = vunpack.c.h.b16 %v1240
    %v1308 = vunpack.c.l.b16 %v1241
    %v1309 = vunpack.c.h.b16 %v1241
    %v1310 = vunpack.c.l.b16 %v1242
    %v1311 = vunpack.c.h.b16 %v1242
    %v1312 = vunpack.c.l.b16 %v1243
    %v1313 = vunpack.c.h.b16 %v1243
    %v1314 = vunpack.c.l.b16 %v1244
    %v1315 = vunpack.c.h.b16 %v1244
    %v1316 = vunpack.c.l.b16 %v1245
    %v1317 = vunpack.c.h.b16 %v1245
    %v1318 = vunpack.c.l.b16 %v1246
    %v1319 = vunpack.c.h.b16 %v1246
    %v1320 = vunpack.c.l.b16 %v1247
    %v1321 = vunpack.c.h.b16 %v1247
    %v1322 = vunpack.c.l.b16 %v1248
    %v1323 = vunpack.c.h.b16 %v1248
    %v1324 = vunpack.c.l.b16 %v1249
    %v1325 = vunpack.c.h.b16 %v1249
    %v1326 = vunpack.c.l.b16 %v1250
    %v1327 = vunpack.c.h.b16 %v1250
    %v1328 = vunpack.c.l.b16 %v1251
    %v1329 = vunpack.c.h.b16 %v1251
    %v1330 = vpack.c.b16 %v1282, %v1278
    %v1331 = vpack.c.b16 %v1283, %v1279
    %v1332 = vpack.c.b16 %v1284, %v1280
    %v1333 = vpack.c.b16 %v1285, %v1281
    %v1334 = vpack.c.b16 %v1290, %v1286
    %v1335 = vpack.c.b16 %v1291, %v1287
    %v1336 = vpack.c.b16 %v1292, %v1288
    %v1337 = vpack.c.b16 %v1293, %v1289
    %v1338 = vpack.c.b16 %v1298, %v1294
    %v1339 = vpack.c.b16 %v1299, %v1295
    %v1340 = vpack.c.b16 %v1300, %v1296
    %v1341 = vpack.c.b16 %v1301, %v1297
    %v1342 = vpack.c.b16 %v1306, %v1302
    %v1343 = vpack.c.b16 %v1307, %v1303
    %v1344 = vpack.c.b16 %v1308, %v1304
    %v1345 = vpack.c.b16 %v1309, %v1305
    %v1346 = vpack.c.b16 %v1314, %v1310
    %v1347 = vpack.c.b16 %v1315, %v1311
    %v1348 = vpack.c.b16 %v1316, %v1312
    %v1349 = vpack.c.b16 %v1317, %v1313
    %v1350 = vpack.c.b16 %v1322, %v1318
    %v1351 = vpack.c.b16 %v1323, %v1319
    %v1352 = vpack.c.b16 %v1324, %v1320
    %v1353 = vpack.c.b16 %v1325, %v1321
    %v1354 = vpack.c.b16 %v1326, %v1326
    %v1355 = vpack.c.b16 %v1327, %v1327
    %v1356 = vpack.c.b16 %v1328, %v1328
    %v1357 = vpack.c.b16 %v1329, %v1329
    %vm1382 = vcmask 818176
    %v1384 = vsel %vm1382, %v1225, 0
    %vm1386 = vcmask 1041408
    %v1388 = vsel %vm1386, %v1354, 0
    %v1391 = vsel %vm1386, %v1355, 0
    %v1394 = vsel %vm1386, %v1356, 0
    %v1397 = vsel %vm1386, %v1357, 0
    %1399 = vmatpush.bf16.msra.mxu0 0
    %1400 = vmatpush.bf16.msra.mxu0 %v1388
    %1401 = vmatpush.bf16.msra.mxu0 %v1350
    %1402 = vmatpush.bf16.msra.mxu0 %v1346
    %1403 = vmatpush.bf16.msra.mxu0 %v1342
    %1404 = vmatpush.bf16.msra.mxu0 %v1338
    %1405 = vmatpush.bf16.msra.mxu0 %v1334
    %1406 = vmatpush.bf16.msra.mxu0 %v1330
    %1407 = vmatmul.bf16.gmra.mxu0 %v1384
    %v1408 = vpop.f32.mrf.mxu0
    %v1409 = vadd.f32 0.0, %v1408
    %v1410 = vpop.f32.mrf.mxu0
    %1411 = vdwg.mxu0
    %1412 = vmatpush.bf16.msra.mxu0 0
    %1413 = vmatpush.bf16.msra.mxu0 %v1391
    %1414 = vmatpush.bf16.msra.mxu0 %v1351
    %1415 = vmatpush.bf16.msra.mxu0 %v1347
    %1416 = vmatpush.bf16.msra.mxu0 %v1343
    %1417 = vmatpush.bf16.msra.mxu0 %v1339
    %1418 = vmatpush.bf16.msra.mxu0 %v1335
    %1419 = vmatpush.bf16.msra.mxu0 %v1331
    %1420 = vmatmul.bf16.gmra.mxu0 %v1384
    %v1421 = vpop.f32.mrf.mxu0
    %v1422 = vadd.f32 0.0, %v1421
    %v1423 = vpop.f32.mrf.mxu0
    %1424 = vdwg.mxu0
    %1425 = vmatpush.bf16.msra.mxu0 0
    %1426 = vmatpush.bf16.msra.mxu0 %v1394
    %1427 = vmatpush.bf16.msra.mxu0 %v1352
    %1428 = vmatpush.bf16.msra.mxu0 %v1348
    %1429 = vmatpush.bf16.msra.mxu0 %v1344
    %1430 = vmatpush.bf16.msra.mxu0 %v1340
    %1431 = vmatpush.bf16.msra.mxu0 %v1336
    %1432 = vmatpush.bf16.msra.mxu0 %v1332
    %1433 = vmatmul.bf16.gmra.mxu0 %v1384
    %v1434 = vpop.f32.mrf.mxu0
    %v1435 = vadd.f32 0.0, %v1434
    %v1436 = vpop.f32.mrf.mxu0
    %1437 = vdwg.mxu0
    %1438 = vmatpush.bf16.msra.mxu0 0
    %1439 = vmatpush.bf16.msra.mxu0 %v1397
    %1440 = vmatpush.bf16.msra.mxu0 %v1353
    %1441 = vmatpush.bf16.msra.mxu0 %v1349
    %1442 = vmatpush.bf16.msra.mxu0 %v1345
    %1443 = vmatpush.bf16.msra.mxu0 %v1341
    %1444 = vmatpush.bf16.msra.mxu0 %v1337
    %1445 = vmatpush.bf16.msra.mxu0 %v1333
    %1446 = vmatmul.bf16.gmra.mxu0 %v1384
    %v1447 = vpop.f32.mrf.mxu0
    %v1448 = vadd.f32 0.0, %v1447
    %v1449 = vpop.f32.mrf.mxu0
    %1450 = vdwg.mxu0
    %v1467 = vunpack.c.l.b16 %v185
    %v1468 = vunpack.c.h.b16 %v185
    %v1469 = vunpack.c.l.b16 %v186
    %v1470 = vunpack.c.h.b16 %v186
    %v1471 = vunpack.c.l.b16 %v187
    %v1472 = vunpack.c.h.b16 %v187
    %v1473 = vunpack.c.l.b16 %v188
    %v1474 = vunpack.c.h.b16 %v188
    %v1475 = vunpack.c.l.b16 %v189
    %v1476 = vunpack.c.h.b16 %v189
    %v1477 = vunpack.c.l.b16 %v190
    %v1478 = vunpack.c.h.b16 %v190
    %v1479 = vunpack.c.l.b16 %v191
    %v1480 = vunpack.c.h.b16 %v191
    %v1481 = vunpack.c.l.b16 %v192
    %v1482 = vunpack.c.h.b16 %v192
    %v1483 = vunpack.c.l.b16 %v193
    %v1484 = vunpack.c.h.b16 %v193
    %v1485 = vunpack.c.l.b16 %v194
    %v1486 = vunpack.c.h.b16 %v194
    %v1487 = vunpack.c.l.b16 %v195
    %v1488 = vunpack.c.h.b16 %v195
    %v1489 = vunpack.c.l.b16 %v196
    %v1490 = vunpack.c.h.b16 %v196
    %v1491 = vunpack.c.l.b16 %v197
    %v1492 = vunpack.c.h.b16 %v197
    %v1493 = vunpack.c.l.b16 %v198
    %v1494 = vunpack.c.h.b16 %v198
    %v1495 = vunpack.c.l.b16 %v199
    %v1496 = vunpack.c.h.b16 %v199
    %v1497 = vunpack.c.l.b16 %v200
    %v1498 = vunpack.c.h.b16 %v200
    %v1499 = vpack.c.b16 %v1467, %v1467
    %v1500 = vpack.c.b16 %v1468, %v1468
    %v1501 = vpack.c.b16 %v1469, %v1469
    %v1502 = vpack.c.b16 %v1470, %v1470
    %v1503 = vpack.c.b16 %v1471, %v1471
    %v1504 = vpack.c.b16 %v1472, %v1472
    %v1505 = vpack.c.b16 %v1473, %v1473
    %v1506 = vpack.c.b16 %v1474, %v1474
    %v1507 = vpack.c.b16 %v1475, %v1475
    %v1508 = vpack.c.b16 %v1476, %v1476
    %v1509 = vpack.c.b16 %v1477, %v1477
    %v1510 = vpack.c.b16 %v1478, %v1478
    %v1511 = vpack.c.b16 %v1479, %v1479
    %v1512 = vpack.c.b16 %v1480, %v1480
    %v1513 = vpack.c.b16 %v1481, %v1481
    %v1514 = vpack.c.b16 %v1482, %v1482
    %v1515 = vpack.c.b16 %v1483, %v1483
    %v1516 = vpack.c.b16 %v1484, %v1484
    %v1517 = vpack.c.b16 %v1485, %v1485
    %v1518 = vpack.c.b16 %v1486, %v1486
    %v1519 = vpack.c.b16 %v1487, %v1487
    %v1520 = vpack.c.b16 %v1488, %v1488
    %v1521 = vpack.c.b16 %v1489, %v1489
    %v1522 = vpack.c.b16 %v1490, %v1490
    %v1523 = vpack.c.b16 %v1491, %v1491
    %v1524 = vpack.c.b16 %v1492, %v1492
    %v1525 = vpack.c.b16 %v1493, %v1493
    %v1526 = vpack.c.b16 %v1494, %v1494
    %v1527 = vpack.c.b16 %v1495, %v1495
    %v1528 = vpack.c.b16 %v1496, %v1496
    %v1529 = vpack.c.b16 %v1497, %v1497
    %v1530 = vpack.c.b16 %v1498, %v1498
    %v2587 = vunpack.c.l.b16 %v201
    %v2588 = vunpack.c.h.b16 %v201
    %v2589 = vunpack.c.l.b16 %v202
    %v2590 = vunpack.c.h.b16 %v202
    %v2591 = vunpack.c.l.b16 %v203
    %v2592 = vunpack.c.h.b16 %v203
    %v2593 = vunpack.c.l.b16 %v204
    %v2594 = vunpack.c.h.b16 %v204
    %v2595 = vunpack.c.l.b16 %v205
    %v2596 = vunpack.c.h.b16 %v205
    %v2597 = vunpack.c.l.b16 %v206
    %v2598 = vunpack.c.h.b16 %v206
    %v2599 = vunpack.c.l.b16 %v207
    %v2600 = vunpack.c.h.b16 %v207
    %v2601 = vunpack.c.l.b16 %v208
    %v2602 = vunpack.c.h.b16 %v208
    %v2603 = vunpack.c.l.b16 %v209
    %v2604 = vunpack.c.h.b16 %v209
    %v2605 = vunpack.c.l.b16 %v210
    %v2606 = vunpack.c.h.b16 %v210
    %v2607 = vunpack.c.l.b16 %v211
    %v2608 = vunpack.c.h.b16 %v211
    %v2609 = vunpack.c.l.b16 %v212
    %v2610 = vunpack.c.h.b16 %v212
    %v2611 = vunpack.c.l.b16 %v213
    %v2612 = vunpack.c.h.b16 %v213
    %v2613 = vunpack.c.l.b16 %v214
    %v2614 = vunpack.c.h.b16 %v214
    %v2615 = vunpack.c.l.b16 %v215
    %v2616 = vunpack.c.h.b16 %v215
    %v2617 = vunpack.c.l.b16 %v216
    %v2618 = vunpack.c.h.b16 %v216
    %v2619 = vunpack.c.l.b16 %v217
    %v2620 = vunpack.c.h.b16 %v217
    %v2621 = vunpack.c.l.b16 %v218
    %v2622 = vunpack.c.h.b16 %v218
    %v2623 = vunpack.c.l.b16 %v219
    %v2624 = vunpack.c.h.b16 %v219
    %v2625 = vunpack.c.l.b16 %v220
    %v2626 = vunpack.c.h.b16 %v220
    %v2627 = vunpack.c.l.b16 %v221
    %v2628 = vunpack.c.h.b16 %v221
    %v2629 = vunpack.c.l.b16 %v222
    %v2630 = vunpack.c.h.b16 %v222
    %v2631 = vunpack.c.l.b16 %v223
    %v2632 = vunpack.c.h.b16 %v223
    %v2633 = vunpack.c.l.b16 %v224
    %v2634 = vunpack.c.h.b16 %v224
    %v2635 = vunpack.c.l.b16 %v225
    %v2636 = vunpack.c.h.b16 %v225
    %v2637 = vunpack.c.l.b16 %v226
    %v2638 = vunpack.c.h.b16 %v226
    %v2639 = vunpack.c.l.b16 %v227
    %v2640 = vunpack.c.h.b16 %v227
    %v2641 = vunpack.c.l.b16 %v228
    %v2642 = vunpack.c.h.b16 %v228
    %v2643 = vunpack.c.l.b16 %v229
    %v2644 = vunpack.c.h.b16 %v229
    %v2645 = vunpack.c.l.b16 %v230
    %v2646 = vunpack.c.h.b16 %v230
    %v2647 = vunpack.c.l.b16 %v231
    %v2648 = vunpack.c.h.b16 %v231
    %v2649 = vunpack.c.l.b16 %v232
    %v2650 = vunpack.c.h.b16 %v232
    %v2651 = vunpack.c.l.b16 %v233
    %v2652 = vunpack.c.h.b16 %v233
    %v2653 = vunpack.c.l.b16 %v234
    %v2654 = vunpack.c.h.b16 %v234
    %v2655 = vunpack.c.l.b16 %v235
    %v2656 = vunpack.c.h.b16 %v235
    %v2657 = vunpack.c.l.b16 %v236
    %v2658 = vunpack.c.h.b16 %v236
    %v2659 = vunpack.c.l.b16 %v237
    %v2660 = vunpack.c.h.b16 %v237
    %v2661 = vunpack.c.l.b16 %v238
    %v2662 = vunpack.c.h.b16 %v238
    %v2663 = vunpack.c.l.b16 %v239
    %v2664 = vunpack.c.h.b16 %v239
    %v2665 = vunpack.c.l.b16 %v240
    %v2666 = vunpack.c.h.b16 %v240
    %v2667 = vunpack.c.l.b16 %v241
    %v2668 = vunpack.c.h.b16 %v241
    %v2669 = vunpack.c.l.b16 %v242
    %v2670 = vunpack.c.h.b16 %v242
    %v2671 = vunpack.c.l.b16 %v243
    %v2672 = vunpack.c.h.b16 %v243
    %v2673 = vunpack.c.l.b16 %v244
    %v2674 = vunpack.c.h.b16 %v244
    %v2675 = vunpack.c.l.b16 %v245
    %v2676 = vunpack.c.h.b16 %v245
    %v2677 = vunpack.c.l.b16 %v246
    %v2678 = vunpack.c.h.b16 %v246
    %v2679 = vunpack.c.l.b16 %v247
    %v2680 = vunpack.c.h.b16 %v247
    %v2681 = vunpack.c.l.b16 %v248
    %v2682 = vunpack.c.h.b16 %v248
    %v2683 = vunpack.c.l.b16 %v249
    %v2684 = vunpack.c.h.b16 %v249
    %v2685 = vunpack.c.l.b16 %v250
    %v2686 = vunpack.c.h.b16 %v250
    %v2687 = vunpack.c.l.b16 %v251
    %v2688 = vunpack.c.h.b16 %v251
    %v2689 = vunpack.c.l.b16 %v252
    %v2690 = vunpack.c.h.b16 %v252
    %v2691 = vunpack.c.l.b16 %v253
    %v2692 = vunpack.c.h.b16 %v253
    %v2693 = vunpack.c.l.b16 %v254
    %v2694 = vunpack.c.h.b16 %v254
    %v2695 = vunpack.c.l.b16 %v255
    %v2696 = vunpack.c.h.b16 %v255
    %v2697 = vunpack.c.l.b16 %v256
    %v2698 = vunpack.c.h.b16 %v256
    %v2699 = vunpack.c.l.b16 %v257
    %v2700 = vunpack.c.h.b16 %v257
    %v2701 = vunpack.c.l.b16 %v258
    %v2702 = vunpack.c.h.b16 %v258
    %v2703 = vunpack.c.l.b16 %v259
    %v2704 = vunpack.c.h.b16 %v259
    %v2705 = vunpack.c.l.b16 %v260
    %v2706 = vunpack.c.h.b16 %v260
    %v2707 = vunpack.c.l.b16 %v261
    %v2708 = vunpack.c.h.b16 %v261
    %v2709 = vunpack.c.l.b16 %v262
    %v2710 = vunpack.c.h.b16 %v262
    %v2711 = vunpack.c.l.b16 %v263
    %v2712 = vunpack.c.h.b16 %v263
    %v2713 = vunpack.c.l.b16 %v264
    %v2714 = vunpack.c.h.b16 %v264
    %v2715 = vunpack.c.l.b16 %v265
    %v2716 = vunpack.c.h.b16 %v265
    %v2717 = vunpack.c.l.b16 %v266
    %v2718 = vunpack.c.h.b16 %v266
    %v2719 = vunpack.c.l.b16 %v267
    %v2720 = vunpack.c.h.b16 %v267
    %v2721 = vunpack.c.l.b16 %v268
    %v2722 = vunpack.c.h.b16 %v268
    %v2723 = vunpack.c.l.b16 %v269
    %v2724 = vunpack.c.h.b16 %v269
    %v2725 = vunpack.c.l.b16 %v270
    %v2726 = vunpack.c.h.b16 %v270
    %v2727 = vunpack.c.l.b16 %v271
    %v2728 = vunpack.c.h.b16 %v271
    %v2729 = vunpack.c.l.b16 %v272
    %v2730 = vunpack.c.h.b16 %v272
    %v2731 = vunpack.c.l.b16 %v273
    %v2732 = vunpack.c.h.b16 %v273
    %v2733 = vunpack.c.l.b16 %v274
    %v2734 = vunpack.c.h.b16 %v274
    %v2735 = vunpack.c.l.b16 %v275
    %v2736 = vunpack.c.h.b16 %v275
    %v2737 = vunpack.c.l.b16 %v276
    %v2738 = vunpack.c.h.b16 %v276
    %v2739 = vunpack.c.l.b16 %v277
    %v2740 = vunpack.c.h.b16 %v277
    %v2741 = vunpack.c.l.b16 %v278
    %v2742 = vunpack.c.h.b16 %v278
    %v2743 = vunpack.c.l.b16 %v279
    %v2744 = vunpack.c.h.b16 %v279
    %v2745 = vunpack.c.l.b16 %v280
    %v2746 = vunpack.c.h.b16 %v280
    %v2747 = vunpack.c.l.b16 %v281
    %v2748 = vunpack.c.h.b16 %v281
    %v2749 = vunpack.c.l.b16 %v282
    %v2750 = vunpack.c.h.b16 %v282
    %v2751 = vunpack.c.l.b16 %v283
    %v2752 = vunpack.c.h.b16 %v283
    %v2753 = vunpack.c.l.b16 %v284
    %v2754 = vunpack.c.h.b16 %v284
    %v2755 = vunpack.c.l.b16 %v285
    %v2756 = vunpack.c.h.b16 %v285
    %v2757 = vunpack.c.l.b16 %v286
    %v2758 = vunpack.c.h.b16 %v286
    %v2759 = vunpack.c.l.b16 %v287
    %v2760 = vunpack.c.h.b16 %v287
    %v2761 = vunpack.c.l.b16 %v288
    %v2762 = vunpack.c.h.b16 %v288
    %v2763 = vunpack.c.l.b16 %v289
    %v2764 = vunpack.c.h.b16 %v289
    %v2765 = vunpack.c.l.b16 %v290
    %v2766 = vunpack.c.h.b16 %v290
    %v2767 = vunpack.c.l.b16 %v291
    %v2768 = vunpack.c.h.b16 %v291
    %v2769 = vunpack.c.l.b16 %v292
    %v2770 = vunpack.c.h.b16 %v292
    %v2771 = vunpack.c.l.b16 %v293
    %v2772 = vunpack.c.h.b16 %v293
    %v2773 = vunpack.c.l.b16 %v294
    %v2774 = vunpack.c.h.b16 %v294
    %v2775 = vunpack.c.l.b16 %v295
    %v2776 = vunpack.c.h.b16 %v295
    %v2777 = vunpack.c.l.b16 %v296
    %v2778 = vunpack.c.h.b16 %v296
    %v2779 = vunpack.c.l.b16 %v297
    %v2780 = vunpack.c.h.b16 %v297
    %v2781 = vunpack.c.l.b16 %v298
    %v2782 = vunpack.c.h.b16 %v298
    %v2783 = vunpack.c.l.b16 %v299
    %v2784 = vunpack.c.h.b16 %v299
    %v2785 = vunpack.c.l.b16 %v300
    %v2786 = vunpack.c.h.b16 %v300
    %v2787 = vunpack.c.l.b16 %v301
    %v2788 = vunpack.c.h.b16 %v301
    %v2789 = vunpack.c.l.b16 %v302
    %v2790 = vunpack.c.h.b16 %v302
    %v2791 = vunpack.c.l.b16 %v303
    %v2792 = vunpack.c.h.b16 %v303
    %v2793 = vunpack.c.l.b16 %v304
    %v2794 = vunpack.c.h.b16 %v304
    %v2795 = vunpack.c.l.b16 %v305
    %v2796 = vunpack.c.h.b16 %v305
    %v2797 = vunpack.c.l.b16 %v306
    %v2798 = vunpack.c.h.b16 %v306
    %v2799 = vunpack.c.l.b16 %v307
    %v2800 = vunpack.c.h.b16 %v307
    %v2801 = vunpack.c.l.b16 %v308
    %v2802 = vunpack.c.h.b16 %v308
    %v2803 = vunpack.c.l.b16 %v309
    %v2804 = vunpack.c.h.b16 %v309
    %v2805 = vunpack.c.l.b16 %v310
    %v2806 = vunpack.c.h.b16 %v310
    %v2807 = vunpack.c.l.b16 %v311
    %v2808 = vunpack.c.h.b16 %v311
    %v2809 = vunpack.c.l.b16 %v312
    %v2810 = vunpack.c.h.b16 %v312
    %v2811 = vunpack.c.l.b16 %v313
    %v2812 = vunpack.c.h.b16 %v313
    %v2813 = vunpack.c.l.b16 %v314
    %v2814 = vunpack.c.h.b16 %v314
    %v2815 = vunpack.c.l.b16 %v315
    %v2816 = vunpack.c.h.b16 %v315
    %v2817 = vunpack.c.l.b16 %v316
    %v2818 = vunpack.c.h.b16 %v316
    %v2819 = vunpack.c.l.b16 %v317
    %v2820 = vunpack.c.h.b16 %v317
    %v2821 = vunpack.c.l.b16 %v318
    %v2822 = vunpack.c.h.b16 %v318
    %v2823 = vunpack.c.l.b16 %v319
    %v2824 = vunpack.c.h.b16 %v319
    %v2825 = vunpack.c.l.b16 %v320
    %v2826 = vunpack.c.h.b16 %v320
    %v2827 = vunpack.c.l.b16 %v321
    %v2828 = vunpack.c.h.b16 %v321
    %v2829 = vunpack.c.l.b16 %v322
    %v2830 = vunpack.c.h.b16 %v322
    %v2831 = vunpack.c.l.b16 %v323
    %v2832 = vunpack.c.h.b16 %v323
    %v2833 = vunpack.c.l.b16 %v324
    %v2834 = vunpack.c.h.b16 %v324
    %v2835 = vunpack.c.l.b16 %v325
    %v2836 = vunpack.c.h.b16 %v325
    %v2837 = vunpack.c.l.b16 %v326
    %v2838 = vunpack.c.h.b16 %v326
    %v2839 = vunpack.c.l.b16 %v327
    %v2840 = vunpack.c.h.b16 %v327
    %v2841 = vunpack.c.l.b16 %v328
    %v2842 = vunpack.c.h.b16 %v328
    %v2843 = vunpack.c.l.b16 %v329
    %v2844 = vunpack.c.h.b16 %v329
    %v2845 = vunpack.c.l.b16 %v330
    %v2846 = vunpack.c.h.b16 %v330
    %v2847 = vunpack.c.l.b16 %v331
    %v2848 = vunpack.c.h.b16 %v331
    %v2849 = vunpack.c.l.b16 %v332
    %v2850 = vunpack.c.h.b16 %v332
    %v2851 = vunpack.c.l.b16 %v333
    %v2852 = vunpack.c.h.b16 %v333
    %v2853 = vunpack.c.l.b16 %v334
    %v2854 = vunpack.c.h.b16 %v334
    %v2855 = vunpack.c.l.b16 %v335
    %v2856 = vunpack.c.h.b16 %v335
    %v2857 = vunpack.c.l.b16 %v336
    %v2858 = vunpack.c.h.b16 %v336
    %v2859 = vunpack.c.l.b16 %v337
    %v2860 = vunpack.c.h.b16 %v337
    %v2861 = vunpack.c.l.b16 %v338
    %v2862 = vunpack.c.h.b16 %v338
    %v2863 = vunpack.c.l.b16 %v339
    %v2864 = vunpack.c.h.b16 %v339
    %v2865 = vunpack.c.l.b16 %v340
    %v2866 = vunpack.c.h.b16 %v340
    %v2867 = vunpack.c.l.b16 %v341
    %v2868 = vunpack.c.h.b16 %v341
    %v2869 = vunpack.c.l.b16 %v342
    %v2870 = vunpack.c.h.b16 %v342
    %v2871 = vunpack.c.l.b16 %v343
    %v2872 = vunpack.c.h.b16 %v343
    %v2873 = vunpack.c.l.b16 %v344
    %v2874 = vunpack.c.h.b16 %v344
    %v2875 = vunpack.c.l.b16 %v345
    %v2876 = vunpack.c.h.b16 %v345
    %v2877 = vunpack.c.l.b16 %v346
    %v2878 = vunpack.c.h.b16 %v346
    %v2879 = vunpack.c.l.b16 %v347
    %v2880 = vunpack.c.h.b16 %v347
    %v2881 = vunpack.c.l.b16 %v348
    %v2882 = vunpack.c.h.b16 %v348
    %v2883 = vunpack.c.l.b16 %v349
    %v2884 = vunpack.c.h.b16 %v349
    %v2885 = vunpack.c.l.b16 %v350
    %v2886 = vunpack.c.h.b16 %v350
    %v2887 = vunpack.c.l.b16 %v351
    %v2888 = vunpack.c.h.b16 %v351
    %v2889 = vunpack.c.l.b16 %v352
    %v2890 = vunpack.c.h.b16 %v352
    %v2891 = vunpack.c.l.b16 %v353
    %v2892 = vunpack.c.h.b16 %v353
    %v2893 = vunpack.c.l.b16 %v354
    %v2894 = vunpack.c.h.b16 %v354
    %v2895 = vunpack.c.l.b16 %v355
    %v2896 = vunpack.c.h.b16 %v355
    %v2897 = vunpack.c.l.b16 %v356
    %v2898 = vunpack.c.h.b16 %v356
    %v2899 = vunpack.c.l.b16 %v357
    %v2900 = vunpack.c.h.b16 %v357
    %v2901 = vunpack.c.l.b16 %v358
    %v2902 = vunpack.c.h.b16 %v358
    %v2903 = vunpack.c.l.b16 %v359
    %v2904 = vunpack.c.h.b16 %v359
    %v2905 = vunpack.c.l.b16 %v360
    %v2906 = vunpack.c.h.b16 %v360
    %v2907 = vunpack.c.l.b16 %v361
    %v2908 = vunpack.c.h.b16 %v361
    %v2909 = vunpack.c.l.b16 %v362
    %v2910 = vunpack.c.h.b16 %v362
    %v2911 = vunpack.c.l.b16 %v363
    %v2912 = vunpack.c.h.b16 %v363
    %v2913 = vunpack.c.l.b16 %v364
    %v2914 = vunpack.c.h.b16 %v364
    %v2915 = vunpack.c.l.b16 %v365
    %v2916 = vunpack.c.h.b16 %v365
    %v2917 = vunpack.c.l.b16 %v366
    %v2918 = vunpack.c.h.b16 %v366
    %v2919 = vunpack.c.l.b16 %v367
    %v2920 = vunpack.c.h.b16 %v367
    %v2921 = vunpack.c.l.b16 %v368
    %v2922 = vunpack.c.h.b16 %v368
    %v2923 = vunpack.c.l.b16 %v369
    %v2924 = vunpack.c.h.b16 %v369
    %v2925 = vunpack.c.l.b16 %v370
    %v2926 = vunpack.c.h.b16 %v370
    %v2927 = vunpack.c.l.b16 %v371
    %v2928 = vunpack.c.h.b16 %v371
    %v2929 = vunpack.c.l.b16 %v372
    %v2930 = vunpack.c.h.b16 %v372
    %v2931 = vunpack.c.l.b16 %v373
    %v2932 = vunpack.c.h.b16 %v373
    %v2933 = vunpack.c.l.b16 %v374
    %v2934 = vunpack.c.h.b16 %v374
    %v2935 = vunpack.c.l.b16 %v375
    %v2936 = vunpack.c.h.b16 %v375
    %v2937 = vunpack.c.l.b16 %v376
    %v2938 = vunpack.c.h.b16 %v376
    %v2939 = vunpack.c.l.b16 %v377
    %v2940 = vunpack.c.h.b16 %v377
    %v2941 = vunpack.c.l.b16 %v378
    %v2942 = vunpack.c.h.b16 %v378
    %v2943 = vunpack.c.l.b16 %v379
    %v2944 = vunpack.c.h.b16 %v379
    %v2945 = vunpack.c.l.b16 %v380
    %v2946 = vunpack.c.h.b16 %v380
    %v2947 = vunpack.c.l.b16 %v381
    %v2948 = vunpack.c.h.b16 %v381
    %v2949 = vunpack.c.l.b16 %v382
    %v2950 = vunpack.c.h.b16 %v382
    %v2951 = vunpack.c.l.b16 %v383
    %v2952 = vunpack.c.h.b16 %v383
    %v2953 = vunpack.c.l.b16 %v384
    %v2954 = vunpack.c.h.b16 %v384
    %v2955 = vunpack.c.l.b16 %v385
    %v2956 = vunpack.c.h.b16 %v385
    %v2957 = vunpack.c.l.b16 %v386
    %v2958 = vunpack.c.h.b16 %v386
    %v2959 = vunpack.c.l.b16 %v387
    %v2960 = vunpack.c.h.b16 %v387
    %v2961 = vunpack.c.l.b16 %v388
    %v2962 = vunpack.c.h.b16 %v388
    %v2963 = vunpack.c.l.b16 %v389
    %v2964 = vunpack.c.h.b16 %v389
    %v2965 = vunpack.c.l.b16 %v390
    %v2966 = vunpack.c.h.b16 %v390
    %v2967 = vunpack.c.l.b16 %v391
    %v2968 = vunpack.c.h.b16 %v391
    %v2969 = vunpack.c.l.b16 %v392
    %v2970 = vunpack.c.h.b16 %v392
    %v2971 = vunpack.c.l.b16 %v393
    %v2972 = vunpack.c.h.b16 %v393
    %v2973 = vunpack.c.l.b16 %v394
    %v2974 = vunpack.c.h.b16 %v394
    %v2975 = vunpack.c.l.b16 %v395
    %v2976 = vunpack.c.h.b16 %v395
    %v2977 = vunpack.c.l.b16 %v396
    %v2978 = vunpack.c.h.b16 %v396
    %v2979 = vunpack.c.l.b16 %v397
    %v2980 = vunpack.c.h.b16 %v397
    %v2981 = vunpack.c.l.b16 %v398
    %v2982 = vunpack.c.h.b16 %v398
    %v2983 = vunpack.c.l.b16 %v399
    %v2984 = vunpack.c.h.b16 %v399
    %v2985 = vunpack.c.l.b16 %v400
    %v2986 = vunpack.c.h.b16 %v400
    %v2987 = vunpack.c.l.b16 %v401
    %v2988 = vunpack.c.h.b16 %v401
    %v2989 = vunpack.c.l.b16 %v402
    %v2990 = vunpack.c.h.b16 %v402
    %v2991 = vunpack.c.l.b16 %v403
    %v2992 = vunpack.c.h.b16 %v403
    %v2993 = vunpack.c.l.b16 %v404
    %v2994 = vunpack.c.h.b16 %v404
    %v2995 = vunpack.c.l.b16 %v405
    %v2996 = vunpack.c.h.b16 %v405
    %v2997 = vunpack.c.l.b16 %v406
    %v2998 = vunpack.c.h.b16 %v406
    %v2999 = vunpack.c.l.b16 %v407
    %v3000 = vunpack.c.h.b16 %v407
    %v3001 = vunpack.c.l.b16 %v408
    %v3002 = vunpack.c.h.b16 %v408
    %v3003 = vunpack.c.l.b16 %v409
    %v3004 = vunpack.c.h.b16 %v409
    %v3005 = vunpack.c.l.b16 %v410
    %v3006 = vunpack.c.h.b16 %v410
    %v3007 = vunpack.c.l.b16 %v411
    %v3008 = vunpack.c.h.b16 %v411
    %v3009 = vunpack.c.l.b16 %v412
    %v3010 = vunpack.c.h.b16 %v412
    %v3011 = vunpack.c.l.b16 %v413
    %v3012 = vunpack.c.h.b16 %v413
    %v3013 = vunpack.c.l.b16 %v414
    %v3014 = vunpack.c.h.b16 %v414
    %v3015 = vunpack.c.l.b16 %v415
    %v3016 = vunpack.c.h.b16 %v415
    %v3017 = vunpack.c.l.b16 %v416
    %v3018 = vunpack.c.h.b16 %v416
    %v3019 = vunpack.c.l.b16 %v417
    %v3020 = vunpack.c.h.b16 %v417
    %v3021 = vunpack.c.l.b16 %v418
    %v3022 = vunpack.c.h.b16 %v418
    %v3023 = vunpack.c.l.b16 %v419
    %v3024 = vunpack.c.h.b16 %v419
    %v3025 = vunpack.c.l.b16 %v420
    %v3026 = vunpack.c.h.b16 %v420
    %v3027 = vunpack.c.l.b16 %v421
    %v3028 = vunpack.c.h.b16 %v421
    %v3029 = vunpack.c.l.b16 %v422
    %v3030 = vunpack.c.h.b16 %v422
    %v3031 = vunpack.c.l.b16 %v423
    %v3032 = vunpack.c.h.b16 %v423
    %v3033 = vunpack.c.l.b16 %v424
    %v3034 = vunpack.c.h.b16 %v424
    %v3035 = vunpack.c.l.b16 %v425
    %v3036 = vunpack.c.h.b16 %v425
    %v3037 = vunpack.c.l.b16 %v426
    %v3038 = vunpack.c.h.b16 %v426
    %v3039 = vunpack.c.l.b16 %v427
    %v3040 = vunpack.c.h.b16 %v427
    %v3041 = vunpack.c.l.b16 %v428
    %v3042 = vunpack.c.h.b16 %v428
    %v3043 = vunpack.c.l.b16 %v429
    %v3044 = vunpack.c.h.b16 %v429
    %v3045 = vunpack.c.l.b16 %v430
    %v3046 = vunpack.c.h.b16 %v430
    %v3047 = vunpack.c.l.b16 %v431
    %v3048 = vunpack.c.h.b16 %v431
    %v3049 = vunpack.c.l.b16 %v432
    %v3050 = vunpack.c.h.b16 %v432
    %v3051 = vunpack.c.l.b16 %v433
    %v3052 = vunpack.c.h.b16 %v433
    %v3053 = vunpack.c.l.b16 %v434
    %v3054 = vunpack.c.h.b16 %v434
    %v3055 = vunpack.c.l.b16 %v435
    %v3056 = vunpack.c.h.b16 %v435
    %v3057 = vunpack.c.l.b16 %v436
    %v3058 = vunpack.c.h.b16 %v436
    %v3059 = vunpack.c.l.b16 %v437
    %v3060 = vunpack.c.h.b16 %v437
    %v3061 = vunpack.c.l.b16 %v438
    %v3062 = vunpack.c.h.b16 %v438
    %v3063 = vunpack.c.l.b16 %v439
    %v3064 = vunpack.c.h.b16 %v439
    %v3065 = vunpack.c.l.b16 %v440
    %v3066 = vunpack.c.h.b16 %v440
    %v3067 = vunpack.c.l.b16 %v441
    %v3068 = vunpack.c.h.b16 %v441
    %v3069 = vunpack.c.l.b16 %v442
    %v3070 = vunpack.c.h.b16 %v442
    %v3071 = vunpack.c.l.b16 %v443
    %v3072 = vunpack.c.h.b16 %v443
    %v3073 = vunpack.c.l.b16 %v444
    %v3074 = vunpack.c.h.b16 %v444
    %v3075 = vunpack.c.l.b16 %v445
    %v3076 = vunpack.c.h.b16 %v445
    %v3077 = vunpack.c.l.b16 %v446
    %v3078 = vunpack.c.h.b16 %v446
    %v3079 = vunpack.c.l.b16 %v447
    %v3080 = vunpack.c.h.b16 %v447
    %v3081 = vunpack.c.l.b16 %v448
    %v3082 = vunpack.c.h.b16 %v448
    %v3083 = vunpack.c.l.b16 %v449
    %v3084 = vunpack.c.h.b16 %v449
    %v3085 = vunpack.c.l.b16 %v450
    %v3086 = vunpack.c.h.b16 %v450
    %v3087 = vunpack.c.l.b16 %v451
    %v3088 = vunpack.c.h.b16 %v451
    %v3089 = vunpack.c.l.b16 %v452
    %v3090 = vunpack.c.h.b16 %v452
    %v3091 = vunpack.c.l.b16 %v453
    %v3092 = vunpack.c.h.b16 %v453
    %v3093 = vunpack.c.l.b16 %v454
    %v3094 = vunpack.c.h.b16 %v454
    %v3095 = vunpack.c.l.b16 %v455
    %v3096 = vunpack.c.h.b16 %v455
    %v3097 = vunpack.c.l.b16 %v456
    %v3098 = vunpack.c.h.b16 %v456
    %v3099 = vunpack.c.l.b16 %v457
    %v3100 = vunpack.c.h.b16 %v457
    %v3101 = vunpack.c.l.b16 %v458
    %v3102 = vunpack.c.h.b16 %v458
    %v3103 = vunpack.c.l.b16 %v459
    %v3104 = vunpack.c.h.b16 %v459
    %v3105 = vunpack.c.l.b16 %v460
    %v3106 = vunpack.c.h.b16 %v460
    %v3107 = vunpack.c.l.b16 %v461
    %v3108 = vunpack.c.h.b16 %v461
    %v3109 = vunpack.c.l.b16 %v462
    %v3110 = vunpack.c.h.b16 %v462
    %v3111 = vunpack.c.l.b16 %v463
    %v3112 = vunpack.c.h.b16 %v463
    %v3113 = vunpack.c.l.b16 %v464
    %v3114 = vunpack.c.h.b16 %v464
    %v3115 = vunpack.c.l.b16 %v465
    %v3116 = vunpack.c.h.b16 %v465
    %v3117 = vunpack.c.l.b16 %v466
    %v3118 = vunpack.c.h.b16 %v466
    %v3119 = vunpack.c.l.b16 %v467
    %v3120 = vunpack.c.h.b16 %v467
    %v3121 = vunpack.c.l.b16 %v468
    %v3122 = vunpack.c.h.b16 %v468
    %v3123 = vunpack.c.l.b16 %v469
    %v3124 = vunpack.c.h.b16 %v469
    %v3125 = vunpack.c.l.b16 %v470
    %v3126 = vunpack.c.h.b16 %v470
    %v3127 = vunpack.c.l.b16 %v471
    %v3128 = vunpack.c.h.b16 %v471
    %v3129 = vunpack.c.l.b16 %v472
    %v3130 = vunpack.c.h.b16 %v472
    %v3131 = vunpack.c.l.b16 %v473
    %v3132 = vunpack.c.h.b16 %v473
    %v3133 = vunpack.c.l.b16 %v474
    %v3134 = vunpack.c.h.b16 %v474
    %v3135 = vunpack.c.l.b16 %v475
    %v3136 = vunpack.c.h.b16 %v475
    %v3137 = vunpack.c.l.b16 %v476
    %v3138 = vunpack.c.h.b16 %v476
    %v3139 = vunpack.c.l.b16 %v477
    %v3140 = vunpack.c.h.b16 %v477
    %v3141 = vunpack.c.l.b16 %v478
    %v3142 = vunpack.c.h.b16 %v478
    %v3143 = vunpack.c.l.b16 %v479
    %v3144 = vunpack.c.h.b16 %v479
    %v3145 = vunpack.c.l.b16 %v480
    %v3146 = vunpack.c.h.b16 %v480
    %v3147 = vunpack.c.l.b16 %v481
    %v3148 = vunpack.c.h.b16 %v481
    %v3149 = vunpack.c.l.b16 %v482
    %v3150 = vunpack.c.h.b16 %v482
    %v3151 = vunpack.c.l.b16 %v483
    %v3152 = vunpack.c.h.b16 %v483
    %v3153 = vunpack.c.l.b16 %v484
    %v3154 = vunpack.c.h.b16 %v484
    %v3155 = vunpack.c.l.b16 %v485
    %v3156 = vunpack.c.h.b16 %v485
    %v3157 = vunpack.c.l.b16 %v486
    %v3158 = vunpack.c.h.b16 %v486
    %v3159 = vunpack.c.l.b16 %v487
    %v3160 = vunpack.c.h.b16 %v487
    %v3161 = vunpack.c.l.b16 %v488
    %v3162 = vunpack.c.h.b16 %v488
    %v3163 = vunpack.c.l.b16 %v489
    %v3164 = vunpack.c.h.b16 %v489
    %v3165 = vunpack.c.l.b16 %v490
    %v3166 = vunpack.c.h.b16 %v490
    %v3167 = vunpack.c.l.b16 %v491
    %v3168 = vunpack.c.h.b16 %v491
    %v3169 = vunpack.c.l.b16 %v492
    %v3170 = vunpack.c.h.b16 %v492
    %v3171 = vunpack.c.l.b16 %v493
    %v3172 = vunpack.c.h.b16 %v493
    %v3173 = vunpack.c.l.b16 %v494
    %v3174 = vunpack.c.h.b16 %v494
    %v3175 = vunpack.c.l.b16 %v495
    %v3176 = vunpack.c.h.b16 %v495
    %v3177 = vunpack.c.l.b16 %v496
    %v3178 = vunpack.c.h.b16 %v496
    %v3179 = vunpack.c.l.b16 %v497
    %v3180 = vunpack.c.h.b16 %v497
    %v3181 = vunpack.c.l.b16 %v498
    %v3182 = vunpack.c.h.b16 %v498
    %v3183 = vunpack.c.l.b16 %v499
    %v3184 = vunpack.c.h.b16 %v499
    %v3185 = vunpack.c.l.b16 %v500
    %v3186 = vunpack.c.h.b16 %v500
    %v3187 = vunpack.c.l.b16 %v501
    %v3188 = vunpack.c.h.b16 %v501
    %v3189 = vunpack.c.l.b16 %v502
    %v3190 = vunpack.c.h.b16 %v502
    %v3191 = vunpack.c.l.b16 %v503
    %v3192 = vunpack.c.h.b16 %v503
    %v3193 = vunpack.c.l.b16 %v504
    %v3194 = vunpack.c.h.b16 %v504
    %v3195 = vunpack.c.l.b16 %v505
    %v3196 = vunpack.c.h.b16 %v505
    %v3197 = vunpack.c.l.b16 %v506
    %v3198 = vunpack.c.h.b16 %v506
    %v3199 = vunpack.c.l.b16 %v507
    %v3200 = vunpack.c.h.b16 %v507
    %v3201 = vunpack.c.l.b16 %v508
    %v3202 = vunpack.c.h.b16 %v508
    %v3203 = vunpack.c.l.b16 %v509
    %v3204 = vunpack.c.h.b16 %v509
    %v3205 = vunpack.c.l.b16 %v510
    %v3206 = vunpack.c.h.b16 %v510
    %v3207 = vunpack.c.l.b16 %v511
    %v3208 = vunpack.c.h.b16 %v511
    %v3209 = vunpack.c.l.b16 %v512
    %v3210 = vunpack.c.h.b16 %v512
    %v3211 = vunpack.c.l.b16 %v513
    %v3212 = vunpack.c.h.b16 %v513
    %v3213 = vunpack.c.l.b16 %v514
    %v3214 = vunpack.c.h.b16 %v514
    %v3215 = vunpack.c.l.b16 %v515
    %v3216 = vunpack.c.h.b16 %v515
    %v3217 = vunpack.c.l.b16 %v516
    %v3218 = vunpack.c.h.b16 %v516
    %v3219 = vunpack.c.l.b16 %v517
    %v3220 = vunpack.c.h.b16 %v517
    %v3221 = vunpack.c.l.b16 %v518
    %v3222 = vunpack.c.h.b16 %v518
    %v3223 = vunpack.c.l.b16 %v519
    %v3224 = vunpack.c.h.b16 %v519
    %v3225 = vunpack.c.l.b16 %v520
    %v3226 = vunpack.c.h.b16 %v520
    %v3227 = vunpack.c.l.b16 %v521
    %v3228 = vunpack.c.h.b16 %v521
    %v3229 = vunpack.c.l.b16 %v522
    %v3230 = vunpack.c.h.b16 %v522
    %v3231 = vunpack.c.l.b16 %v523
    %v3232 = vunpack.c.h.b16 %v523
    %v3233 = vunpack.c.l.b16 %v524
    %v3234 = vunpack.c.h.b16 %v524
    %v3235 = vunpack.c.l.b16 %v525
    %v3236 = vunpack.c.h.b16 %v525
    %v3237 = vunpack.c.l.b16 %v526
    %v3238 = vunpack.c.h.b16 %v526
    %v3239 = vunpack.c.l.b16 %v527
    %v3240 = vunpack.c.h.b16 %v527
    %v3241 = vunpack.c.l.b16 %v528
    %v3242 = vunpack.c.h.b16 %v528
    %v3243 = vunpack.c.l.b16 %v529
    %v3244 = vunpack.c.h.b16 %v529
    %v3245 = vunpack.c.l.b16 %v530
    %v3246 = vunpack.c.h.b16 %v530
    %v3247 = vunpack.c.l.b16 %v531
    %v3248 = vunpack.c.h.b16 %v531
    %v3249 = vunpack.c.l.b16 %v532
    %v3250 = vunpack.c.h.b16 %v532
    %v3251 = vunpack.c.l.b16 %v533
    %v3252 = vunpack.c.h.b16 %v533
    %v3253 = vunpack.c.l.b16 %v534
    %v3254 = vunpack.c.h.b16 %v534
    %v3255 = vunpack.c.l.b16 %v535
    %v3256 = vunpack.c.h.b16 %v535
    %v3257 = vunpack.c.l.b16 %v536
    %v3258 = vunpack.c.h.b16 %v536
    %v3259 = vunpack.c.l.b16 %v537
    %v3260 = vunpack.c.h.b16 %v537
    %v3261 = vunpack.c.l.b16 %v538
    %v3262 = vunpack.c.h.b16 %v538
    %v3263 = vunpack.c.l.b16 %v539
    %v3264 = vunpack.c.h.b16 %v539
    %v3265 = vunpack.c.l.b16 %v540
    %v3266 = vunpack.c.h.b16 %v540
    %v3267 = vunpack.c.l.b16 %v541
    %v3268 = vunpack.c.h.b16 %v541
    %v3269 = vunpack.c.l.b16 %v542
    %v3270 = vunpack.c.h.b16 %v542
    %v3271 = vunpack.c.l.b16 %v543
    %v3272 = vunpack.c.h.b16 %v543
    %v3273 = vunpack.c.l.b16 %v544
    %v3274 = vunpack.c.h.b16 %v544
    %v3275 = vunpack.c.l.b16 %v545
    %v3276 = vunpack.c.h.b16 %v545
    %v3277 = vunpack.c.l.b16 %v546
    %v3278 = vunpack.c.h.b16 %v546
    %v3279 = vunpack.c.l.b16 %v547
    %v3280 = vunpack.c.h.b16 %v547
    %v3281 = vunpack.c.l.b16 %v548
    %v3282 = vunpack.c.h.b16 %v548
    %v3283 = vunpack.c.l.b16 %v549
    %v3284 = vunpack.c.h.b16 %v549
    %v3285 = vunpack.c.l.b16 %v550
    %v3286 = vunpack.c.h.b16 %v550
    %v3287 = vunpack.c.l.b16 %v551
    %v3288 = vunpack.c.h.b16 %v551
    %v3289 = vunpack.c.l.b16 %v552
    %v3290 = vunpack.c.h.b16 %v552
    %v3291 = vunpack.c.l.b16 %v553
    %v3292 = vunpack.c.h.b16 %v553
    %v3293 = vunpack.c.l.b16 %v554
    %v3294 = vunpack.c.h.b16 %v554
    %v3295 = vunpack.c.l.b16 %v555
    %v3296 = vunpack.c.h.b16 %v555
    %v3297 = vunpack.c.l.b16 %v556
    %v3298 = vunpack.c.h.b16 %v556
    %v3299 = vunpack.c.l.b16 %v557
    %v3300 = vunpack.c.h.b16 %v557
    %v3301 = vunpack.c.l.b16 %v558
    %v3302 = vunpack.c.h.b16 %v558
    %v3303 = vunpack.c.l.b16 %v559
    %v3304 = vunpack.c.h.b16 %v559
    %v3305 = vunpack.c.l.b16 %v560
    %v3306 = vunpack.c.h.b16 %v560
    %v3307 = vunpack.c.l.b16 %v561
    %v3308 = vunpack.c.h.b16 %v561
    %v3309 = vunpack.c.l.b16 %v562
    %v3310 = vunpack.c.h.b16 %v562
    %v3311 = vunpack.c.l.b16 %v563
    %v3312 = vunpack.c.h.b16 %v563
    %v3313 = vunpack.c.l.b16 %v564
    %v3314 = vunpack.c.h.b16 %v564
    %v3315 = vunpack.c.l.b16 %v565
    %v3316 = vunpack.c.h.b16 %v565
    %v3317 = vunpack.c.l.b16 %v566
    %v3318 = vunpack.c.h.b16 %v566
    %v3319 = vunpack.c.l.b16 %v567
    %v3320 = vunpack.c.h.b16 %v567
    %v3321 = vunpack.c.l.b16 %v568
    %v3322 = vunpack.c.h.b16 %v568
    %v3323 = vunpack.c.l.b16 %v569
    %v3324 = vunpack.c.h.b16 %v569
    %v3325 = vunpack.c.l.b16 %v570
    %v3326 = vunpack.c.h.b16 %v570
    %v3327 = vunpack.c.l.b16 %v571
    %v3328 = vunpack.c.h.b16 %v571
    %v3329 = vunpack.c.l.b16 %v572
    %v3330 = vunpack.c.h.b16 %v572
    %v3331 = vunpack.c.l.b16 %v573
    %v3332 = vunpack.c.h.b16 %v573
    %v3333 = vunpack.c.l.b16 %v574
    %v3334 = vunpack.c.h.b16 %v574
    %v3335 = vunpack.c.l.b16 %v575
    %v3336 = vunpack.c.h.b16 %v575
    %v3337 = vunpack.c.l.b16 %v576
    %v3338 = vunpack.c.h.b16 %v576
    %v3339 = vunpack.c.l.b16 %v577
    %v3340 = vunpack.c.h.b16 %v577
    %v3341 = vunpack.c.l.b16 %v578
    %v3342 = vunpack.c.h.b16 %v578
    %v3343 = vunpack.c.l.b16 %v579
    %v3344 = vunpack.c.h.b16 %v579
    %v3345 = vunpack.c.l.b16 %v580
    %v3346 = vunpack.c.h.b16 %v580
    %v3347 = vunpack.c.l.b16 %v581
    %v3348 = vunpack.c.h.b16 %v581
    %v3349 = vunpack.c.l.b16 %v582
    %v3350 = vunpack.c.h.b16 %v582
    %v3351 = vunpack.c.l.b16 %v583
    %v3352 = vunpack.c.h.b16 %v583
    %v3353 = vunpack.c.l.b16 %v584
    %v3354 = vunpack.c.h.b16 %v584
    %v3355 = vunpack.c.l.b16 %v585
    %v3356 = vunpack.c.h.b16 %v585
    %v3357 = vunpack.c.l.b16 %v586
    %v3358 = vunpack.c.h.b16 %v586
    %v3359 = vunpack.c.l.b16 %v587
    %v3360 = vunpack.c.h.b16 %v587
    %v3361 = vunpack.c.l.b16 %v588
    %v3362 = vunpack.c.h.b16 %v588
    %v3363 = vunpack.c.l.b16 %v589
    %v3364 = vunpack.c.h.b16 %v589
    %v3365 = vunpack.c.l.b16 %v590
    %v3366 = vunpack.c.h.b16 %v590
    %v3367 = vunpack.c.l.b16 %v591
    %v3368 = vunpack.c.h.b16 %v591
    %v3369 = vunpack.c.l.b16 %v592
    %v3370 = vunpack.c.h.b16 %v592
    %v3371 = vunpack.c.l.b16 %v593
    %v3372 = vunpack.c.h.b16 %v593
    %v3373 = vunpack.c.l.b16 %v594
    %v3374 = vunpack.c.h.b16 %v594
    %v3375 = vunpack.c.l.b16 %v595
    %v3376 = vunpack.c.h.b16 %v595
    %v3377 = vunpack.c.l.b16 %v596
    %v3378 = vunpack.c.h.b16 %v596
    %v3379 = vunpack.c.l.b16 %v597
    %v3380 = vunpack.c.h.b16 %v597
    %v3381 = vunpack.c.l.b16 %v598
    %v3382 = vunpack.c.h.b16 %v598
    %v3383 = vunpack.c.l.b16 %v599
    %v3384 = vunpack.c.h.b16 %v599
    %v3385 = vunpack.c.l.b16 %v600
    %v3386 = vunpack.c.h.b16 %v600
    %v3387 = vunpack.c.l.b16 %v601
    %v3388 = vunpack.c.h.b16 %v601
    %v3389 = vunpack.c.l.b16 %v602
    %v3390 = vunpack.c.h.b16 %v602
    %v3391 = vunpack.c.l.b16 %v603
    %v3392 = vunpack.c.h.b16 %v603
    %v3393 = vunpack.c.l.b16 %v604
    %v3394 = vunpack.c.h.b16 %v604
    %v3395 = vunpack.c.l.b16 %v605
    %v3396 = vunpack.c.h.b16 %v605
    %v3397 = vunpack.c.l.b16 %v606
    %v3398 = vunpack.c.h.b16 %v606
    %v3399 = vunpack.c.l.b16 %v607
    %v3400 = vunpack.c.h.b16 %v607
    %v3401 = vunpack.c.l.b16 %v608
    %v3402 = vunpack.c.h.b16 %v608
    %v3403 = vunpack.c.l.b16 %v609
    %v3404 = vunpack.c.h.b16 %v609
    %v3405 = vunpack.c.l.b16 %v610
    %v3406 = vunpack.c.h.b16 %v610
    %v3407 = vunpack.c.l.b16 %v611
    %v3408 = vunpack.c.h.b16 %v611
    %v3409 = vunpack.c.l.b16 %v612
    %v3410 = vunpack.c.h.b16 %v612
    %v3411 = vunpack.c.l.b16 %v613
    %v3412 = vunpack.c.h.b16 %v613
    %v3413 = vunpack.c.l.b16 %v614
    %v3414 = vunpack.c.h.b16 %v614
    %v3415 = vunpack.c.l.b16 %v615
    %v3416 = vunpack.c.h.b16 %v615
    %v3417 = vunpack.c.l.b16 %v616
    %v3418 = vunpack.c.h.b16 %v616
    %v3419 = vunpack.c.l.b16 %v617
    %v3420 = vunpack.c.h.b16 %v617
    %v3421 = vunpack.c.l.b16 %v618
    %v3422 = vunpack.c.h.b16 %v618
    %v3423 = vunpack.c.l.b16 %v619
    %v3424 = vunpack.c.h.b16 %v619
    %v3425 = vunpack.c.l.b16 %v620
    %v3426 = vunpack.c.h.b16 %v620
    %v3427 = vunpack.c.l.b16 %v621
    %v3428 = vunpack.c.h.b16 %v621
    %v3429 = vunpack.c.l.b16 %v622
    %v3430 = vunpack.c.h.b16 %v622
    %v3431 = vunpack.c.l.b16 %v623
    %v3432 = vunpack.c.h.b16 %v623
    %v3433 = vunpack.c.l.b16 %v624
    %v3434 = vunpack.c.h.b16 %v624
    %v3435 = vunpack.c.l.b16 %v625
    %v3436 = vunpack.c.h.b16 %v625
    %v3437 = vunpack.c.l.b16 %v626
    %v3438 = vunpack.c.h.b16 %v626
    %v3439 = vunpack.c.l.b16 %v627
    %v3440 = vunpack.c.h.b16 %v627
    %v3441 = vunpack.c.l.b16 %v628
    %v3442 = vunpack.c.h.b16 %v628
    %v3443 = vunpack.c.l.b16 %v629
    %v3444 = vunpack.c.h.b16 %v629
    %v3445 = vunpack.c.l.b16 %v630
    %v3446 = vunpack.c.h.b16 %v630
    %v3447 = vunpack.c.l.b16 %v631
    %v3448 = vunpack.c.h.b16 %v631
    %v3449 = vunpack.c.l.b16 %v632
    %v3450 = vunpack.c.h.b16 %v632
    %v3451 = vunpack.c.l.b16 %v633
    %v3452 = vunpack.c.h.b16 %v633
    %v3453 = vunpack.c.l.b16 %v634
    %v3454 = vunpack.c.h.b16 %v634
    %v3455 = vunpack.c.l.b16 %v635
    %v3456 = vunpack.c.h.b16 %v635
    %v3457 = vunpack.c.l.b16 %v636
    %v3458 = vunpack.c.h.b16 %v636
    %v3459 = vunpack.c.l.b16 %v637
    %v3460 = vunpack.c.h.b16 %v637
    %v3461 = vunpack.c.l.b16 %v638
    %v3462 = vunpack.c.h.b16 %v638
    %v3463 = vunpack.c.l.b16 %v639
    %v3464 = vunpack.c.h.b16 %v639
    %v3465 = vunpack.c.l.b16 %v640
    %v3466 = vunpack.c.h.b16 %v640
    %v3467 = vunpack.c.l.b16 %v641
    %v3468 = vunpack.c.h.b16 %v641
    %v3469 = vunpack.c.l.b16 %v642
    %v3470 = vunpack.c.h.b16 %v642
    %v3471 = vunpack.c.l.b16 %v643
    %v3472 = vunpack.c.h.b16 %v643
    %v3473 = vunpack.c.l.b16 %v644
    %v3474 = vunpack.c.h.b16 %v644
    %v3475 = vunpack.c.l.b16 %v645
    %v3476 = vunpack.c.h.b16 %v645
    %v3477 = vunpack.c.l.b16 %v646
    %v3478 = vunpack.c.h.b16 %v646
    %v3479 = vunpack.c.l.b16 %v647
    %v3480 = vunpack.c.h.b16 %v647
    %v3481 = vunpack.c.l.b16 %v648
    %v3482 = vunpack.c.h.b16 %v648
    %v3483 = vunpack.c.l.b16 %v649
    %v3484 = vunpack.c.h.b16 %v649
    %v3485 = vunpack.c.l.b16 %v650
    %v3486 = vunpack.c.h.b16 %v650
    %v3487 = vunpack.c.l.b16 %v651
    %v3488 = vunpack.c.h.b16 %v651
    %v3489 = vunpack.c.l.b16 %v652
    %v3490 = vunpack.c.h.b16 %v652
    %v3491 = vunpack.c.l.b16 %v653
    %v3492 = vunpack.c.h.b16 %v653
    %v3493 = vunpack.c.l.b16 %v654
    %v3494 = vunpack.c.h.b16 %v654
    %v3495 = vunpack.c.l.b16 %v655
    %v3496 = vunpack.c.h.b16 %v655
    %v3497 = vunpack.c.l.b16 %v656
    %v3498 = vunpack.c.h.b16 %v656
    %v3499 = vunpack.c.l.b16 %v657
    %v3500 = vunpack.c.h.b16 %v657
    %v3501 = vunpack.c.l.b16 %v658
    %v3502 = vunpack.c.h.b16 %v658
    %v3503 = vunpack.c.l.b16 %v659
    %v3504 = vunpack.c.h.b16 %v659
    %v3505 = vunpack.c.l.b16 %v660
    %v3506 = vunpack.c.h.b16 %v660
    %v3507 = vunpack.c.l.b16 %v661
    %v3508 = vunpack.c.h.b16 %v661
    %v3509 = vunpack.c.l.b16 %v662
    %v3510 = vunpack.c.h.b16 %v662
    %v3511 = vunpack.c.l.b16 %v663
    %v3512 = vunpack.c.h.b16 %v663
    %v3513 = vunpack.c.l.b16 %v664
    %v3514 = vunpack.c.h.b16 %v664
    %v3515 = vunpack.c.l.b16 %v665
    %v3516 = vunpack.c.h.b16 %v665
    %v3517 = vunpack.c.l.b16 %v666
    %v3518 = vunpack.c.h.b16 %v666
    %v3519 = vunpack.c.l.b16 %v667
    %v3520 = vunpack.c.h.b16 %v667
    %v3521 = vunpack.c.l.b16 %v668
    %v3522 = vunpack.c.h.b16 %v668
    %v3523 = vunpack.c.l.b16 %v669
    %v3524 = vunpack.c.h.b16 %v669
    %v3525 = vunpack.c.l.b16 %v670
    %v3526 = vunpack.c.h.b16 %v670
    %v3527 = vunpack.c.l.b16 %v671
    %v3528 = vunpack.c.h.b16 %v671
    %v3529 = vunpack.c.l.b16 %v672
    %v3530 = vunpack.c.h.b16 %v672
    %v3531 = vunpack.c.l.b16 %v673
    %v3532 = vunpack.c.h.b16 %v673
    %v3533 = vunpack.c.l.b16 %v674
    %v3534 = vunpack.c.h.b16 %v674
    %v3535 = vunpack.c.l.b16 %v675
    %v3536 = vunpack.c.h.b16 %v675
    %v3537 = vunpack.c.l.b16 %v676
    %v3538 = vunpack.c.h.b16 %v676
    %v3539 = vunpack.c.l.b16 %v677
    %v3540 = vunpack.c.h.b16 %v677
    %v3541 = vunpack.c.l.b16 %v678
    %v3542 = vunpack.c.h.b16 %v678
    %v3543 = vunpack.c.l.b16 %v679
    %v3544 = vunpack.c.h.b16 %v679
    %v3545 = vunpack.c.l.b16 %v680
    %v3546 = vunpack.c.h.b16 %v680
    %v3547 = vunpack.c.l.b16 %v681
    %v3548 = vunpack.c.h.b16 %v681
    %v3549 = vunpack.c.l.b16 %v682
    %v3550 = vunpack.c.h.b16 %v682
    %v3551 = vunpack.c.l.b16 %v683
    %v3552 = vunpack.c.h.b16 %v683
    %v3553 = vunpack.c.l.b16 %v684
    %v3554 = vunpack.c.h.b16 %v684
    %v3555 = vunpack.c.l.b16 %v685
    %v3556 = vunpack.c.h.b16 %v685
    %v3557 = vunpack.c.l.b16 %v686
    %v3558 = vunpack.c.h.b16 %v686
    %v3559 = vunpack.c.l.b16 %v687
    %v3560 = vunpack.c.h.b16 %v687
    %v3561 = vunpack.c.l.b16 %v688
    %v3562 = vunpack.c.h.b16 %v688
    %v3563 = vunpack.c.l.b16 %v689
    %v3564 = vunpack.c.h.b16 %v689
    %v3565 = vunpack.c.l.b16 %v690
    %v3566 = vunpack.c.h.b16 %v690
    %v3567 = vunpack.c.l.b16 %v691
    %v3568 = vunpack.c.h.b16 %v691
    %v3569 = vunpack.c.l.b16 %v692
    %v3570 = vunpack.c.h.b16 %v692
    %v3571 = vunpack.c.l.b16 %v693
    %v3572 = vunpack.c.h.b16 %v693
    %v3573 = vunpack.c.l.b16 %v694
    %v3574 = vunpack.c.h.b16 %v694
    %v3575 = vunpack.c.l.b16 %v695
    %v3576 = vunpack.c.h.b16 %v695
    %v3577 = vunpack.c.l.b16 %v696
    %v3578 = vunpack.c.h.b16 %v696
    %v3579 = vunpack.c.l.b16 %v697
    %v3580 = vunpack.c.h.b16 %v697
    %v3581 = vunpack.c.l.b16 %v698
    %v3582 = vunpack.c.h.b16 %v698
    %v3583 = vunpack.c.l.b16 %v699
    %v3584 = vunpack.c.h.b16 %v699
    %v3585 = vunpack.c.l.b16 %v700
    %v3586 = vunpack.c.h.b16 %v700
    %v3587 = vunpack.c.l.b16 %v701
    %v3588 = vunpack.c.h.b16 %v701
    %v3589 = vunpack.c.l.b16 %v702
    %v3590 = vunpack.c.h.b16 %v702
    %v3591 = vunpack.c.l.b16 %v703
    %v3592 = vunpack.c.h.b16 %v703
    %v3593 = vunpack.c.l.b16 %v704
    %v3594 = vunpack.c.h.b16 %v704
    %v3595 = vunpack.c.l.b16 %v705
    %v3596 = vunpack.c.h.b16 %v705
    %v3597 = vunpack.c.l.b16 %v706
    %v3598 = vunpack.c.h.b16 %v706
    %v3599 = vunpack.c.l.b16 %v707
    %v3600 = vunpack.c.h.b16 %v707
    %v3601 = vunpack.c.l.b16 %v708
    %v3602 = vunpack.c.h.b16 %v708
    %v3603 = vunpack.c.l.b16 %v709
    %v3604 = vunpack.c.h.b16 %v709
    %v3605 = vunpack.c.l.b16 %v710
    %v3606 = vunpack.c.h.b16 %v710
    %v3607 = vunpack.c.l.b16 %v711
    %v3608 = vunpack.c.h.b16 %v711
    %v3609 = vunpack.c.l.b16 %v712
    %v3610 = vunpack.c.h.b16 %v712
    %v3611 = vunpack.c.l.b16 %v713
    %v3612 = vunpack.c.h.b16 %v713
    %v3613 = vunpack.c.l.b16 %v714
    %v3614 = vunpack.c.h.b16 %v714
    %v3615 = vunpack.c.l.b16 %v715
    %v3616 = vunpack.c.h.b16 %v715
    %v3617 = vunpack.c.l.b16 %v716
    %v3618 = vunpack.c.h.b16 %v716
    %v3619 = vunpack.c.l.b16 %v717
    %v3620 = vunpack.c.h.b16 %v717
    %v3621 = vunpack.c.l.b16 %v718
    %v3622 = vunpack.c.h.b16 %v718
    %v3623 = vunpack.c.l.b16 %v719
    %v3624 = vunpack.c.h.b16 %v719
    %v3625 = vunpack.c.l.b16 %v720
    %v3626 = vunpack.c.h.b16 %v720
    %v3627 = vunpack.c.l.b16 %v721
    %v3628 = vunpack.c.h.b16 %v721
    %v3629 = vunpack.c.l.b16 %v722
    %v3630 = vunpack.c.h.b16 %v722
    %v3631 = vunpack.c.l.b16 %v723
    %v3632 = vunpack.c.h.b16 %v723
    %v3633 = vunpack.c.l.b16 %v724
    %v3634 = vunpack.c.h.b16 %v724
    %v3635 = vunpack.c.l.b16 %v725
    %v3636 = vunpack.c.h.b16 %v725
    %v3637 = vunpack.c.l.b16 %v726
    %v3638 = vunpack.c.h.b16 %v726
    %v3639 = vunpack.c.l.b16 %v727
    %v3640 = vunpack.c.h.b16 %v727
    %v3641 = vunpack.c.l.b16 %v728
    %v3642 = vunpack.c.h.b16 %v728
    %v3643 = vunpack.c.l.b16 %v729
    %v3644 = vunpack.c.h.b16 %v729
    %v3645 = vunpack.c.l.b16 %v730
    %v3646 = vunpack.c.h.b16 %v730
    %v3647 = vunpack.c.l.b16 %v731
    %v3648 = vunpack.c.h.b16 %v731
    %v3649 = vunpack.c.l.b16 %v732
    %v3650 = vunpack.c.h.b16 %v732
    %v3651 = vunpack.c.l.b16 %v733
    %v3652 = vunpack.c.h.b16 %v733
    %v3653 = vunpack.c.l.b16 %v734
    %v3654 = vunpack.c.h.b16 %v734
    %v3655 = vunpack.c.l.b16 %v735
    %v3656 = vunpack.c.h.b16 %v735
    %v3657 = vunpack.c.l.b16 %v736
    %v3658 = vunpack.c.h.b16 %v736
    %v3659 = vunpack.c.l.b16 %v737
    %v3660 = vunpack.c.h.b16 %v737
    %v3661 = vunpack.c.l.b16 %v738
    %v3662 = vunpack.c.h.b16 %v738
    %v3663 = vunpack.c.l.b16 %v739
    %v3664 = vunpack.c.h.b16 %v739
    %v3665 = vunpack.c.l.b16 %v740
    %v3666 = vunpack.c.h.b16 %v740
    %v3667 = vunpack.c.l.b16 %v741
    %v3668 = vunpack.c.h.b16 %v741
    %v3669 = vunpack.c.l.b16 %v742
    %v3670 = vunpack.c.h.b16 %v742
    %v3671 = vunpack.c.l.b16 %v743
    %v3672 = vunpack.c.h.b16 %v743
    %v3673 = vunpack.c.l.b16 %v744
    %v3674 = vunpack.c.h.b16 %v744
    %v3675 = vunpack.c.l.b16 %v745
    %v3676 = vunpack.c.h.b16 %v745
    %v3677 = vunpack.c.l.b16 %v746
    %v3678 = vunpack.c.h.b16 %v746
    %v3679 = vunpack.c.l.b16 %v747
    %v3680 = vunpack.c.h.b16 %v747
    %v3681 = vunpack.c.l.b16 %v748
    %v3682 = vunpack.c.h.b16 %v748
    %v3683 = vunpack.c.l.b16 %v749
    %v3684 = vunpack.c.h.b16 %v749
    %v3685 = vunpack.c.l.b16 %v750
    %v3686 = vunpack.c.h.b16 %v750
    %v3687 = vunpack.c.l.b16 %v751
    %v3688 = vunpack.c.h.b16 %v751
    %v3689 = vunpack.c.l.b16 %v752
    %v3690 = vunpack.c.h.b16 %v752
    %v3691 = vunpack.c.l.b16 %v753
    %v3692 = vunpack.c.h.b16 %v753
    %v3693 = vunpack.c.l.b16 %v754
    %v3694 = vunpack.c.h.b16 %v754
    %v3695 = vunpack.c.l.b16 %v755
    %v3696 = vunpack.c.h.b16 %v755
    %v3697 = vunpack.c.l.b16 %v756
    %v3698 = vunpack.c.h.b16 %v756
    %v3699 = vunpack.c.l.b16 %v757
    %v3700 = vunpack.c.h.b16 %v757
    %v3701 = vunpack.c.l.b16 %v758
    %v3702 = vunpack.c.h.b16 %v758
    %v3703 = vunpack.c.l.b16 %v759
    %v3704 = vunpack.c.h.b16 %v759
    %v3705 = vunpack.c.l.b16 %v760
    %v3706 = vunpack.c.h.b16 %v760
    %v3707 = vunpack.c.l.b16 %v761
    %v3708 = vunpack.c.h.b16 %v761
    %v3709 = vunpack.c.l.b16 %v762
    %v3710 = vunpack.c.h.b16 %v762
    %v3711 = vunpack.c.l.b16 %v763
    %v3712 = vunpack.c.h.b16 %v763
    %v3713 = vunpack.c.l.b16 %v764
    %v3714 = vunpack.c.h.b16 %v764
    %v3715 = vunpack.c.l.b16 %v765
    %v3716 = vunpack.c.h.b16 %v765
    %v3717 = vunpack.c.l.b16 %v766
    %v3718 = vunpack.c.h.b16 %v766
    %v3719 = vunpack.c.l.b16 %v767
    %v3720 = vunpack.c.h.b16 %v767
    %v3721 = vunpack.c.l.b16 %v768
    %v3722 = vunpack.c.h.b16 %v768
    %v3723 = vunpack.c.l.b16 %v769
    %v3724 = vunpack.c.h.b16 %v769
    %v3725 = vunpack.c.l.b16 %v770
    %v3726 = vunpack.c.h.b16 %v770
    %v3727 = vunpack.c.l.b16 %v771
    %v3728 = vunpack.c.h.b16 %v771
    %v3729 = vunpack.c.l.b16 %v772
    %v3730 = vunpack.c.h.b16 %v772
    %v3731 = vunpack.c.l.b16 %v773
    %v3732 = vunpack.c.h.b16 %v773
    %v3733 = vunpack.c.l.b16 %v774
    %v3734 = vunpack.c.h.b16 %v774
    %v3735 = vunpack.c.l.b16 %v775
    %v3736 = vunpack.c.h.b16 %v775
    %v3737 = vunpack.c.l.b16 %v776
    %v3738 = vunpack.c.h.b16 %v776
    %v3739 = vunpack.c.l.b16 %v777
    %v3740 = vunpack.c.h.b16 %v777
    %v3741 = vunpack.c.l.b16 %v778
    %v3742 = vunpack.c.h.b16 %v778
    %v3743 = vunpack.c.l.b16 %v779
    %v3744 = vunpack.c.h.b16 %v779
    %v3745 = vunpack.c.l.b16 %v780
    %v3746 = vunpack.c.h.b16 %v780
    %v3747 = vunpack.c.l.b16 %v781
    %v3748 = vunpack.c.h.b16 %v781
    %v3749 = vunpack.c.l.b16 %v782
    %v3750 = vunpack.c.h.b16 %v782
    %v3751 = vunpack.c.l.b16 %v783
    %v3752 = vunpack.c.h.b16 %v783
    %v3753 = vunpack.c.l.b16 %v784
    %v3754 = vunpack.c.h.b16 %v784
    %v3755 = vunpack.c.l.b16 %v785
    %v3756 = vunpack.c.h.b16 %v785
    %v3757 = vunpack.c.l.b16 %v786
    %v3758 = vunpack.c.h.b16 %v786
    %v3759 = vunpack.c.l.b16 %v787
    %v3760 = vunpack.c.h.b16 %v787
    %v3761 = vunpack.c.l.b16 %v788
    %v3762 = vunpack.c.h.b16 %v788
    %v3763 = vunpack.c.l.b16 %v789
    %v3764 = vunpack.c.h.b16 %v789
    %v3765 = vunpack.c.l.b16 %v790
    %v3766 = vunpack.c.h.b16 %v790
    %v3767 = vunpack.c.l.b16 %v791
    %v3768 = vunpack.c.h.b16 %v791
    %v3769 = vunpack.c.l.b16 %v792
    %v3770 = vunpack.c.h.b16 %v792
    %v3771 = vunpack.c.l.b16 %v793
    %v3772 = vunpack.c.h.b16 %v793
    %v3773 = vunpack.c.l.b16 %v794
    %v3774 = vunpack.c.h.b16 %v794
    %v3775 = vunpack.c.l.b16 %v795
    %v3776 = vunpack.c.h.b16 %v795
    %v3777 = vunpack.c.l.b16 %v796
    %v3778 = vunpack.c.h.b16 %v796
    %v3779 = vunpack.c.l.b16 %v797
    %v3780 = vunpack.c.h.b16 %v797
    %v3781 = vunpack.c.l.b16 %v798
    %v3782 = vunpack.c.h.b16 %v798
    %v3783 = vunpack.c.l.b16 %v799
    %v3784 = vunpack.c.h.b16 %v799
    %v3785 = vunpack.c.l.b16 %v800
    %v3786 = vunpack.c.h.b16 %v800
    %v3787 = vunpack.c.l.b16 %v801
    %v3788 = vunpack.c.h.b16 %v801
    %v3789 = vunpack.c.l.b16 %v802
    %v3790 = vunpack.c.h.b16 %v802
    %v3791 = vunpack.c.l.b16 %v803
    %v3792 = vunpack.c.h.b16 %v803
    %v3793 = vunpack.c.l.b16 %v804
    %v3794 = vunpack.c.h.b16 %v804
    %v3795 = vunpack.c.l.b16 %v805
    %v3796 = vunpack.c.h.b16 %v805
    %v3797 = vunpack.c.l.b16 %v806
    %v3798 = vunpack.c.h.b16 %v806
    %v3799 = vunpack.c.l.b16 %v807
    %v3800 = vunpack.c.h.b16 %v807
    %v3801 = vunpack.c.l.b16 %v808
    %v3802 = vunpack.c.h.b16 %v808
    %v3803 = vunpack.c.l.b16 %v809
    %v3804 = vunpack.c.h.b16 %v809
    %v3805 = vunpack.c.l.b16 %v810
    %v3806 = vunpack.c.h.b16 %v810
    %v3807 = vunpack.c.l.b16 %v811
    %v3808 = vunpack.c.h.b16 %v811
    %v3809 = vunpack.c.l.b16 %v812
    %v3810 = vunpack.c.h.b16 %v812
    %v3811 = vunpack.c.l.b16 %v813
    %v3812 = vunpack.c.h.b16 %v813
    %v3813 = vunpack.c.l.b16 %v814
    %v3814 = vunpack.c.h.b16 %v814
    %v3815 = vunpack.c.l.b16 %v815
    %v3816 = vunpack.c.h.b16 %v815
    %v3817 = vunpack.c.l.b16 %v816
    %v3818 = vunpack.c.h.b16 %v816
    %v3819 = vunpack.c.l.b16 %v817
    %v3820 = vunpack.c.h.b16 %v817
    %v3821 = vunpack.c.l.b16 %v818
    %v3822 = vunpack.c.h.b16 %v818
    %v3823 = vunpack.c.l.b16 %v819
    %v3824 = vunpack.c.h.b16 %v819
    %v3825 = vunpack.c.l.b16 %v820
    %v3826 = vunpack.c.h.b16 %v820
    %v3827 = vunpack.c.l.b16 %v821
    %v3828 = vunpack.c.h.b16 %v821
    %v3829 = vunpack.c.l.b16 %v822
    %v3830 = vunpack.c.h.b16 %v822
    %v3831 = vunpack.c.l.b16 %v823
    %v3832 = vunpack.c.h.b16 %v823
    %v3833 = vunpack.c.l.b16 %v824
    %v3834 = vunpack.c.h.b16 %v824
    %v3835 = vunpack.c.l.b16 %v825
    %v3836 = vunpack.c.h.b16 %v825
    %v3837 = vunpack.c.l.b16 %v826
    %v3838 = vunpack.c.h.b16 %v826
    %v3839 = vunpack.c.l.b16 %v827
    %v3840 = vunpack.c.h.b16 %v827
    %v3841 = vunpack.c.l.b16 %v828
    %v3842 = vunpack.c.h.b16 %v828
    %v3843 = vunpack.c.l.b16 %v829
    %v3844 = vunpack.c.h.b16 %v829
    %v3845 = vunpack.c.l.b16 %v830
    %v3846 = vunpack.c.h.b16 %v830
    %v3847 = vunpack.c.l.b16 %v831
    %v3848 = vunpack.c.h.b16 %v831
    %v3849 = vunpack.c.l.b16 %v832
    %v3850 = vunpack.c.h.b16 %v832
    %v3851 = vunpack.c.l.b16 %v833
    %v3852 = vunpack.c.h.b16 %v833
    %v3853 = vunpack.c.l.b16 %v834
    %v3854 = vunpack.c.h.b16 %v834
    %v3855 = vunpack.c.l.b16 %v835
    %v3856 = vunpack.c.h.b16 %v835
    %v3857 = vunpack.c.l.b16 %v836
    %v3858 = vunpack.c.h.b16 %v836
    %v3859 = vunpack.c.l.b16 %v837
    %v3860 = vunpack.c.h.b16 %v837
    %v3861 = vunpack.c.l.b16 %v838
    %v3862 = vunpack.c.h.b16 %v838
    %v3863 = vunpack.c.l.b16 %v839
    %v3864 = vunpack.c.h.b16 %v839
    %v3865 = vunpack.c.l.b16 %v840
    %v3866 = vunpack.c.h.b16 %v840
    %v3867 = vunpack.c.l.b16 %v841
    %v3868 = vunpack.c.h.b16 %v841
    %v3869 = vunpack.c.l.b16 %v842
    %v3870 = vunpack.c.h.b16 %v842
    %v3871 = vunpack.c.l.b16 %v843
    %v3872 = vunpack.c.h.b16 %v843
    %v3873 = vunpack.c.l.b16 %v844
    %v3874 = vunpack.c.h.b16 %v844
    %v3875 = vunpack.c.l.b16 %v845
    %v3876 = vunpack.c.h.b16 %v845
    %v3877 = vunpack.c.l.b16 %v846
    %v3878 = vunpack.c.h.b16 %v846
    %v3879 = vunpack.c.l.b16 %v847
    %v3880 = vunpack.c.h.b16 %v847
    %v3881 = vunpack.c.l.b16 %v848
    %v3882 = vunpack.c.h.b16 %v848
    %v3883 = vunpack.c.l.b16 %v849
    %v3884 = vunpack.c.h.b16 %v849
    %v3885 = vunpack.c.l.b16 %v850
    %v3886 = vunpack.c.h.b16 %v850
    %v3887 = vunpack.c.l.b16 %v851
    %v3888 = vunpack.c.h.b16 %v851
    %v3889 = vunpack.c.l.b16 %v852
    %v3890 = vunpack.c.h.b16 %v852
    %v3891 = vunpack.c.l.b16 %v853
    %v3892 = vunpack.c.h.b16 %v853
    %v3893 = vunpack.c.l.b16 %v854
    %v3894 = vunpack.c.h.b16 %v854
    %v3895 = vunpack.c.l.b16 %v855
    %v3896 = vunpack.c.h.b16 %v855
    %v3897 = vunpack.c.l.b16 %v856
    %v3898 = vunpack.c.h.b16 %v856
    %v3899 = vunpack.c.l.b16 %v857
    %v3900 = vunpack.c.h.b16 %v857
    %v3901 = vunpack.c.l.b16 %v858
    %v3902 = vunpack.c.h.b16 %v858
    %v3903 = vunpack.c.l.b16 %v859
    %v3904 = vunpack.c.h.b16 %v859
    %v3905 = vunpack.c.l.b16 %v860
    %v3906 = vunpack.c.h.b16 %v860
    %v3907 = vunpack.c.l.b16 %v861
    %v3908 = vunpack.c.h.b16 %v861
    %v3909 = vunpack.c.l.b16 %v862
    %v3910 = vunpack.c.h.b16 %v862
    %v3911 = vunpack.c.l.b16 %v863
    %v3912 = vunpack.c.h.b16 %v863
    %v3913 = vunpack.c.l.b16 %v864
    %v3914 = vunpack.c.h.b16 %v864
    %v3915 = vunpack.c.l.b16 %v865
    %v3916 = vunpack.c.h.b16 %v865
    %v3917 = vunpack.c.l.b16 %v866
    %v3918 = vunpack.c.h.b16 %v866
    %v3919 = vunpack.c.l.b16 %v867
    %v3920 = vunpack.c.h.b16 %v867
    %v3921 = vunpack.c.l.b16 %v868
    %v3922 = vunpack.c.h.b16 %v868
    %v3923 = vunpack.c.l.b16 %v869
    %v3924 = vunpack.c.h.b16 %v869
    %v3925 = vunpack.c.l.b16 %v870
    %v3926 = vunpack.c.h.b16 %v870
    %v3927 = vunpack.c.l.b16 %v871
    %v3928 = vunpack.c.h.b16 %v871
    %v3929 = vunpack.c.l.b16 %v872
    %v3930 = vunpack.c.h.b16 %v872
    %v3931 = vunpack.c.l.b16 %v873
    %v3932 = vunpack.c.h.b16 %v873
    %v3933 = vunpack.c.l.b16 %v874
    %v3934 = vunpack.c.h.b16 %v874
    %v3935 = vunpack.c.l.b16 %v875
    %v3936 = vunpack.c.h.b16 %v875
    %v3937 = vunpack.c.l.b16 %v876
    %v3938 = vunpack.c.h.b16 %v876
    %v3939 = vunpack.c.l.b16 %v877
    %v3940 = vunpack.c.h.b16 %v877
    %v3941 = vunpack.c.l.b16 %v878
    %v3942 = vunpack.c.h.b16 %v878
    %v3943 = vunpack.c.l.b16 %v879
    %v3944 = vunpack.c.h.b16 %v879
    %v3945 = vunpack.c.l.b16 %v880
    %v3946 = vunpack.c.h.b16 %v880
    %v3947 = vunpack.c.l.b16 %v881
    %v3948 = vunpack.c.h.b16 %v881
    %v3949 = vunpack.c.l.b16 %v882
    %v3950 = vunpack.c.h.b16 %v882
    %v3951 = vunpack.c.l.b16 %v883
    %v3952 = vunpack.c.h.b16 %v883
    %v3953 = vunpack.c.l.b16 %v884
    %v3954 = vunpack.c.h.b16 %v884
    %v3955 = vunpack.c.l.b16 %v885
    %v3956 = vunpack.c.h.b16 %v885
    %v3957 = vunpack.c.l.b16 %v886
    %v3958 = vunpack.c.h.b16 %v886
    %v3959 = vunpack.c.l.b16 %v887
    %v3960 = vunpack.c.h.b16 %v887
    %v3961 = vunpack.c.l.b16 %v888
    %v3962 = vunpack.c.h.b16 %v888
    %v3963 = vunpack.c.l.b16 %v889
    %v3964 = vunpack.c.h.b16 %v889
    %v3965 = vunpack.c.l.b16 %v890
    %v3966 = vunpack.c.h.b16 %v890
    %v3967 = vunpack.c.l.b16 %v891
    %v3968 = vunpack.c.h.b16 %v891
    %v3969 = vunpack.c.l.b16 %v892
    %v3970 = vunpack.c.h.b16 %v892
    %v3971 = vunpack.c.l.b16 %v893
    %v3972 = vunpack.c.h.b16 %v893
    %v3973 = vunpack.c.l.b16 %v894
    %v3974 = vunpack.c.h.b16 %v894
    %v3975 = vunpack.c.l.b16 %v895
    %v3976 = vunpack.c.h.b16 %v895
    %v3977 = vunpack.c.l.b16 %v896
    %v3978 = vunpack.c.h.b16 %v896
    %v3979 = vunpack.c.l.b16 %v897
    %v3980 = vunpack.c.h.b16 %v897
    %v3981 = vunpack.c.l.b16 %v898
    %v3982 = vunpack.c.h.b16 %v898
    %v3983 = vunpack.c.l.b16 %v899
    %v3984 = vunpack.c.h.b16 %v899
    %v3985 = vunpack.c.l.b16 %v900
    %v3986 = vunpack.c.h.b16 %v900
    %v3987 = vunpack.c.l.b16 %v901
    %v3988 = vunpack.c.h.b16 %v901
    %v3989 = vunpack.c.l.b16 %v902
    %v3990 = vunpack.c.h.b16 %v902
    %v3991 = vunpack.c.l.b16 %v903
    %v3992 = vunpack.c.h.b16 %v903
    %v3993 = vunpack.c.l.b16 %v904
    %v3994 = vunpack.c.h.b16 %v904
    %v3995 = vunpack.c.l.b16 %v905
    %v3996 = vunpack.c.h.b16 %v905
    %v3997 = vunpack.c.l.b16 %v906
    %v3998 = vunpack.c.h.b16 %v906
    %v3999 = vunpack.c.l.b16 %v907
    %v4000 = vunpack.c.h.b16 %v907
    %v4001 = vunpack.c.l.b16 %v908
    %v4002 = vunpack.c.h.b16 %v908
    %v4003 = vunpack.c.l.b16 %v909
    %v4004 = vunpack.c.h.b16 %v909
    %v4005 = vunpack.c.l.b16 %v910
    %v4006 = vunpack.c.h.b16 %v910
    %v4007 = vunpack.c.l.b16 %v911
    %v4008 = vunpack.c.h.b16 %v911
    %v4009 = vunpack.c.l.b16 %v912
    %v4010 = vunpack.c.h.b16 %v912
    %v4011 = vunpack.c.l.b16 %v913
    %v4012 = vunpack.c.h.b16 %v913
    %v4013 = vunpack.c.l.b16 %v914
    %v4014 = vunpack.c.h.b16 %v914
    %v4015 = vunpack.c.l.b16 %v915
    %v4016 = vunpack.c.h.b16 %v915
    %v4017 = vunpack.c.l.b16 %v916
    %v4018 = vunpack.c.h.b16 %v916
    %v4019 = vunpack.c.l.b16 %v917
    %v4020 = vunpack.c.h.b16 %v917
    %v4021 = vunpack.c.l.b16 %v918
    %v4022 = vunpack.c.h.b16 %v918
    %v4023 = vunpack.c.l.b16 %v919
    %v4024 = vunpack.c.h.b16 %v919
    %v4025 = vunpack.c.l.b16 %v920
    %v4026 = vunpack.c.h.b16 %v920
    %v4027 = vunpack.c.l.b16 %v921
    %v4028 = vunpack.c.h.b16 %v921
    %v4029 = vunpack.c.l.b16 %v922
    %v4030 = vunpack.c.h.b16 %v922
    %v4031 = vunpack.c.l.b16 %v923
    %v4032 = vunpack.c.h.b16 %v923
    %v4033 = vunpack.c.l.b16 %v924
    %v4034 = vunpack.c.h.b16 %v924
    %v4035 = vunpack.c.l.b16 %v925
    %v4036 = vunpack.c.h.b16 %v925
    %v4037 = vunpack.c.l.b16 %v926
    %v4038 = vunpack.c.h.b16 %v926
    %v4039 = vunpack.c.l.b16 %v927
    %v4040 = vunpack.c.h.b16 %v927
    %v4041 = vunpack.c.l.b16 %v928
    %v4042 = vunpack.c.h.b16 %v928
    %v4043 = vunpack.c.l.b16 %v929
    %v4044 = vunpack.c.h.b16 %v929
    %v4045 = vunpack.c.l.b16 %v930
    %v4046 = vunpack.c.h.b16 %v930
    %v4047 = vunpack.c.l.b16 %v931
    %v4048 = vunpack.c.h.b16 %v931
    %v4049 = vunpack.c.l.b16 %v932
    %v4050 = vunpack.c.h.b16 %v932
    %v4051 = vunpack.c.l.b16 %v933
    %v4052 = vunpack.c.h.b16 %v933
    %v4053 = vunpack.c.l.b16 %v934
    %v4054 = vunpack.c.h.b16 %v934
    %v4055 = vunpack.c.l.b16 %v935
    %v4056 = vunpack.c.h.b16 %v935
    %v4057 = vunpack.c.l.b16 %v936
    %v4058 = vunpack.c.h.b16 %v936
    %v4059 = vunpack.c.l.b16 %v937
    %v4060 = vunpack.c.h.b16 %v937
    %v4061 = vunpack.c.l.b16 %v938
    %v4062 = vunpack.c.h.b16 %v938
    %v4063 = vunpack.c.l.b16 %v939
    %v4064 = vunpack.c.h.b16 %v939
    %v4065 = vunpack.c.l.b16 %v940
    %v4066 = vunpack.c.h.b16 %v940
    %v4067 = vunpack.c.l.b16 %v941
    %v4068 = vunpack.c.h.b16 %v941
    %v4069 = vunpack.c.l.b16 %v942
    %v4070 = vunpack.c.h.b16 %v942
    %v4071 = vunpack.c.l.b16 %v943
    %v4072 = vunpack.c.h.b16 %v943
    %v4073 = vunpack.c.l.b16 %v944
    %v4074 = vunpack.c.h.b16 %v944
    %v4075 = vunpack.c.l.b16 %v945
    %v4076 = vunpack.c.h.b16 %v945
    %v4077 = vunpack.c.l.b16 %v946
    %v4078 = vunpack.c.h.b16 %v946
    %v4079 = vunpack.c.l.b16 %v947
    %v4080 = vunpack.c.h.b16 %v947
    %v4081 = vunpack.c.l.b16 %v948
    %v4082 = vunpack.c.h.b16 %v948
    %v4083 = vunpack.c.l.b16 %v949
    %v4084 = vunpack.c.h.b16 %v949
    %v4085 = vunpack.c.l.b16 %v950
    %v4086 = vunpack.c.h.b16 %v950
    %v4087 = vunpack.c.l.b16 %v951
    %v4088 = vunpack.c.h.b16 %v951
    %v4089 = vunpack.c.l.b16 %v952
    %v4090 = vunpack.c.h.b16 %v952
    %v4091 = vunpack.c.l.b16 %v953
    %v4092 = vunpack.c.h.b16 %v953
    %v4093 = vunpack.c.l.b16 %v954
    %v4094 = vunpack.c.h.b16 %v954
    %v4095 = vunpack.c.l.b16 %v955
    %v4096 = vunpack.c.h.b16 %v955
    %v4097 = vunpack.c.l.b16 %v956
    %v4098 = vunpack.c.h.b16 %v956
    %v4099 = vunpack.c.l.b16 %v957
    %v4100 = vunpack.c.h.b16 %v957
    %v4101 = vunpack.c.l.b16 %v958
    %v4102 = vunpack.c.h.b16 %v958
    %v4103 = vunpack.c.l.b16 %v959
    %v4104 = vunpack.c.h.b16 %v959
    %v4105 = vunpack.c.l.b16 %v960
    %v4106 = vunpack.c.h.b16 %v960
    %v4107 = vunpack.c.l.b16 %v961
    %v4108 = vunpack.c.h.b16 %v961
    %v4109 = vunpack.c.l.b16 %v962
    %v4110 = vunpack.c.h.b16 %v962
    %v4111 = vunpack.c.l.b16 %v963
    %v4112 = vunpack.c.h.b16 %v963
    %v4113 = vunpack.c.l.b16 %v964
    %v4114 = vunpack.c.h.b16 %v964
    %v4115 = vunpack.c.l.b16 %v965
    %v4116 = vunpack.c.h.b16 %v965
    %v4117 = vunpack.c.l.b16 %v966
    %v4118 = vunpack.c.h.b16 %v966
    %v4119 = vunpack.c.l.b16 %v967
    %v4120 = vunpack.c.h.b16 %v967
    %v4121 = vunpack.c.l.b16 %v968
    %v4122 = vunpack.c.h.b16 %v968
    %v4123 = vunpack.c.l.b16 %v969
    %v4124 = vunpack.c.h.b16 %v969
    %v4125 = vunpack.c.l.b16 %v970
    %v4126 = vunpack.c.h.b16 %v970
    %v4127 = vunpack.c.l.b16 %v971
    %v4128 = vunpack.c.h.b16 %v971
    %v4129 = vunpack.c.l.b16 %v972
    %v4130 = vunpack.c.h.b16 %v972
    %v4131 = vunpack.c.l.b16 %v973
    %v4132 = vunpack.c.h.b16 %v973
    %v4133 = vunpack.c.l.b16 %v974
    %v4134 = vunpack.c.h.b16 %v974
    %v4135 = vunpack.c.l.b16 %v975
    %v4136 = vunpack.c.h.b16 %v975
    %v4137 = vunpack.c.l.b16 %v976
    %v4138 = vunpack.c.h.b16 %v976
    %v4139 = vunpack.c.l.b16 %v977
    %v4140 = vunpack.c.h.b16 %v977
    %v4141 = vunpack.c.l.b16 %v978
    %v4142 = vunpack.c.h.b16 %v978
    %v4143 = vunpack.c.l.b16 %v979
    %v4144 = vunpack.c.h.b16 %v979
    %v4145 = vunpack.c.l.b16 %v980
    %v4146 = vunpack.c.h.b16 %v980
    %v4147 = vunpack.c.l.b16 %v981
    %v4148 = vunpack.c.h.b16 %v981
    %v4149 = vunpack.c.l.b16 %v982
    %v4150 = vunpack.c.h.b16 %v982
    %v4151 = vunpack.c.l.b16 %v983
    %v4152 = vunpack.c.h.b16 %v983
    %v4153 = vunpack.c.l.b16 %v984
    %v4154 = vunpack.c.h.b16 %v984
    %v4155 = vunpack.c.l.b16 %v985
    %v4156 = vunpack.c.h.b16 %v985
    %v4157 = vunpack.c.l.b16 %v986
    %v4158 = vunpack.c.h.b16 %v986
    %v4159 = vunpack.c.l.b16 %v987
    %v4160 = vunpack.c.h.b16 %v987
    %v4161 = vunpack.c.l.b16 %v988
    %v4162 = vunpack.c.h.b16 %v988
    %v4163 = vunpack.c.l.b16 %v989
    %v4164 = vunpack.c.h.b16 %v989
    %v4165 = vunpack.c.l.b16 %v990
    %v4166 = vunpack.c.h.b16 %v990
    %v4167 = vunpack.c.l.b16 %v991
    %v4168 = vunpack.c.h.b16 %v991
    %v4169 = vunpack.c.l.b16 %v992
    %v4170 = vunpack.c.h.b16 %v992
    %v4171 = vunpack.c.l.b16 %v993
    %v4172 = vunpack.c.h.b16 %v993
    %v4173 = vunpack.c.l.b16 %v994
    %v4174 = vunpack.c.h.b16 %v994
    %v4175 = vunpack.c.l.b16 %v995
    %v4176 = vunpack.c.h.b16 %v995
    %v4177 = vunpack.c.l.b16 %v996
    %v4178 = vunpack.c.h.b16 %v996
    %v4179 = vunpack.c.l.b16 %v997
    %v4180 = vunpack.c.h.b16 %v997
    %v4181 = vunpack.c.l.b16 %v998
    %v4182 = vunpack.c.h.b16 %v998
    %v4183 = vunpack.c.l.b16 %v999
    %v4184 = vunpack.c.h.b16 %v999
    %v4185 = vunpack.c.l.b16 %v1000
    %v4186 = vunpack.c.h.b16 %v1000
    %v4187 = vunpack.c.l.b16 %v1001
    %v4188 = vunpack.c.h.b16 %v1001
    %v4189 = vunpack.c.l.b16 %v1002
    %v4190 = vunpack.c.h.b16 %v1002
    %v4191 = vunpack.c.l.b16 %v1003
    %v4192 = vunpack.c.h.b16 %v1003
    %v4193 = vunpack.c.l.b16 %v1004
    %v4194 = vunpack.c.h.b16 %v1004
    %v4195 = vunpack.c.l.b16 %v1005
    %v4196 = vunpack.c.h.b16 %v1005
    %v4197 = vunpack.c.l.b16 %v1006
    %v4198 = vunpack.c.h.b16 %v1006
    %v4199 = vunpack.c.l.b16 %v1007
    %v4200 = vunpack.c.h.b16 %v1007
    %v4201 = vunpack.c.l.b16 %v1008
    %v4202 = vunpack.c.h.b16 %v1008
    %v4203 = vunpack.c.l.b16 %v1009
    %v4204 = vunpack.c.h.b16 %v1009
    %v4205 = vunpack.c.l.b16 %v1010
    %v4206 = vunpack.c.h.b16 %v1010
    %v4207 = vunpack.c.l.b16 %v1011
    %v4208 = vunpack.c.h.b16 %v1011
    %v4209 = vunpack.c.l.b16 %v1012
    %v4210 = vunpack.c.h.b16 %v1012
    %v4211 = vunpack.c.l.b16 %v1013
    %v4212 = vunpack.c.h.b16 %v1013
    %v4213 = vunpack.c.l.b16 %v1014
    %v4214 = vunpack.c.h.b16 %v1014
    %v4215 = vunpack.c.l.b16 %v1015
    %v4216 = vunpack.c.h.b16 %v1015
    %v4217 = vunpack.c.l.b16 %v1016
    %v4218 = vunpack.c.h.b16 %v1016
    %v4219 = vunpack.c.l.b16 %v1017
    %v4220 = vunpack.c.h.b16 %v1017
    %v4221 = vunpack.c.l.b16 %v1018
    %v4222 = vunpack.c.h.b16 %v1018
    %v4223 = vunpack.c.l.b16 %v1019
    %v4224 = vunpack.c.h.b16 %v1019
    %v4225 = vunpack.c.l.b16 %v1020
    %v4226 = vunpack.c.h.b16 %v1020
    %v4227 = vunpack.c.l.b16 %v1021
    %v4228 = vunpack.c.h.b16 %v1021
    %v4229 = vunpack.c.l.b16 %v1022
    %v4230 = vunpack.c.h.b16 %v1022
    %v4231 = vunpack.c.l.b16 %v1023
    %v4232 = vunpack.c.h.b16 %v1023
    %v4233 = vunpack.c.l.b16 %v1024
    %v4234 = vunpack.c.h.b16 %v1024
    %v4235 = vunpack.c.l.b16 %v1025
    %v4236 = vunpack.c.h.b16 %v1025
    %v4237 = vunpack.c.l.b16 %v1026
    %v4238 = vunpack.c.h.b16 %v1026
    %v4239 = vunpack.c.l.b16 %v1027
    %v4240 = vunpack.c.h.b16 %v1027
    %v4241 = vunpack.c.l.b16 %v1028
    %v4242 = vunpack.c.h.b16 %v1028
    %v4243 = vunpack.c.l.b16 %v1029
    %v4244 = vunpack.c.h.b16 %v1029
    %v4245 = vunpack.c.l.b16 %v1030
    %v4246 = vunpack.c.h.b16 %v1030
    %v4247 = vunpack.c.l.b16 %v1031
    %v4248 = vunpack.c.h.b16 %v1031
    %v4249 = vunpack.c.l.b16 %v1032
    %v4250 = vunpack.c.h.b16 %v1032
    %v4251 = vunpack.c.l.b16 %v1033
    %v4252 = vunpack.c.h.b16 %v1033
    %v4253 = vunpack.c.l.b16 %v1034
    %v4254 = vunpack.c.h.b16 %v1034
    %v4255 = vunpack.c.l.b16 %v1035
    %v4256 = vunpack.c.h.b16 %v1035
    %v4257 = vunpack.c.l.b16 %v1036
    %v4258 = vunpack.c.h.b16 %v1036
    %v4259 = vunpack.c.l.b16 %v1037
    %v4260 = vunpack.c.h.b16 %v1037
    %v4261 = vunpack.c.l.b16 %v1038
    %v4262 = vunpack.c.h.b16 %v1038
    %v4263 = vunpack.c.l.b16 %v1039
    %v4264 = vunpack.c.h.b16 %v1039
    %v4265 = vunpack.c.l.b16 %v1040
    %v4266 = vunpack.c.h.b16 %v1040
    %v4267 = vunpack.c.l.b16 %v1041
    %v4268 = vunpack.c.h.b16 %v1041
    %v4269 = vunpack.c.l.b16 %v1042
    %v4270 = vunpack.c.h.b16 %v1042
    %v4271 = vunpack.c.l.b16 %v1043
    %v4272 = vunpack.c.h.b16 %v1043
    %v4273 = vunpack.c.l.b16 %v1044
    %v4274 = vunpack.c.h.b16 %v1044
    %v4275 = vunpack.c.l.b16 %v1045
    %v4276 = vunpack.c.h.b16 %v1045
    %v4277 = vunpack.c.l.b16 %v1046
    %v4278 = vunpack.c.h.b16 %v1046
    %v4279 = vunpack.c.l.b16 %v1047
    %v4280 = vunpack.c.h.b16 %v1047
    %v4281 = vunpack.c.l.b16 %v1048
    %v4282 = vunpack.c.h.b16 %v1048
    %v4283 = vunpack.c.l.b16 %v1049
    %v4284 = vunpack.c.h.b16 %v1049
    %v4285 = vunpack.c.l.b16 %v1050
    %v4286 = vunpack.c.h.b16 %v1050
    %v4287 = vunpack.c.l.b16 %v1051
    %v4288 = vunpack.c.h.b16 %v1051
    %v4289 = vunpack.c.l.b16 %v1052
    %v4290 = vunpack.c.h.b16 %v1052
    %v4291 = vunpack.c.l.b16 %v1053
    %v4292 = vunpack.c.h.b16 %v1053
    %v4293 = vunpack.c.l.b16 %v1054
    %v4294 = vunpack.c.h.b16 %v1054
    %v4295 = vunpack.c.l.b16 %v1055
    %v4296 = vunpack.c.h.b16 %v1055
    %v4297 = vunpack.c.l.b16 %v1056
    %v4298 = vunpack.c.h.b16 %v1056
    %v4299 = vunpack.c.l.b16 %v1057
    %v4300 = vunpack.c.h.b16 %v1057
    %v4301 = vunpack.c.l.b16 %v1058
    %v4302 = vunpack.c.h.b16 %v1058
    %v4303 = vunpack.c.l.b16 %v1059
    %v4304 = vunpack.c.h.b16 %v1059
    %v4305 = vunpack.c.l.b16 %v1060
    %v4306 = vunpack.c.h.b16 %v1060
    %v4307 = vunpack.c.l.b16 %v1061
    %v4308 = vunpack.c.h.b16 %v1061
    %v4309 = vunpack.c.l.b16 %v1062
    %v4310 = vunpack.c.h.b16 %v1062
    %v4311 = vunpack.c.l.b16 %v1063
    %v4312 = vunpack.c.h.b16 %v1063
    %v4313 = vunpack.c.l.b16 %v1064
    %v4314 = vunpack.c.h.b16 %v1064
    %v4315 = vunpack.c.l.b16 %v1065
    %v4316 = vunpack.c.h.b16 %v1065
    %v4317 = vunpack.c.l.b16 %v1066
    %v4318 = vunpack.c.h.b16 %v1066
    %v4319 = vunpack.c.l.b16 %v1067
    %v4320 = vunpack.c.h.b16 %v1067
    %v4321 = vunpack.c.l.b16 %v1068
    %v4322 = vunpack.c.h.b16 %v1068
    %v4323 = vunpack.c.l.b16 %v1069
    %v4324 = vunpack.c.h.b16 %v1069
    %v4325 = vunpack.c.l.b16 %v1070
    %v4326 = vunpack.c.h.b16 %v1070
    %v4327 = vunpack.c.l.b16 %v1071
    %v4328 = vunpack.c.h.b16 %v1071
    %v4329 = vunpack.c.l.b16 %v1072
    %v4330 = vunpack.c.h.b16 %v1072
    %v4331 = vunpack.c.l.b16 %v1073
    %v4332 = vunpack.c.h.b16 %v1073
    %v4333 = vunpack.c.l.b16 %v1074
    %v4334 = vunpack.c.h.b16 %v1074
    %v4335 = vunpack.c.l.b16 %v1075
    %v4336 = vunpack.c.h.b16 %v1075
    %v4337 = vunpack.c.l.b16 %v1076
    %v4338 = vunpack.c.h.b16 %v1076
    %v4339 = vunpack.c.l.b16 %v1077
    %v4340 = vunpack.c.h.b16 %v1077
    %v4341 = vunpack.c.l.b16 %v1078
    %v4342 = vunpack.c.h.b16 %v1078
    %v4343 = vunpack.c.l.b16 %v1079
    %v4344 = vunpack.c.h.b16 %v1079
    %v4345 = vunpack.c.l.b16 %v1080
    %v4346 = vunpack.c.h.b16 %v1080
    %v4347 = vunpack.c.l.b16 %v1081
    %v4348 = vunpack.c.h.b16 %v1081
    %v4349 = vunpack.c.l.b16 %v1082
    %v4350 = vunpack.c.h.b16 %v1082
    %v4351 = vunpack.c.l.b16 %v1083
    %v4352 = vunpack.c.h.b16 %v1083
    %v4353 = vunpack.c.l.b16 %v1084
    %v4354 = vunpack.c.h.b16 %v1084
    %v4355 = vunpack.c.l.b16 %v1085
    %v4356 = vunpack.c.h.b16 %v1085
    %v4357 = vunpack.c.l.b16 %v1086
    %v4358 = vunpack.c.h.b16 %v1086
    %v4359 = vunpack.c.l.b16 %v1087
    %v4360 = vunpack.c.h.b16 %v1087
    %v4361 = vunpack.c.l.b16 %v1088
    %v4362 = vunpack.c.h.b16 %v1088
    %v4363 = vunpack.c.l.b16 %v1089
    %v4364 = vunpack.c.h.b16 %v1089
    %v4365 = vunpack.c.l.b16 %v1090
    %v4366 = vunpack.c.h.b16 %v1090
    %v4367 = vunpack.c.l.b16 %v1091
    %v4368 = vunpack.c.h.b16 %v1091
    %v4369 = vunpack.c.l.b16 %v1092
    %v4370 = vunpack.c.h.b16 %v1092
    %v4371 = vunpack.c.l.b16 %v1093
    %v4372 = vunpack.c.h.b16 %v1093
    %v4373 = vunpack.c.l.b16 %v1094
    %v4374 = vunpack.c.h.b16 %v1094
    %v4375 = vunpack.c.l.b16 %v1095
    %v4376 = vunpack.c.h.b16 %v1095
    %v4377 = vunpack.c.l.b16 %v1096
    %v4378 = vunpack.c.h.b16 %v1096
    %v4379 = vunpack.c.l.b16 %v1097
    %v4380 = vunpack.c.h.b16 %v1097
    %v4381 = vunpack.c.l.b16 %v1098
    %v4382 = vunpack.c.h.b16 %v1098
    %v4383 = vunpack.c.l.b16 %v1099
    %v4384 = vunpack.c.h.b16 %v1099
    %v4385 = vunpack.c.l.b16 %v1100
    %v4386 = vunpack.c.h.b16 %v1100
    %v4387 = vunpack.c.l.b16 %v1101
    %v4388 = vunpack.c.h.b16 %v1101
    %v4389 = vunpack.c.l.b16 %v1102
    %v4390 = vunpack.c.h.b16 %v1102
    %v4391 = vunpack.c.l.b16 %v1103
    %v4392 = vunpack.c.h.b16 %v1103
    %v4393 = vunpack.c.l.b16 %v1104
    %v4394 = vunpack.c.h.b16 %v1104
    %v4395 = vunpack.c.l.b16 %v1105
    %v4396 = vunpack.c.h.b16 %v1105
    %v4397 = vunpack.c.l.b16 %v1106
    %v4398 = vunpack.c.h.b16 %v1106
    %v4399 = vunpack.c.l.b16 %v1107
    %v4400 = vunpack.c.h.b16 %v1107
    %v4401 = vunpack.c.l.b16 %v1108
    %v4402 = vunpack.c.h.b16 %v1108
    %v4403 = vunpack.c.l.b16 %v1109
    %v4404 = vunpack.c.h.b16 %v1109
    %v4405 = vunpack.c.l.b16 %v1110
    %v4406 = vunpack.c.h.b16 %v1110
    %v4407 = vunpack.c.l.b16 %v1111
    %v4408 = vunpack.c.h.b16 %v1111
    %v4409 = vunpack.c.l.b16 %v1112
    %v4410 = vunpack.c.h.b16 %v1112
    %v4411 = vunpack.c.l.b16 %v1113
    %v4412 = vunpack.c.h.b16 %v1113
    %v4413 = vunpack.c.l.b16 %v1114
    %v4414 = vunpack.c.h.b16 %v1114
    %v4415 = vunpack.c.l.b16 %v1115
    %v4416 = vunpack.c.h.b16 %v1115
    %v4417 = vunpack.c.l.b16 %v1116
    %v4418 = vunpack.c.h.b16 %v1116
    %v4419 = vunpack.c.l.b16 %v1117
    %v4420 = vunpack.c.h.b16 %v1117
    %v4421 = vunpack.c.l.b16 %v1118
    %v4422 = vunpack.c.h.b16 %v1118
    %v4423 = vunpack.c.l.b16 %v1119
    %v4424 = vunpack.c.h.b16 %v1119
    %v4425 = vunpack.c.l.b16 %v1120
    %v4426 = vunpack.c.h.b16 %v1120
    %v4427 = vunpack.c.l.b16 %v1121
    %v4428 = vunpack.c.h.b16 %v1121
    %v4429 = vunpack.c.l.b16 %v1122
    %v4430 = vunpack.c.h.b16 %v1122
    %v4431 = vunpack.c.l.b16 %v1123
    %v4432 = vunpack.c.h.b16 %v1123
    %v4433 = vunpack.c.l.b16 %v1124
    %v4434 = vunpack.c.h.b16 %v1124
    %v4435 = vunpack.c.l.b16 %v1125
    %v4436 = vunpack.c.h.b16 %v1125
    %v4437 = vunpack.c.l.b16 %v1126
    %v4438 = vunpack.c.h.b16 %v1126
    %v4439 = vunpack.c.l.b16 %v1127
    %v4440 = vunpack.c.h.b16 %v1127
    %v4441 = vunpack.c.l.b16 %v1128
    %v4442 = vunpack.c.h.b16 %v1128
    %v4443 = vunpack.c.l.b16 %v1129
    %v4444 = vunpack.c.h.b16 %v1129
    %v4445 = vunpack.c.l.b16 %v1130
    %v4446 = vunpack.c.h.b16 %v1130
    %v4447 = vunpack.c.l.b16 %v1131
    %v4448 = vunpack.c.h.b16 %v1131
    %v4449 = vunpack.c.l.b16 %v1132
    %v4450 = vunpack.c.h.b16 %v1132
    %v4451 = vunpack.c.l.b16 %v1133
    %v4452 = vunpack.c.h.b16 %v1133
    %v4453 = vunpack.c.l.b16 %v1134
    %v4454 = vunpack.c.h.b16 %v1134
    %v4455 = vunpack.c.l.b16 %v1135
    %v4456 = vunpack.c.h.b16 %v1135
    %v4457 = vunpack.c.l.b16 %v1136
    %v4458 = vunpack.c.h.b16 %v1136
    %v4459 = vunpack.c.l.b16 %v1137
    %v4460 = vunpack.c.h.b16 %v1137
    %v4461 = vunpack.c.l.b16 %v1138
    %v4462 = vunpack.c.h.b16 %v1138
    %v4463 = vunpack.c.l.b16 %v1139
    %v4464 = vunpack.c.h.b16 %v1139
    %v4465 = vunpack.c.l.b16 %v1140
    %v4466 = vunpack.c.h.b16 %v1140
    %v4467 = vunpack.c.l.b16 %v1141
    %v4468 = vunpack.c.h.b16 %v1141
    %v4469 = vunpack.c.l.b16 %v1142
    %v4470 = vunpack.c.h.b16 %v1142
    %v4471 = vunpack.c.l.b16 %v1143
    %v4472 = vunpack.c.h.b16 %v1143
    %v4473 = vunpack.c.l.b16 %v1144
    %v4474 = vunpack.c.h.b16 %v1144
    %v4475 = vunpack.c.l.b16 %v1145
    %v4476 = vunpack.c.h.b16 %v1145
    %v4477 = vunpack.c.l.b16 %v1146
    %v4478 = vunpack.c.h.b16 %v1146
    %v4479 = vunpack.c.l.b16 %v1147
    %v4480 = vunpack.c.h.b16 %v1147
    %v4481 = vunpack.c.l.b16 %v1148
    %v4482 = vunpack.c.h.b16 %v1148
    %v4483 = vunpack.c.l.b16 %v1149
    %v4484 = vunpack.c.h.b16 %v1149
    %v4485 = vunpack.c.l.b16 %v1150
    %v4486 = vunpack.c.h.b16 %v1150
    %v4487 = vunpack.c.l.b16 %v1151
    %v4488 = vunpack.c.h.b16 %v1151
    %v4489 = vunpack.c.l.b16 %v1152
    %v4490 = vunpack.c.h.b16 %v1152
    %v4491 = vunpack.c.l.b16 %v1153
    %v4492 = vunpack.c.h.b16 %v1153
    %v4493 = vunpack.c.l.b16 %v1154
    %v4494 = vunpack.c.h.b16 %v1154
    %v4495 = vunpack.c.l.b16 %v1155
    %v4496 = vunpack.c.h.b16 %v1155
    %v4497 = vunpack.c.l.b16 %v1156
    %v4498 = vunpack.c.h.b16 %v1156
    %v4499 = vunpack.c.l.b16 %v1157
    %v4500 = vunpack.c.h.b16 %v1157
    %v4501 = vunpack.c.l.b16 %v1158
    %v4502 = vunpack.c.h.b16 %v1158
    %v4503 = vunpack.c.l.b16 %v1159
    %v4504 = vunpack.c.h.b16 %v1159
    %v4505 = vunpack.c.l.b16 %v1160
    %v4506 = vunpack.c.h.b16 %v1160
    %v4507 = vunpack.c.l.b16 %v1161
    %v4508 = vunpack.c.h.b16 %v1161
    %v4509 = vunpack.c.l.b16 %v1162
    %v4510 = vunpack.c.h.b16 %v1162
    %v4511 = vunpack.c.l.b16 %v1163
    %v4512 = vunpack.c.h.b16 %v1163
    %v4513 = vunpack.c.l.b16 %v1164
    %v4514 = vunpack.c.h.b16 %v1164
    %v4515 = vunpack.c.l.b16 %v1165
    %v4516 = vunpack.c.h.b16 %v1165
    %v4517 = vunpack.c.l.b16 %v1166
    %v4518 = vunpack.c.h.b16 %v1166
    %v4519 = vunpack.c.l.b16 %v1167
    %v4520 = vunpack.c.h.b16 %v1167
    %v4521 = vunpack.c.l.b16 %v1168
    %v4522 = vunpack.c.h.b16 %v1168
    %v4523 = vunpack.c.l.b16 %v1169
    %v4524 = vunpack.c.h.b16 %v1169
    %v4525 = vunpack.c.l.b16 %v1170
    %v4526 = vunpack.c.h.b16 %v1170
    %v4527 = vunpack.c.l.b16 %v1171
    %v4528 = vunpack.c.h.b16 %v1171
    %v4529 = vunpack.c.l.b16 %v1172
    %v4530 = vunpack.c.h.b16 %v1172
    %v4531 = vunpack.c.l.b16 %v1173
    %v4532 = vunpack.c.h.b16 %v1173
    %v4533 = vunpack.c.l.b16 %v1174
    %v4534 = vunpack.c.h.b16 %v1174
    %v4535 = vunpack.c.l.b16 %v1175
    %v4536 = vunpack.c.h.b16 %v1175
    %v4537 = vunpack.c.l.b16 %v1176
    %v4538 = vunpack.c.h.b16 %v1176
    %v4539 = vunpack.c.l.b16 %v1177
    %v4540 = vunpack.c.h.b16 %v1177
    %v4541 = vunpack.c.l.b16 %v1178
    %v4542 = vunpack.c.h.b16 %v1178
    %v4543 = vunpack.c.l.b16 %v1179
    %v4544 = vunpack.c.h.b16 %v1179
    %v4545 = vunpack.c.l.b16 %v1180
    %v4546 = vunpack.c.h.b16 %v1180
    %v4547 = vunpack.c.l.b16 %v1181
    %v4548 = vunpack.c.h.b16 %v1181
    %v4549 = vunpack.c.l.b16 %v1182
    %v4550 = vunpack.c.h.b16 %v1182
    %v4551 = vunpack.c.l.b16 %v1183
    %v4552 = vunpack.c.h.b16 %v1183
    %v4553 = vunpack.c.l.b16 %v1184
    %v4554 = vunpack.c.h.b16 %v1184
    %v4555 = vunpack.c.l.b16 %v1185
    %v4556 = vunpack.c.h.b16 %v1185
    %v4557 = vunpack.c.l.b16 %v1186
    %v4558 = vunpack.c.h.b16 %v1186
    %v4559 = vunpack.c.l.b16 %v1187
    %v4560 = vunpack.c.h.b16 %v1187
    %v4561 = vunpack.c.l.b16 %v1188
    %v4562 = vunpack.c.h.b16 %v1188
    %v4563 = vunpack.c.l.b16 %v1189
    %v4564 = vunpack.c.h.b16 %v1189
    %v4565 = vunpack.c.l.b16 %v1190
    %v4566 = vunpack.c.h.b16 %v1190
    %v4567 = vunpack.c.l.b16 %v1191
    %v4568 = vunpack.c.h.b16 %v1191
    %v4569 = vunpack.c.l.b16 %v1192
    %v4570 = vunpack.c.h.b16 %v1192
    %v4571 = vunpack.c.l.b16 %v1193
    %v4572 = vunpack.c.h.b16 %v1193
    %v4573 = vunpack.c.l.b16 %v1194
    %v4574 = vunpack.c.h.b16 %v1194
    %v4575 = vunpack.c.l.b16 %v1195
    %v4576 = vunpack.c.h.b16 %v1195
    %v4577 = vunpack.c.l.b16 %v1196
    %v4578 = vunpack.c.h.b16 %v1196
    %v4579 = vunpack.c.l.b16 %v1197
    %v4580 = vunpack.c.h.b16 %v1197
    %v4581 = vunpack.c.l.b16 %v1198
    %v4582 = vunpack.c.h.b16 %v1198
    %v4583 = vunpack.c.l.b16 %v1199
    %v4584 = vunpack.c.h.b16 %v1199
    %v4585 = vunpack.c.l.b16 %v1200
    %v4586 = vunpack.c.h.b16 %v1200
    %v4587 = vunpack.c.l.b16 %v1201
    %v4588 = vunpack.c.h.b16 %v1201
    %v4589 = vunpack.c.l.b16 %v1202
    %v4590 = vunpack.c.h.b16 %v1202
    %v4591 = vunpack.c.l.b16 %v1203
    %v4592 = vunpack.c.h.b16 %v1203
    %v4593 = vunpack.c.l.b16 %v1204
    %v4594 = vunpack.c.h.b16 %v1204
    %v4595 = vunpack.c.l.b16 %v1205
    %v4596 = vunpack.c.h.b16 %v1205
    %v4597 = vunpack.c.l.b16 %v1206
    %v4598 = vunpack.c.h.b16 %v1206
    %v4599 = vunpack.c.l.b16 %v1207
    %v4600 = vunpack.c.h.b16 %v1207
    %v4601 = vunpack.c.l.b16 %v1208
    %v4602 = vunpack.c.h.b16 %v1208
    %v4603 = vunpack.c.l.b16 %v1209
    %v4604 = vunpack.c.h.b16 %v1209
    %v4605 = vunpack.c.l.b16 %v1210
    %v4606 = vunpack.c.h.b16 %v1210
    %v4607 = vunpack.c.l.b16 %v1211
    %v4608 = vunpack.c.h.b16 %v1211
    %v4609 = vunpack.c.l.b16 %v1212
    %v4610 = vunpack.c.h.b16 %v1212
    %v4611 = vunpack.c.l.b16 %v1213
    %v4612 = vunpack.c.h.b16 %v1213
    %v4613 = vunpack.c.l.b16 %v1214
    %v4614 = vunpack.c.h.b16 %v1214
    %v4615 = vunpack.c.l.b16 %v1215
    %v4616 = vunpack.c.h.b16 %v1215
    %v4617 = vunpack.c.l.b16 %v1216
    %v4618 = vunpack.c.h.b16 %v1216
    %v4619 = vunpack.c.l.b16 %v1217
    %v4620 = vunpack.c.h.b16 %v1217
    %v4621 = vunpack.c.l.b16 %v1218
    %v4622 = vunpack.c.h.b16 %v1218
    %v4623 = vunpack.c.l.b16 %v1219
    %v4624 = vunpack.c.h.b16 %v1219
    %v4625 = vunpack.c.l.b16 %v1220
    %v4626 = vunpack.c.h.b16 %v1220
    %v4627 = vunpack.c.l.b16 %v1221
    %v4628 = vunpack.c.h.b16 %v1221
    %v4629 = vunpack.c.l.b16 %v1222
    %v4630 = vunpack.c.h.b16 %v1222
    %v4631 = vunpack.c.l.b16 %v1223
    %v4632 = vunpack.c.h.b16 %v1223
    %v4633 = vunpack.c.l.b16 %v1224
    %v4634 = vunpack.c.h.b16 %v1224
    %v4635 = vpack.c.b16 %v2591, %v2587
    %v4636 = vpack.c.b16 %v2592, %v2588
    %v4637 = vpack.c.b16 %v2593, %v2589
    %v4638 = vpack.c.b16 %v2594, %v2590
    %v4639 = vpack.c.b16 %v2599, %v2595
    %v4640 = vpack.c.b16 %v2600, %v2596
    %v4641 = vpack.c.b16 %v2601, %v2597
    %v4642 = vpack.c.b16 %v2602, %v2598
    %v4643 = vpack.c.b16 %v2607, %v2603
    %v4644 = vpack.c.b16 %v2608, %v2604
    %v4645 = vpack.c.b16 %v2609, %v2605
    %v4646 = vpack.c.b16 %v2610, %v2606
    %v4647 = vpack.c.b16 %v2615, %v2611
    %v4648 = vpack.c.b16 %v2616, %v2612
    %v4649 = vpack.c.b16 %v2617, %v2613
    %v4650 = vpack.c.b16 %v2618, %v2614
    %v4651 = vpack.c.b16 %v2623, %v2619
    %v4652 = vpack.c.b16 %v2624, %v2620
    %v4653 = vpack.c.b16 %v2625, %v2621
    %v4654 = vpack.c.b16 %v2626, %v2622
    %v4655 = vpack.c.b16 %v2631, %v2627
    %v4656 = vpack.c.b16 %v2632, %v2628
    %v4657 = vpack.c.b16 %v2633, %v2629
    %v4658 = vpack.c.b16 %v2634, %v2630
    %v4659 = vpack.c.b16 %v2639, %v2635
    %v4660 = vpack.c.b16 %v2640, %v2636
    %v4661 = vpack.c.b16 %v2641, %v2637
    %v4662 = vpack.c.b16 %v2642, %v2638
    %v4663 = vpack.c.b16 %v2647, %v2643
    %v4664 = vpack.c.b16 %v2648, %v2644
    %v4665 = vpack.c.b16 %v2649, %v2645
    %v4666 = vpack.c.b16 %v2650, %v2646
    %v4667 = vpack.c.b16 %v2655, %v2651
    %v4668 = vpack.c.b16 %v2656, %v2652
    %v4669 = vpack.c.b16 %v2657, %v2653
    %v4670 = vpack.c.b16 %v2658, %v2654
    %v4671 = vpack.c.b16 %v2663, %v2659
    %v4672 = vpack.c.b16 %v2664, %v2660
    %v4673 = vpack.c.b16 %v2665, %v2661
    %v4674 = vpack.c.b16 %v2666, %v2662
    %v4675 = vpack.c.b16 %v2671, %v2667
    %v4676 = vpack.c.b16 %v2672, %v2668
    %v4677 = vpack.c.b16 %v2673, %v2669
    %v4678 = vpack.c.b16 %v2674, %v2670
    %v4679 = vpack.c.b16 %v2679, %v2675
    %v4680 = vpack.c.b16 %v2680, %v2676
    %v4681 = vpack.c.b16 %v2681, %v2677
    %v4682 = vpack.c.b16 %v2682, %v2678
    %v4683 = vpack.c.b16 %v2687, %v2683
    %v4684 = vpack.c.b16 %v2688, %v2684
    %v4685 = vpack.c.b16 %v2689, %v2685
    %v4686 = vpack.c.b16 %v2690, %v2686
    %v4687 = vpack.c.b16 %v2695, %v2691
    %v4688 = vpack.c.b16 %v2696, %v2692
    %v4689 = vpack.c.b16 %v2697, %v2693
    %v4690 = vpack.c.b16 %v2698, %v2694
    %v4691 = vpack.c.b16 %v2703, %v2699
    %v4692 = vpack.c.b16 %v2704, %v2700
    %v4693 = vpack.c.b16 %v2705, %v2701
    %v4694 = vpack.c.b16 %v2706, %v2702
    %v4695 = vpack.c.b16 %v2711, %v2707
    %v4696 = vpack.c.b16 %v2712, %v2708
    %v4697 = vpack.c.b16 %v2713, %v2709
    %v4698 = vpack.c.b16 %v2714, %v2710
    %v4699 = vpack.c.b16 %v2719, %v2715
    %v4700 = vpack.c.b16 %v2720, %v2716
    %v4701 = vpack.c.b16 %v2721, %v2717
    %v4702 = vpack.c.b16 %v2722, %v2718
    %v4703 = vpack.c.b16 %v2727, %v2723
    %v4704 = vpack.c.b16 %v2728, %v2724
    %v4705 = vpack.c.b16 %v2729, %v2725
    %v4706 = vpack.c.b16 %v2730, %v2726
    %v4707 = vpack.c.b16 %v2735, %v2731
    %v4708 = vpack.c.b16 %v2736, %v2732
    %v4709 = vpack.c.b16 %v2737, %v2733
    %v4710 = vpack.c.b16 %v2738, %v2734
    %v4711 = vpack.c.b16 %v2743, %v2739
    %v4712 = vpack.c.b16 %v2744, %v2740
    %v4713 = vpack.c.b16 %v2745, %v2741
    %v4714 = vpack.c.b16 %v2746, %v2742
    %v4715 = vpack.c.b16 %v2751, %v2747
    %v4716 = vpack.c.b16 %v2752, %v2748
    %v4717 = vpack.c.b16 %v2753, %v2749
    %v4718 = vpack.c.b16 %v2754, %v2750
    %v4719 = vpack.c.b16 %v2759, %v2755
    %v4720 = vpack.c.b16 %v2760, %v2756
    %v4721 = vpack.c.b16 %v2761, %v2757
    %v4722 = vpack.c.b16 %v2762, %v2758
    %v4723 = vpack.c.b16 %v2767, %v2763
    %v4724 = vpack.c.b16 %v2768, %v2764
    %v4725 = vpack.c.b16 %v2769, %v2765
    %v4726 = vpack.c.b16 %v2770, %v2766
    %v4727 = vpack.c.b16 %v2775, %v2771
    %v4728 = vpack.c.b16 %v2776, %v2772
    %v4729 = vpack.c.b16 %v2777, %v2773
    %v4730 = vpack.c.b16 %v2778, %v2774
    %v4731 = vpack.c.b16 %v2783, %v2779
    %v4732 = vpack.c.b16 %v2784, %v2780
    %v4733 = vpack.c.b16 %v2785, %v2781
    %v4734 = vpack.c.b16 %v2786, %v2782
    %v4735 = vpack.c.b16 %v2791, %v2787
    %v4736 = vpack.c.b16 %v2792, %v2788
    %v4737 = vpack.c.b16 %v2793, %v2789
    %v4738 = vpack.c.b16 %v2794, %v2790
    %v4739 = vpack.c.b16 %v2799, %v2795
    %v4740 = vpack.c.b16 %v2800, %v2796
    %v4741 = vpack.c.b16 %v2801, %v2797
    %v4742 = vpack.c.b16 %v2802, %v2798
    %v4743 = vpack.c.b16 %v2807, %v2803
    %v4744 = vpack.c.b16 %v2808, %v2804
    %v4745 = vpack.c.b16 %v2809, %v2805
    %v4746 = vpack.c.b16 %v2810, %v2806
    %v4747 = vpack.c.b16 %v2815, %v2811
    %v4748 = vpack.c.b16 %v2816, %v2812
    %v4749 = vpack.c.b16 %v2817, %v2813
    %v4750 = vpack.c.b16 %v2818, %v2814
    %v4751 = vpack.c.b16 %v2823, %v2819
    %v4752 = vpack.c.b16 %v2824, %v2820
    %v4753 = vpack.c.b16 %v2825, %v2821
    %v4754 = vpack.c.b16 %v2826, %v2822
    %v4755 = vpack.c.b16 %v2831, %v2827
    %v4756 = vpack.c.b16 %v2832, %v2828
    %v4757 = vpack.c.b16 %v2833, %v2829
    %v4758 = vpack.c.b16 %v2834, %v2830
    %v4759 = vpack.c.b16 %v2839, %v2835
    %v4760 = vpack.c.b16 %v2840, %v2836
    %v4761 = vpack.c.b16 %v2841, %v2837
    %v4762 = vpack.c.b16 %v2842, %v2838
    %v4763 = vpack.c.b16 %v2847, %v2843
    %v4764 = vpack.c.b16 %v2848, %v2844
    %v4765 = vpack.c.b16 %v2849, %v2845
    %v4766 = vpack.c.b16 %v2850, %v2846
    %v4767 = vpack.c.b16 %v2855, %v2851
    %v4768 = vpack.c.b16 %v2856, %v2852
    %v4769 = vpack.c.b16 %v2857, %v2853
    %v4770 = vpack.c.b16 %v2858, %v2854
    %v4771 = vpack.c.b16 %v2863, %v2859
    %v4772 = vpack.c.b16 %v2864, %v2860
    %v4773 = vpack.c.b16 %v2865, %v2861
    %v4774 = vpack.c.b16 %v2866, %v2862
    %v4775 = vpack.c.b16 %v2871, %v2867
    %v4776 = vpack.c.b16 %v2872, %v2868
    %v4777 = vpack.c.b16 %v2873, %v2869
    %v4778 = vpack.c.b16 %v2874, %v2870
    %v4779 = vpack.c.b16 %v2879, %v2875
    %v4780 = vpack.c.b16 %v2880, %v2876
    %v4781 = vpack.c.b16 %v2881, %v2877
    %v4782 = vpack.c.b16 %v2882, %v2878
    %v4783 = vpack.c.b16 %v2887, %v2883
    %v4784 = vpack.c.b16 %v2888, %v2884
    %v4785 = vpack.c.b16 %v2889, %v2885
    %v4786 = vpack.c.b16 %v2890, %v2886
    %v4787 = vpack.c.b16 %v2895, %v2891
    %v4788 = vpack.c.b16 %v2896, %v2892
    %v4789 = vpack.c.b16 %v2897, %v2893
    %v4790 = vpack.c.b16 %v2898, %v2894
    %v4791 = vpack.c.b16 %v2903, %v2899
    %v4792 = vpack.c.b16 %v2904, %v2900
    %v4793 = vpack.c.b16 %v2905, %v2901
    %v4794 = vpack.c.b16 %v2906, %v2902
    %v4795 = vpack.c.b16 %v2911, %v2907
    %v4796 = vpack.c.b16 %v2912, %v2908
    %v4797 = vpack.c.b16 %v2913, %v2909
    %v4798 = vpack.c.b16 %v2914, %v2910
    %v4799 = vpack.c.b16 %v2919, %v2915
    %v4800 = vpack.c.b16 %v2920, %v2916
    %v4801 = vpack.c.b16 %v2921, %v2917
    %v4802 = vpack.c.b16 %v2922, %v2918
    %v4803 = vpack.c.b16 %v2927, %v2923
    %v4804 = vpack.c.b16 %v2928, %v2924
    %v4805 = vpack.c.b16 %v2929, %v2925
    %v4806 = vpack.c.b16 %v2930, %v2926
    %v4807 = vpack.c.b16 %v2935, %v2931
    %v4808 = vpack.c.b16 %v2936, %v2932
    %v4809 = vpack.c.b16 %v2937, %v2933
    %v4810 = vpack.c.b16 %v2938, %v2934
    %v4811 = vpack.c.b16 %v2943, %v2939
    %v4812 = vpack.c.b16 %v2944, %v2940
    %v4813 = vpack.c.b16 %v2945, %v2941
    %v4814 = vpack.c.b16 %v2946, %v2942
    %v4815 = vpack.c.b16 %v2951, %v2947
    %v4816 = vpack.c.b16 %v2952, %v2948
    %v4817 = vpack.c.b16 %v2953, %v2949
    %v4818 = vpack.c.b16 %v2954, %v2950
    %v4819 = vpack.c.b16 %v2959, %v2955
    %v4820 = vpack.c.b16 %v2960, %v2956
    %v4821 = vpack.c.b16 %v2961, %v2957
    %v4822 = vpack.c.b16 %v2962, %v2958
    %v4823 = vpack.c.b16 %v2967, %v2963
    %v4824 = vpack.c.b16 %v2968, %v2964
    %v4825 = vpack.c.b16 %v2969, %v2965
    %v4826 = vpack.c.b16 %v2970, %v2966
    %v4827 = vpack.c.b16 %v2975, %v2971
    %v4828 = vpack.c.b16 %v2976, %v2972
    %v4829 = vpack.c.b16 %v2977, %v2973
    %v4830 = vpack.c.b16 %v2978, %v2974
    %v4831 = vpack.c.b16 %v2983, %v2979
    %v4832 = vpack.c.b16 %v2984, %v2980
    %v4833 = vpack.c.b16 %v2985, %v2981
    %v4834 = vpack.c.b16 %v2986, %v2982
    %v4835 = vpack.c.b16 %v2991, %v2987
    %v4836 = vpack.c.b16 %v2992, %v2988
    %v4837 = vpack.c.b16 %v2993, %v2989
    %v4838 = vpack.c.b16 %v2994, %v2990
    %v4839 = vpack.c.b16 %v2999, %v2995
    %v4840 = vpack.c.b16 %v3000, %v2996
    %v4841 = vpack.c.b16 %v3001, %v2997
    %v4842 = vpack.c.b16 %v3002, %v2998
    %v4843 = vpack.c.b16 %v3007, %v3003
    %v4844 = vpack.c.b16 %v3008, %v3004
    %v4845 = vpack.c.b16 %v3009, %v3005
    %v4846 = vpack.c.b16 %v3010, %v3006
    %v4847 = vpack.c.b16 %v3015, %v3011
    %v4848 = vpack.c.b16 %v3016, %v3012
    %v4849 = vpack.c.b16 %v3017, %v3013
    %v4850 = vpack.c.b16 %v3018, %v3014
    %v4851 = vpack.c.b16 %v3023, %v3019
    %v4852 = vpack.c.b16 %v3024, %v3020
    %v4853 = vpack.c.b16 %v3025, %v3021
    %v4854 = vpack.c.b16 %v3026, %v3022
    %v4855 = vpack.c.b16 %v3031, %v3027
    %v4856 = vpack.c.b16 %v3032, %v3028
    %v4857 = vpack.c.b16 %v3033, %v3029
    %v4858 = vpack.c.b16 %v3034, %v3030
    %v4859 = vpack.c.b16 %v3039, %v3035
    %v4860 = vpack.c.b16 %v3040, %v3036
    %v4861 = vpack.c.b16 %v3041, %v3037
    %v4862 = vpack.c.b16 %v3042, %v3038
    %v4863 = vpack.c.b16 %v3047, %v3043
    %v4864 = vpack.c.b16 %v3048, %v3044
    %v4865 = vpack.c.b16 %v3049, %v3045
    %v4866 = vpack.c.b16 %v3050, %v3046
    %v4867 = vpack.c.b16 %v3055, %v3051
    %v4868 = vpack.c.b16 %v3056, %v3052
    %v4869 = vpack.c.b16 %v3057, %v3053
    %v4870 = vpack.c.b16 %v3058, %v3054
    %v4871 = vpack.c.b16 %v3063, %v3059
    %v4872 = vpack.c.b16 %v3064, %v3060
    %v4873 = vpack.c.b16 %v3065, %v3061
    %v4874 = vpack.c.b16 %v3066, %v3062
    %v4875 = vpack.c.b16 %v3071, %v3067
    %v4876 = vpack.c.b16 %v3072, %v3068
    %v4877 = vpack.c.b16 %v3073, %v3069
    %v4878 = vpack.c.b16 %v3074, %v3070
    %v4879 = vpack.c.b16 %v3079, %v3075
    %v4880 = vpack.c.b16 %v3080, %v3076
    %v4881 = vpack.c.b16 %v3081, %v3077
    %v4882 = vpack.c.b16 %v3082, %v3078
    %v4883 = vpack.c.b16 %v3087, %v3083
    %v4884 = vpack.c.b16 %v3088, %v3084
    %v4885 = vpack.c.b16 %v3089, %v3085
    %v4886 = vpack.c.b16 %v3090, %v3086
    %v4887 = vpack.c.b16 %v3095, %v3091
    %v4888 = vpack.c.b16 %v3096, %v3092
    %v4889 = vpack.c.b16 %v3097, %v3093
    %v4890 = vpack.c.b16 %v3098, %v3094
    %v4891 = vpack.c.b16 %v3103, %v3099
    %v4892 = vpack.c.b16 %v3104, %v3100
    %v4893 = vpack.c.b16 %v3105, %v3101
    %v4894 = vpack.c.b16 %v3106, %v3102
    %v4895 = vpack.c.b16 %v3111, %v3107
    %v4896 = vpack.c.b16 %v3112, %v3108
    %v4897 = vpack.c.b16 %v3113, %v3109
    %v4898 = vpack.c.b16 %v3114, %v3110
    %v4899 = vpack.c.b16 %v3119, %v3115
    %v4900 = vpack.c.b16 %v3120, %v3116
    %v4901 = vpack.c.b16 %v3121, %v3117
    %v4902 = vpack.c.b16 %v3122, %v3118
    %v4903 = vpack.c.b16 %v3127, %v3123
    %v4904 = vpack.c.b16 %v3128, %v3124
    %v4905 = vpack.c.b16 %v3129, %v3125
    %v4906 = vpack.c.b16 %v3130, %v3126
    %v4907 = vpack.c.b16 %v3135, %v3131
    %v4908 = vpack.c.b16 %v3136, %v3132
    %v4909 = vpack.c.b16 %v3137, %v3133
    %v4910 = vpack.c.b16 %v3138, %v3134
    %v4911 = vpack.c.b16 %v3143, %v3139
    %v4912 = vpack.c.b16 %v3144, %v3140
    %v4913 = vpack.c.b16 %v3145, %v3141
    %v4914 = vpack.c.b16 %v3146, %v3142
    %v4915 = vpack.c.b16 %v3151, %v3147
    %v4916 = vpack.c.b16 %v3152, %v3148
    %v4917 = vpack.c.b16 %v3153, %v3149
    %v4918 = vpack.c.b16 %v3154, %v3150
    %v4919 = vpack.c.b16 %v3159, %v3155
    %v4920 = vpack.c.b16 %v3160, %v3156
    %v4921 = vpack.c.b16 %v3161, %v3157
    %v4922 = vpack.c.b16 %v3162, %v3158
    %v4923 = vpack.c.b16 %v3167, %v3163
    %v4924 = vpack.c.b16 %v3168, %v3164
    %v4925 = vpack.c.b16 %v3169, %v3165
    %v4926 = vpack.c.b16 %v3170, %v3166
    %v4927 = vpack.c.b16 %v3175, %v3171
    %v4928 = vpack.c.b16 %v3176, %v3172
    %v4929 = vpack.c.b16 %v3177, %v3173
    %v4930 = vpack.c.b16 %v3178, %v3174
    %v4931 = vpack.c.b16 %v3183, %v3179
    %v4932 = vpack.c.b16 %v3184, %v3180
    %v4933 = vpack.c.b16 %v3185, %v3181
    %v4934 = vpack.c.b16 %v3186, %v3182
    %v4935 = vpack.c.b16 %v3191, %v3187
    %v4936 = vpack.c.b16 %v3192, %v3188
    %v4937 = vpack.c.b16 %v3193, %v3189
    %v4938 = vpack.c.b16 %v3194, %v3190
    %v4939 = vpack.c.b16 %v3199, %v3195
    %v4940 = vpack.c.b16 %v3200, %v3196
    %v4941 = vpack.c.b16 %v3201, %v3197
    %v4942 = vpack.c.b16 %v3202, %v3198
    %v4943 = vpack.c.b16 %v3207, %v3203
    %v4944 = vpack.c.b16 %v3208, %v3204
    %v4945 = vpack.c.b16 %v3209, %v3205
    %v4946 = vpack.c.b16 %v3210, %v3206
    %v4947 = vpack.c.b16 %v3215, %v3211
    %v4948 = vpack.c.b16 %v3216, %v3212
    %v4949 = vpack.c.b16 %v3217, %v3213
    %v4950 = vpack.c.b16 %v3218, %v3214
    %v4951 = vpack.c.b16 %v3223, %v3219
    %v4952 = vpack.c.b16 %v3224, %v3220
    %v4953 = vpack.c.b16 %v3225, %v3221
    %v4954 = vpack.c.b16 %v3226, %v3222
    %v4955 = vpack.c.b16 %v3231, %v3227
    %v4956 = vpack.c.b16 %v3232, %v3228
    %v4957 = vpack.c.b16 %v3233, %v3229
    %v4958 = vpack.c.b16 %v3234, %v3230
    %v4959 = vpack.c.b16 %v3239, %v3235
    %v4960 = vpack.c.b16 %v3240, %v3236
    %v4961 = vpack.c.b16 %v3241, %v3237
    %v4962 = vpack.c.b16 %v3242, %v3238
    %v4963 = vpack.c.b16 %v3247, %v3243
    %v4964 = vpack.c.b16 %v3248, %v3244
    %v4965 = vpack.c.b16 %v3249, %v3245
    %v4966 = vpack.c.b16 %v3250, %v3246
    %v4967 = vpack.c.b16 %v3255, %v3251
    %v4968 = vpack.c.b16 %v3256, %v3252
    %v4969 = vpack.c.b16 %v3257, %v3253
    %v4970 = vpack.c.b16 %v3258, %v3254
    %v4971 = vpack.c.b16 %v3263, %v3259
    %v4972 = vpack.c.b16 %v3264, %v3260
    %v4973 = vpack.c.b16 %v3265, %v3261
    %v4974 = vpack.c.b16 %v3266, %v3262
    %v4975 = vpack.c.b16 %v3271, %v3267
    %v4976 = vpack.c.b16 %v3272, %v3268
    %v4977 = vpack.c.b16 %v3273, %v3269
    %v4978 = vpack.c.b16 %v3274, %v3270
    %v4979 = vpack.c.b16 %v3279, %v3275
    %v4980 = vpack.c.b16 %v3280, %v3276
    %v4981 = vpack.c.b16 %v3281, %v3277
    %v4982 = vpack.c.b16 %v3282, %v3278
    %v4983 = vpack.c.b16 %v3287, %v3283
    %v4984 = vpack.c.b16 %v3288, %v3284
    %v4985 = vpack.c.b16 %v3289, %v3285
    %v4986 = vpack.c.b16 %v3290, %v3286
    %v4987 = vpack.c.b16 %v3295, %v3291
    %v4988 = vpack.c.b16 %v3296, %v3292
    %v4989 = vpack.c.b16 %v3297, %v3293
    %v4990 = vpack.c.b16 %v3298, %v3294
    %v4991 = vpack.c.b16 %v3303, %v3299
    %v4992 = vpack.c.b16 %v3304, %v3300
    %v4993 = vpack.c.b16 %v3305, %v3301
    %v4994 = vpack.c.b16 %v3306, %v3302
    %v4995 = vpack.c.b16 %v3311, %v3307
    %v4996 = vpack.c.b16 %v3312, %v3308
    %v4997 = vpack.c.b16 %v3313, %v3309
    %v4998 = vpack.c.b16 %v3314, %v3310
    %v4999 = vpack.c.b16 %v3319, %v3315
    %v5000 = vpack.c.b16 %v3320, %v3316
    %v5001 = vpack.c.b16 %v3321, %v3317
    %v5002 = vpack.c.b16 %v3322, %v3318
    %v5003 = vpack.c.b16 %v3327, %v3323
    %v5004 = vpack.c.b16 %v3328, %v3324
    %v5005 = vpack.c.b16 %v3329, %v3325
    %v5006 = vpack.c.b16 %v3330, %v3326
    %v5007 = vpack.c.b16 %v3335, %v3331
    %v5008 = vpack.c.b16 %v3336, %v3332
    %v5009 = vpack.c.b16 %v3337, %v3333
    %v5010 = vpack.c.b16 %v3338, %v3334
    %v5011 = vpack.c.b16 %v3343, %v3339
    %v5012 = vpack.c.b16 %v3344, %v3340
    %v5013 = vpack.c.b16 %v3345, %v3341
    %v5014 = vpack.c.b16 %v3346, %v3342
    %v5015 = vpack.c.b16 %v3351, %v3347
    %v5016 = vpack.c.b16 %v3352, %v3348
    %v5017 = vpack.c.b16 %v3353, %v3349
    %v5018 = vpack.c.b16 %v3354, %v3350
    %v5019 = vpack.c.b16 %v3359, %v3355
    %v5020 = vpack.c.b16 %v3360, %v3356
    %v5021 = vpack.c.b16 %v3361, %v3357
    %v5022 = vpack.c.b16 %v3362, %v3358
    %v5023 = vpack.c.b16 %v3367, %v3363
    %v5024 = vpack.c.b16 %v3368, %v3364
    %v5025 = vpack.c.b16 %v3369, %v3365
    %v5026 = vpack.c.b16 %v3370, %v3366
    %v5027 = vpack.c.b16 %v3375, %v3371
    %v5028 = vpack.c.b16 %v3376, %v3372
    %v5029 = vpack.c.b16 %v3377, %v3373
    %v5030 = vpack.c.b16 %v3378, %v3374
    %v5031 = vpack.c.b16 %v3383, %v3379
    %v5032 = vpack.c.b16 %v3384, %v3380
    %v5033 = vpack.c.b16 %v3385, %v3381
    %v5034 = vpack.c.b16 %v3386, %v3382
    %v5035 = vpack.c.b16 %v3391, %v3387
    %v5036 = vpack.c.b16 %v3392, %v3388
    %v5037 = vpack.c.b16 %v3393, %v3389
    %v5038 = vpack.c.b16 %v3394, %v3390
    %v5039 = vpack.c.b16 %v3399, %v3395
    %v5040 = vpack.c.b16 %v3400, %v3396
    %v5041 = vpack.c.b16 %v3401, %v3397
    %v5042 = vpack.c.b16 %v3402, %v3398
    %v5043 = vpack.c.b16 %v3407, %v3403
    %v5044 = vpack.c.b16 %v3408, %v3404
    %v5045 = vpack.c.b16 %v3409, %v3405
    %v5046 = vpack.c.b16 %v3410, %v3406
    %v5047 = vpack.c.b16 %v3415, %v3411
    %v5048 = vpack.c.b16 %v3416, %v3412
    %v5049 = vpack.c.b16 %v3417, %v3413
    %v5050 = vpack.c.b16 %v3418, %v3414
    %v5051 = vpack.c.b16 %v3423, %v3419
    %v5052 = vpack.c.b16 %v3424, %v3420
    %v5053 = vpack.c.b16 %v3425, %v3421
    %v5054 = vpack.c.b16 %v3426, %v3422
    %v5055 = vpack.c.b16 %v3431, %v3427
    %v5056 = vpack.c.b16 %v3432, %v3428
    %v5057 = vpack.c.b16 %v3433, %v3429
    %v5058 = vpack.c.b16 %v3434, %v3430
    %v5059 = vpack.c.b16 %v3439, %v3435
    %v5060 = vpack.c.b16 %v3440, %v3436
    %v5061 = vpack.c.b16 %v3441, %v3437
    %v5062 = vpack.c.b16 %v3442, %v3438
    %v5063 = vpack.c.b16 %v3447, %v3443
    %v5064 = vpack.c.b16 %v3448, %v3444
    %v5065 = vpack.c.b16 %v3449, %v3445
    %v5066 = vpack.c.b16 %v3450, %v3446
    %v5067 = vpack.c.b16 %v3455, %v3451
    %v5068 = vpack.c.b16 %v3456, %v3452
    %v5069 = vpack.c.b16 %v3457, %v3453
    %v5070 = vpack.c.b16 %v3458, %v3454
    %v5071 = vpack.c.b16 %v3463, %v3459
    %v5072 = vpack.c.b16 %v3464, %v3460
    %v5073 = vpack.c.b16 %v3465, %v3461
    %v5074 = vpack.c.b16 %v3466, %v3462
    %v5075 = vpack.c.b16 %v3471, %v3467
    %v5076 = vpack.c.b16 %v3472, %v3468
    %v5077 = vpack.c.b16 %v3473, %v3469
    %v5078 = vpack.c.b16 %v3474, %v3470
    %v5079 = vpack.c.b16 %v3479, %v3475
    %v5080 = vpack.c.b16 %v3480, %v3476
    %v5081 = vpack.c.b16 %v3481, %v3477
    %v5082 = vpack.c.b16 %v3482, %v3478
    %v5083 = vpack.c.b16 %v3487, %v3483
    %v5084 = vpack.c.b16 %v3488, %v3484
    %v5085 = vpack.c.b16 %v3489, %v3485
    %v5086 = vpack.c.b16 %v3490, %v3486
    %v5087 = vpack.c.b16 %v3495, %v3491
    %v5088 = vpack.c.b16 %v3496, %v3492
    %v5089 = vpack.c.b16 %v3497, %v3493
    %v5090 = vpack.c.b16 %v3498, %v3494
    %v5091 = vpack.c.b16 %v3503, %v3499
    %v5092 = vpack.c.b16 %v3504, %v3500
    %v5093 = vpack.c.b16 %v3505, %v3501
    %v5094 = vpack.c.b16 %v3506, %v3502
    %v5095 = vpack.c.b16 %v3511, %v3507
    %v5096 = vpack.c.b16 %v3512, %v3508
    %v5097 = vpack.c.b16 %v3513, %v3509
    %v5098 = vpack.c.b16 %v3514, %v3510
    %v5099 = vpack.c.b16 %v3519, %v3515
    %v5100 = vpack.c.b16 %v3520, %v3516
    %v5101 = vpack.c.b16 %v3521, %v3517
    %v5102 = vpack.c.b16 %v3522, %v3518
    %v5103 = vpack.c.b16 %v3527, %v3523
    %v5104 = vpack.c.b16 %v3528, %v3524
    %v5105 = vpack.c.b16 %v3529, %v3525
    %v5106 = vpack.c.b16 %v3530, %v3526
    %v5107 = vpack.c.b16 %v3535, %v3531
    %v5108 = vpack.c.b16 %v3536, %v3532
    %v5109 = vpack.c.b16 %v3537, %v3533
    %v5110 = vpack.c.b16 %v3538, %v3534
    %v5111 = vpack.c.b16 %v3543, %v3539
    %v5112 = vpack.c.b16 %v3544, %v3540
    %v5113 = vpack.c.b16 %v3545, %v3541
    %v5114 = vpack.c.b16 %v3546, %v3542
    %v5115 = vpack.c.b16 %v3551, %v3547
    %v5116 = vpack.c.b16 %v3552, %v3548
    %v5117 = vpack.c.b16 %v3553, %v3549
    %v5118 = vpack.c.b16 %v3554, %v3550
    %v5119 = vpack.c.b16 %v3559, %v3555
    %v5120 = vpack.c.b16 %v3560, %v3556
    %v5121 = vpack.c.b16 %v3561, %v3557
    %v5122 = vpack.c.b16 %v3562, %v3558
    %v5123 = vpack.c.b16 %v3567, %v3563
    %v5124 = vpack.c.b16 %v3568, %v3564
    %v5125 = vpack.c.b16 %v3569, %v3565
    %v5126 = vpack.c.b16 %v3570, %v3566
    %v5127 = vpack.c.b16 %v3575, %v3571
    %v5128 = vpack.c.b16 %v3576, %v3572
    %v5129 = vpack.c.b16 %v3577, %v3573
    %v5130 = vpack.c.b16 %v3578, %v3574
    %v5131 = vpack.c.b16 %v3583, %v3579
    %v5132 = vpack.c.b16 %v3584, %v3580
    %v5133 = vpack.c.b16 %v3585, %v3581
    %v5134 = vpack.c.b16 %v3586, %v3582
    %v5135 = vpack.c.b16 %v3591, %v3587
    %v5136 = vpack.c.b16 %v3592, %v3588
    %v5137 = vpack.c.b16 %v3593, %v3589
    %v5138 = vpack.c.b16 %v3594, %v3590
    %v5139 = vpack.c.b16 %v3599, %v3595
    %v5140 = vpack.c.b16 %v3600, %v3596
    %v5141 = vpack.c.b16 %v3601, %v3597
    %v5142 = vpack.c.b16 %v3602, %v3598
    %v5143 = vpack.c.b16 %v3607, %v3603
    %v5144 = vpack.c.b16 %v3608, %v3604
    %v5145 = vpack.c.b16 %v3609, %v3605
    %v5146 = vpack.c.b16 %v3610, %v3606
    %v5147 = vpack.c.b16 %v3615, %v3611
    %v5148 = vpack.c.b16 %v3616, %v3612
    %v5149 = vpack.c.b16 %v3617, %v3613
    %v5150 = vpack.c.b16 %v3618, %v3614
    %v5151 = vpack.c.b16 %v3623, %v3619
    %v5152 = vpack.c.b16 %v3624, %v3620
    %v5153 = vpack.c.b16 %v3625, %v3621
    %v5154 = vpack.c.b16 %v3626, %v3622
    %v5155 = vpack.c.b16 %v3631, %v3627
    %v5156 = vpack.c.b16 %v3632, %v3628
    %v5157 = vpack.c.b16 %v3633, %v3629
    %v5158 = vpack.c.b16 %v3634, %v3630
    %v5159 = vpack.c.b16 %v3639, %v3635
    %v5160 = vpack.c.b16 %v3640, %v3636
    %v5161 = vpack.c.b16 %v3641, %v3637
    %v5162 = vpack.c.b16 %v3642, %v3638
    %v5163 = vpack.c.b16 %v3647, %v3643
    %v5164 = vpack.c.b16 %v3648, %v3644
    %v5165 = vpack.c.b16 %v3649, %v3645
    %v5166 = vpack.c.b16 %v3650, %v3646
    %v5167 = vpack.c.b16 %v3655, %v3651
    %v5168 = vpack.c.b16 %v3656, %v3652
    %v5169 = vpack.c.b16 %v3657, %v3653
    %v5170 = vpack.c.b16 %v3658, %v3654
    %v5171 = vpack.c.b16 %v3663, %v3659
    %v5172 = vpack.c.b16 %v3664, %v3660
    %v5173 = vpack.c.b16 %v3665, %v3661
    %v5174 = vpack.c.b16 %v3666, %v3662
    %v5175 = vpack.c.b16 %v3671, %v3667
    %v5176 = vpack.c.b16 %v3672, %v3668
    %v5177 = vpack.c.b16 %v3673, %v3669
    %v5178 = vpack.c.b16 %v3674, %v3670
    %v5179 = vpack.c.b16 %v3679, %v3675
    %v5180 = vpack.c.b16 %v3680, %v3676
    %v5181 = vpack.c.b16 %v3681, %v3677
    %v5182 = vpack.c.b16 %v3682, %v3678
    %v5183 = vpack.c.b16 %v3687, %v3683
    %v5184 = vpack.c.b16 %v3688, %v3684
    %v5185 = vpack.c.b16 %v3689, %v3685
    %v5186 = vpack.c.b16 %v3690, %v3686
    %v5187 = vpack.c.b16 %v3695, %v3691
    %v5188 = vpack.c.b16 %v3696, %v3692
    %v5189 = vpack.c.b16 %v3697, %v3693
    %v5190 = vpack.c.b16 %v3698, %v3694
    %v5191 = vpack.c.b16 %v3703, %v3699
    %v5192 = vpack.c.b16 %v3704, %v3700
    %v5193 = vpack.c.b16 %v3705, %v3701
    %v5194 = vpack.c.b16 %v3706, %v3702
    %v5195 = vpack.c.b16 %v3711, %v3707
    %v5196 = vpack.c.b16 %v3712, %v3708
    %v5197 = vpack.c.b16 %v3713, %v3709
    %v5198 = vpack.c.b16 %v3714, %v3710
    %v5199 = vpack.c.b16 %v3719, %v3715
    %v5200 = vpack.c.b16 %v3720, %v3716
    %v5201 = vpack.c.b16 %v3721, %v3717
    %v5202 = vpack.c.b16 %v3722, %v3718
    %v5203 = vpack.c.b16 %v3727, %v3723
    %v5204 = vpack.c.b16 %v3728, %v3724
    %v5205 = vpack.c.b16 %v3729, %v3725
    %v5206 = vpack.c.b16 %v3730, %v3726
    %v5207 = vpack.c.b16 %v3735, %v3731
    %v5208 = vpack.c.b16 %v3736, %v3732
    %v5209 = vpack.c.b16 %v3737, %v3733
    %v5210 = vpack.c.b16 %v3738, %v3734
    %v5211 = vpack.c.b16 %v3743, %v3739
    %v5212 = vpack.c.b16 %v3744, %v3740
    %v5213 = vpack.c.b16 %v3745, %v3741
    %v5214 = vpack.c.b16 %v3746, %v3742
    %v5215 = vpack.c.b16 %v3751, %v3747
    %v5216 = vpack.c.b16 %v3752, %v3748
    %v5217 = vpack.c.b16 %v3753, %v3749
    %v5218 = vpack.c.b16 %v3754, %v3750
    %v5219 = vpack.c.b16 %v3759, %v3755
    %v5220 = vpack.c.b16 %v3760, %v3756
    %v5221 = vpack.c.b16 %v3761, %v3757
    %v5222 = vpack.c.b16 %v3762, %v3758
    %v5223 = vpack.c.b16 %v3767, %v3763
    %v5224 = vpack.c.b16 %v3768, %v3764
    %v5225 = vpack.c.b16 %v3769, %v3765
    %v5226 = vpack.c.b16 %v3770, %v3766
    %v5227 = vpack.c.b16 %v3775, %v3771
    %v5228 = vpack.c.b16 %v3776, %v3772
    %v5229 = vpack.c.b16 %v3777, %v3773
    %v5230 = vpack.c.b16 %v3778, %v3774
    %v5231 = vpack.c.b16 %v3783, %v3779
    %v5232 = vpack.c.b16 %v3784, %v3780
    %v5233 = vpack.c.b16 %v3785, %v3781
    %v5234 = vpack.c.b16 %v3786, %v3782
    %v5235 = vpack.c.b16 %v3791, %v3787
    %v5236 = vpack.c.b16 %v3792, %v3788
    %v5237 = vpack.c.b16 %v3793, %v3789
    %v5238 = vpack.c.b16 %v3794, %v3790
    %v5239 = vpack.c.b16 %v3799, %v3795
    %v5240 = vpack.c.b16 %v3800, %v3796
    %v5241 = vpack.c.b16 %v3801, %v3797
    %v5242 = vpack.c.b16 %v3802, %v3798
    %v5243 = vpack.c.b16 %v3807, %v3803
    %v5244 = vpack.c.b16 %v3808, %v3804
    %v5245 = vpack.c.b16 %v3809, %v3805
    %v5246 = vpack.c.b16 %v3810, %v3806
    %v5247 = vpack.c.b16 %v3815, %v3811
    %v5248 = vpack.c.b16 %v3816, %v3812
    %v5249 = vpack.c.b16 %v3817, %v3813
    %v5250 = vpack.c.b16 %v3818, %v3814
    %v5251 = vpack.c.b16 %v3823, %v3819
    %v5252 = vpack.c.b16 %v3824, %v3820
    %v5253 = vpack.c.b16 %v3825, %v3821
    %v5254 = vpack.c.b16 %v3826, %v3822
    %v5255 = vpack.c.b16 %v3831, %v3827
    %v5256 = vpack.c.b16 %v3832, %v3828
    %v5257 = vpack.c.b16 %v3833, %v3829
    %v5258 = vpack.c.b16 %v3834, %v3830
    %v5259 = vpack.c.b16 %v3839, %v3835
    %v5260 = vpack.c.b16 %v3840, %v3836
    %v5261 = vpack.c.b16 %v3841, %v3837
    %v5262 = vpack.c.b16 %v3842, %v3838
    %v5263 = vpack.c.b16 %v3847, %v3843
    %v5264 = vpack.c.b16 %v3848, %v3844
    %v5265 = vpack.c.b16 %v3849, %v3845
    %v5266 = vpack.c.b16 %v3850, %v3846
    %v5267 = vpack.c.b16 %v3855, %v3851
    %v5268 = vpack.c.b16 %v3856, %v3852
    %v5269 = vpack.c.b16 %v3857, %v3853
    %v5270 = vpack.c.b16 %v3858, %v3854
    %v5271 = vpack.c.b16 %v3863, %v3859
    %v5272 = vpack.c.b16 %v3864, %v3860
    %v5273 = vpack.c.b16 %v3865, %v3861
    %v5274 = vpack.c.b16 %v3866, %v3862
    %v5275 = vpack.c.b16 %v3871, %v3867
    %v5276 = vpack.c.b16 %v3872, %v3868
    %v5277 = vpack.c.b16 %v3873, %v3869
    %v5278 = vpack.c.b16 %v3874, %v3870
    %v5279 = vpack.c.b16 %v3879, %v3875
    %v5280 = vpack.c.b16 %v3880, %v3876
    %v5281 = vpack.c.b16 %v3881, %v3877
    %v5282 = vpack.c.b16 %v3882, %v3878
    %v5283 = vpack.c.b16 %v3887, %v3883
    %v5284 = vpack.c.b16 %v3888, %v3884
    %v5285 = vpack.c.b16 %v3889, %v3885
    %v5286 = vpack.c.b16 %v3890, %v3886
    %v5287 = vpack.c.b16 %v3895, %v3891
    %v5288 = vpack.c.b16 %v3896, %v3892
    %v5289 = vpack.c.b16 %v3897, %v3893
    %v5290 = vpack.c.b16 %v3898, %v3894
    %v5291 = vpack.c.b16 %v3903, %v3899
    %v5292 = vpack.c.b16 %v3904, %v3900
    %v5293 = vpack.c.b16 %v3905, %v3901
    %v5294 = vpack.c.b16 %v3906, %v3902
    %v5295 = vpack.c.b16 %v3911, %v3907
    %v5296 = vpack.c.b16 %v3912, %v3908
    %v5297 = vpack.c.b16 %v3913, %v3909
    %v5298 = vpack.c.b16 %v3914, %v3910
    %v5299 = vpack.c.b16 %v3919, %v3915
    %v5300 = vpack.c.b16 %v3920, %v3916
    %v5301 = vpack.c.b16 %v3921, %v3917
    %v5302 = vpack.c.b16 %v3922, %v3918
    %v5303 = vpack.c.b16 %v3927, %v3923
    %v5304 = vpack.c.b16 %v3928, %v3924
    %v5305 = vpack.c.b16 %v3929, %v3925
    %v5306 = vpack.c.b16 %v3930, %v3926
    %v5307 = vpack.c.b16 %v3935, %v3931
    %v5308 = vpack.c.b16 %v3936, %v3932
    %v5309 = vpack.c.b16 %v3937, %v3933
    %v5310 = vpack.c.b16 %v3938, %v3934
    %v5311 = vpack.c.b16 %v3943, %v3939
    %v5312 = vpack.c.b16 %v3944, %v3940
    %v5313 = vpack.c.b16 %v3945, %v3941
    %v5314 = vpack.c.b16 %v3946, %v3942
    %v5315 = vpack.c.b16 %v3951, %v3947
    %v5316 = vpack.c.b16 %v3952, %v3948
    %v5317 = vpack.c.b16 %v3953, %v3949
    %v5318 = vpack.c.b16 %v3954, %v3950
    %v5319 = vpack.c.b16 %v3959, %v3955
    %v5320 = vpack.c.b16 %v3960, %v3956
    %v5321 = vpack.c.b16 %v3961, %v3957
    %v5322 = vpack.c.b16 %v3962, %v3958
    %v5323 = vpack.c.b16 %v3967, %v3963
    %v5324 = vpack.c.b16 %v3968, %v3964
    %v5325 = vpack.c.b16 %v3969, %v3965
    %v5326 = vpack.c.b16 %v3970, %v3966
    %v5327 = vpack.c.b16 %v3975, %v3971
    %v5328 = vpack.c.b16 %v3976, %v3972
    %v5329 = vpack.c.b16 %v3977, %v3973
    %v5330 = vpack.c.b16 %v3978, %v3974
    %v5331 = vpack.c.b16 %v3983, %v3979
    %v5332 = vpack.c.b16 %v3984, %v3980
    %v5333 = vpack.c.b16 %v3985, %v3981
    %v5334 = vpack.c.b16 %v3986, %v3982
    %v5335 = vpack.c.b16 %v3991, %v3987
    %v5336 = vpack.c.b16 %v3992, %v3988
    %v5337 = vpack.c.b16 %v3993, %v3989
    %v5338 = vpack.c.b16 %v3994, %v3990
    %v5339 = vpack.c.b16 %v3999, %v3995
    %v5340 = vpack.c.b16 %v4000, %v3996
    %v5341 = vpack.c.b16 %v4001, %v3997
    %v5342 = vpack.c.b16 %v4002, %v3998
    %v5343 = vpack.c.b16 %v4007, %v4003
    %v5344 = vpack.c.b16 %v4008, %v4004
    %v5345 = vpack.c.b16 %v4009, %v4005
    %v5346 = vpack.c.b16 %v4010, %v4006
    %v5347 = vpack.c.b16 %v4015, %v4011
    %v5348 = vpack.c.b16 %v4016, %v4012
    %v5349 = vpack.c.b16 %v4017, %v4013
    %v5350 = vpack.c.b16 %v4018, %v4014
    %v5351 = vpack.c.b16 %v4023, %v4019
    %v5352 = vpack.c.b16 %v4024, %v4020
    %v5353 = vpack.c.b16 %v4025, %v4021
    %v5354 = vpack.c.b16 %v4026, %v4022
    %v5355 = vpack.c.b16 %v4031, %v4027
    %v5356 = vpack.c.b16 %v4032, %v4028
    %v5357 = vpack.c.b16 %v4033, %v4029
    %v5358 = vpack.c.b16 %v4034, %v4030
    %v5359 = vpack.c.b16 %v4039, %v4035
    %v5360 = vpack.c.b16 %v4040, %v4036
    %v5361 = vpack.c.b16 %v4041, %v4037
    %v5362 = vpack.c.b16 %v4042, %v4038
    %v5363 = vpack.c.b16 %v4047, %v4043
    %v5364 = vpack.c.b16 %v4048, %v4044
    %v5365 = vpack.c.b16 %v4049, %v4045
    %v5366 = vpack.c.b16 %v4050, %v4046
    %v5367 = vpack.c.b16 %v4055, %v4051
    %v5368 = vpack.c.b16 %v4056, %v4052
    %v5369 = vpack.c.b16 %v4057, %v4053
    %v5370 = vpack.c.b16 %v4058, %v4054
    %v5371 = vpack.c.b16 %v4063, %v4059
    %v5372 = vpack.c.b16 %v4064, %v4060
    %v5373 = vpack.c.b16 %v4065, %v4061
    %v5374 = vpack.c.b16 %v4066, %v4062
    %v5375 = vpack.c.b16 %v4071, %v4067
    %v5376 = vpack.c.b16 %v4072, %v4068
    %v5377 = vpack.c.b16 %v4073, %v4069
    %v5378 = vpack.c.b16 %v4074, %v4070
    %v5379 = vpack.c.b16 %v4079, %v4075
    %v5380 = vpack.c.b16 %v4080, %v4076
    %v5381 = vpack.c.b16 %v4081, %v4077
    %v5382 = vpack.c.b16 %v4082, %v4078
    %v5383 = vpack.c.b16 %v4087, %v4083
    %v5384 = vpack.c.b16 %v4088, %v4084
    %v5385 = vpack.c.b16 %v4089, %v4085
    %v5386 = vpack.c.b16 %v4090, %v4086
    %v5387 = vpack.c.b16 %v4095, %v4091
    %v5388 = vpack.c.b16 %v4096, %v4092
    %v5389 = vpack.c.b16 %v4097, %v4093
    %v5390 = vpack.c.b16 %v4098, %v4094
    %v5391 = vpack.c.b16 %v4103, %v4099
    %v5392 = vpack.c.b16 %v4104, %v4100
    %v5393 = vpack.c.b16 %v4105, %v4101
    %v5394 = vpack.c.b16 %v4106, %v4102
    %v5395 = vpack.c.b16 %v4111, %v4107
    %v5396 = vpack.c.b16 %v4112, %v4108
    %v5397 = vpack.c.b16 %v4113, %v4109
    %v5398 = vpack.c.b16 %v4114, %v4110
    %v5399 = vpack.c.b16 %v4119, %v4115
    %v5400 = vpack.c.b16 %v4120, %v4116
    %v5401 = vpack.c.b16 %v4121, %v4117
    %v5402 = vpack.c.b16 %v4122, %v4118
    %v5403 = vpack.c.b16 %v4127, %v4123
    %v5404 = vpack.c.b16 %v4128, %v4124
    %v5405 = vpack.c.b16 %v4129, %v4125
    %v5406 = vpack.c.b16 %v4130, %v4126
    %v5407 = vpack.c.b16 %v4135, %v4131
    %v5408 = vpack.c.b16 %v4136, %v4132
    %v5409 = vpack.c.b16 %v4137, %v4133
    %v5410 = vpack.c.b16 %v4138, %v4134
    %v5411 = vpack.c.b16 %v4143, %v4139
    %v5412 = vpack.c.b16 %v4144, %v4140
    %v5413 = vpack.c.b16 %v4145, %v4141
    %v5414 = vpack.c.b16 %v4146, %v4142
    %v5415 = vpack.c.b16 %v4151, %v4147
    %v5416 = vpack.c.b16 %v4152, %v4148
    %v5417 = vpack.c.b16 %v4153, %v4149
    %v5418 = vpack.c.b16 %v4154, %v4150
    %v5419 = vpack.c.b16 %v4159, %v4155
    %v5420 = vpack.c.b16 %v4160, %v4156
    %v5421 = vpack.c.b16 %v4161, %v4157
    %v5422 = vpack.c.b16 %v4162, %v4158
    %v5423 = vpack.c.b16 %v4167, %v4163
    %v5424 = vpack.c.b16 %v4168, %v4164
    %v5425 = vpack.c.b16 %v4169, %v4165
    %v5426 = vpack.c.b16 %v4170, %v4166
    %v5427 = vpack.c.b16 %v4175, %v4171
    %v5428 = vpack.c.b16 %v4176, %v4172
    %v5429 = vpack.c.b16 %v4177, %v4173
    %v5430 = vpack.c.b16 %v4178, %v4174
    %v5431 = vpack.c.b16 %v4183, %v4179
    %v5432 = vpack.c.b16 %v4184, %v4180
    %v5433 = vpack.c.b16 %v4185, %v4181
    %v5434 = vpack.c.b16 %v4186, %v4182
    %v5435 = vpack.c.b16 %v4191, %v4187
    %v5436 = vpack.c.b16 %v4192, %v4188
    %v5437 = vpack.c.b16 %v4193, %v4189
    %v5438 = vpack.c.b16 %v4194, %v4190
    %v5439 = vpack.c.b16 %v4199, %v4195
    %v5440 = vpack.c.b16 %v4200, %v4196
    %v5441 = vpack.c.b16 %v4201, %v4197
    %v5442 = vpack.c.b16 %v4202, %v4198
    %v5443 = vpack.c.b16 %v4207, %v4203
    %v5444 = vpack.c.b16 %v4208, %v4204
    %v5445 = vpack.c.b16 %v4209, %v4205
    %v5446 = vpack.c.b16 %v4210, %v4206
    %v5447 = vpack.c.b16 %v4215, %v4211
    %v5448 = vpack.c.b16 %v4216, %v4212
    %v5449 = vpack.c.b16 %v4217, %v4213
    %v5450 = vpack.c.b16 %v4218, %v4214
    %v5451 = vpack.c.b16 %v4223, %v4219
    %v5452 = vpack.c.b16 %v4224, %v4220
    %v5453 = vpack.c.b16 %v4225, %v4221
    %v5454 = vpack.c.b16 %v4226, %v4222
    %v5455 = vpack.c.b16 %v4231, %v4227
    %v5456 = vpack.c.b16 %v4232, %v4228
    %v5457 = vpack.c.b16 %v4233, %v4229
    %v5458 = vpack.c.b16 %v4234, %v4230
    %v5459 = vpack.c.b16 %v4239, %v4235
    %v5460 = vpack.c.b16 %v4240, %v4236
    %v5461 = vpack.c.b16 %v4241, %v4237
    %v5462 = vpack.c.b16 %v4242, %v4238
    %v5463 = vpack.c.b16 %v4247, %v4243
    %v5464 = vpack.c.b16 %v4248, %v4244
    %v5465 = vpack.c.b16 %v4249, %v4245
    %v5466 = vpack.c.b16 %v4250, %v4246
    %v5467 = vpack.c.b16 %v4255, %v4251
    %v5468 = vpack.c.b16 %v4256, %v4252
    %v5469 = vpack.c.b16 %v4257, %v4253
    %v5470 = vpack.c.b16 %v4258, %v4254
    %v5471 = vpack.c.b16 %v4263, %v4259
    %v5472 = vpack.c.b16 %v4264, %v4260
    %v5473 = vpack.c.b16 %v4265, %v4261
    %v5474 = vpack.c.b16 %v4266, %v4262
    %v5475 = vpack.c.b16 %v4271, %v4267
    %v5476 = vpack.c.b16 %v4272, %v4268
    %v5477 = vpack.c.b16 %v4273, %v4269
    %v5478 = vpack.c.b16 %v4274, %v4270
    %v5479 = vpack.c.b16 %v4279, %v4275
    %v5480 = vpack.c.b16 %v4280, %v4276
    %v5481 = vpack.c.b16 %v4281, %v4277
    %v5482 = vpack.c.b16 %v4282, %v4278
    %v5483 = vpack.c.b16 %v4287, %v4283
    %v5484 = vpack.c.b16 %v4288, %v4284
    %v5485 = vpack.c.b16 %v4289, %v4285
    %v5486 = vpack.c.b16 %v4290, %v4286
    %v5487 = vpack.c.b16 %v4295, %v4291
    %v5488 = vpack.c.b16 %v4296, %v4292
    %v5489 = vpack.c.b16 %v4297, %v4293
    %v5490 = vpack.c.b16 %v4298, %v4294
    %v5491 = vpack.c.b16 %v4303, %v4299
    %v5492 = vpack.c.b16 %v4304, %v4300
    %v5493 = vpack.c.b16 %v4305, %v4301
    %v5494 = vpack.c.b16 %v4306, %v4302
    %v5495 = vpack.c.b16 %v4311, %v4307
    %v5496 = vpack.c.b16 %v4312, %v4308
    %v5497 = vpack.c.b16 %v4313, %v4309
    %v5498 = vpack.c.b16 %v4314, %v4310
    %v5499 = vpack.c.b16 %v4319, %v4315
    %v5500 = vpack.c.b16 %v4320, %v4316
    %v5501 = vpack.c.b16 %v4321, %v4317
    %v5502 = vpack.c.b16 %v4322, %v4318
    %v5503 = vpack.c.b16 %v4327, %v4323
    %v5504 = vpack.c.b16 %v4328, %v4324
    %v5505 = vpack.c.b16 %v4329, %v4325
    %v5506 = vpack.c.b16 %v4330, %v4326
    %v5507 = vpack.c.b16 %v4335, %v4331
    %v5508 = vpack.c.b16 %v4336, %v4332
    %v5509 = vpack.c.b16 %v4337, %v4333
    %v5510 = vpack.c.b16 %v4338, %v4334
    %v5511 = vpack.c.b16 %v4343, %v4339
    %v5512 = vpack.c.b16 %v4344, %v4340
    %v5513 = vpack.c.b16 %v4345, %v4341
    %v5514 = vpack.c.b16 %v4346, %v4342
    %v5515 = vpack.c.b16 %v4351, %v4347
    %v5516 = vpack.c.b16 %v4352, %v4348
    %v5517 = vpack.c.b16 %v4353, %v4349
    %v5518 = vpack.c.b16 %v4354, %v4350
    %v5519 = vpack.c.b16 %v4359, %v4355
    %v5520 = vpack.c.b16 %v4360, %v4356
    %v5521 = vpack.c.b16 %v4361, %v4357
    %v5522 = vpack.c.b16 %v4362, %v4358
    %v5523 = vpack.c.b16 %v4367, %v4363
    %v5524 = vpack.c.b16 %v4368, %v4364
    %v5525 = vpack.c.b16 %v4369, %v4365
    %v5526 = vpack.c.b16 %v4370, %v4366
    %v5527 = vpack.c.b16 %v4375, %v4371
    %v5528 = vpack.c.b16 %v4376, %v4372
    %v5529 = vpack.c.b16 %v4377, %v4373
    %v5530 = vpack.c.b16 %v4378, %v4374
    %v5531 = vpack.c.b16 %v4383, %v4379
    %v5532 = vpack.c.b16 %v4384, %v4380
    %v5533 = vpack.c.b16 %v4385, %v4381
    %v5534 = vpack.c.b16 %v4386, %v4382
    %v5535 = vpack.c.b16 %v4391, %v4387
    %v5536 = vpack.c.b16 %v4392, %v4388
    %v5537 = vpack.c.b16 %v4393, %v4389
    %v5538 = vpack.c.b16 %v4394, %v4390
    %v5539 = vpack.c.b16 %v4399, %v4395
    %v5540 = vpack.c.b16 %v4400, %v4396
    %v5541 = vpack.c.b16 %v4401, %v4397
    %v5542 = vpack.c.b16 %v4402, %v4398
    %v5543 = vpack.c.b16 %v4407, %v4403
    %v5544 = vpack.c.b16 %v4408, %v4404
    %v5545 = vpack.c.b16 %v4409, %v4405
    %v5546 = vpack.c.b16 %v4410, %v4406
    %v5547 = vpack.c.b16 %v4415, %v4411
    %v5548 = vpack.c.b16 %v4416, %v4412
    %v5549 = vpack.c.b16 %v4417, %v4413
    %v5550 = vpack.c.b16 %v4418, %v4414
    %v5551 = vpack.c.b16 %v4423, %v4419
    %v5552 = vpack.c.b16 %v4424, %v4420
    %v5553 = vpack.c.b16 %v4425, %v4421
    %v5554 = vpack.c.b16 %v4426, %v4422
    %v5555 = vpack.c.b16 %v4431, %v4427
    %v5556 = vpack.c.b16 %v4432, %v4428
    %v5557 = vpack.c.b16 %v4433, %v4429
    %v5558 = vpack.c.b16 %v4434, %v4430
    %v5559 = vpack.c.b16 %v4439, %v4435
    %v5560 = vpack.c.b16 %v4440, %v4436
    %v5561 = vpack.c.b16 %v4441, %v4437
    %v5562 = vpack.c.b16 %v4442, %v4438
    %v5563 = vpack.c.b16 %v4447, %v4443
    %v5564 = vpack.c.b16 %v4448, %v4444
    %v5565 = vpack.c.b16 %v4449, %v4445
    %v5566 = vpack.c.b16 %v4450, %v4446
    %v5567 = vpack.c.b16 %v4455, %v4451
    %v5568 = vpack.c.b16 %v4456, %v4452
    %v5569 = vpack.c.b16 %v4457, %v4453
    %v5570 = vpack.c.b16 %v4458, %v4454
    %v5571 = vpack.c.b16 %v4463, %v4459
    %v5572 = vpack.c.b16 %v4464, %v4460
    %v5573 = vpack.c.b16 %v4465, %v4461
    %v5574 = vpack.c.b16 %v4466, %v4462
    %v5575 = vpack.c.b16 %v4471, %v4467
    %v5576 = vpack.c.b16 %v4472, %v4468
    %v5577 = vpack.c.b16 %v4473, %v4469
    %v5578 = vpack.c.b16 %v4474, %v4470
    %v5579 = vpack.c.b16 %v4479, %v4475
    %v5580 = vpack.c.b16 %v4480, %v4476
    %v5581 = vpack.c.b16 %v4481, %v4477
    %v5582 = vpack.c.b16 %v4482, %v4478
    %v5583 = vpack.c.b16 %v4487, %v4483
    %v5584 = vpack.c.b16 %v4488, %v4484
    %v5585 = vpack.c.b16 %v4489, %v4485
    %v5586 = vpack.c.b16 %v4490, %v4486
    %v5587 = vpack.c.b16 %v4495, %v4491
    %v5588 = vpack.c.b16 %v4496, %v4492
    %v5589 = vpack.c.b16 %v4497, %v4493
    %v5590 = vpack.c.b16 %v4498, %v4494
    %v5591 = vpack.c.b16 %v4503, %v4499
    %v5592 = vpack.c.b16 %v4504, %v4500
    %v5593 = vpack.c.b16 %v4505, %v4501
    %v5594 = vpack.c.b16 %v4506, %v4502
    %v5595 = vpack.c.b16 %v4511, %v4507
    %v5596 = vpack.c.b16 %v4512, %v4508
    %v5597 = vpack.c.b16 %v4513, %v4509
    %v5598 = vpack.c.b16 %v4514, %v4510
    %v5599 = vpack.c.b16 %v4519, %v4515
    %v5600 = vpack.c.b16 %v4520, %v4516
    %v5601 = vpack.c.b16 %v4521, %v4517
    %v5602 = vpack.c.b16 %v4522, %v4518
    %v5603 = vpack.c.b16 %v4527, %v4523
    %v5604 = vpack.c.b16 %v4528, %v4524
    %v5605 = vpack.c.b16 %v4529, %v4525
    %v5606 = vpack.c.b16 %v4530, %v4526
    %v5607 = vpack.c.b16 %v4535, %v4531
    %v5608 = vpack.c.b16 %v4536, %v4532
    %v5609 = vpack.c.b16 %v4537, %v4533
    %v5610 = vpack.c.b16 %v4538, %v4534
    %v5611 = vpack.c.b16 %v4543, %v4539
    %v5612 = vpack.c.b16 %v4544, %v4540
    %v5613 = vpack.c.b16 %v4545, %v4541
    %v5614 = vpack.c.b16 %v4546, %v4542
    %v5615 = vpack.c.b16 %v4551, %v4547
    %v5616 = vpack.c.b16 %v4552, %v4548
    %v5617 = vpack.c.b16 %v4553, %v4549
    %v5618 = vpack.c.b16 %v4554, %v4550
    %v5619 = vpack.c.b16 %v4559, %v4555
    %v5620 = vpack.c.b16 %v4560, %v4556
    %v5621 = vpack.c.b16 %v4561, %v4557
    %v5622 = vpack.c.b16 %v4562, %v4558
    %v5623 = vpack.c.b16 %v4567, %v4563
    %v5624 = vpack.c.b16 %v4568, %v4564
    %v5625 = vpack.c.b16 %v4569, %v4565
    %v5626 = vpack.c.b16 %v4570, %v4566
    %v5627 = vpack.c.b16 %v4575, %v4571
    %v5628 = vpack.c.b16 %v4576, %v4572
    %v5629 = vpack.c.b16 %v4577, %v4573
    %v5630 = vpack.c.b16 %v4578, %v4574
    %v5631 = vpack.c.b16 %v4583, %v4579
    %v5632 = vpack.c.b16 %v4584, %v4580
    %v5633 = vpack.c.b16 %v4585, %v4581
    %v5634 = vpack.c.b16 %v4586, %v4582
    %v5635 = vpack.c.b16 %v4591, %v4587
    %v5636 = vpack.c.b16 %v4592, %v4588
    %v5637 = vpack.c.b16 %v4593, %v4589
    %v5638 = vpack.c.b16 %v4594, %v4590
    %v5639 = vpack.c.b16 %v4599, %v4595
    %v5640 = vpack.c.b16 %v4600, %v4596
    %v5641 = vpack.c.b16 %v4601, %v4597
    %v5642 = vpack.c.b16 %v4602, %v4598
    %v5643 = vpack.c.b16 %v4607, %v4603
    %v5644 = vpack.c.b16 %v4608, %v4604
    %v5645 = vpack.c.b16 %v4609, %v4605
    %v5646 = vpack.c.b16 %v4610, %v4606
    %v5647 = vpack.c.b16 %v4615, %v4611
    %v5648 = vpack.c.b16 %v4616, %v4612
    %v5649 = vpack.c.b16 %v4617, %v4613
    %v5650 = vpack.c.b16 %v4618, %v4614
    %v5651 = vpack.c.b16 %v4623, %v4619
    %v5652 = vpack.c.b16 %v4624, %v4620
    %v5653 = vpack.c.b16 %v4625, %v4621
    %v5654 = vpack.c.b16 %v4626, %v4622
    %v5655 = vpack.c.b16 %v4631, %v4627
    %v5656 = vpack.c.b16 %v4632, %v4628
    %v5657 = vpack.c.b16 %v4633, %v4629
    %v5658 = vpack.c.b16 %v4634, %v4630
    %6683 = vmatpush.bf16.msra.mxu0 %v4663
    %6684 = vmatpush.bf16.msra.mxu0 %v4659
    %6685 = vmatpush.bf16.msra.mxu0 %v4655
    %6686 = vmatpush.bf16.msra.mxu0 %v4651
    %6687 = vmatpush.bf16.msra.mxu0 %v4647
    %6688 = vmatpush.bf16.msra.mxu0 %v4643
    %6689 = vmatpush.bf16.msra.mxu0 %v4639
    %6690 = vmatpush.bf16.msra.mxu0 %v4635
    %6691 = vmatmul.bf16.gmra.mxu0 %v1499
    %v6692 = vpop.f32.mrf.mxu0
    %v6693 = vadd.f32 %v1409, %v6692
    %v6694 = vpop.f32.mrf.mxu0
    %6695 = vdwg.mxu0
    %6696 = vmatpush.bf16.msra.mxu0 %v4695
    %6697 = vmatpush.bf16.msra.mxu0 %v4691
    %6698 = vmatpush.bf16.msra.mxu0 %v4687
    %6699 = vmatpush.bf16.msra.mxu0 %v4683
    %6700 = vmatpush.bf16.msra.mxu0 %v4679
    %6701 = vmatpush.bf16.msra.mxu0 %v4675
    %6702 = vmatpush.bf16.msra.mxu0 %v4671
    %6703 = vmatpush.bf16.msra.mxu0 %v4667
    %6704 = vmatmul.bf16.gmra.mxu0 %v1500
    %v6705 = vpop.f32.mrf.mxu0
    %v6706 = vadd.f32 %v6693, %v6705
    %v6707 = vpop.f32.mrf.mxu0
    %6708 = vdwg.mxu0
    %6709 = vmatpush.bf16.msra.mxu0 %v4727
    %6710 = vmatpush.bf16.msra.mxu0 %v4723
    %6711 = vmatpush.bf16.msra.mxu0 %v4719
    %6712 = vmatpush.bf16.msra.mxu0 %v4715
    %6713 = vmatpush.bf16.msra.mxu0 %v4711
    %6714 = vmatpush.bf16.msra.mxu0 %v4707
    %6715 = vmatpush.bf16.msra.mxu0 %v4703
    %6716 = vmatpush.bf16.msra.mxu0 %v4699
    %6717 = vmatmul.bf16.gmra.mxu0 %v1501
    %v6718 = vpop.f32.mrf.mxu0
    %v6719 = vadd.f32 %v6706, %v6718
    %v6720 = vpop.f32.mrf.mxu0
    %6721 = vdwg.mxu0
    %6722 = vmatpush.bf16.msra.mxu0 %v4759
    %6723 = vmatpush.bf16.msra.mxu0 %v4755
    %6724 = vmatpush.bf16.msra.mxu0 %v4751
    %6725 = vmatpush.bf16.msra.mxu0 %v4747
    %6726 = vmatpush.bf16.msra.mxu0 %v4743
    %6727 = vmatpush.bf16.msra.mxu0 %v4739
    %6728 = vmatpush.bf16.msra.mxu0 %v4735
    %6729 = vmatpush.bf16.msra.mxu0 %v4731
    %6730 = vmatmul.bf16.gmra.mxu0 %v1502
    %v6731 = vpop.f32.mrf.mxu0
    %v6732 = vadd.f32 %v6719, %v6731
    %v6733 = vpop.f32.mrf.mxu0
    %6734 = vdwg.mxu0
    %6735 = vmatpush.bf16.msra.mxu0 %v4791
    %6736 = vmatpush.bf16.msra.mxu0 %v4787
    %6737 = vmatpush.bf16.msra.mxu0 %v4783
    %6738 = vmatpush.bf16.msra.mxu0 %v4779
    %6739 = vmatpush.bf16.msra.mxu0 %v4775
    %6740 = vmatpush.bf16.msra.mxu0 %v4771
    %6741 = vmatpush.bf16.msra.mxu0 %v4767
    %6742 = vmatpush.bf16.msra.mxu0 %v4763
    %6743 = vmatmul.bf16.gmra.mxu0 %v1503
    %v6744 = vpop.f32.mrf.mxu0
    %v6745 = vadd.f32 %v6732, %v6744
    %v6746 = vpop.f32.mrf.mxu0
    %6747 = vdwg.mxu0
    %6748 = vmatpush.bf16.msra.mxu0 %v4823
    %6749 = vmatpush.bf16.msra.mxu0 %v4819
    %6750 = vmatpush.bf16.msra.mxu0 %v4815
    %6751 = vmatpush.bf16.msra.mxu0 %v4811
    %6752 = vmatpush.bf16.msra.mxu0 %v4807
    %6753 = vmatpush.bf16.msra.mxu0 %v4803
    %6754 = vmatpush.bf16.msra.mxu0 %v4799
    %6755 = vmatpush.bf16.msra.mxu0 %v4795
    %6756 = vmatmul.bf16.gmra.mxu0 %v1504
    %v6757 = vpop.f32.mrf.mxu0
    %v6758 = vadd.f32 %v6745, %v6757
    %v6759 = vpop.f32.mrf.mxu0
    %6760 = vdwg.mxu0
    %6761 = vmatpush.bf16.msra.mxu0 %v4855
    %6762 = vmatpush.bf16.msra.mxu0 %v4851
    %6763 = vmatpush.bf16.msra.mxu0 %v4847
    %6764 = vmatpush.bf16.msra.mxu0 %v4843
    %6765 = vmatpush.bf16.msra.mxu0 %v4839
    %6766 = vmatpush.bf16.msra.mxu0 %v4835
    %6767 = vmatpush.bf16.msra.mxu0 %v4831
    %6768 = vmatpush.bf16.msra.mxu0 %v4827
    %6769 = vmatmul.bf16.gmra.mxu0 %v1505
    %v6770 = vpop.f32.mrf.mxu0
    %v6771 = vadd.f32 %v6758, %v6770
    %v6772 = vpop.f32.mrf.mxu0
    %6773 = vdwg.mxu0
    %6774 = vmatpush.bf16.msra.mxu0 %v4887
    %6775 = vmatpush.bf16.msra.mxu0 %v4883
    %6776 = vmatpush.bf16.msra.mxu0 %v4879
    %6777 = vmatpush.bf16.msra.mxu0 %v4875
    %6778 = vmatpush.bf16.msra.mxu0 %v4871
    %6779 = vmatpush.bf16.msra.mxu0 %v4867
    %6780 = vmatpush.bf16.msra.mxu0 %v4863
    %6781 = vmatpush.bf16.msra.mxu0 %v4859
    %6782 = vmatmul.bf16.gmra.mxu0 %v1506
    %v6783 = vpop.f32.mrf.mxu0
    %v6784 = vadd.f32 %v6771, %v6783
    %v6785 = vpop.f32.mrf.mxu0
    %6786 = vdwg.mxu0
    %6787 = vmatpush.bf16.msra.mxu0 %v4919
    %6788 = vmatpush.bf16.msra.mxu0 %v4915
    %6789 = vmatpush.bf16.msra.mxu0 %v4911
    %6790 = vmatpush.bf16.msra.mxu0 %v4907
    %6791 = vmatpush.bf16.msra.mxu0 %v4903
    %6792 = vmatpush.bf16.msra.mxu0 %v4899
    %6793 = vmatpush.bf16.msra.mxu0 %v4895
    %6794 = vmatpush.bf16.msra.mxu0 %v4891
    %6795 = vmatmul.bf16.gmra.mxu0 %v1507
    %v6796 = vpop.f32.mrf.mxu0
    %v6797 = vadd.f32 %v6784, %v6796
    %v6798 = vpop.f32.mrf.mxu0
    %6799 = vdwg.mxu0
    %6800 = vmatpush.bf16.msra.mxu0 %v4951
    %6801 = vmatpush.bf16.msra.mxu0 %v4947
    %6802 = vmatpush.bf16.msra.mxu0 %v4943
    %6803 = vmatpush.bf16.msra.mxu0 %v4939
    %6804 = vmatpush.bf16.msra.mxu0 %v4935
    %6805 = vmatpush.bf16.msra.mxu0 %v4931
    %6806 = vmatpush.bf16.msra.mxu0 %v4927
    %6807 = vmatpush.bf16.msra.mxu0 %v4923
    %6808 = vmatmul.bf16.gmra.mxu0 %v1508
    %v6809 = vpop.f32.mrf.mxu0
    %v6810 = vadd.f32 %v6797, %v6809
    %v6811 = vpop.f32.mrf.mxu0
    %6812 = vdwg.mxu0
    %6813 = vmatpush.bf16.msra.mxu0 %v4983
    %6814 = vmatpush.bf16.msra.mxu0 %v4979
    %6815 = vmatpush.bf16.msra.mxu0 %v4975
    %6816 = vmatpush.bf16.msra.mxu0 %v4971
    %6817 = vmatpush.bf16.msra.mxu0 %v4967
    %6818 = vmatpush.bf16.msra.mxu0 %v4963
    %6819 = vmatpush.bf16.msra.mxu0 %v4959
    %6820 = vmatpush.bf16.msra.mxu0 %v4955
    %6821 = vmatmul.bf16.gmra.mxu0 %v1509
    %v6822 = vpop.f32.mrf.mxu0
    %v6823 = vadd.f32 %v6810, %v6822
    %v6824 = vpop.f32.mrf.mxu0
    %6825 = vdwg.mxu0
    %6826 = vmatpush.bf16.msra.mxu0 %v5015
    %6827 = vmatpush.bf16.msra.mxu0 %v5011
    %6828 = vmatpush.bf16.msra.mxu0 %v5007
    %6829 = vmatpush.bf16.msra.mxu0 %v5003
    %6830 = vmatpush.bf16.msra.mxu0 %v4999
    %6831 = vmatpush.bf16.msra.mxu0 %v4995
    %6832 = vmatpush.bf16.msra.mxu0 %v4991
    %6833 = vmatpush.bf16.msra.mxu0 %v4987
    %6834 = vmatmul.bf16.gmra.mxu0 %v1510
    %v6835 = vpop.f32.mrf.mxu0
    %v6836 = vadd.f32 %v6823, %v6835
    %v6837 = vpop.f32.mrf.mxu0
    %6838 = vdwg.mxu0
    %6839 = vmatpush.bf16.msra.mxu0 %v5047
    %6840 = vmatpush.bf16.msra.mxu0 %v5043
    %6841 = vmatpush.bf16.msra.mxu0 %v5039
    %6842 = vmatpush.bf16.msra.mxu0 %v5035
    %6843 = vmatpush.bf16.msra.mxu0 %v5031
    %6844 = vmatpush.bf16.msra.mxu0 %v5027
    %6845 = vmatpush.bf16.msra.mxu0 %v5023
    %6846 = vmatpush.bf16.msra.mxu0 %v5019
    %6847 = vmatmul.bf16.gmra.mxu0 %v1511
    %v6848 = vpop.f32.mrf.mxu0
    %v6849 = vadd.f32 %v6836, %v6848
    %v6850 = vpop.f32.mrf.mxu0
    %6851 = vdwg.mxu0
    %6852 = vmatpush.bf16.msra.mxu0 %v5079
    %6853 = vmatpush.bf16.msra.mxu0 %v5075
    %6854 = vmatpush.bf16.msra.mxu0 %v5071
    %6855 = vmatpush.bf16.msra.mxu0 %v5067
    %6856 = vmatpush.bf16.msra.mxu0 %v5063
    %6857 = vmatpush.bf16.msra.mxu0 %v5059
    %6858 = vmatpush.bf16.msra.mxu0 %v5055
    %6859 = vmatpush.bf16.msra.mxu0 %v5051
    %6860 = vmatmul.bf16.gmra.mxu0 %v1512
    %v6861 = vpop.f32.mrf.mxu0
    %v6862 = vadd.f32 %v6849, %v6861
    %v6863 = vpop.f32.mrf.mxu0
    %6864 = vdwg.mxu0
    %6865 = vmatpush.bf16.msra.mxu0 %v5111
    %6866 = vmatpush.bf16.msra.mxu0 %v5107
    %6867 = vmatpush.bf16.msra.mxu0 %v5103
    %6868 = vmatpush.bf16.msra.mxu0 %v5099
    %6869 = vmatpush.bf16.msra.mxu0 %v5095
    %6870 = vmatpush.bf16.msra.mxu0 %v5091
    %6871 = vmatpush.bf16.msra.mxu0 %v5087
    %6872 = vmatpush.bf16.msra.mxu0 %v5083
    %6873 = vmatmul.bf16.gmra.mxu0 %v1513
    %v6874 = vpop.f32.mrf.mxu0
    %v6875 = vadd.f32 %v6862, %v6874
    %v6876 = vpop.f32.mrf.mxu0
    %6877 = vdwg.mxu0
    %6878 = vmatpush.bf16.msra.mxu0 %v5143
    %6879 = vmatpush.bf16.msra.mxu0 %v5139
    %6880 = vmatpush.bf16.msra.mxu0 %v5135
    %6881 = vmatpush.bf16.msra.mxu0 %v5131
    %6882 = vmatpush.bf16.msra.mxu0 %v5127
    %6883 = vmatpush.bf16.msra.mxu0 %v5123
    %6884 = vmatpush.bf16.msra.mxu0 %v5119
    %6885 = vmatpush.bf16.msra.mxu0 %v5115
    %6886 = vmatmul.bf16.gmra.mxu0 %v1514
    %v6887 = vpop.f32.mrf.mxu0
    %v6888 = vadd.f32 %v6875, %v6887
    %v6889 = vpop.f32.mrf.mxu0
    %6890 = vdwg.mxu0
    %6891 = vmatpush.bf16.msra.mxu0 %v5175
    %6892 = vmatpush.bf16.msra.mxu0 %v5171
    %6893 = vmatpush.bf16.msra.mxu0 %v5167
    %6894 = vmatpush.bf16.msra.mxu0 %v5163
    %6895 = vmatpush.bf16.msra.mxu0 %v5159
    %6896 = vmatpush.bf16.msra.mxu0 %v5155
    %6897 = vmatpush.bf16.msra.mxu0 %v5151
    %6898 = vmatpush.bf16.msra.mxu0 %v5147
    %6899 = vmatmul.bf16.gmra.mxu0 %v1515
    %v6900 = vpop.f32.mrf.mxu0
    %v6901 = vadd.f32 %v6888, %v6900
    %v6902 = vpop.f32.mrf.mxu0
    %6903 = vdwg.mxu0
    %6904 = vmatpush.bf16.msra.mxu0 %v5207
    %6905 = vmatpush.bf16.msra.mxu0 %v5203
    %6906 = vmatpush.bf16.msra.mxu0 %v5199
    %6907 = vmatpush.bf16.msra.mxu0 %v5195
    %6908 = vmatpush.bf16.msra.mxu0 %v5191
    %6909 = vmatpush.bf16.msra.mxu0 %v5187
    %6910 = vmatpush.bf16.msra.mxu0 %v5183
    %6911 = vmatpush.bf16.msra.mxu0 %v5179
    %6912 = vmatmul.bf16.gmra.mxu0 %v1516
    %v6913 = vpop.f32.mrf.mxu0
    %v6914 = vadd.f32 %v6901, %v6913
    %v6915 = vpop.f32.mrf.mxu0
    %6916 = vdwg.mxu0
    %6917 = vmatpush.bf16.msra.mxu0 %v5239
    %6918 = vmatpush.bf16.msra.mxu0 %v5235
    %6919 = vmatpush.bf16.msra.mxu0 %v5231
    %6920 = vmatpush.bf16.msra.mxu0 %v5227
    %6921 = vmatpush.bf16.msra.mxu0 %v5223
    %6922 = vmatpush.bf16.msra.mxu0 %v5219
    %6923 = vmatpush.bf16.msra.mxu0 %v5215
    %6924 = vmatpush.bf16.msra.mxu0 %v5211
    %6925 = vmatmul.bf16.gmra.mxu0 %v1517
    %v6926 = vpop.f32.mrf.mxu0
    %v6927 = vadd.f32 %v6914, %v6926
    %v6928 = vpop.f32.mrf.mxu0
    %6929 = vdwg.mxu0
    %6930 = vmatpush.bf16.msra.mxu0 %v5271
    %6931 = vmatpush.bf16.msra.mxu0 %v5267
    %6932 = vmatpush.bf16.msra.mxu0 %v5263
    %6933 = vmatpush.bf16.msra.mxu0 %v5259
    %6934 = vmatpush.bf16.msra.mxu0 %v5255
    %6935 = vmatpush.bf16.msra.mxu0 %v5251
    %6936 = vmatpush.bf16.msra.mxu0 %v5247
    %6937 = vmatpush.bf16.msra.mxu0 %v5243
    %6938 = vmatmul.bf16.gmra.mxu0 %v1518
    %v6939 = vpop.f32.mrf.mxu0
    %v6940 = vadd.f32 %v6927, %v6939
    %v6941 = vpop.f32.mrf.mxu0
    %6942 = vdwg.mxu0
    %6943 = vmatpush.bf16.msra.mxu0 %v5303
    %6944 = vmatpush.bf16.msra.mxu0 %v5299
    %6945 = vmatpush.bf16.msra.mxu0 %v5295
    %6946 = vmatpush.bf16.msra.mxu0 %v5291
    %6947 = vmatpush.bf16.msra.mxu0 %v5287
    %6948 = vmatpush.bf16.msra.mxu0 %v5283
    %6949 = vmatpush.bf16.msra.mxu0 %v5279
    %6950 = vmatpush.bf16.msra.mxu0 %v5275
    %6951 = vmatmul.bf16.gmra.mxu0 %v1519
    %v6952 = vpop.f32.mrf.mxu0
    %v6953 = vadd.f32 %v6940, %v6952
    %v6954 = vpop.f32.mrf.mxu0
    %6955 = vdwg.mxu0
    %6956 = vmatpush.bf16.msra.mxu0 %v5335
    %6957 = vmatpush.bf16.msra.mxu0 %v5331
    %6958 = vmatpush.bf16.msra.mxu0 %v5327
    %6959 = vmatpush.bf16.msra.mxu0 %v5323
    %6960 = vmatpush.bf16.msra.mxu0 %v5319
    %6961 = vmatpush.bf16.msra.mxu0 %v5315
    %6962 = vmatpush.bf16.msra.mxu0 %v5311
    %6963 = vmatpush.bf16.msra.mxu0 %v5307
    %6964 = vmatmul.bf16.gmra.mxu0 %v1520
    %v6965 = vpop.f32.mrf.mxu0
    %v6966 = vadd.f32 %v6953, %v6965
    %v6967 = vpop.f32.mrf.mxu0
    %6968 = vdwg.mxu0
    %6969 = vmatpush.bf16.msra.mxu0 %v5367
    %6970 = vmatpush.bf16.msra.mxu0 %v5363
    %6971 = vmatpush.bf16.msra.mxu0 %v5359
    %6972 = vmatpush.bf16.msra.mxu0 %v5355
    %6973 = vmatpush.bf16.msra.mxu0 %v5351
    %6974 = vmatpush.bf16.msra.mxu0 %v5347
    %6975 = vmatpush.bf16.msra.mxu0 %v5343
    %6976 = vmatpush.bf16.msra.mxu0 %v5339
    %6977 = vmatmul.bf16.gmra.mxu0 %v1521
    %v6978 = vpop.f32.mrf.mxu0
    %v6979 = vadd.f32 %v6966, %v6978
    %v6980 = vpop.f32.mrf.mxu0
    %6981 = vdwg.mxu0
    %6982 = vmatpush.bf16.msra.mxu0 %v5399
    %6983 = vmatpush.bf16.msra.mxu0 %v5395
    %6984 = vmatpush.bf16.msra.mxu0 %v5391
    %6985 = vmatpush.bf16.msra.mxu0 %v5387
    %6986 = vmatpush.bf16.msra.mxu0 %v5383
    %6987 = vmatpush.bf16.msra.mxu0 %v5379
    %6988 = vmatpush.bf16.msra.mxu0 %v5375
    %6989 = vmatpush.bf16.msra.mxu0 %v5371
    %6990 = vmatmul.bf16.gmra.mxu0 %v1522
    %v6991 = vpop.f32.mrf.mxu0
    %v6992 = vadd.f32 %v6979, %v6991
    %v6993 = vpop.f32.mrf.mxu0
    %6994 = vdwg.mxu0
    %6995 = vmatpush.bf16.msra.mxu0 %v5431
    %6996 = vmatpush.bf16.msra.mxu0 %v5427
    %6997 = vmatpush.bf16.msra.mxu0 %v5423
    %6998 = vmatpush.bf16.msra.mxu0 %v5419
    %6999 = vmatpush.bf16.msra.mxu0 %v5415
    %7000 = vmatpush.bf16.msra.mxu0 %v5411
    %7001 = vmatpush.bf16.msra.mxu0 %v5407
    %7002 = vmatpush.bf16.msra.mxu0 %v5403
    %7003 = vmatmul.bf16.gmra.mxu0 %v1523
    %v7004 = vpop.f32.mrf.mxu0
    %v7005 = vadd.f32 %v6992, %v7004
    %v7006 = vpop.f32.mrf.mxu0
    %7007 = vdwg.mxu0
    %7008 = vmatpush.bf16.msra.mxu0 %v5463
    %7009 = vmatpush.bf16.msra.mxu0 %v5459
    %7010 = vmatpush.bf16.msra.mxu0 %v5455
    %7011 = vmatpush.bf16.msra.mxu0 %v5451
    %7012 = vmatpush.bf16.msra.mxu0 %v5447
    %7013 = vmatpush.bf16.msra.mxu0 %v5443
    %7014 = vmatpush.bf16.msra.mxu0 %v5439
    %7015 = vmatpush.bf16.msra.mxu0 %v5435
    %7016 = vmatmul.bf16.gmra.mxu0 %v1524
    %v7017 = vpop.f32.mrf.mxu0
    %v7018 = vadd.f32 %v7005, %v7017
    %v7019 = vpop.f32.mrf.mxu0
    %7020 = vdwg.mxu0
    %7021 = vmatpush.bf16.msra.mxu0 %v5495
    %7022 = vmatpush.bf16.msra.mxu0 %v5491
    %7023 = vmatpush.bf16.msra.mxu0 %v5487
    %7024 = vmatpush.bf16.msra.mxu0 %v5483
    %7025 = vmatpush.bf16.msra.mxu0 %v5479
    %7026 = vmatpush.bf16.msra.mxu0 %v5475
    %7027 = vmatpush.bf16.msra.mxu0 %v5471
    %7028 = vmatpush.bf16.msra.mxu0 %v5467
    %7029 = vmatmul.bf16.gmra.mxu0 %v1525
    %v7030 = vpop.f32.mrf.mxu0
    %v7031 = vadd.f32 %v7018, %v7030
    %v7032 = vpop.f32.mrf.mxu0
    %7033 = vdwg.mxu0
    %7034 = vmatpush.bf16.msra.mxu0 %v5527
    %7035 = vmatpush.bf16.msra.mxu0 %v5523
    %7036 = vmatpush.bf16.msra.mxu0 %v5519
    %7037 = vmatpush.bf16.msra.mxu0 %v5515
    %7038 = vmatpush.bf16.msra.mxu0 %v5511
    %7039 = vmatpush.bf16.msra.mxu0 %v5507
    %7040 = vmatpush.bf16.msra.mxu0 %v5503
    %7041 = vmatpush.bf16.msra.mxu0 %v5499
    %7042 = vmatmul.bf16.gmra.mxu0 %v1526
    %v7043 = vpop.f32.mrf.mxu0
    %v7044 = vadd.f32 %v7031, %v7043
    %v7045 = vpop.f32.mrf.mxu0
    %7046 = vdwg.mxu0
    %7047 = vmatpush.bf16.msra.mxu0 %v5559
    %7048 = vmatpush.bf16.msra.mxu0 %v5555
    %7049 = vmatpush.bf16.msra.mxu0 %v5551
    %7050 = vmatpush.bf16.msra.mxu0 %v5547
    %7051 = vmatpush.bf16.msra.mxu0 %v5543
    %7052 = vmatpush.bf16.msra.mxu0 %v5539
    %7053 = vmatpush.bf16.msra.mxu0 %v5535
    %7054 = vmatpush.bf16.msra.mxu0 %v5531
    %7055 = vmatmul.bf16.gmra.mxu0 %v1527
    %v7056 = vpop.f32.mrf.mxu0
    %v7057 = vadd.f32 %v7044, %v7056
    %v7058 = vpop.f32.mrf.mxu0
    %7059 = vdwg.mxu0
    %7060 = vmatpush.bf16.msra.mxu0 %v5591
    %7061 = vmatpush.bf16.msra.mxu0 %v5587
    %7062 = vmatpush.bf16.msra.mxu0 %v5583
    %7063 = vmatpush.bf16.msra.mxu0 %v5579
    %7064 = vmatpush.bf16.msra.mxu0 %v5575
    %7065 = vmatpush.bf16.msra.mxu0 %v5571
    %7066 = vmatpush.bf16.msra.mxu0 %v5567
    %7067 = vmatpush.bf16.msra.mxu0 %v5563
    %7068 = vmatmul.bf16.gmra.mxu0 %v1528
    %v7069 = vpop.f32.mrf.mxu0
    %v7070 = vadd.f32 %v7057, %v7069
    %v7071 = vpop.f32.mrf.mxu0
    %7072 = vdwg.mxu0
    %7073 = vmatpush.bf16.msra.mxu0 %v5623
    %7074 = vmatpush.bf16.msra.mxu0 %v5619
    %7075 = vmatpush.bf16.msra.mxu0 %v5615
    %7076 = vmatpush.bf16.msra.mxu0 %v5611
    %7077 = vmatpush.bf16.msra.mxu0 %v5607
    %7078 = vmatpush.bf16.msra.mxu0 %v5603
    %7079 = vmatpush.bf16.msra.mxu0 %v5599
    %7080 = vmatpush.bf16.msra.mxu0 %v5595
    %7081 = vmatmul.bf16.gmra.mxu0 %v1529
    %v7082 = vpop.f32.mrf.mxu0
    %v7083 = vadd.f32 %v7070, %v7082
    %v7084 = vpop.f32.mrf.mxu0
    %7085 = vdwg.mxu0
    %7086 = vmatpush.bf16.msra.mxu0 %v5655
    %7087 = vmatpush.bf16.msra.mxu0 %v5651
    %7088 = vmatpush.bf16.msra.mxu0 %v5647
    %7089 = vmatpush.bf16.msra.mxu0 %v5643
    %7090 = vmatpush.bf16.msra.mxu0 %v5639
    %7091 = vmatpush.bf16.msra.mxu0 %v5635
    %7092 = vmatpush.bf16.msra.mxu0 %v5631
    %7093 = vmatpush.bf16.msra.mxu0 %v5627
    %7094 = vmatmul.bf16.gmra.mxu0 %v1530
    %v7095 = vpop.f32.mrf.mxu0
    %v7096 = vadd.f32 %v7083, %v7095
    %v7097 = vpop.f32.mrf.mxu0
    %7098 = vdwg.mxu0
    %7099 = vmatpush.bf16.msra.mxu0 %v4664
    %7100 = vmatpush.bf16.msra.mxu0 %v4660
    %7101 = vmatpush.bf16.msra.mxu0 %v4656
    %7102 = vmatpush.bf16.msra.mxu0 %v4652
    %7103 = vmatpush.bf16.msra.mxu0 %v4648
    %7104 = vmatpush.bf16.msra.mxu0 %v4644
    %7105 = vmatpush.bf16.msra.mxu0 %v4640
    %7106 = vmatpush.bf16.msra.mxu0 %v4636
    %7107 = vmatmul.bf16.gmra.mxu0 %v1499
    %v7108 = vpop.f32.mrf.mxu0
    %v7109 = vadd.f32 %v1422, %v7108
    %v7110 = vpop.f32.mrf.mxu0
    %7111 = vdwg.mxu0
    %7112 = vmatpush.bf16.msra.mxu0 %v4696
    %7113 = vmatpush.bf16.msra.mxu0 %v4692
    %7114 = vmatpush.bf16.msra.mxu0 %v4688
    %7115 = vmatpush.bf16.msra.mxu0 %v4684
    %7116 = vmatpush.bf16.msra.mxu0 %v4680
    %7117 = vmatpush.bf16.msra.mxu0 %v4676
    %7118 = vmatpush.bf16.msra.mxu0 %v4672
    %7119 = vmatpush.bf16.msra.mxu0 %v4668
    %7120 = vmatmul.bf16.gmra.mxu0 %v1500
    %v7121 = vpop.f32.mrf.mxu0
    %v7122 = vadd.f32 %v7109, %v7121
    %v7123 = vpop.f32.mrf.mxu0
    %7124 = vdwg.mxu0
    %7125 = vmatpush.bf16.msra.mxu0 %v4728
    %7126 = vmatpush.bf16.msra.mxu0 %v4724
    %7127 = vmatpush.bf16.msra.mxu0 %v4720
    %7128 = vmatpush.bf16.msra.mxu0 %v4716
    %7129 = vmatpush.bf16.msra.mxu0 %v4712
    %7130 = vmatpush.bf16.msra.mxu0 %v4708
    %7131 = vmatpush.bf16.msra.mxu0 %v4704
    %7132 = vmatpush.bf16.msra.mxu0 %v4700
    %7133 = vmatmul.bf16.gmra.mxu0 %v1501
    %v7134 = vpop.f32.mrf.mxu0
    %v7135 = vadd.f32 %v7122, %v7134
    %v7136 = vpop.f32.mrf.mxu0
    %7137 = vdwg.mxu0
    %7138 = vmatpush.bf16.msra.mxu0 %v4760
    %7139 = vmatpush.bf16.msra.mxu0 %v4756
    %7140 = vmatpush.bf16.msra.mxu0 %v4752
    %7141 = vmatpush.bf16.msra.mxu0 %v4748
    %7142 = vmatpush.bf16.msra.mxu0 %v4744
    %7143 = vmatpush.bf16.msra.mxu0 %v4740
    %7144 = vmatpush.bf16.msra.mxu0 %v4736
    %7145 = vmatpush.bf16.msra.mxu0 %v4732
    %7146 = vmatmul.bf16.gmra.mxu0 %v1502
    %v7147 = vpop.f32.mrf.mxu0
    %v7148 = vadd.f32 %v7135, %v7147
    %v7149 = vpop.f32.mrf.mxu0
    %7150 = vdwg.mxu0
    %7151 = vmatpush.bf16.msra.mxu0 %v4792
    %7152 = vmatpush.bf16.msra.mxu0 %v4788
    %7153 = vmatpush.bf16.msra.mxu0 %v4784
    %7154 = vmatpush.bf16.msra.mxu0 %v4780
    %7155 = vmatpush.bf16.msra.mxu0 %v4776
    %7156 = vmatpush.bf16.msra.mxu0 %v4772
    %7157 = vmatpush.bf16.msra.mxu0 %v4768
    %7158 = vmatpush.bf16.msra.mxu0 %v4764
    %7159 = vmatmul.bf16.gmra.mxu0 %v1503
    %v7160 = vpop.f32.mrf.mxu0
    %v7161 = vadd.f32 %v7148, %v7160
    %v7162 = vpop.f32.mrf.mxu0
    %7163 = vdwg.mxu0
    %7164 = vmatpush.bf16.msra.mxu0 %v4824
    %7165 = vmatpush.bf16.msra.mxu0 %v4820
    %7166 = vmatpush.bf16.msra.mxu0 %v4816
    %7167 = vmatpush.bf16.msra.mxu0 %v4812
    %7168 = vmatpush.bf16.msra.mxu0 %v4808
    %7169 = vmatpush.bf16.msra.mxu0 %v4804
    %7170 = vmatpush.bf16.msra.mxu0 %v4800
    %7171 = vmatpush.bf16.msra.mxu0 %v4796
    %7172 = vmatmul.bf16.gmra.mxu0 %v1504
    %v7173 = vpop.f32.mrf.mxu0
    %v7174 = vadd.f32 %v7161, %v7173
    %v7175 = vpop.f32.mrf.mxu0
    %7176 = vdwg.mxu0
    %7177 = vmatpush.bf16.msra.mxu0 %v4856
    %7178 = vmatpush.bf16.msra.mxu0 %v4852
    %7179 = vmatpush.bf16.msra.mxu0 %v4848
    %7180 = vmatpush.bf16.msra.mxu0 %v4844
    %7181 = vmatpush.bf16.msra.mxu0 %v4840
    %7182 = vmatpush.bf16.msra.mxu0 %v4836
    %7183 = vmatpush.bf16.msra.mxu0 %v4832
    %7184 = vmatpush.bf16.msra.mxu0 %v4828
    %7185 = vmatmul.bf16.gmra.mxu0 %v1505
    %v7186 = vpop.f32.mrf.mxu0
    %v7187 = vadd.f32 %v7174, %v7186
    %v7188 = vpop.f32.mrf.mxu0
    %7189 = vdwg.mxu0
    %7190 = vmatpush.bf16.msra.mxu0 %v4888
    %7191 = vmatpush.bf16.msra.mxu0 %v4884
    %7192 = vmatpush.bf16.msra.mxu0 %v4880
    %7193 = vmatpush.bf16.msra.mxu0 %v4876
    %7194 = vmatpush.bf16.msra.mxu0 %v4872
    %7195 = vmatpush.bf16.msra.mxu0 %v4868
    %7196 = vmatpush.bf16.msra.mxu0 %v4864
    %7197 = vmatpush.bf16.msra.mxu0 %v4860
    %7198 = vmatmul.bf16.gmra.mxu0 %v1506
    %v7199 = vpop.f32.mrf.mxu0
    %v7200 = vadd.f32 %v7187, %v7199
    %v7201 = vpop.f32.mrf.mxu0
    %7202 = vdwg.mxu0
    %7203 = vmatpush.bf16.msra.mxu0 %v4920
    %7204 = vmatpush.bf16.msra.mxu0 %v4916
    %7205 = vmatpush.bf16.msra.mxu0 %v4912
    %7206 = vmatpush.bf16.msra.mxu0 %v4908
    %7207 = vmatpush.bf16.msra.mxu0 %v4904
    %7208 = vmatpush.bf16.msra.mxu0 %v4900
    %7209 = vmatpush.bf16.msra.mxu0 %v4896
    %7210 = vmatpush.bf16.msra.mxu0 %v4892
    %7211 = vmatmul.bf16.gmra.mxu0 %v1507
    %v7212 = vpop.f32.mrf.mxu0
    %v7213 = vadd.f32 %v7200, %v7212
    %v7214 = vpop.f32.mrf.mxu0
    %7215 = vdwg.mxu0
    %7216 = vmatpush.bf16.msra.mxu0 %v4952
    %7217 = vmatpush.bf16.msra.mxu0 %v4948
    %7218 = vmatpush.bf16.msra.mxu0 %v4944
    %7219 = vmatpush.bf16.msra.mxu0 %v4940
    %7220 = vmatpush.bf16.msra.mxu0 %v4936
    %7221 = vmatpush.bf16.msra.mxu0 %v4932
    %7222 = vmatpush.bf16.msra.mxu0 %v4928
    %7223 = vmatpush.bf16.msra.mxu0 %v4924
    %7224 = vmatmul.bf16.gmra.mxu0 %v1508
    %v7225 = vpop.f32.mrf.mxu0
    %v7226 = vadd.f32 %v7213, %v7225
    %v7227 = vpop.f32.mrf.mxu0
    %7228 = vdwg.mxu0
    %7229 = vmatpush.bf16.msra.mxu0 %v4984
    %7230 = vmatpush.bf16.msra.mxu0 %v4980
    %7231 = vmatpush.bf16.msra.mxu0 %v4976
    %7232 = vmatpush.bf16.msra.mxu0 %v4972
    %7233 = vmatpush.bf16.msra.mxu0 %v4968
    %7234 = vmatpush.bf16.msra.mxu0 %v4964
    %7235 = vmatpush.bf16.msra.mxu0 %v4960
    %7236 = vmatpush.bf16.msra.mxu0 %v4956
    %7237 = vmatmul.bf16.gmra.mxu0 %v1509
    %v7238 = vpop.f32.mrf.mxu0
    %v7239 = vadd.f32 %v7226, %v7238
    %v7240 = vpop.f32.mrf.mxu0
    %7241 = vdwg.mxu0
    %7242 = vmatpush.bf16.msra.mxu0 %v5016
    %7243 = vmatpush.bf16.msra.mxu0 %v5012
    %7244 = vmatpush.bf16.msra.mxu0 %v5008
    %7245 = vmatpush.bf16.msra.mxu0 %v5004
    %7246 = vmatpush.bf16.msra.mxu0 %v5000
    %7247 = vmatpush.bf16.msra.mxu0 %v4996
    %7248 = vmatpush.bf16.msra.mxu0 %v4992
    %7249 = vmatpush.bf16.msra.mxu0 %v4988
    %7250 = vmatmul.bf16.gmra.mxu0 %v1510
    %v7251 = vpop.f32.mrf.mxu0
    %v7252 = vadd.f32 %v7239, %v7251
    %v7253 = vpop.f32.mrf.mxu0
    %7254 = vdwg.mxu0
    %7255 = vmatpush.bf16.msra.mxu0 %v5048
    %7256 = vmatpush.bf16.msra.mxu0 %v5044
    %7257 = vmatpush.bf16.msra.mxu0 %v5040
    %7258 = vmatpush.bf16.msra.mxu0 %v5036
    %7259 = vmatpush.bf16.msra.mxu0 %v5032
    %7260 = vmatpush.bf16.msra.mxu0 %v5028
    %7261 = vmatpush.bf16.msra.mxu0 %v5024
    %7262 = vmatpush.bf16.msra.mxu0 %v5020
    %7263 = vmatmul.bf16.gmra.mxu0 %v1511
    %v7264 = vpop.f32.mrf.mxu0
    %v7265 = vadd.f32 %v7252, %v7264
    %v7266 = vpop.f32.mrf.mxu0
    %7267 = vdwg.mxu0
    %7268 = vmatpush.bf16.msra.mxu0 %v5080
    %7269 = vmatpush.bf16.msra.mxu0 %v5076
    %7270 = vmatpush.bf16.msra.mxu0 %v5072
    %7271 = vmatpush.bf16.msra.mxu0 %v5068
    %7272 = vmatpush.bf16.msra.mxu0 %v5064
    %7273 = vmatpush.bf16.msra.mxu0 %v5060
    %7274 = vmatpush.bf16.msra.mxu0 %v5056
    %7275 = vmatpush.bf16.msra.mxu0 %v5052
    %7276 = vmatmul.bf16.gmra.mxu0 %v1512
    %v7277 = vpop.f32.mrf.mxu0
    %v7278 = vadd.f32 %v7265, %v7277
    %v7279 = vpop.f32.mrf.mxu0
    %7280 = vdwg.mxu0
    %7281 = vmatpush.bf16.msra.mxu0 %v5112
    %7282 = vmatpush.bf16.msra.mxu0 %v5108
    %7283 = vmatpush.bf16.msra.mxu0 %v5104
    %7284 = vmatpush.bf16.msra.mxu0 %v5100
    %7285 = vmatpush.bf16.msra.mxu0 %v5096
    %7286 = vmatpush.bf16.msra.mxu0 %v5092
    %7287 = vmatpush.bf16.msra.mxu0 %v5088
    %7288 = vmatpush.bf16.msra.mxu0 %v5084
    %7289 = vmatmul.bf16.gmra.mxu0 %v1513
    %v7290 = vpop.f32.mrf.mxu0
    %v7291 = vadd.f32 %v7278, %v7290
    %v7292 = vpop.f32.mrf.mxu0
    %7293 = vdwg.mxu0
    %7294 = vmatpush.bf16.msra.mxu0 %v5144
    %7295 = vmatpush.bf16.msra.mxu0 %v5140
    %7296 = vmatpush.bf16.msra.mxu0 %v5136
    %7297 = vmatpush.bf16.msra.mxu0 %v5132
    %7298 = vmatpush.bf16.msra.mxu0 %v5128
    %7299 = vmatpush.bf16.msra.mxu0 %v5124
    %7300 = vmatpush.bf16.msra.mxu0 %v5120
    %7301 = vmatpush.bf16.msra.mxu0 %v5116
    %7302 = vmatmul.bf16.gmra.mxu0 %v1514
    %v7303 = vpop.f32.mrf.mxu0
    %v7304 = vadd.f32 %v7291, %v7303
    %v7305 = vpop.f32.mrf.mxu0
    %7306 = vdwg.mxu0
    %7307 = vmatpush.bf16.msra.mxu0 %v5176
    %7308 = vmatpush.bf16.msra.mxu0 %v5172
    %7309 = vmatpush.bf16.msra.mxu0 %v5168
    %7310 = vmatpush.bf16.msra.mxu0 %v5164
    %7311 = vmatpush.bf16.msra.mxu0 %v5160
    %7312 = vmatpush.bf16.msra.mxu0 %v5156
    %7313 = vmatpush.bf16.msra.mxu0 %v5152
    %7314 = vmatpush.bf16.msra.mxu0 %v5148
    %7315 = vmatmul.bf16.gmra.mxu0 %v1515
    %v7316 = vpop.f32.mrf.mxu0
    %v7317 = vadd.f32 %v7304, %v7316
    %v7318 = vpop.f32.mrf.mxu0
    %7319 = vdwg.mxu0
    %7320 = vmatpush.bf16.msra.mxu0 %v5208
    %7321 = vmatpush.bf16.msra.mxu0 %v5204
    %7322 = vmatpush.bf16.msra.mxu0 %v5200
    %7323 = vmatpush.bf16.msra.mxu0 %v5196
    %7324 = vmatpush.bf16.msra.mxu0 %v5192
    %7325 = vmatpush.bf16.msra.mxu0 %v5188
    %7326 = vmatpush.bf16.msra.mxu0 %v5184
    %7327 = vmatpush.bf16.msra.mxu0 %v5180
    %7328 = vmatmul.bf16.gmra.mxu0 %v1516
    %v7329 = vpop.f32.mrf.mxu0
    %v7330 = vadd.f32 %v7317, %v7329
    %v7331 = vpop.f32.mrf.mxu0
    %7332 = vdwg.mxu0
    %7333 = vmatpush.bf16.msra.mxu0 %v5240
    %7334 = vmatpush.bf16.msra.mxu0 %v5236
    %7335 = vmatpush.bf16.msra.mxu0 %v5232
    %7336 = vmatpush.bf16.msra.mxu0 %v5228
    %7337 = vmatpush.bf16.msra.mxu0 %v5224
    %7338 = vmatpush.bf16.msra.mxu0 %v5220
    %7339 = vmatpush.bf16.msra.mxu0 %v5216
    %7340 = vmatpush.bf16.msra.mxu0 %v5212
    %7341 = vmatmul.bf16.gmra.mxu0 %v1517
    %v7342 = vpop.f32.mrf.mxu0
    %v7343 = vadd.f32 %v7330, %v7342
    %v7344 = vpop.f32.mrf.mxu0
    %7345 = vdwg.mxu0
    %7346 = vmatpush.bf16.msra.mxu0 %v5272
    %7347 = vmatpush.bf16.msra.mxu0 %v5268
    %7348 = vmatpush.bf16.msra.mxu0 %v5264
    %7349 = vmatpush.bf16.msra.mxu0 %v5260
    %7350 = vmatpush.bf16.msra.mxu0 %v5256
    %7351 = vmatpush.bf16.msra.mxu0 %v5252
    %7352 = vmatpush.bf16.msra.mxu0 %v5248
    %7353 = vmatpush.bf16.msra.mxu0 %v5244
    %7354 = vmatmul.bf16.gmra.mxu0 %v1518
    %v7355 = vpop.f32.mrf.mxu0
    %v7356 = vadd.f32 %v7343, %v7355
    %v7357 = vpop.f32.mrf.mxu0
    %7358 = vdwg.mxu0
    %7359 = vmatpush.bf16.msra.mxu0 %v5304
    %7360 = vmatpush.bf16.msra.mxu0 %v5300
    %7361 = vmatpush.bf16.msra.mxu0 %v5296
    %7362 = vmatpush.bf16.msra.mxu0 %v5292
    %7363 = vmatpush.bf16.msra.mxu0 %v5288
    %7364 = vmatpush.bf16.msra.mxu0 %v5284
    %7365 = vmatpush.bf16.msra.mxu0 %v5280
    %7366 = vmatpush.bf16.msra.mxu0 %v5276
    %7367 = vmatmul.bf16.gmra.mxu0 %v1519
    %v7368 = vpop.f32.mrf.mxu0
    %v7369 = vadd.f32 %v7356, %v7368
    %v7370 = vpop.f32.mrf.mxu0
    %7371 = vdwg.mxu0
    %7372 = vmatpush.bf16.msra.mxu0 %v5336
    %7373 = vmatpush.bf16.msra.mxu0 %v5332
    %7374 = vmatpush.bf16.msra.mxu0 %v5328
    %7375 = vmatpush.bf16.msra.mxu0 %v5324
    %7376 = vmatpush.bf16.msra.mxu0 %v5320
    %7377 = vmatpush.bf16.msra.mxu0 %v5316
    %7378 = vmatpush.bf16.msra.mxu0 %v5312
    %7379 = vmatpush.bf16.msra.mxu0 %v5308
    %7380 = vmatmul.bf16.gmra.mxu0 %v1520
    %v7381 = vpop.f32.mrf.mxu0
    %v7382 = vadd.f32 %v7369, %v7381
    %v7383 = vpop.f32.mrf.mxu0
    %7384 = vdwg.mxu0
    %7385 = vmatpush.bf16.msra.mxu0 %v5368
    %7386 = vmatpush.bf16.msra.mxu0 %v5364
    %7387 = vmatpush.bf16.msra.mxu0 %v5360
    %7388 = vmatpush.bf16.msra.mxu0 %v5356
    %7389 = vmatpush.bf16.msra.mxu0 %v5352
    %7390 = vmatpush.bf16.msra.mxu0 %v5348
    %7391 = vmatpush.bf16.msra.mxu0 %v5344
    %7392 = vmatpush.bf16.msra.mxu0 %v5340
    %7393 = vmatmul.bf16.gmra.mxu0 %v1521
    %v7394 = vpop.f32.mrf.mxu0
    %v7395 = vadd.f32 %v7382, %v7394
    %v7396 = vpop.f32.mrf.mxu0
    %7397 = vdwg.mxu0
    %7398 = vmatpush.bf16.msra.mxu0 %v5400
    %7399 = vmatpush.bf16.msra.mxu0 %v5396
    %7400 = vmatpush.bf16.msra.mxu0 %v5392
    %7401 = vmatpush.bf16.msra.mxu0 %v5388
    %7402 = vmatpush.bf16.msra.mxu0 %v5384
    %7403 = vmatpush.bf16.msra.mxu0 %v5380
    %7404 = vmatpush.bf16.msra.mxu0 %v5376
    %7405 = vmatpush.bf16.msra.mxu0 %v5372
    %7406 = vmatmul.bf16.gmra.mxu0 %v1522
    %v7407 = vpop.f32.mrf.mxu0
    %v7408 = vadd.f32 %v7395, %v7407
    %v7409 = vpop.f32.mrf.mxu0
    %7410 = vdwg.mxu0
    %7411 = vmatpush.bf16.msra.mxu0 %v5432
    %7412 = vmatpush.bf16.msra.mxu0 %v5428
    %7413 = vmatpush.bf16.msra.mxu0 %v5424
    %7414 = vmatpush.bf16.msra.mxu0 %v5420
    %7415 = vmatpush.bf16.msra.mxu0 %v5416
    %7416 = vmatpush.bf16.msra.mxu0 %v5412
    %7417 = vmatpush.bf16.msra.mxu0 %v5408
    %7418 = vmatpush.bf16.msra.mxu0 %v5404
    %7419 = vmatmul.bf16.gmra.mxu0 %v1523
    %v7420 = vpop.f32.mrf.mxu0
    %v7421 = vadd.f32 %v7408, %v7420
    %v7422 = vpop.f32.mrf.mxu0
    %7423 = vdwg.mxu0
    %7424 = vmatpush.bf16.msra.mxu0 %v5464
    %7425 = vmatpush.bf16.msra.mxu0 %v5460
    %7426 = vmatpush.bf16.msra.mxu0 %v5456
    %7427 = vmatpush.bf16.msra.mxu0 %v5452
    %7428 = vmatpush.bf16.msra.mxu0 %v5448
    %7429 = vmatpush.bf16.msra.mxu0 %v5444
    %7430 = vmatpush.bf16.msra.mxu0 %v5440
    %7431 = vmatpush.bf16.msra.mxu0 %v5436
    %7432 = vmatmul.bf16.gmra.mxu0 %v1524
    %v7433 = vpop.f32.mrf.mxu0
    %v7434 = vadd.f32 %v7421, %v7433
    %v7435 = vpop.f32.mrf.mxu0
    %7436 = vdwg.mxu0
    %7437 = vmatpush.bf16.msra.mxu0 %v5496
    %7438 = vmatpush.bf16.msra.mxu0 %v5492
    %7439 = vmatpush.bf16.msra.mxu0 %v5488
    %7440 = vmatpush.bf16.msra.mxu0 %v5484
    %7441 = vmatpush.bf16.msra.mxu0 %v5480
    %7442 = vmatpush.bf16.msra.mxu0 %v5476
    %7443 = vmatpush.bf16.msra.mxu0 %v5472
    %7444 = vmatpush.bf16.msra.mxu0 %v5468
    %7445 = vmatmul.bf16.gmra.mxu0 %v1525
    %v7446 = vpop.f32.mrf.mxu0
    %v7447 = vadd.f32 %v7434, %v7446
    %v7448 = vpop.f32.mrf.mxu0
    %7449 = vdwg.mxu0
    %7450 = vmatpush.bf16.msra.mxu0 %v5528
    %7451 = vmatpush.bf16.msra.mxu0 %v5524
    %7452 = vmatpush.bf16.msra.mxu0 %v5520
    %7453 = vmatpush.bf16.msra.mxu0 %v5516
    %7454 = vmatpush.bf16.msra.mxu0 %v5512
    %7455 = vmatpush.bf16.msra.mxu0 %v5508
    %7456 = vmatpush.bf16.msra.mxu0 %v5504
    %7457 = vmatpush.bf16.msra.mxu0 %v5500
    %7458 = vmatmul.bf16.gmra.mxu0 %v1526
    %v7459 = vpop.f32.mrf.mxu0
    %v7460 = vadd.f32 %v7447, %v7459
    %v7461 = vpop.f32.mrf.mxu0
    %7462 = vdwg.mxu0
    %7463 = vmatpush.bf16.msra.mxu0 %v5560
    %7464 = vmatpush.bf16.msra.mxu0 %v5556
    %7465 = vmatpush.bf16.msra.mxu0 %v5552
    %7466 = vmatpush.bf16.msra.mxu0 %v5548
    %7467 = vmatpush.bf16.msra.mxu0 %v5544
    %7468 = vmatpush.bf16.msra.mxu0 %v5540
    %7469 = vmatpush.bf16.msra.mxu0 %v5536
    %7470 = vmatpush.bf16.msra.mxu0 %v5532
    %7471 = vmatmul.bf16.gmra.mxu0 %v1527
    %v7472 = vpop.f32.mrf.mxu0
    %v7473 = vadd.f32 %v7460, %v7472
    %v7474 = vpop.f32.mrf.mxu0
    %7475 = vdwg.mxu0
    %7476 = vmatpush.bf16.msra.mxu0 %v5592
    %7477 = vmatpush.bf16.msra.mxu0 %v5588
    %7478 = vmatpush.bf16.msra.mxu0 %v5584
    %7479 = vmatpush.bf16.msra.mxu0 %v5580
    %7480 = vmatpush.bf16.msra.mxu0 %v5576
    %7481 = vmatpush.bf16.msra.mxu0 %v5572
    %7482 = vmatpush.bf16.msra.mxu0 %v5568
    %7483 = vmatpush.bf16.msra.mxu0 %v5564
    %7484 = vmatmul.bf16.gmra.mxu0 %v1528
    %v7485 = vpop.f32.mrf.mxu0
    %v7486 = vadd.f32 %v7473, %v7485
    %v7487 = vpop.f32.mrf.mxu0
    %7488 = vdwg.mxu0
    %7489 = vmatpush.bf16.msra.mxu0 %v5624
    %7490 = vmatpush.bf16.msra.mxu0 %v5620
    %7491 = vmatpush.bf16.msra.mxu0 %v5616
    %7492 = vmatpush.bf16.msra.mxu0 %v5612
    %7493 = vmatpush.bf16.msra.mxu0 %v5608
    %7494 = vmatpush.bf16.msra.mxu0 %v5604
    %7495 = vmatpush.bf16.msra.mxu0 %v5600
    %7496 = vmatpush.bf16.msra.mxu0 %v5596
    %7497 = vmatmul.bf16.gmra.mxu0 %v1529
    %v7498 = vpop.f32.mrf.mxu0
    %v7499 = vadd.f32 %v7486, %v7498
    %v7500 = vpop.f32.mrf.mxu0
    %7501 = vdwg.mxu0
    %7502 = vmatpush.bf16.msra.mxu0 %v5656
    %7503 = vmatpush.bf16.msra.mxu0 %v5652
    %7504 = vmatpush.bf16.msra.mxu0 %v5648
    %7505 = vmatpush.bf16.msra.mxu0 %v5644
    %7506 = vmatpush.bf16.msra.mxu0 %v5640
    %7507 = vmatpush.bf16.msra.mxu0 %v5636
    %7508 = vmatpush.bf16.msra.mxu0 %v5632
    %7509 = vmatpush.bf16.msra.mxu0 %v5628
    %7510 = vmatmul.bf16.gmra.mxu0 %v1530
    %v7511 = vpop.f32.mrf.mxu0
    %v7512 = vadd.f32 %v7499, %v7511
    %v7513 = vpop.f32.mrf.mxu0
    %7514 = vdwg.mxu0
    %7515 = vmatpush.bf16.msra.mxu0 %v4665
    %7516 = vmatpush.bf16.msra.mxu0 %v4661
    %7517 = vmatpush.bf16.msra.mxu0 %v4657
    %7518 = vmatpush.bf16.msra.mxu0 %v4653
    %7519 = vmatpush.bf16.msra.mxu0 %v4649
    %7520 = vmatpush.bf16.msra.mxu0 %v4645
    %7521 = vmatpush.bf16.msra.mxu0 %v4641
    %7522 = vmatpush.bf16.msra.mxu0 %v4637
    %7523 = vmatmul.bf16.gmra.mxu0 %v1499
    %v7524 = vpop.f32.mrf.mxu0
    %v7525 = vadd.f32 %v1435, %v7524
    %v7526 = vpop.f32.mrf.mxu0
    %7527 = vdwg.mxu0
    %7528 = vmatpush.bf16.msra.mxu0 %v4697
    %7529 = vmatpush.bf16.msra.mxu0 %v4693
    %7530 = vmatpush.bf16.msra.mxu0 %v4689
    %7531 = vmatpush.bf16.msra.mxu0 %v4685
    %7532 = vmatpush.bf16.msra.mxu0 %v4681
    %7533 = vmatpush.bf16.msra.mxu0 %v4677
    %7534 = vmatpush.bf16.msra.mxu0 %v4673
    %7535 = vmatpush.bf16.msra.mxu0 %v4669
    %7536 = vmatmul.bf16.gmra.mxu0 %v1500
    %v7537 = vpop.f32.mrf.mxu0
    %v7538 = vadd.f32 %v7525, %v7537
    %v7539 = vpop.f32.mrf.mxu0
    %7540 = vdwg.mxu0
    %7541 = vmatpush.bf16.msra.mxu0 %v4729
    %7542 = vmatpush.bf16.msra.mxu0 %v4725
    %7543 = vmatpush.bf16.msra.mxu0 %v4721
    %7544 = vmatpush.bf16.msra.mxu0 %v4717
    %7545 = vmatpush.bf16.msra.mxu0 %v4713
    %7546 = vmatpush.bf16.msra.mxu0 %v4709
    %7547 = vmatpush.bf16.msra.mxu0 %v4705
    %7548 = vmatpush.bf16.msra.mxu0 %v4701
    %7549 = vmatmul.bf16.gmra.mxu0 %v1501
    %v7550 = vpop.f32.mrf.mxu0
    %v7551 = vadd.f32 %v7538, %v7550
    %v7552 = vpop.f32.mrf.mxu0
    %7553 = vdwg.mxu0
    %7554 = vmatpush.bf16.msra.mxu0 %v4761
    %7555 = vmatpush.bf16.msra.mxu0 %v4757
    %7556 = vmatpush.bf16.msra.mxu0 %v4753
    %7557 = vmatpush.bf16.msra.mxu0 %v4749
    %7558 = vmatpush.bf16.msra.mxu0 %v4745
    %7559 = vmatpush.bf16.msra.mxu0 %v4741
    %7560 = vmatpush.bf16.msra.mxu0 %v4737
    %7561 = vmatpush.bf16.msra.mxu0 %v4733
    %7562 = vmatmul.bf16.gmra.mxu0 %v1502
    %v7563 = vpop.f32.mrf.mxu0
    %v7564 = vadd.f32 %v7551, %v7563
    %v7565 = vpop.f32.mrf.mxu0
    %7566 = vdwg.mxu0
    %7567 = vmatpush.bf16.msra.mxu0 %v4793
    %7568 = vmatpush.bf16.msra.mxu0 %v4789
    %7569 = vmatpush.bf16.msra.mxu0 %v4785
    %7570 = vmatpush.bf16.msra.mxu0 %v4781
    %7571 = vmatpush.bf16.msra.mxu0 %v4777
    %7572 = vmatpush.bf16.msra.mxu0 %v4773
    %7573 = vmatpush.bf16.msra.mxu0 %v4769
    %7574 = vmatpush.bf16.msra.mxu0 %v4765
    %7575 = vmatmul.bf16.gmra.mxu0 %v1503
    %v7576 = vpop.f32.mrf.mxu0
    %v7577 = vadd.f32 %v7564, %v7576
    %v7578 = vpop.f32.mrf.mxu0
    %7579 = vdwg.mxu0
    %7580 = vmatpush.bf16.msra.mxu0 %v4825
    %7581 = vmatpush.bf16.msra.mxu0 %v4821
    %7582 = vmatpush.bf16.msra.mxu0 %v4817
    %7583 = vmatpush.bf16.msra.mxu0 %v4813
    %7584 = vmatpush.bf16.msra.mxu0 %v4809
    %7585 = vmatpush.bf16.msra.mxu0 %v4805
    %7586 = vmatpush.bf16.msra.mxu0 %v4801
    %7587 = vmatpush.bf16.msra.mxu0 %v4797
    %7588 = vmatmul.bf16.gmra.mxu0 %v1504
    %v7589 = vpop.f32.mrf.mxu0
    %v7590 = vadd.f32 %v7577, %v7589
    %v7591 = vpop.f32.mrf.mxu0
    %7592 = vdwg.mxu0
    %7593 = vmatpush.bf16.msra.mxu0 %v4857
    %7594 = vmatpush.bf16.msra.mxu0 %v4853
    %7595 = vmatpush.bf16.msra.mxu0 %v4849
    %7596 = vmatpush.bf16.msra.mxu0 %v4845
    %7597 = vmatpush.bf16.msra.mxu0 %v4841
    %7598 = vmatpush.bf16.msra.mxu0 %v4837
    %7599 = vmatpush.bf16.msra.mxu0 %v4833
    %7600 = vmatpush.bf16.msra.mxu0 %v4829
    %7601 = vmatmul.bf16.gmra.mxu0 %v1505
    %v7602 = vpop.f32.mrf.mxu0
    %v7603 = vadd.f32 %v7590, %v7602
    %v7604 = vpop.f32.mrf.mxu0
    %7605 = vdwg.mxu0
    %7606 = vmatpush.bf16.msra.mxu0 %v4889
    %7607 = vmatpush.bf16.msra.mxu0 %v4885
    %7608 = vmatpush.bf16.msra.mxu0 %v4881
    %7609 = vmatpush.bf16.msra.mxu0 %v4877
    %7610 = vmatpush.bf16.msra.mxu0 %v4873
    %7611 = vmatpush.bf16.msra.mxu0 %v4869
    %7612 = vmatpush.bf16.msra.mxu0 %v4865
    %7613 = vmatpush.bf16.msra.mxu0 %v4861
    %7614 = vmatmul.bf16.gmra.mxu0 %v1506
    %v7615 = vpop.f32.mrf.mxu0
    %v7616 = vadd.f32 %v7603, %v7615
    %v7617 = vpop.f32.mrf.mxu0
    %7618 = vdwg.mxu0
    %7619 = vmatpush.bf16.msra.mxu0 %v4921
    %7620 = vmatpush.bf16.msra.mxu0 %v4917
    %7621 = vmatpush.bf16.msra.mxu0 %v4913
    %7622 = vmatpush.bf16.msra.mxu0 %v4909
    %7623 = vmatpush.bf16.msra.mxu0 %v4905
    %7624 = vmatpush.bf16.msra.mxu0 %v4901
    %7625 = vmatpush.bf16.msra.mxu0 %v4897
    %7626 = vmatpush.bf16.msra.mxu0 %v4893
    %7627 = vmatmul.bf16.gmra.mxu0 %v1507
    %v7628 = vpop.f32.mrf.mxu0
    %v7629 = vadd.f32 %v7616, %v7628
    %v7630 = vpop.f32.mrf.mxu0
    %7631 = vdwg.mxu0
    %7632 = vmatpush.bf16.msra.mxu0 %v4953
    %7633 = vmatpush.bf16.msra.mxu0 %v4949
    %7634 = vmatpush.bf16.msra.mxu0 %v4945
    %7635 = vmatpush.bf16.msra.mxu0 %v4941
    %7636 = vmatpush.bf16.msra.mxu0 %v4937
    %7637 = vmatpush.bf16.msra.mxu0 %v4933
    %7638 = vmatpush.bf16.msra.mxu0 %v4929
    %7639 = vmatpush.bf16.msra.mxu0 %v4925
    %7640 = vmatmul.bf16.gmra.mxu0 %v1508
    %v7641 = vpop.f32.mrf.mxu0
    %v7642 = vadd.f32 %v7629, %v7641
    %v7643 = vpop.f32.mrf.mxu0
    %7644 = vdwg.mxu0
    %7645 = vmatpush.bf16.msra.mxu0 %v4985
    %7646 = vmatpush.bf16.msra.mxu0 %v4981
    %7647 = vmatpush.bf16.msra.mxu0 %v4977
    %7648 = vmatpush.bf16.msra.mxu0 %v4973
    %7649 = vmatpush.bf16.msra.mxu0 %v4969
    %7650 = vmatpush.bf16.msra.mxu0 %v4965
    %7651 = vmatpush.bf16.msra.mxu0 %v4961
    %7652 = vmatpush.bf16.msra.mxu0 %v4957
    %7653 = vmatmul.bf16.gmra.mxu0 %v1509
    %v7654 = vpop.f32.mrf.mxu0
    %v7655 = vadd.f32 %v7642, %v7654
    %v7656 = vpop.f32.mrf.mxu0
    %7657 = vdwg.mxu0
    %7658 = vmatpush.bf16.msra.mxu0 %v5017
    %7659 = vmatpush.bf16.msra.mxu0 %v5013
    %7660 = vmatpush.bf16.msra.mxu0 %v5009
    %7661 = vmatpush.bf16.msra.mxu0 %v5005
    %7662 = vmatpush.bf16.msra.mxu0 %v5001
    %7663 = vmatpush.bf16.msra.mxu0 %v4997
    %7664 = vmatpush.bf16.msra.mxu0 %v4993
    %7665 = vmatpush.bf16.msra.mxu0 %v4989
    %7666 = vmatmul.bf16.gmra.mxu0 %v1510
    %v7667 = vpop.f32.mrf.mxu0
    %v7668 = vadd.f32 %v7655, %v7667
    %v7669 = vpop.f32.mrf.mxu0
    %7670 = vdwg.mxu0
    %7671 = vmatpush.bf16.msra.mxu0 %v5049
    %7672 = vmatpush.bf16.msra.mxu0 %v5045
    %7673 = vmatpush.bf16.msra.mxu0 %v5041
    %7674 = vmatpush.bf16.msra.mxu0 %v5037
    %7675 = vmatpush.bf16.msra.mxu0 %v5033
    %7676 = vmatpush.bf16.msra.mxu0 %v5029
    %7677 = vmatpush.bf16.msra.mxu0 %v5025
    %7678 = vmatpush.bf16.msra.mxu0 %v5021
    %7679 = vmatmul.bf16.gmra.mxu0 %v1511
    %v7680 = vpop.f32.mrf.mxu0
    %v7681 = vadd.f32 %v7668, %v7680
    %v7682 = vpop.f32.mrf.mxu0
    %7683 = vdwg.mxu0
    %7684 = vmatpush.bf16.msra.mxu0 %v5081
    %7685 = vmatpush.bf16.msra.mxu0 %v5077
    %7686 = vmatpush.bf16.msra.mxu0 %v5073
    %7687 = vmatpush.bf16.msra.mxu0 %v5069
    %7688 = vmatpush.bf16.msra.mxu0 %v5065
    %7689 = vmatpush.bf16.msra.mxu0 %v5061
    %7690 = vmatpush.bf16.msra.mxu0 %v5057
    %7691 = vmatpush.bf16.msra.mxu0 %v5053
    %7692 = vmatmul.bf16.gmra.mxu0 %v1512
    %v7693 = vpop.f32.mrf.mxu0
    %v7694 = vadd.f32 %v7681, %v7693
    %v7695 = vpop.f32.mrf.mxu0
    %7696 = vdwg.mxu0
    %7697 = vmatpush.bf16.msra.mxu0 %v5113
    %7698 = vmatpush.bf16.msra.mxu0 %v5109
    %7699 = vmatpush.bf16.msra.mxu0 %v5105
    %7700 = vmatpush.bf16.msra.mxu0 %v5101
    %7701 = vmatpush.bf16.msra.mxu0 %v5097
    %7702 = vmatpush.bf16.msra.mxu0 %v5093
    %7703 = vmatpush.bf16.msra.mxu0 %v5089
    %7704 = vmatpush.bf16.msra.mxu0 %v5085
    %7705 = vmatmul.bf16.gmra.mxu0 %v1513
    %v7706 = vpop.f32.mrf.mxu0
    %v7707 = vadd.f32 %v7694, %v7706
    %v7708 = vpop.f32.mrf.mxu0
    %7709 = vdwg.mxu0
    %7710 = vmatpush.bf16.msra.mxu0 %v5145
    %7711 = vmatpush.bf16.msra.mxu0 %v5141
    %7712 = vmatpush.bf16.msra.mxu0 %v5137
    %7713 = vmatpush.bf16.msra.mxu0 %v5133
    %7714 = vmatpush.bf16.msra.mxu0 %v5129
    %7715 = vmatpush.bf16.msra.mxu0 %v5125
    %7716 = vmatpush.bf16.msra.mxu0 %v5121
    %7717 = vmatpush.bf16.msra.mxu0 %v5117
    %7718 = vmatmul.bf16.gmra.mxu0 %v1514
    %v7719 = vpop.f32.mrf.mxu0
    %v7720 = vadd.f32 %v7707, %v7719
    %v7721 = vpop.f32.mrf.mxu0
    %7722 = vdwg.mxu0
    %7723 = vmatpush.bf16.msra.mxu0 %v5177
    %7724 = vmatpush.bf16.msra.mxu0 %v5173
    %7725 = vmatpush.bf16.msra.mxu0 %v5169
    %7726 = vmatpush.bf16.msra.mxu0 %v5165
    %7727 = vmatpush.bf16.msra.mxu0 %v5161
    %7728 = vmatpush.bf16.msra.mxu0 %v5157
    %7729 = vmatpush.bf16.msra.mxu0 %v5153
    %7730 = vmatpush.bf16.msra.mxu0 %v5149
    %7731 = vmatmul.bf16.gmra.mxu0 %v1515
    %v7732 = vpop.f32.mrf.mxu0
    %v7733 = vadd.f32 %v7720, %v7732
    %v7734 = vpop.f32.mrf.mxu0
    %7735 = vdwg.mxu0
    %7736 = vmatpush.bf16.msra.mxu0 %v5209
    %7737 = vmatpush.bf16.msra.mxu0 %v5205
    %7738 = vmatpush.bf16.msra.mxu0 %v5201
    %7739 = vmatpush.bf16.msra.mxu0 %v5197
    %7740 = vmatpush.bf16.msra.mxu0 %v5193
    %7741 = vmatpush.bf16.msra.mxu0 %v5189
    %7742 = vmatpush.bf16.msra.mxu0 %v5185
    %7743 = vmatpush.bf16.msra.mxu0 %v5181
    %7744 = vmatmul.bf16.gmra.mxu0 %v1516
    %v7745 = vpop.f32.mrf.mxu0
    %v7746 = vadd.f32 %v7733, %v7745
    %v7747 = vpop.f32.mrf.mxu0
    %7748 = vdwg.mxu0
    %7749 = vmatpush.bf16.msra.mxu0 %v5241
    %7750 = vmatpush.bf16.msra.mxu0 %v5237
    %7751 = vmatpush.bf16.msra.mxu0 %v5233
    %7752 = vmatpush.bf16.msra.mxu0 %v5229
    %7753 = vmatpush.bf16.msra.mxu0 %v5225
    %7754 = vmatpush.bf16.msra.mxu0 %v5221
    %7755 = vmatpush.bf16.msra.mxu0 %v5217
    %7756 = vmatpush.bf16.msra.mxu0 %v5213
    %7757 = vmatmul.bf16.gmra.mxu0 %v1517
    %v7758 = vpop.f32.mrf.mxu0
    %v7759 = vadd.f32 %v7746, %v7758
    %v7760 = vpop.f32.mrf.mxu0
    %7761 = vdwg.mxu0
    %7762 = vmatpush.bf16.msra.mxu0 %v5273
    %7763 = vmatpush.bf16.msra.mxu0 %v5269
    %7764 = vmatpush.bf16.msra.mxu0 %v5265
    %7765 = vmatpush.bf16.msra.mxu0 %v5261
    %7766 = vmatpush.bf16.msra.mxu0 %v5257
    %7767 = vmatpush.bf16.msra.mxu0 %v5253
    %7768 = vmatpush.bf16.msra.mxu0 %v5249
    %7769 = vmatpush.bf16.msra.mxu0 %v5245
    %7770 = vmatmul.bf16.gmra.mxu0 %v1518
    %v7771 = vpop.f32.mrf.mxu0
    %v7772 = vadd.f32 %v7759, %v7771
    %v7773 = vpop.f32.mrf.mxu0
    %7774 = vdwg.mxu0
    %7775 = vmatpush.bf16.msra.mxu0 %v5305
    %7776 = vmatpush.bf16.msra.mxu0 %v5301
    %7777 = vmatpush.bf16.msra.mxu0 %v5297
    %7778 = vmatpush.bf16.msra.mxu0 %v5293
    %7779 = vmatpush.bf16.msra.mxu0 %v5289
    %7780 = vmatpush.bf16.msra.mxu0 %v5285
    %7781 = vmatpush.bf16.msra.mxu0 %v5281
    %7782 = vmatpush.bf16.msra.mxu0 %v5277
    %7783 = vmatmul.bf16.gmra.mxu0 %v1519
    %v7784 = vpop.f32.mrf.mxu0
    %v7785 = vadd.f32 %v7772, %v7784
    %v7786 = vpop.f32.mrf.mxu0
    %7787 = vdwg.mxu0
    %7788 = vmatpush.bf16.msra.mxu0 %v5337
    %7789 = vmatpush.bf16.msra.mxu0 %v5333
    %7790 = vmatpush.bf16.msra.mxu0 %v5329
    %7791 = vmatpush.bf16.msra.mxu0 %v5325
    %7792 = vmatpush.bf16.msra.mxu0 %v5321
    %7793 = vmatpush.bf16.msra.mxu0 %v5317
    %7794 = vmatpush.bf16.msra.mxu0 %v5313
    %7795 = vmatpush.bf16.msra.mxu0 %v5309
    %7796 = vmatmul.bf16.gmra.mxu0 %v1520
    %v7797 = vpop.f32.mrf.mxu0
    %v7798 = vadd.f32 %v7785, %v7797
    %v7799 = vpop.f32.mrf.mxu0
    %7800 = vdwg.mxu0
    %7801 = vmatpush.bf16.msra.mxu0 %v5369
    %7802 = vmatpush.bf16.msra.mxu0 %v5365
    %7803 = vmatpush.bf16.msra.mxu0 %v5361
    %7804 = vmatpush.bf16.msra.mxu0 %v5357
    %7805 = vmatpush.bf16.msra.mxu0 %v5353
    %7806 = vmatpush.bf16.msra.mxu0 %v5349
    %7807 = vmatpush.bf16.msra.mxu0 %v5345
    %7808 = vmatpush.bf16.msra.mxu0 %v5341
    %7809 = vmatmul.bf16.gmra.mxu0 %v1521
    %v7810 = vpop.f32.mrf.mxu0
    %v7811 = vadd.f32 %v7798, %v7810
    %v7812 = vpop.f32.mrf.mxu0
    %7813 = vdwg.mxu0
    %7814 = vmatpush.bf16.msra.mxu0 %v5401
    %7815 = vmatpush.bf16.msra.mxu0 %v5397
    %7816 = vmatpush.bf16.msra.mxu0 %v5393
    %7817 = vmatpush.bf16.msra.mxu0 %v5389
    %7818 = vmatpush.bf16.msra.mxu0 %v5385
    %7819 = vmatpush.bf16.msra.mxu0 %v5381
    %7820 = vmatpush.bf16.msra.mxu0 %v5377
    %7821 = vmatpush.bf16.msra.mxu0 %v5373
    %7822 = vmatmul.bf16.gmra.mxu0 %v1522
    %v7823 = vpop.f32.mrf.mxu0
    %v7824 = vadd.f32 %v7811, %v7823
    %v7825 = vpop.f32.mrf.mxu0
    %7826 = vdwg.mxu0
    %7827 = vmatpush.bf16.msra.mxu0 %v5433
    %7828 = vmatpush.bf16.msra.mxu0 %v5429
    %7829 = vmatpush.bf16.msra.mxu0 %v5425
    %7830 = vmatpush.bf16.msra.mxu0 %v5421
    %7831 = vmatpush.bf16.msra.mxu0 %v5417
    %7832 = vmatpush.bf16.msra.mxu0 %v5413
    %7833 = vmatpush.bf16.msra.mxu0 %v5409
    %7834 = vmatpush.bf16.msra.mxu0 %v5405
    %7835 = vmatmul.bf16.gmra.mxu0 %v1523
    %v7836 = vpop.f32.mrf.mxu0
    %v7837 = vadd.f32 %v7824, %v7836
    %v7838 = vpop.f32.mrf.mxu0
    %7839 = vdwg.mxu0
    %7840 = vmatpush.bf16.msra.mxu0 %v5465
    %7841 = vmatpush.bf16.msra.mxu0 %v5461
    %7842 = vmatpush.bf16.msra.mxu0 %v5457
    %7843 = vmatpush.bf16.msra.mxu0 %v5453
    %7844 = vmatpush.bf16.msra.mxu0 %v5449
    %7845 = vmatpush.bf16.msra.mxu0 %v5445
    %7846 = vmatpush.bf16.msra.mxu0 %v5441
    %7847 = vmatpush.bf16.msra.mxu0 %v5437
    %7848 = vmatmul.bf16.gmra.mxu0 %v1524
    %v7849 = vpop.f32.mrf.mxu0
    %v7850 = vadd.f32 %v7837, %v7849
    %v7851 = vpop.f32.mrf.mxu0
    %7852 = vdwg.mxu0
    %7853 = vmatpush.bf16.msra.mxu0 %v5497
    %7854 = vmatpush.bf16.msra.mxu0 %v5493
    %7855 = vmatpush.bf16.msra.mxu0 %v5489
    %7856 = vmatpush.bf16.msra.mxu0 %v5485
    %7857 = vmatpush.bf16.msra.mxu0 %v5481
    %7858 = vmatpush.bf16.msra.mxu0 %v5477
    %7859 = vmatpush.bf16.msra.mxu0 %v5473
    %7860 = vmatpush.bf16.msra.mxu0 %v5469
    %7861 = vmatmul.bf16.gmra.mxu0 %v1525
    %v7862 = vpop.f32.mrf.mxu0
    %v7863 = vadd.f32 %v7850, %v7862
    %v7864 = vpop.f32.mrf.mxu0
    %7865 = vdwg.mxu0
    %7866 = vmatpush.bf16.msra.mxu0 %v5529
    %7867 = vmatpush.bf16.msra.mxu0 %v5525
    %7868 = vmatpush.bf16.msra.mxu0 %v5521
    %7869 = vmatpush.bf16.msra.mxu0 %v5517
    %7870 = vmatpush.bf16.msra.mxu0 %v5513
    %7871 = vmatpush.bf16.msra.mxu0 %v5509
    %7872 = vmatpush.bf16.msra.mxu0 %v5505
    %7873 = vmatpush.bf16.msra.mxu0 %v5501
    %7874 = vmatmul.bf16.gmra.mxu0 %v1526
    %v7875 = vpop.f32.mrf.mxu0
    %v7876 = vadd.f32 %v7863, %v7875
    %v7877 = vpop.f32.mrf.mxu0
    %7878 = vdwg.mxu0
    %7879 = vmatpush.bf16.msra.mxu0 %v5561
    %7880 = vmatpush.bf16.msra.mxu0 %v5557
    %7881 = vmatpush.bf16.msra.mxu0 %v5553
    %7882 = vmatpush.bf16.msra.mxu0 %v5549
    %7883 = vmatpush.bf16.msra.mxu0 %v5545
    %7884 = vmatpush.bf16.msra.mxu0 %v5541
    %7885 = vmatpush.bf16.msra.mxu0 %v5537
    %7886 = vmatpush.bf16.msra.mxu0 %v5533
    %7887 = vmatmul.bf16.gmra.mxu0 %v1527
    %v7888 = vpop.f32.mrf.mxu0
    %v7889 = vadd.f32 %v7876, %v7888
    %v7890 = vpop.f32.mrf.mxu0
    %7891 = vdwg.mxu0
    %7892 = vmatpush.bf16.msra.mxu0 %v5593
    %7893 = vmatpush.bf16.msra.mxu0 %v5589
    %7894 = vmatpush.bf16.msra.mxu0 %v5585
    %7895 = vmatpush.bf16.msra.mxu0 %v5581
    %7896 = vmatpush.bf16.msra.mxu0 %v5577
    %7897 = vmatpush.bf16.msra.mxu0 %v5573
    %7898 = vmatpush.bf16.msra.mxu0 %v5569
    %7899 = vmatpush.bf16.msra.mxu0 %v5565
    %7900 = vmatmul.bf16.gmra.mxu0 %v1528
    %v7901 = vpop.f32.mrf.mxu0
    %v7902 = vadd.f32 %v7889, %v7901
    %v7903 = vpop.f32.mrf.mxu0
    %7904 = vdwg.mxu0
    %7905 = vmatpush.bf16.msra.mxu0 %v5625
    %7906 = vmatpush.bf16.msra.mxu0 %v5621
    %7907 = vmatpush.bf16.msra.mxu0 %v5617
    %7908 = vmatpush.bf16.msra.mxu0 %v5613
    %7909 = vmatpush.bf16.msra.mxu0 %v5609
    %7910 = vmatpush.bf16.msra.mxu0 %v5605
    %7911 = vmatpush.bf16.msra.mxu0 %v5601
    %7912 = vmatpush.bf16.msra.mxu0 %v5597
    %7913 = vmatmul.bf16.gmra.mxu0 %v1529
    %v7914 = vpop.f32.mrf.mxu0
    %v7915 = vadd.f32 %v7902, %v7914
    %v7916 = vpop.f32.mrf.mxu0
    %7917 = vdwg.mxu0
    %7918 = vmatpush.bf16.msra.mxu0 %v5657
    %7919 = vmatpush.bf16.msra.mxu0 %v5653
    %7920 = vmatpush.bf16.msra.mxu0 %v5649
    %7921 = vmatpush.bf16.msra.mxu0 %v5645
    %7922 = vmatpush.bf16.msra.mxu0 %v5641
    %7923 = vmatpush.bf16.msra.mxu0 %v5637
    %7924 = vmatpush.bf16.msra.mxu0 %v5633
    %7925 = vmatpush.bf16.msra.mxu0 %v5629
    %7926 = vmatmul.bf16.gmra.mxu0 %v1530
    %v7927 = vpop.f32.mrf.mxu0
    %v7928 = vadd.f32 %v7915, %v7927
    %v7929 = vpop.f32.mrf.mxu0
    %7930 = vdwg.mxu0
    %7931 = vmatpush.bf16.msra.mxu0 %v4666
    %7932 = vmatpush.bf16.msra.mxu0 %v4662
    %7933 = vmatpush.bf16.msra.mxu0 %v4658
    %7934 = vmatpush.bf16.msra.mxu0 %v4654
    %7935 = vmatpush.bf16.msra.mxu0 %v4650
    %7936 = vmatpush.bf16.msra.mxu0 %v4646
    %7937 = vmatpush.bf16.msra.mxu0 %v4642
    %7938 = vmatpush.bf16.msra.mxu0 %v4638
    %7939 = vmatmul.bf16.gmra.mxu0 %v1499
    %v7940 = vpop.f32.mrf.mxu0
    %v7941 = vadd.f32 %v1448, %v7940
    %v7942 = vpop.f32.mrf.mxu0
    %7943 = vdwg.mxu0
    %7944 = vmatpush.bf16.msra.mxu0 %v4698
    %7945 = vmatpush.bf16.msra.mxu0 %v4694
    %7946 = vmatpush.bf16.msra.mxu0 %v4690
    %7947 = vmatpush.bf16.msra.mxu0 %v4686
    %7948 = vmatpush.bf16.msra.mxu0 %v4682
    %7949 = vmatpush.bf16.msra.mxu0 %v4678
    %7950 = vmatpush.bf16.msra.mxu0 %v4674
    %7951 = vmatpush.bf16.msra.mxu0 %v4670
    %7952 = vmatmul.bf16.gmra.mxu0 %v1500
    %v7953 = vpop.f32.mrf.mxu0
    %v7954 = vadd.f32 %v7941, %v7953
    %v7955 = vpop.f32.mrf.mxu0
    %7956 = vdwg.mxu0
    %7957 = vmatpush.bf16.msra.mxu0 %v4730
    %7958 = vmatpush.bf16.msra.mxu0 %v4726
    %7959 = vmatpush.bf16.msra.mxu0 %v4722
    %7960 = vmatpush.bf16.msra.mxu0 %v4718
    %7961 = vmatpush.bf16.msra.mxu0 %v4714
    %7962 = vmatpush.bf16.msra.mxu0 %v4710
    %7963 = vmatpush.bf16.msra.mxu0 %v4706
    %7964 = vmatpush.bf16.msra.mxu0 %v4702
    %7965 = vmatmul.bf16.gmra.mxu0 %v1501
    %v7966 = vpop.f32.mrf.mxu0
    %v7967 = vadd.f32 %v7954, %v7966
    %v7968 = vpop.f32.mrf.mxu0
    %7969 = vdwg.mxu0
    %7970 = vmatpush.bf16.msra.mxu0 %v4762
    %7971 = vmatpush.bf16.msra.mxu0 %v4758
    %7972 = vmatpush.bf16.msra.mxu0 %v4754
    %7973 = vmatpush.bf16.msra.mxu0 %v4750
    %7974 = vmatpush.bf16.msra.mxu0 %v4746
    %7975 = vmatpush.bf16.msra.mxu0 %v4742
    %7976 = vmatpush.bf16.msra.mxu0 %v4738
    %7977 = vmatpush.bf16.msra.mxu0 %v4734
    %7978 = vmatmul.bf16.gmra.mxu0 %v1502
    %v7979 = vpop.f32.mrf.mxu0
    %v7980 = vadd.f32 %v7967, %v7979
    %v7981 = vpop.f32.mrf.mxu0
    %7982 = vdwg.mxu0
    %7983 = vmatpush.bf16.msra.mxu0 %v4794
    %7984 = vmatpush.bf16.msra.mxu0 %v4790
    %7985 = vmatpush.bf16.msra.mxu0 %v4786
    %7986 = vmatpush.bf16.msra.mxu0 %v4782
    %7987 = vmatpush.bf16.msra.mxu0 %v4778
    %7988 = vmatpush.bf16.msra.mxu0 %v4774
    %7989 = vmatpush.bf16.msra.mxu0 %v4770
    %7990 = vmatpush.bf16.msra.mxu0 %v4766
    %7991 = vmatmul.bf16.gmra.mxu0 %v1503
    %v7992 = vpop.f32.mrf.mxu0
    %v7993 = vadd.f32 %v7980, %v7992
    %v7994 = vpop.f32.mrf.mxu0
    %7995 = vdwg.mxu0
    %7996 = vmatpush.bf16.msra.mxu0 %v4826
    %7997 = vmatpush.bf16.msra.mxu0 %v4822
    %7998 = vmatpush.bf16.msra.mxu0 %v4818
    %7999 = vmatpush.bf16.msra.mxu0 %v4814
    %8000 = vmatpush.bf16.msra.mxu0 %v4810
    %8001 = vmatpush.bf16.msra.mxu0 %v4806
    %8002 = vmatpush.bf16.msra.mxu0 %v4802
    %8003 = vmatpush.bf16.msra.mxu0 %v4798
    %8004 = vmatmul.bf16.gmra.mxu0 %v1504
    %v8005 = vpop.f32.mrf.mxu0
    %v8006 = vadd.f32 %v7993, %v8005
    %v8007 = vpop.f32.mrf.mxu0
    %8008 = vdwg.mxu0
    %8009 = vmatpush.bf16.msra.mxu0 %v4858
    %8010 = vmatpush.bf16.msra.mxu0 %v4854
    %8011 = vmatpush.bf16.msra.mxu0 %v4850
    %8012 = vmatpush.bf16.msra.mxu0 %v4846
    %8013 = vmatpush.bf16.msra.mxu0 %v4842
    %8014 = vmatpush.bf16.msra.mxu0 %v4838
    %8015 = vmatpush.bf16.msra.mxu0 %v4834
    %8016 = vmatpush.bf16.msra.mxu0 %v4830
    %8017 = vmatmul.bf16.gmra.mxu0 %v1505
    %v8018 = vpop.f32.mrf.mxu0
    %v8019 = vadd.f32 %v8006, %v8018
    %v8020 = vpop.f32.mrf.mxu0
    %8021 = vdwg.mxu0
    %8022 = vmatpush.bf16.msra.mxu0 %v4890
    %8023 = vmatpush.bf16.msra.mxu0 %v4886
    %8024 = vmatpush.bf16.msra.mxu0 %v4882
    %8025 = vmatpush.bf16.msra.mxu0 %v4878
    %8026 = vmatpush.bf16.msra.mxu0 %v4874
    %8027 = vmatpush.bf16.msra.mxu0 %v4870
    %8028 = vmatpush.bf16.msra.mxu0 %v4866
    %8029 = vmatpush.bf16.msra.mxu0 %v4862
    %8030 = vmatmul.bf16.gmra.mxu0 %v1506
    %v8031 = vpop.f32.mrf.mxu0
    %v8032 = vadd.f32 %v8019, %v8031
    %v8033 = vpop.f32.mrf.mxu0
    %8034 = vdwg.mxu0
    %8035 = vmatpush.bf16.msra.mxu0 %v4922
    %8036 = vmatpush.bf16.msra.mxu0 %v4918
    %8037 = vmatpush.bf16.msra.mxu0 %v4914
    %8038 = vmatpush.bf16.msra.mxu0 %v4910
    %8039 = vmatpush.bf16.msra.mxu0 %v4906
    %8040 = vmatpush.bf16.msra.mxu0 %v4902
    %8041 = vmatpush.bf16.msra.mxu0 %v4898
    %8042 = vmatpush.bf16.msra.mxu0 %v4894
    %8043 = vmatmul.bf16.gmra.mxu0 %v1507
    %v8044 = vpop.f32.mrf.mxu0
    %v8045 = vadd.f32 %v8032, %v8044
    %v8046 = vpop.f32.mrf.mxu0
    %8047 = vdwg.mxu0
    %8048 = vmatpush.bf16.msra.mxu0 %v4954
    %8049 = vmatpush.bf16.msra.mxu0 %v4950
    %8050 = vmatpush.bf16.msra.mxu0 %v4946
    %8051 = vmatpush.bf16.msra.mxu0 %v4942
    %8052 = vmatpush.bf16.msra.mxu0 %v4938
    %8053 = vmatpush.bf16.msra.mxu0 %v4934
    %8054 = vmatpush.bf16.msra.mxu0 %v4930
    %8055 = vmatpush.bf16.msra.mxu0 %v4926
    %8056 = vmatmul.bf16.gmra.mxu0 %v1508
    %v8057 = vpop.f32.mrf.mxu0
    %v8058 = vadd.f32 %v8045, %v8057
    %v8059 = vpop.f32.mrf.mxu0
    %8060 = vdwg.mxu0
    %8061 = vmatpush.bf16.msra.mxu0 %v4986
    %8062 = vmatpush.bf16.msra.mxu0 %v4982
    %8063 = vmatpush.bf16.msra.mxu0 %v4978
    %8064 = vmatpush.bf16.msra.mxu0 %v4974
    %8065 = vmatpush.bf16.msra.mxu0 %v4970
    %8066 = vmatpush.bf16.msra.mxu0 %v4966
    %8067 = vmatpush.bf16.msra.mxu0 %v4962
    %8068 = vmatpush.bf16.msra.mxu0 %v4958
    %8069 = vmatmul.bf16.gmra.mxu0 %v1509
    %v8070 = vpop.f32.mrf.mxu0
    %v8071 = vadd.f32 %v8058, %v8070
    %v8072 = vpop.f32.mrf.mxu0
    %8073 = vdwg.mxu0
    %8074 = vmatpush.bf16.msra.mxu0 %v5018
    %8075 = vmatpush.bf16.msra.mxu0 %v5014
    %8076 = vmatpush.bf16.msra.mxu0 %v5010
    %8077 = vmatpush.bf16.msra.mxu0 %v5006
    %8078 = vmatpush.bf16.msra.mxu0 %v5002
    %8079 = vmatpush.bf16.msra.mxu0 %v4998
    %8080 = vmatpush.bf16.msra.mxu0 %v4994
    %8081 = vmatpush.bf16.msra.mxu0 %v4990
    %8082 = vmatmul.bf16.gmra.mxu0 %v1510
    %v8083 = vpop.f32.mrf.mxu0
    %v8084 = vadd.f32 %v8071, %v8083
    %v8085 = vpop.f32.mrf.mxu0
    %8086 = vdwg.mxu0
    %8087 = vmatpush.bf16.msra.mxu0 %v5050
    %8088 = vmatpush.bf16.msra.mxu0 %v5046
    %8089 = vmatpush.bf16.msra.mxu0 %v5042
    %8090 = vmatpush.bf16.msra.mxu0 %v5038
    %8091 = vmatpush.bf16.msra.mxu0 %v5034
    %8092 = vmatpush.bf16.msra.mxu0 %v5030
    %8093 = vmatpush.bf16.msra.mxu0 %v5026
    %8094 = vmatpush.bf16.msra.mxu0 %v5022
    %8095 = vmatmul.bf16.gmra.mxu0 %v1511
    %v8096 = vpop.f32.mrf.mxu0
    %v8097 = vadd.f32 %v8084, %v8096
    %v8098 = vpop.f32.mrf.mxu0
    %8099 = vdwg.mxu0
    %8100 = vmatpush.bf16.msra.mxu0 %v5082
    %8101 = vmatpush.bf16.msra.mxu0 %v5078
    %8102 = vmatpush.bf16.msra.mxu0 %v5074
    %8103 = vmatpush.bf16.msra.mxu0 %v5070
    %8104 = vmatpush.bf16.msra.mxu0 %v5066
    %8105 = vmatpush.bf16.msra.mxu0 %v5062
    %8106 = vmatpush.bf16.msra.mxu0 %v5058
    %8107 = vmatpush.bf16.msra.mxu0 %v5054
    %8108 = vmatmul.bf16.gmra.mxu0 %v1512
    %v8109 = vpop.f32.mrf.mxu0
    %v8110 = vadd.f32 %v8097, %v8109
    %v8111 = vpop.f32.mrf.mxu0
    %8112 = vdwg.mxu0
    %8113 = vmatpush.bf16.msra.mxu0 %v5114
    %8114 = vmatpush.bf16.msra.mxu0 %v5110
    %8115 = vmatpush.bf16.msra.mxu0 %v5106
    %8116 = vmatpush.bf16.msra.mxu0 %v5102
    %8117 = vmatpush.bf16.msra.mxu0 %v5098
    %8118 = vmatpush.bf16.msra.mxu0 %v5094
    %8119 = vmatpush.bf16.msra.mxu0 %v5090
    %8120 = vmatpush.bf16.msra.mxu0 %v5086
    %8121 = vmatmul.bf16.gmra.mxu0 %v1513
    %v8122 = vpop.f32.mrf.mxu0
    %v8123 = vadd.f32 %v8110, %v8122
    %v8124 = vpop.f32.mrf.mxu0
    %8125 = vdwg.mxu0
    %8126 = vmatpush.bf16.msra.mxu0 %v5146
    %8127 = vmatpush.bf16.msra.mxu0 %v5142
    %8128 = vmatpush.bf16.msra.mxu0 %v5138
    %8129 = vmatpush.bf16.msra.mxu0 %v5134
    %8130 = vmatpush.bf16.msra.mxu0 %v5130
    %8131 = vmatpush.bf16.msra.mxu0 %v5126
    %8132 = vmatpush.bf16.msra.mxu0 %v5122
    %8133 = vmatpush.bf16.msra.mxu0 %v5118
    %8134 = vmatmul.bf16.gmra.mxu0 %v1514
    %v8135 = vpop.f32.mrf.mxu0
    %v8136 = vadd.f32 %v8123, %v8135
    %v8137 = vpop.f32.mrf.mxu0
    %8138 = vdwg.mxu0
    %8139 = vmatpush.bf16.msra.mxu0 %v5178
    %8140 = vmatpush.bf16.msra.mxu0 %v5174
    %8141 = vmatpush.bf16.msra.mxu0 %v5170
    %8142 = vmatpush.bf16.msra.mxu0 %v5166
    %8143 = vmatpush.bf16.msra.mxu0 %v5162
    %8144 = vmatpush.bf16.msra.mxu0 %v5158
    %8145 = vmatpush.bf16.msra.mxu0 %v5154
    %8146 = vmatpush.bf16.msra.mxu0 %v5150
    %8147 = vmatmul.bf16.gmra.mxu0 %v1515
    %v8148 = vpop.f32.mrf.mxu0
    %v8149 = vadd.f32 %v8136, %v8148
    %v8150 = vpop.f32.mrf.mxu0
    %8151 = vdwg.mxu0
    %8152 = vmatpush.bf16.msra.mxu0 %v5210
    %8153 = vmatpush.bf16.msra.mxu0 %v5206
    %8154 = vmatpush.bf16.msra.mxu0 %v5202
    %8155 = vmatpush.bf16.msra.mxu0 %v5198
    %8156 = vmatpush.bf16.msra.mxu0 %v5194
    %8157 = vmatpush.bf16.msra.mxu0 %v5190
    %8158 = vmatpush.bf16.msra.mxu0 %v5186
    %8159 = vmatpush.bf16.msra.mxu0 %v5182
    %8160 = vmatmul.bf16.gmra.mxu0 %v1516
    %v8161 = vpop.f32.mrf.mxu0
    %v8162 = vadd.f32 %v8149, %v8161
    %v8163 = vpop.f32.mrf.mxu0
    %8164 = vdwg.mxu0
    %8165 = vmatpush.bf16.msra.mxu0 %v5242
    %8166 = vmatpush.bf16.msra.mxu0 %v5238
    %8167 = vmatpush.bf16.msra.mxu0 %v5234
    %8168 = vmatpush.bf16.msra.mxu0 %v5230
    %8169 = vmatpush.bf16.msra.mxu0 %v5226
    %8170 = vmatpush.bf16.msra.mxu0 %v5222
    %8171 = vmatpush.bf16.msra.mxu0 %v5218
    %8172 = vmatpush.bf16.msra.mxu0 %v5214
    %8173 = vmatmul.bf16.gmra.mxu0 %v1517
    %v8174 = vpop.f32.mrf.mxu0
    %v8175 = vadd.f32 %v8162, %v8174
    %v8176 = vpop.f32.mrf.mxu0
    %8177 = vdwg.mxu0
    %8178 = vmatpush.bf16.msra.mxu0 %v5274
    %8179 = vmatpush.bf16.msra.mxu0 %v5270
    %8180 = vmatpush.bf16.msra.mxu0 %v5266
    %8181 = vmatpush.bf16.msra.mxu0 %v5262
    %8182 = vmatpush.bf16.msra.mxu0 %v5258
    %8183 = vmatpush.bf16.msra.mxu0 %v5254
    %8184 = vmatpush.bf16.msra.mxu0 %v5250
    %8185 = vmatpush.bf16.msra.mxu0 %v5246
    %8186 = vmatmul.bf16.gmra.mxu0 %v1518
    %v8187 = vpop.f32.mrf.mxu0
    %v8188 = vadd.f32 %v8175, %v8187
    %v8189 = vpop.f32.mrf.mxu0
    %8190 = vdwg.mxu0
    %8191 = vmatpush.bf16.msra.mxu0 %v5306
    %8192 = vmatpush.bf16.msra.mxu0 %v5302
    %8193 = vmatpush.bf16.msra.mxu0 %v5298
    %8194 = vmatpush.bf16.msra.mxu0 %v5294
    %8195 = vmatpush.bf16.msra.mxu0 %v5290
    %8196 = vmatpush.bf16.msra.mxu0 %v5286
    %8197 = vmatpush.bf16.msra.mxu0 %v5282
    %8198 = vmatpush.bf16.msra.mxu0 %v5278
    %8199 = vmatmul.bf16.gmra.mxu0 %v1519
    %v8200 = vpop.f32.mrf.mxu0
    %v8201 = vadd.f32 %v8188, %v8200
    %v8202 = vpop.f32.mrf.mxu0
    %8203 = vdwg.mxu0
    %8204 = vmatpush.bf16.msra.mxu0 %v5338
    %8205 = vmatpush.bf16.msra.mxu0 %v5334
    %8206 = vmatpush.bf16.msra.mxu0 %v5330
    %8207 = vmatpush.bf16.msra.mxu0 %v5326
    %8208 = vmatpush.bf16.msra.mxu0 %v5322
    %8209 = vmatpush.bf16.msra.mxu0 %v5318
    %8210 = vmatpush.bf16.msra.mxu0 %v5314
    %8211 = vmatpush.bf16.msra.mxu0 %v5310
    %8212 = vmatmul.bf16.gmra.mxu0 %v1520
    %v8213 = vpop.f32.mrf.mxu0
    %v8214 = vadd.f32 %v8201, %v8213
    %v8215 = vpop.f32.mrf.mxu0
    %8216 = vdwg.mxu0
    %8217 = vmatpush.bf16.msra.mxu0 %v5370
    %8218 = vmatpush.bf16.msra.mxu0 %v5366
    %8219 = vmatpush.bf16.msra.mxu0 %v5362
    %8220 = vmatpush.bf16.msra.mxu0 %v5358
    %8221 = vmatpush.bf16.msra.mxu0 %v5354
    %8222 = vmatpush.bf16.msra.mxu0 %v5350
    %8223 = vmatpush.bf16.msra.mxu0 %v5346
    %8224 = vmatpush.bf16.msra.mxu0 %v5342
    %8225 = vmatmul.bf16.gmra.mxu0 %v1521
    %v8226 = vpop.f32.mrf.mxu0
    %v8227 = vadd.f32 %v8214, %v8226
    %v8228 = vpop.f32.mrf.mxu0
    %8229 = vdwg.mxu0
    %8230 = vmatpush.bf16.msra.mxu0 %v5402
    %8231 = vmatpush.bf16.msra.mxu0 %v5398
    %8232 = vmatpush.bf16.msra.mxu0 %v5394
    %8233 = vmatpush.bf16.msra.mxu0 %v5390
    %8234 = vmatpush.bf16.msra.mxu0 %v5386
    %8235 = vmatpush.bf16.msra.mxu0 %v5382
    %8236 = vmatpush.bf16.msra.mxu0 %v5378
    %8237 = vmatpush.bf16.msra.mxu0 %v5374
    %8238 = vmatmul.bf16.gmra.mxu0 %v1522
    %v8239 = vpop.f32.mrf.mxu0
    %v8240 = vadd.f32 %v8227, %v8239
    %v8241 = vpop.f32.mrf.mxu0
    %8242 = vdwg.mxu0
    %8243 = vmatpush.bf16.msra.mxu0 %v5434
    %8244 = vmatpush.bf16.msra.mxu0 %v5430
    %8245 = vmatpush.bf16.msra.mxu0 %v5426
    %8246 = vmatpush.bf16.msra.mxu0 %v5422
    %8247 = vmatpush.bf16.msra.mxu0 %v5418
    %8248 = vmatpush.bf16.msra.mxu0 %v5414
    %8249 = vmatpush.bf16.msra.mxu0 %v5410
    %8250 = vmatpush.bf16.msra.mxu0 %v5406
    %8251 = vmatmul.bf16.gmra.mxu0 %v1523
    %v8252 = vpop.f32.mrf.mxu0
    %v8253 = vadd.f32 %v8240, %v8252
    %v8254 = vpop.f32.mrf.mxu0
    %8255 = vdwg.mxu0
    %8256 = vmatpush.bf16.msra.mxu0 %v5466
    %8257 = vmatpush.bf16.msra.mxu0 %v5462
    %8258 = vmatpush.bf16.msra.mxu0 %v5458
    %8259 = vmatpush.bf16.msra.mxu0 %v5454
    %8260 = vmatpush.bf16.msra.mxu0 %v5450
    %8261 = vmatpush.bf16.msra.mxu0 %v5446
    %8262 = vmatpush.bf16.msra.mxu0 %v5442
    %8263 = vmatpush.bf16.msra.mxu0 %v5438
    %8264 = vmatmul.bf16.gmra.mxu0 %v1524
    %v8265 = vpop.f32.mrf.mxu0
    %v8266 = vadd.f32 %v8253, %v8265
    %v8267 = vpop.f32.mrf.mxu0
    %8268 = vdwg.mxu0
    %8269 = vmatpush.bf16.msra.mxu0 %v5498
    %8270 = vmatpush.bf16.msra.mxu0 %v5494
    %8271 = vmatpush.bf16.msra.mxu0 %v5490
    %8272 = vmatpush.bf16.msra.mxu0 %v5486
    %8273 = vmatpush.bf16.msra.mxu0 %v5482
    %8274 = vmatpush.bf16.msra.mxu0 %v5478
    %8275 = vmatpush.bf16.msra.mxu0 %v5474
    %8276 = vmatpush.bf16.msra.mxu0 %v5470
    %8277 = vmatmul.bf16.gmra.mxu0 %v1525
    %v8278 = vpop.f32.mrf.mxu0
    %v8279 = vadd.f32 %v8266, %v8278
    %v8280 = vpop.f32.mrf.mxu0
    %8281 = vdwg.mxu0
    %8282 = vmatpush.bf16.msra.mxu0 %v5530
    %8283 = vmatpush.bf16.msra.mxu0 %v5526
    %8284 = vmatpush.bf16.msra.mxu0 %v5522
    %8285 = vmatpush.bf16.msra.mxu0 %v5518
    %8286 = vmatpush.bf16.msra.mxu0 %v5514
    %8287 = vmatpush.bf16.msra.mxu0 %v5510
    %8288 = vmatpush.bf16.msra.mxu0 %v5506
    %8289 = vmatpush.bf16.msra.mxu0 %v5502
    %8290 = vmatmul.bf16.gmra.mxu0 %v1526
    %v8291 = vpop.f32.mrf.mxu0
    %v8292 = vadd.f32 %v8279, %v8291
    %v8293 = vpop.f32.mrf.mxu0
    %8294 = vdwg.mxu0
    %8295 = vmatpush.bf16.msra.mxu0 %v5562
    %8296 = vmatpush.bf16.msra.mxu0 %v5558
    %8297 = vmatpush.bf16.msra.mxu0 %v5554
    %8298 = vmatpush.bf16.msra.mxu0 %v5550
    %8299 = vmatpush.bf16.msra.mxu0 %v5546
    %8300 = vmatpush.bf16.msra.mxu0 %v5542
    %8301 = vmatpush.bf16.msra.mxu0 %v5538
    %8302 = vmatpush.bf16.msra.mxu0 %v5534
    %8303 = vmatmul.bf16.gmra.mxu0 %v1527
    %v8304 = vpop.f32.mrf.mxu0
    %v8305 = vadd.f32 %v8292, %v8304
    %v8306 = vpop.f32.mrf.mxu0
    %8307 = vdwg.mxu0
    %8308 = vmatpush.bf16.msra.mxu0 %v5594
    %8309 = vmatpush.bf16.msra.mxu0 %v5590
    %8310 = vmatpush.bf16.msra.mxu0 %v5586
    %8311 = vmatpush.bf16.msra.mxu0 %v5582
    %8312 = vmatpush.bf16.msra.mxu0 %v5578
    %8313 = vmatpush.bf16.msra.mxu0 %v5574
    %8314 = vmatpush.bf16.msra.mxu0 %v5570
    %8315 = vmatpush.bf16.msra.mxu0 %v5566
    %8316 = vmatmul.bf16.gmra.mxu0 %v1528
    %v8317 = vpop.f32.mrf.mxu0
    %v8318 = vadd.f32 %v8305, %v8317
    %v8319 = vpop.f32.mrf.mxu0
    %8320 = vdwg.mxu0
    %8321 = vmatpush.bf16.msra.mxu0 %v5626
    %8322 = vmatpush.bf16.msra.mxu0 %v5622
    %8323 = vmatpush.bf16.msra.mxu0 %v5618
    %8324 = vmatpush.bf16.msra.mxu0 %v5614
    %8325 = vmatpush.bf16.msra.mxu0 %v5610
    %8326 = vmatpush.bf16.msra.mxu0 %v5606
    %8327 = vmatpush.bf16.msra.mxu0 %v5602
    %8328 = vmatpush.bf16.msra.mxu0 %v5598
    %8329 = vmatmul.bf16.gmra.mxu0 %v1529
    %v8330 = vpop.f32.mrf.mxu0
    %v8331 = vadd.f32 %v8318, %v8330
    %v8332 = vpop.f32.mrf.mxu0
    %8333 = vdwg.mxu0
    %8334 = vmatpush.bf16.msra.mxu0 %v5658
    %8335 = vmatpush.bf16.msra.mxu0 %v5654
    %8336 = vmatpush.bf16.msra.mxu0 %v5650
    %8337 = vmatpush.bf16.msra.mxu0 %v5646
    %8338 = vmatpush.bf16.msra.mxu0 %v5642
    %8339 = vmatpush.bf16.msra.mxu0 %v5638
    %8340 = vmatpush.bf16.msra.mxu0 %v5634
    %8341 = vmatpush.bf16.msra.mxu0 %v5630
    %8342 = vmatmul.bf16.gmra.mxu0 %v1530
    %v8343 = vpop.f32.mrf.mxu0
    %v8344 = vadd.f32 %v8331, %v8343
    %v8345 = vpop.f32.mrf.mxu0
    %8346 = vdwg.mxu0
    %v8347 = vld [vmem:[#allocation10] sm:$0xf]
    %v8349 = vperm.slane %v8347, 0
    %v8350 = vperm.slane %v8347, 1
    %v8351 = vperm.slane %v8347, 2
    %v8352 = vperm.slane %v8347, 3
    %v8357 = vadd.f32 %v7096, %v8349
    %v8358 = vadd.f32 %v7512, %v8350
    %v8359 = vadd.f32 %v7928, %v8351
    %v8360 = vadd.f32 %v8344, %v8352
    %vm8361 = vcmp.gt.f32.partialorder %v8357, 0.0
    %vm8362 = vcmp.gt.f32.partialorder %v8358, 0.0
    %vm8363 = vcmp.gt.f32.partialorder %v8359, 0.0
    %vm8364 = vcmp.gt.f32.partialorder %v8360, 0.0
    %v8365 = vmul.f32 %v8357, 0.2
    %v8366 = vmul.f32 %v8358, 0.2
    %v8367 = vmul.f32 %v8359, 0.2
    %v8368 = vmul.f32 %v8360, 0.2
    %v8369 = vsel %vm8361, %v8357, %v8365
    %v8370 = vsel %vm8362, %v8358, %v8366
    %v8371 = vsel %vm8363, %v8359, %v8367
    %v8372 = vsel %vm8364, %v8360, %v8368
    %v8373 = vpack.c.bf16 %v8369, %v8369
    %v8374 = vpack.c.bf16 %v8370, %v8370
    %v8375 = vpack.c.bf16 %v8371, %v8371
    %v8376 = vpack.c.bf16 %v8372, %v8372
    %v8377 = vld [vmem:[#allocation11] sm:$0xff]
    %v8378 = vld [vmem:[#allocation11 + $0x8] sm:$0xff]
    %v8379 = vld [vmem:[#allocation11 + $0x10] sm:$0xff]
    %v8380 = vld [vmem:[#allocation11 + $0x18] sm:$0xff]
    %v8381 = vld [vmem:[#allocation11 + $0x20] sm:$0xff]
    %v8382 = vld [vmem:[#allocation11 + $0x28] sm:$0xff]
    %v8383 = vld [vmem:[#allocation11 + $0x30] sm:$0xff]
    %v8384 = vld [vmem:[#allocation11 + $0x38] sm:$0xff]
    %v8385 = vld [vmem:[#allocation11 + $0x40] sm:$0xff]
    %v8386 = vld [vmem:[#allocation11 + $0x48] sm:$0xff]
    %v8387 = vld [vmem:[#allocation11 + $0x50] sm:$0xff]
    %v8388 = vld [vmem:[#allocation11 + $0x58] sm:$0xff]
    %v8389 = vld [vmem:[#allocation11 + $0x60] sm:$0xff]
    %v8390 = vld [vmem:[#allocation11 + $0x68] sm:$0xff]
    %v8391 = vld [vmem:[#allocation11 + $0x70] sm:$0xff]
    %v8392 = vld [vmem:[#allocation11 + $0x78] sm:$0xff]
    %v8393 = vld [vmem:[#allocation11 + $0x80] sm:$0xff]
    %v8394 = vld [vmem:[#allocation11 + $0x88] sm:$0xff]
    %v8395 = vld [vmem:[#allocation11 + $0x90] sm:$0xff]
    %v8396 = vld [vmem:[#allocation11 + $0x98] sm:$0xff]
    %v8397 = vld [vmem:[#allocation11 + $0xa0] sm:$0xff]
    %v8398 = vld [vmem:[#allocation11 + $0xa8] sm:$0xff]
    %v8399 = vld [vmem:[#allocation11 + $0xb0] sm:$0xff]
    %v8400 = vld [vmem:[#allocation11 + $0xb8] sm:$0xff]
    %v8401 = vld [vmem:[#allocation11 + $0xc0] sm:$0xff]
    %v8402 = vld [vmem:[#allocation11 + $0xc8] sm:$0xff]
    %v8403 = vld [vmem:[#allocation11 + $0xd0] sm:$0xff]
    %v8404 = vld [vmem:[#allocation11 + $0xd8] sm:$0xff]
    %v8405 = vld [vmem:[#allocation11 + $0xe0] sm:$0xff]
    %v8406 = vld [vmem:[#allocation11 + $0xe8] sm:$0xff]
    %v8407 = vld [vmem:[#allocation11 + $0xf0] sm:$0xff]
    %v8408 = vld [vmem:[#allocation11 + $0xf8] sm:$0xff]
    %v8409 = vld [vmem:[#allocation11 + $0x100] sm:$0xff]
    %v8410 = vld [vmem:[#allocation11 + $0x108] sm:$0xff]
    %v8411 = vld [vmem:[#allocation11 + $0x110] sm:$0xff]
    %v8412 = vld [vmem:[#allocation11 + $0x118] sm:$0xff]
    %v8413 = vld [vmem:[#allocation11 + $0x120] sm:$0xff]
    %v8414 = vld [vmem:[#allocation11 + $0x128] sm:$0xff]
    %v8415 = vld [vmem:[#allocation11 + $0x130] sm:$0xff]
    %v8416 = vld [vmem:[#allocation11 + $0x138] sm:$0xff]
    %v8417 = vld [vmem:[#allocation11 + $0x140] sm:$0xff]
    %v8418 = vld [vmem:[#allocation11 + $0x148] sm:$0xff]
    %v8419 = vld [vmem:[#allocation11 + $0x150] sm:$0xff]
    %v8420 = vld [vmem:[#allocation11 + $0x158] sm:$0xff]
    %v8421 = vld [vmem:[#allocation11 + $0x160] sm:$0xff]
    %v8422 = vld [vmem:[#allocation11 + $0x168] sm:$0xff]
    %v8423 = vld [vmem:[#allocation11 + $0x170] sm:$0xff]
    %v8424 = vld [vmem:[#allocation11 + $0x178] sm:$0xff]
    %v8425 = vld [vmem:[#allocation11 + $0x180] sm:$0xff]
    %v8426 = vld [vmem:[#allocation11 + $0x188] sm:$0xff]
    %v8427 = vld [vmem:[#allocation11 + $0x190] sm:$0xff]
    %v8428 = vld [vmem:[#allocation11 + $0x198] sm:$0xff]
    %v8429 = vld [vmem:[#allocation11 + $0x1a0] sm:$0xff]
    %v8430 = vld [vmem:[#allocation11 + $0x1a8] sm:$0xff]
    %v8431 = vld [vmem:[#allocation11 + $0x1b0] sm:$0xff]
    %v8432 = vld [vmem:[#allocation11 + $0x1b8] sm:$0xff]
    %v8433 = vld [vmem:[#allocation11 + $0x1c0] sm:$0xff]
    %v8434 = vld [vmem:[#allocation11 + $0x1c8] sm:$0xff]
    %v8435 = vld [vmem:[#allocation11 + $0x1d0] sm:$0xff]
    %v8436 = vld [vmem:[#allocation11 + $0x1d8] sm:$0xff]
    %v8437 = vld [vmem:[#allocation11 + $0x1e0] sm:$0xff]
    %v8438 = vld [vmem:[#allocation11 + $0x1e8] sm:$0xff]
    %v8439 = vld [vmem:[#allocation11 + $0x1f0] sm:$0xff]
    %v8440 = vld [vmem:[#allocation11 + $0x1f8] sm:$0xff]
    %v8441 = vld [vmem:[#allocation11 + $0x200] sm:$0xff]
    %v8442 = vld [vmem:[#allocation11 + $0x208] sm:$0xff]
    %v8443 = vld [vmem:[#allocation11 + $0x210] sm:$0xff]
    %v8444 = vld [vmem:[#allocation11 + $0x218] sm:$0xff]
    %v8445 = vld [vmem:[#allocation11 + $0x220] sm:$0xff]
    %v8446 = vld [vmem:[#allocation11 + $0x228] sm:$0xff]
    %v8447 = vld [vmem:[#allocation11 + $0x230] sm:$0xff]
    %v8448 = vld [vmem:[#allocation11 + $0x238] sm:$0xff]
    %v8449 = vld [vmem:[#allocation11 + $0x240] sm:$0xff]
    %v8450 = vld [vmem:[#allocation11 + $0x248] sm:$0xff]
    %v8451 = vld [vmem:[#allocation11 + $0x250] sm:$0xff]
    %v8452 = vld [vmem:[#allocation11 + $0x258] sm:$0xff]
    %v8453 = vld [vmem:[#allocation11 + $0x260] sm:$0xff]
    %v8454 = vld [vmem:[#allocation11 + $0x268] sm:$0xff]
    %v8455 = vld [vmem:[#allocation11 + $0x270] sm:$0xff]
    %v8456 = vld [vmem:[#allocation11 + $0x278] sm:$0xff]
    %v8457 = vld [vmem:[#allocation11 + $0x280] sm:$0xff]
    %v8458 = vld [vmem:[#allocation11 + $0x288] sm:$0xff]
    %v8459 = vld [vmem:[#allocation11 + $0x290] sm:$0xff]
    %v8460 = vld [vmem:[#allocation11 + $0x298] sm:$0xff]
    %v8461 = vld [vmem:[#allocation11 + $0x2a0] sm:$0xff]
    %v8462 = vld [vmem:[#allocation11 + $0x2a8] sm:$0xff]
    %v8463 = vld [vmem:[#allocation11 + $0x2b0] sm:$0xff]
    %v8464 = vld [vmem:[#allocation11 + $0x2b8] sm:$0xff]
    %v8465 = vld [vmem:[#allocation11 + $0x2c0] sm:$0xff]
    %v8466 = vld [vmem:[#allocation11 + $0x2c8] sm:$0xff]
    %v8467 = vld [vmem:[#allocation11 + $0x2d0] sm:$0xff]
    %v8468 = vld [vmem:[#allocation11 + $0x2d8] sm:$0xff]
    %v8469 = vld [vmem:[#allocation11 + $0x2e0] sm:$0xff]
    %v8470 = vld [vmem:[#allocation11 + $0x2e8] sm:$0xff]
    %v8471 = vld [vmem:[#allocation11 + $0x2f0] sm:$0xff]
    %v8472 = vld [vmem:[#allocation11 + $0x2f8] sm:$0xff]
    %v8473 = vld [vmem:[#allocation11 + $0x300] sm:$0xff]
    %v8474 = vld [vmem:[#allocation11 + $0x308] sm:$0xff]
    %v8475 = vld [vmem:[#allocation11 + $0x310] sm:$0xff]
    %v8476 = vld [vmem:[#allocation11 + $0x318] sm:$0xff]
    %v8477 = vld [vmem:[#allocation11 + $0x320] sm:$0xff]
    %v8478 = vld [vmem:[#allocation11 + $0x328] sm:$0xff]
    %v8479 = vld [vmem:[#allocation11 + $0x330] sm:$0xff]
    %v8480 = vld [vmem:[#allocation11 + $0x338] sm:$0xff]
    %v8481 = vld [vmem:[#allocation11 + $0x340] sm:$0xff]
    %v8482 = vld [vmem:[#allocation11 + $0x348] sm:$0xff]
    %v8483 = vld [vmem:[#allocation11 + $0x350] sm:$0xff]
    %v8484 = vld [vmem:[#allocation11 + $0x358] sm:$0xff]
    %v8485 = vld [vmem:[#allocation11 + $0x360] sm:$0xff]
    %v8486 = vld [vmem:[#allocation11 + $0x368] sm:$0xff]
    %v8487 = vld [vmem:[#allocation11 + $0x370] sm:$0xff]
    %v8488 = vld [vmem:[#allocation11 + $0x378] sm:$0xff]
    %v8489 = vld [vmem:[#allocation11 + $0x380] sm:$0xff]
    %v8490 = vld [vmem:[#allocation11 + $0x388] sm:$0xff]
    %v8491 = vld [vmem:[#allocation11 + $0x390] sm:$0xff]
    %v8492 = vld [vmem:[#allocation11 + $0x398] sm:$0xff]
    %v8493 = vld [vmem:[#allocation11 + $0x3a0] sm:$0xff]
    %v8494 = vld [vmem:[#allocation11 + $0x3a8] sm:$0xff]
    %v8495 = vld [vmem:[#allocation11 + $0x3b0] sm:$0xff]
    %v8496 = vld [vmem:[#allocation11 + $0x3b8] sm:$0xff]
    %v8497 = vld [vmem:[#allocation11 + $0x3c0] sm:$0xff]
    %v8498 = vld [vmem:[#allocation11 + $0x3c8] sm:$0xff]
    %v8499 = vld [vmem:[#allocation11 + $0x3d0] sm:$0xff]
    %v8500 = vld [vmem:[#allocation11 + $0x3d8] sm:$0xff]
    %v8501 = vld [vmem:[#allocation11 + $0x3e0] sm:$0xff]
    %v8502 = vld [vmem:[#allocation11 + $0x3e8] sm:$0xff]
    %v8503 = vld [vmem:[#allocation11 + $0x3f0] sm:$0xff]
    %v8504 = vld [vmem:[#allocation11 + $0x3f8] sm:$0xff]
    %v8505 = vld [vmem:[#allocation13] sm:$0xf]
    %v8507 = vperm.slane %v8505, 0
    %v8508 = vperm.slane %v8505, 1
    %v8509 = vperm.slane %v8505, 2
    %v8510 = vperm.slane %v8505, 3
    %v8643 = vunpack.c.l.b16 %v8377
    %v8644 = vunpack.c.h.b16 %v8377
    %v8645 = vunpack.c.l.b16 %v8378
    %v8646 = vunpack.c.h.b16 %v8378
    %v8647 = vunpack.c.l.b16 %v8379
    %v8648 = vunpack.c.h.b16 %v8379
    %v8649 = vunpack.c.l.b16 %v8380
    %v8650 = vunpack.c.h.b16 %v8380
    %v8651 = vunpack.c.l.b16 %v8381
    %v8652 = vunpack.c.h.b16 %v8381
    %v8653 = vunpack.c.l.b16 %v8382
    %v8654 = vunpack.c.h.b16 %v8382
    %v8655 = vunpack.c.l.b16 %v8383
    %v8656 = vunpack.c.h.b16 %v8383
    %v8657 = vunpack.c.l.b16 %v8384
    %v8658 = vunpack.c.h.b16 %v8384
    %v8659 = vunpack.c.l.b16 %v8385
    %v8660 = vunpack.c.h.b16 %v8385
    %v8661 = vunpack.c.l.b16 %v8386
    %v8662 = vunpack.c.h.b16 %v8386
    %v8663 = vunpack.c.l.b16 %v8387
    %v8664 = vunpack.c.h.b16 %v8387
    %v8665 = vunpack.c.l.b16 %v8388
    %v8666 = vunpack.c.h.b16 %v8388
    %v8667 = vunpack.c.l.b16 %v8389
    %v8668 = vunpack.c.h.b16 %v8389
    %v8669 = vunpack.c.l.b16 %v8390
    %v8670 = vunpack.c.h.b16 %v8390
    %v8671 = vunpack.c.l.b16 %v8391
    %v8672 = vunpack.c.h.b16 %v8391
    %v8673 = vunpack.c.l.b16 %v8392
    %v8674 = vunpack.c.h.b16 %v8392
    %v8675 = vunpack.c.l.b16 %v8393
    %v8676 = vunpack.c.h.b16 %v8393
    %v8677 = vunpack.c.l.b16 %v8394
    %v8678 = vunpack.c.h.b16 %v8394
    %v8679 = vunpack.c.l.b16 %v8395
    %v8680 = vunpack.c.h.b16 %v8395
    %v8681 = vunpack.c.l.b16 %v8396
    %v8682 = vunpack.c.h.b16 %v8396
    %v8683 = vunpack.c.l.b16 %v8397
    %v8684 = vunpack.c.h.b16 %v8397
    %v8685 = vunpack.c.l.b16 %v8398
    %v8686 = vunpack.c.h.b16 %v8398
    %v8687 = vunpack.c.l.b16 %v8399
    %v8688 = vunpack.c.h.b16 %v8399
    %v8689 = vunpack.c.l.b16 %v8400
    %v8690 = vunpack.c.h.b16 %v8400
    %v8691 = vunpack.c.l.b16 %v8401
    %v8692 = vunpack.c.h.b16 %v8401
    %v8693 = vunpack.c.l.b16 %v8402
    %v8694 = vunpack.c.h.b16 %v8402
    %v8695 = vunpack.c.l.b16 %v8403
    %v8696 = vunpack.c.h.b16 %v8403
    %v8697 = vunpack.c.l.b16 %v8404
    %v8698 = vunpack.c.h.b16 %v8404
    %v8699 = vunpack.c.l.b16 %v8405
    %v8700 = vunpack.c.h.b16 %v8405
    %v8701 = vunpack.c.l.b16 %v8406
    %v8702 = vunpack.c.h.b16 %v8406
    %v8703 = vunpack.c.l.b16 %v8407
    %v8704 = vunpack.c.h.b16 %v8407
    %v8705 = vunpack.c.l.b16 %v8408
    %v8706 = vunpack.c.h.b16 %v8408
    %v8707 = vunpack.c.l.b16 %v8409
    %v8708 = vunpack.c.h.b16 %v8409
    %v8709 = vunpack.c.l.b16 %v8410
    %v8710 = vunpack.c.h.b16 %v8410
    %v8711 = vunpack.c.l.b16 %v8411
    %v8712 = vunpack.c.h.b16 %v8411
    %v8713 = vunpack.c.l.b16 %v8412
    %v8714 = vunpack.c.h.b16 %v8412
    %v8715 = vunpack.c.l.b16 %v8413
    %v8716 = vunpack.c.h.b16 %v8413
    %v8717 = vunpack.c.l.b16 %v8414
    %v8718 = vunpack.c.h.b16 %v8414
    %v8719 = vunpack.c.l.b16 %v8415
    %v8720 = vunpack.c.h.b16 %v8415
    %v8721 = vunpack.c.l.b16 %v8416
    %v8722 = vunpack.c.h.b16 %v8416
    %v8723 = vunpack.c.l.b16 %v8417
    %v8724 = vunpack.c.h.b16 %v8417
    %v8725 = vunpack.c.l.b16 %v8418
    %v8726 = vunpack.c.h.b16 %v8418
    %v8727 = vunpack.c.l.b16 %v8419
    %v8728 = vunpack.c.h.b16 %v8419
    %v8729 = vunpack.c.l.b16 %v8420
    %v8730 = vunpack.c.h.b16 %v8420
    %v8731 = vunpack.c.l.b16 %v8421
    %v8732 = vunpack.c.h.b16 %v8421
    %v8733 = vunpack.c.l.b16 %v8422
    %v8734 = vunpack.c.h.b16 %v8422
    %v8735 = vunpack.c.l.b16 %v8423
    %v8736 = vunpack.c.h.b16 %v8423
    %v8737 = vunpack.c.l.b16 %v8424
    %v8738 = vunpack.c.h.b16 %v8424
    %v8739 = vunpack.c.l.b16 %v8425
    %v8740 = vunpack.c.h.b16 %v8425
    %v8741 = vunpack.c.l.b16 %v8426
    %v8742 = vunpack.c.h.b16 %v8426
    %v8743 = vunpack.c.l.b16 %v8427
    %v8744 = vunpack.c.h.b16 %v8427
    %v8745 = vunpack.c.l.b16 %v8428
    %v8746 = vunpack.c.h.b16 %v8428
    %v8747 = vunpack.c.l.b16 %v8429
    %v8748 = vunpack.c.h.b16 %v8429
    %v8749 = vunpack.c.l.b16 %v8430
    %v8750 = vunpack.c.h.b16 %v8430
    %v8751 = vunpack.c.l.b16 %v8431
    %v8752 = vunpack.c.h.b16 %v8431
    %v8753 = vunpack.c.l.b16 %v8432
    %v8754 = vunpack.c.h.b16 %v8432
    %v8755 = vunpack.c.l.b16 %v8433
    %v8756 = vunpack.c.h.b16 %v8433
    %v8757 = vunpack.c.l.b16 %v8434
    %v8758 = vunpack.c.h.b16 %v8434
    %v8759 = vunpack.c.l.b16 %v8435
    %v8760 = vunpack.c.h.b16 %v8435
    %v8761 = vunpack.c.l.b16 %v8436
    %v8762 = vunpack.c.h.b16 %v8436
    %v8763 = vunpack.c.l.b16 %v8437
    %v8764 = vunpack.c.h.b16 %v8437
    %v8765 = vunpack.c.l.b16 %v8438
    %v8766 = vunpack.c.h.b16 %v8438
    %v8767 = vunpack.c.l.b16 %v8439
    %v8768 = vunpack.c.h.b16 %v8439
    %v8769 = vunpack.c.l.b16 %v8440
    %v8770 = vunpack.c.h.b16 %v8440
    %v8771 = vunpack.c.l.b16 %v8441
    %v8772 = vunpack.c.h.b16 %v8441
    %v8773 = vunpack.c.l.b16 %v8442
    %v8774 = vunpack.c.h.b16 %v8442
    %v8775 = vunpack.c.l.b16 %v8443
    %v8776 = vunpack.c.h.b16 %v8443
    %v8777 = vunpack.c.l.b16 %v8444
    %v8778 = vunpack.c.h.b16 %v8444
    %v8779 = vunpack.c.l.b16 %v8445
    %v8780 = vunpack.c.h.b16 %v8445
    %v8781 = vunpack.c.l.b16 %v8446
    %v8782 = vunpack.c.h.b16 %v8446
    %v8783 = vunpack.c.l.b16 %v8447
    %v8784 = vunpack.c.h.b16 %v8447
    %v8785 = vunpack.c.l.b16 %v8448
    %v8786 = vunpack.c.h.b16 %v8448
    %v8787 = vunpack.c.l.b16 %v8449
    %v8788 = vunpack.c.h.b16 %v8449
    %v8789 = vunpack.c.l.b16 %v8450
    %v8790 = vunpack.c.h.b16 %v8450
    %v8791 = vunpack.c.l.b16 %v8451
    %v8792 = vunpack.c.h.b16 %v8451
    %v8793 = vunpack.c.l.b16 %v8452
    %v8794 = vunpack.c.h.b16 %v8452
    %v8795 = vunpack.c.l.b16 %v8453
    %v8796 = vunpack.c.h.b16 %v8453
    %v8797 = vunpack.c.l.b16 %v8454
    %v8798 = vunpack.c.h.b16 %v8454
    %v8799 = vunpack.c.l.b16 %v8455
    %v8800 = vunpack.c.h.b16 %v8455
    %v8801 = vunpack.c.l.b16 %v8456
    %v8802 = vunpack.c.h.b16 %v8456
    %v8803 = vunpack.c.l.b16 %v8457
    %v8804 = vunpack.c.h.b16 %v8457
    %v8805 = vunpack.c.l.b16 %v8458
    %v8806 = vunpack.c.h.b16 %v8458
    %v8807 = vunpack.c.l.b16 %v8459
    %v8808 = vunpack.c.h.b16 %v8459
    %v8809 = vunpack.c.l.b16 %v8460
    %v8810 = vunpack.c.h.b16 %v8460
    %v8811 = vunpack.c.l.b16 %v8461
    %v8812 = vunpack.c.h.b16 %v8461
    %v8813 = vunpack.c.l.b16 %v8462
    %v8814 = vunpack.c.h.b16 %v8462
    %v8815 = vunpack.c.l.b16 %v8463
    %v8816 = vunpack.c.h.b16 %v8463
    %v8817 = vunpack.c.l.b16 %v8464
    %v8818 = vunpack.c.h.b16 %v8464
    %v8819 = vunpack.c.l.b16 %v8465
    %v8820 = vunpack.c.h.b16 %v8465
    %v8821 = vunpack.c.l.b16 %v8466
    %v8822 = vunpack.c.h.b16 %v8466
    %v8823 = vunpack.c.l.b16 %v8467
    %v8824 = vunpack.c.h.b16 %v8467
    %v8825 = vunpack.c.l.b16 %v8468
    %v8826 = vunpack.c.h.b16 %v8468
    %v8827 = vunpack.c.l.b16 %v8469
    %v8828 = vunpack.c.h.b16 %v8469
    %v8829 = vunpack.c.l.b16 %v8470
    %v8830 = vunpack.c.h.b16 %v8470
    %v8831 = vunpack.c.l.b16 %v8471
    %v8832 = vunpack.c.h.b16 %v8471
    %v8833 = vunpack.c.l.b16 %v8472
    %v8834 = vunpack.c.h.b16 %v8472
    %v8835 = vunpack.c.l.b16 %v8473
    %v8836 = vunpack.c.h.b16 %v8473
    %v8837 = vunpack.c.l.b16 %v8474
    %v8838 = vunpack.c.h.b16 %v8474
    %v8839 = vunpack.c.l.b16 %v8475
    %v8840 = vunpack.c.h.b16 %v8475
    %v8841 = vunpack.c.l.b16 %v8476
    %v8842 = vunpack.c.h.b16 %v8476
    %v8843 = vunpack.c.l.b16 %v8477
    %v8844 = vunpack.c.h.b16 %v8477
    %v8845 = vunpack.c.l.b16 %v8478
    %v8846 = vunpack.c.h.b16 %v8478
    %v8847 = vunpack.c.l.b16 %v8479
    %v8848 = vunpack.c.h.b16 %v8479
    %v8849 = vunpack.c.l.b16 %v8480
    %v8850 = vunpack.c.h.b16 %v8480
    %v8851 = vunpack.c.l.b16 %v8481
    %v8852 = vunpack.c.h.b16 %v8481
    %v8853 = vunpack.c.l.b16 %v8482
    %v8854 = vunpack.c.h.b16 %v8482
    %v8855 = vunpack.c.l.b16 %v8483
    %v8856 = vunpack.c.h.b16 %v8483
    %v8857 = vunpack.c.l.b16 %v8484
    %v8858 = vunpack.c.h.b16 %v8484
    %v8859 = vunpack.c.l.b16 %v8485
    %v8860 = vunpack.c.h.b16 %v8485
    %v8861 = vunpack.c.l.b16 %v8486
    %v8862 = vunpack.c.h.b16 %v8486
    %v8863 = vunpack.c.l.b16 %v8487
    %v8864 = vunpack.c.h.b16 %v8487
    %v8865 = vunpack.c.l.b16 %v8488
    %v8866 = vunpack.c.h.b16 %v8488
    %v8867 = vunpack.c.l.b16 %v8489
    %v8868 = vunpack.c.h.b16 %v8489
    %v8869 = vunpack.c.l.b16 %v8490
    %v8870 = vunpack.c.h.b16 %v8490
    %v8871 = vunpack.c.l.b16 %v8491
    %v8872 = vunpack.c.h.b16 %v8491
    %v8873 = vunpack.c.l.b16 %v8492
    %v8874 = vunpack.c.h.b16 %v8492
    %v8875 = vunpack.c.l.b16 %v8493
    %v8876 = vunpack.c.h.b16 %v8493
    %v8877 = vunpack.c.l.b16 %v8494
    %v8878 = vunpack.c.h.b16 %v8494
    %v8879 = vunpack.c.l.b16 %v8495
    %v8880 = vunpack.c.h.b16 %v8495
    %v8881 = vunpack.c.l.b16 %v8496
    %v8882 = vunpack.c.h.b16 %v8496
    %v8883 = vunpack.c.l.b16 %v8497
    %v8884 = vunpack.c.h.b16 %v8497
    %v8885 = vunpack.c.l.b16 %v8498
    %v8886 = vunpack.c.h.b16 %v8498
    %v8887 = vunpack.c.l.b16 %v8499
    %v8888 = vunpack.c.h.b16 %v8499
    %v8889 = vunpack.c.l.b16 %v8500
    %v8890 = vunpack.c.h.b16 %v8500
    %v8891 = vunpack.c.l.b16 %v8501
    %v8892 = vunpack.c.h.b16 %v8501
    %v8893 = vunpack.c.l.b16 %v8502
    %v8894 = vunpack.c.h.b16 %v8502
    %v8895 = vunpack.c.l.b16 %v8503
    %v8896 = vunpack.c.h.b16 %v8503
    %v8897 = vunpack.c.l.b16 %v8504
    %v8898 = vunpack.c.h.b16 %v8504
    %v8899 = vpack.c.b16 %v8647, %v8643
    %v8900 = vpack.c.b16 %v8648, %v8644
    %v8901 = vpack.c.b16 %v8649, %v8645
    %v8902 = vpack.c.b16 %v8650, %v8646
    %v8903 = vpack.c.b16 %v8655, %v8651
    %v8904 = vpack.c.b16 %v8656, %v8652
    %v8905 = vpack.c.b16 %v8657, %v8653
    %v8906 = vpack.c.b16 %v8658, %v8654
    %v8907 = vpack.c.b16 %v8663, %v8659
    %v8908 = vpack.c.b16 %v8664, %v8660
    %v8909 = vpack.c.b16 %v8665, %v8661
    %v8910 = vpack.c.b16 %v8666, %v8662
    %v8911 = vpack.c.b16 %v8671, %v8667
    %v8912 = vpack.c.b16 %v8672, %v8668
    %v8913 = vpack.c.b16 %v8673, %v8669
    %v8914 = vpack.c.b16 %v8674, %v8670
    %v8915 = vpack.c.b16 %v8679, %v8675
    %v8916 = vpack.c.b16 %v8680, %v8676
    %v8917 = vpack.c.b16 %v8681, %v8677
    %v8918 = vpack.c.b16 %v8682, %v8678
    %v8919 = vpack.c.b16 %v8687, %v8683
    %v8920 = vpack.c.b16 %v8688, %v8684
    %v8921 = vpack.c.b16 %v8689, %v8685
    %v8922 = vpack.c.b16 %v8690, %v8686
    %v8923 = vpack.c.b16 %v8695, %v8691
    %v8924 = vpack.c.b16 %v8696, %v8692
    %v8925 = vpack.c.b16 %v8697, %v8693
    %v8926 = vpack.c.b16 %v8698, %v8694
    %v8927 = vpack.c.b16 %v8703, %v8699
    %v8928 = vpack.c.b16 %v8704, %v8700
    %v8929 = vpack.c.b16 %v8705, %v8701
    %v8930 = vpack.c.b16 %v8706, %v8702
    %v8931 = vpack.c.b16 %v8711, %v8707
    %v8932 = vpack.c.b16 %v8712, %v8708
    %v8933 = vpack.c.b16 %v8713, %v8709
    %v8934 = vpack.c.b16 %v8714, %v8710
    %v8935 = vpack.c.b16 %v8719, %v8715
    %v8936 = vpack.c.b16 %v8720, %v8716
    %v8937 = vpack.c.b16 %v8721, %v8717
    %v8938 = vpack.c.b16 %v8722, %v8718
    %v8939 = vpack.c.b16 %v8727, %v8723
    %v8940 = vpack.c.b16 %v8728, %v8724
    %v8941 = vpack.c.b16 %v8729, %v8725
    %v8942 = vpack.c.b16 %v8730, %v8726
    %v8943 = vpack.c.b16 %v8735, %v8731
    %v8944 = vpack.c.b16 %v8736, %v8732
    %v8945 = vpack.c.b16 %v8737, %v8733
    %v8946 = vpack.c.b16 %v8738, %v8734
    %v8947 = vpack.c.b16 %v8743, %v8739
    %v8948 = vpack.c.b16 %v8744, %v8740
    %v8949 = vpack.c.b16 %v8745, %v8741
    %v8950 = vpack.c.b16 %v8746, %v8742
    %v8951 = vpack.c.b16 %v8751, %v8747
    %v8952 = vpack.c.b16 %v8752, %v8748
    %v8953 = vpack.c.b16 %v8753, %v8749
    %v8954 = vpack.c.b16 %v8754, %v8750
    %v8955 = vpack.c.b16 %v8759, %v8755
    %v8956 = vpack.c.b16 %v8760, %v8756
    %v8957 = vpack.c.b16 %v8761, %v8757
    %v8958 = vpack.c.b16 %v8762, %v8758
    %v8959 = vpack.c.b16 %v8767, %v8763
    %v8960 = vpack.c.b16 %v8768, %v8764
    %v8961 = vpack.c.b16 %v8769, %v8765
    %v8962 = vpack.c.b16 %v8770, %v8766
    %v8963 = vpack.c.b16 %v8775, %v8771
    %v8964 = vpack.c.b16 %v8776, %v8772
    %v8965 = vpack.c.b16 %v8777, %v8773
    %v8966 = vpack.c.b16 %v8778, %v8774
    %v8967 = vpack.c.b16 %v8783, %v8779
    %v8968 = vpack.c.b16 %v8784, %v8780
    %v8969 = vpack.c.b16 %v8785, %v8781
    %v8970 = vpack.c.b16 %v8786, %v8782
    %v8971 = vpack.c.b16 %v8791, %v8787
    %v8972 = vpack.c.b16 %v8792, %v8788
    %v8973 = vpack.c.b16 %v8793, %v8789
    %v8974 = vpack.c.b16 %v8794, %v8790
    %v8975 = vpack.c.b16 %v8799, %v8795
    %v8976 = vpack.c.b16 %v8800, %v8796
    %v8977 = vpack.c.b16 %v8801, %v8797
    %v8978 = vpack.c.b16 %v8802, %v8798
    %v8979 = vpack.c.b16 %v8807, %v8803
    %v8980 = vpack.c.b16 %v8808, %v8804
    %v8981 = vpack.c.b16 %v8809, %v8805
    %v8982 = vpack.c.b16 %v8810, %v8806
    %v8983 = vpack.c.b16 %v8815, %v8811
    %v8984 = vpack.c.b16 %v8816, %v8812
    %v8985 = vpack.c.b16 %v8817, %v8813
    %v8986 = vpack.c.b16 %v8818, %v8814
    %v8987 = vpack.c.b16 %v8823, %v8819
    %v8988 = vpack.c.b16 %v8824, %v8820
    %v8989 = vpack.c.b16 %v8825, %v8821
    %v8990 = vpack.c.b16 %v8826, %v8822
    %v8991 = vpack.c.b16 %v8831, %v8827
    %v8992 = vpack.c.b16 %v8832, %v8828
    %v8993 = vpack.c.b16 %v8833, %v8829
    %v8994 = vpack.c.b16 %v8834, %v8830
    %v8995 = vpack.c.b16 %v8839, %v8835
    %v8996 = vpack.c.b16 %v8840, %v8836
    %v8997 = vpack.c.b16 %v8841, %v8837
    %v8998 = vpack.c.b16 %v8842, %v8838
    %v8999 = vpack.c.b16 %v8847, %v8843
    %v9000 = vpack.c.b16 %v8848, %v8844
    %v9001 = vpack.c.b16 %v8849, %v8845
    %v9002 = vpack.c.b16 %v8850, %v8846
    %v9003 = vpack.c.b16 %v8855, %v8851
    %v9004 = vpack.c.b16 %v8856, %v8852
    %v9005 = vpack.c.b16 %v8857, %v8853
    %v9006 = vpack.c.b16 %v8858, %v8854
    %v9007 = vpack.c.b16 %v8863, %v8859
    %v9008 = vpack.c.b16 %v8864, %v8860
    %v9009 = vpack.c.b16 %v8865, %v8861
    %v9010 = vpack.c.b16 %v8866, %v8862
    %v9011 = vpack.c.b16 %v8871, %v8867
    %v9012 = vpack.c.b16 %v8872, %v8868
    %v9013 = vpack.c.b16 %v8873, %v8869
    %v9014 = vpack.c.b16 %v8874, %v8870
    %v9015 = vpack.c.b16 %v8879, %v8875
    %v9016 = vpack.c.b16 %v8880, %v8876
    %v9017 = vpack.c.b16 %v8881, %v8877
    %v9018 = vpack.c.b16 %v8882, %v8878
    %v9019 = vpack.c.b16 %v8887, %v8883
    %v9020 = vpack.c.b16 %v8888, %v8884
    %v9021 = vpack.c.b16 %v8889, %v8885
    %v9022 = vpack.c.b16 %v8890, %v8886
    %v9023 = vpack.c.b16 %v8895, %v8891
    %v9024 = vpack.c.b16 %v8896, %v8892
    %v9025 = vpack.c.b16 %v8897, %v8893
    %v9026 = vpack.c.b16 %v8898, %v8894
    %9155 = vmatpush.bf16.msra.mxu0 %v8927
    %9156 = vmatpush.bf16.msra.mxu0 %v8923
    %9157 = vmatpush.bf16.msra.mxu0 %v8919
    %9158 = vmatpush.bf16.msra.mxu0 %v8915
    %9159 = vmatpush.bf16.msra.mxu0 %v8911
    %9160 = vmatpush.bf16.msra.mxu0 %v8907
    %9161 = vmatpush.bf16.msra.mxu0 %v8903
    %9162 = vmatpush.bf16.msra.mxu0 %v8899
    %9163 = vmatmul.bf16.gmra.mxu0 %v8373
    %v9164 = vpop.f32.mrf.mxu0
    %v9165 = vadd.f32 %v8507, %v9164
    %v9166 = vpop.f32.mrf.mxu0
    %9167 = vdwg.mxu0
    %9168 = vmatpush.bf16.msra.mxu0 %v8959
    %9169 = vmatpush.bf16.msra.mxu0 %v8955
    %9170 = vmatpush.bf16.msra.mxu0 %v8951
    %9171 = vmatpush.bf16.msra.mxu0 %v8947
    %9172 = vmatpush.bf16.msra.mxu0 %v8943
    %9173 = vmatpush.bf16.msra.mxu0 %v8939
    %9174 = vmatpush.bf16.msra.mxu0 %v8935
    %9175 = vmatpush.bf16.msra.mxu0 %v8931
    %9176 = vmatmul.bf16.gmra.mxu0 %v8374
    %v9177 = vpop.f32.mrf.mxu0
    %v9178 = vadd.f32 %v9165, %v9177
    %v9179 = vpop.f32.mrf.mxu0
    %9180 = vdwg.mxu0
    %9181 = vmatpush.bf16.msra.mxu0 %v8991
    %9182 = vmatpush.bf16.msra.mxu0 %v8987
    %9183 = vmatpush.bf16.msra.mxu0 %v8983
    %9184 = vmatpush.bf16.msra.mxu0 %v8979
    %9185 = vmatpush.bf16.msra.mxu0 %v8975
    %9186 = vmatpush.bf16.msra.mxu0 %v8971
    %9187 = vmatpush.bf16.msra.mxu0 %v8967
    %9188 = vmatpush.bf16.msra.mxu0 %v8963
    %9189 = vmatmul.bf16.gmra.mxu0 %v8375
    %v9190 = vpop.f32.mrf.mxu0
    %v9191 = vadd.f32 %v9178, %v9190
    %v9192 = vpop.f32.mrf.mxu0
    %9193 = vdwg.mxu0
    %9194 = vmatpush.bf16.msra.mxu0 %v9023
    %9195 = vmatpush.bf16.msra.mxu0 %v9019
    %9196 = vmatpush.bf16.msra.mxu0 %v9015
    %9197 = vmatpush.bf16.msra.mxu0 %v9011
    %9198 = vmatpush.bf16.msra.mxu0 %v9007
    %9199 = vmatpush.bf16.msra.mxu0 %v9003
    %9200 = vmatpush.bf16.msra.mxu0 %v8999
    %9201 = vmatpush.bf16.msra.mxu0 %v8995
    %9202 = vmatmul.bf16.gmra.mxu0 %v8376
    %v9203 = vpop.f32.mrf.mxu0
    %v9204 = vadd.f32 %v9191, %v9203
    %v9205 = vpop.f32.mrf.mxu0
    %9206 = vdwg.mxu0
    %9207 = vmatpush.bf16.msra.mxu0 %v8928
    %9208 = vmatpush.bf16.msra.mxu0 %v8924
    %9209 = vmatpush.bf16.msra.mxu0 %v8920
    %9210 = vmatpush.bf16.msra.mxu0 %v8916
    %9211 = vmatpush.bf16.msra.mxu0 %v8912
    %9212 = vmatpush.bf16.msra.mxu0 %v8908
    %9213 = vmatpush.bf16.msra.mxu0 %v8904
    %9214 = vmatpush.bf16.msra.mxu0 %v8900
    %9215 = vmatmul.bf16.gmra.mxu0 %v8373
    %v9216 = vpop.f32.mrf.mxu0
    %v9217 = vadd.f32 %v8508, %v9216
    %v9218 = vpop.f32.mrf.mxu0
    %9219 = vdwg.mxu0
    %9220 = vmatpush.bf16.msra.mxu0 %v8960
    %9221 = vmatpush.bf16.msra.mxu0 %v8956
    %9222 = vmatpush.bf16.msra.mxu0 %v8952
    %9223 = vmatpush.bf16.msra.mxu0 %v8948
    %9224 = vmatpush.bf16.msra.mxu0 %v8944
    %9225 = vmatpush.bf16.msra.mxu0 %v8940
    %9226 = vmatpush.bf16.msra.mxu0 %v8936
    %9227 = vmatpush.bf16.msra.mxu0 %v8932
    %9228 = vmatmul.bf16.gmra.mxu0 %v8374
    %v9229 = vpop.f32.mrf.mxu0
    %v9230 = vadd.f32 %v9217, %v9229
    %v9231 = vpop.f32.mrf.mxu0
    %9232 = vdwg.mxu0
    %9233 = vmatpush.bf16.msra.mxu0 %v8992
    %9234 = vmatpush.bf16.msra.mxu0 %v8988
    %9235 = vmatpush.bf16.msra.mxu0 %v8984
    %9236 = vmatpush.bf16.msra.mxu0 %v8980
    %9237 = vmatpush.bf16.msra.mxu0 %v8976
    %9238 = vmatpush.bf16.msra.mxu0 %v8972
    %9239 = vmatpush.bf16.msra.mxu0 %v8968
    %9240 = vmatpush.bf16.msra.mxu0 %v8964
    %9241 = vmatmul.bf16.gmra.mxu0 %v8375
    %v9242 = vpop.f32.mrf.mxu0
    %v9243 = vadd.f32 %v9230, %v9242
    %v9244 = vpop.f32.mrf.mxu0
    %9245 = vdwg.mxu0
    %9246 = vmatpush.bf16.msra.mxu0 %v9024
    %9247 = vmatpush.bf16.msra.mxu0 %v9020
    %9248 = vmatpush.bf16.msra.mxu0 %v9016
    %9249 = vmatpush.bf16.msra.mxu0 %v9012
    %9250 = vmatpush.bf16.msra.mxu0 %v9008
    %9251 = vmatpush.bf16.msra.mxu0 %v9004
    %9252 = vmatpush.bf16.msra.mxu0 %v9000
    %9253 = vmatpush.bf16.msra.mxu0 %v8996
    %9254 = vmatmul.bf16.gmra.mxu0 %v8376
    %v9255 = vpop.f32.mrf.mxu0
    %v9256 = vadd.f32 %v9243, %v9255
    %v9257 = vpop.f32.mrf.mxu0
    %9258 = vdwg.mxu0
    %9259 = vmatpush.bf16.msra.mxu0 %v8929
    %9260 = vmatpush.bf16.msra.mxu0 %v8925
    %9261 = vmatpush.bf16.msra.mxu0 %v8921
    %9262 = vmatpush.bf16.msra.mxu0 %v8917
    %9263 = vmatpush.bf16.msra.mxu0 %v8913
    %9264 = vmatpush.bf16.msra.mxu0 %v8909
    %9265 = vmatpush.bf16.msra.mxu0 %v8905
    %9266 = vmatpush.bf16.msra.mxu0 %v8901
    %9267 = vmatmul.bf16.gmra.mxu0 %v8373
    %v9268 = vpop.f32.mrf.mxu0
    %v9269 = vadd.f32 %v8509, %v9268
    %v9270 = vpop.f32.mrf.mxu0
    %9271 = vdwg.mxu0
    %9272 = vmatpush.bf16.msra.mxu0 %v8961
    %9273 = vmatpush.bf16.msra.mxu0 %v8957
    %9274 = vmatpush.bf16.msra.mxu0 %v8953
    %9275 = vmatpush.bf16.msra.mxu0 %v8949
    %9276 = vmatpush.bf16.msra.mxu0 %v8945
    %9277 = vmatpush.bf16.msra.mxu0 %v8941
    %9278 = vmatpush.bf16.msra.mxu0 %v8937
    %9279 = vmatpush.bf16.msra.mxu0 %v8933
    %9280 = vmatmul.bf16.gmra.mxu0 %v8374
    %v9281 = vpop.f32.mrf.mxu0
    %v9282 = vadd.f32 %v9269, %v9281
    %v9283 = vpop.f32.mrf.mxu0
    %9284 = vdwg.mxu0
    %9285 = vmatpush.bf16.msra.mxu0 %v8993
    %9286 = vmatpush.bf16.msra.mxu0 %v8989
    %9287 = vmatpush.bf16.msra.mxu0 %v8985
    %9288 = vmatpush.bf16.msra.mxu0 %v8981
    %9289 = vmatpush.bf16.msra.mxu0 %v8977
    %9290 = vmatpush.bf16.msra.mxu0 %v8973
    %9291 = vmatpush.bf16.msra.mxu0 %v8969
    %9292 = vmatpush.bf16.msra.mxu0 %v8965
    %9293 = vmatmul.bf16.gmra.mxu0 %v8375
    %v9294 = vpop.f32.mrf.mxu0
    %v9295 = vadd.f32 %v9282, %v9294
    %v9296 = vpop.f32.mrf.mxu0
    %9297 = vdwg.mxu0
    %9298 = vmatpush.bf16.msra.mxu0 %v9025
    %9299 = vmatpush.bf16.msra.mxu0 %v9021
    %9300 = vmatpush.bf16.msra.mxu0 %v9017
    %9301 = vmatpush.bf16.msra.mxu0 %v9013
    %9302 = vmatpush.bf16.msra.mxu0 %v9009
    %9303 = vmatpush.bf16.msra.mxu0 %v9005
    %9304 = vmatpush.bf16.msra.mxu0 %v9001
    %9305 = vmatpush.bf16.msra.mxu0 %v8997
    %9306 = vmatmul.bf16.gmra.mxu0 %v8376
    %v9307 = vpop.f32.mrf.mxu0
    %v9308 = vadd.f32 %v9295, %v9307
    %v9309 = vpop.f32.mrf.mxu0
    %9310 = vdwg.mxu0
    %9311 = vmatpush.bf16.msra.mxu0 %v8930
    %9312 = vmatpush.bf16.msra.mxu0 %v8926
    %9313 = vmatpush.bf16.msra.mxu0 %v8922
    %9314 = vmatpush.bf16.msra.mxu0 %v8918
    %9315 = vmatpush.bf16.msra.mxu0 %v8914
    %9316 = vmatpush.bf16.msra.mxu0 %v8910
    %9317 = vmatpush.bf16.msra.mxu0 %v8906
    %9318 = vmatpush.bf16.msra.mxu0 %v8902
    %9319 = vmatmul.bf16.gmra.mxu0 %v8373
    %v9320 = vpop.f32.mrf.mxu0
    %v9321 = vadd.f32 %v8510, %v9320
    %v9322 = vpop.f32.mrf.mxu0
    %9323 = vdwg.mxu0
    %9324 = vmatpush.bf16.msra.mxu0 %v8962
    %9325 = vmatpush.bf16.msra.mxu0 %v8958
    %9326 = vmatpush.bf16.msra.mxu0 %v8954
    %9327 = vmatpush.bf16.msra.mxu0 %v8950
    %9328 = vmatpush.bf16.msra.mxu0 %v8946
    %9329 = vmatpush.bf16.msra.mxu0 %v8942
    %9330 = vmatpush.bf16.msra.mxu0 %v8938
    %9331 = vmatpush.bf16.msra.mxu0 %v8934
    %9332 = vmatmul.bf16.gmra.mxu0 %v8374
    %v9333 = vpop.f32.mrf.mxu0
    %v9334 = vadd.f32 %v9321, %v9333
    %v9335 = vpop.f32.mrf.mxu0
    %9336 = vdwg.mxu0
    %9337 = vmatpush.bf16.msra.mxu0 %v8994
    %9338 = vmatpush.bf16.msra.mxu0 %v8990
    %9339 = vmatpush.bf16.msra.mxu0 %v8986
    %9340 = vmatpush.bf16.msra.mxu0 %v8982
    %9341 = vmatpush.bf16.msra.mxu0 %v8978
    %9342 = vmatpush.bf16.msra.mxu0 %v8974
    %9343 = vmatpush.bf16.msra.mxu0 %v8970
    %9344 = vmatpush.bf16.msra.mxu0 %v8966
    %9345 = vmatmul.bf16.gmra.mxu0 %v8375
    %v9346 = vpop.f32.mrf.mxu0
    %v9347 = vadd.f32 %v9334, %v9346
    %v9348 = vpop.f32.mrf.mxu0
    %9349 = vdwg.mxu0
    %9350 = vmatpush.bf16.msra.mxu0 %v9026
    %9351 = vmatpush.bf16.msra.mxu0 %v9022
    %9352 = vmatpush.bf16.msra.mxu0 %v9018
    %9353 = vmatpush.bf16.msra.mxu0 %v9014
    %9354 = vmatpush.bf16.msra.mxu0 %v9010
    %9355 = vmatpush.bf16.msra.mxu0 %v9006
    %9356 = vmatpush.bf16.msra.mxu0 %v9002
    %9357 = vmatpush.bf16.msra.mxu0 %v8998
    %9358 = vmatmul.bf16.gmra.mxu0 %v8376
    %v9359 = vpop.f32.mrf.mxu0
    %v9360 = vadd.f32 %v9347, %v9359
    %v9361 = vpop.f32.mrf.mxu0
    %9362 = vdwg.mxu0
    %vm9363 = vcmp.gt.f32.partialorder %v9204, 0.0
    %vm9364 = vcmp.gt.f32.partialorder %v9256, 0.0
    %vm9365 = vcmp.gt.f32.partialorder %v9308, 0.0
    %vm9366 = vcmp.gt.f32.partialorder %v9360, 0.0
    %v9367 = vmul.f32 %v9204, 0.2
    %v9368 = vmul.f32 %v9256, 0.2
    %v9369 = vmul.f32 %v9308, 0.2
    %v9370 = vmul.f32 %v9360, 0.2
    %v9371 = vsel %vm9363, %v9204, %v9367
    %v9372 = vsel %vm9364, %v9256, %v9368
    %v9373 = vsel %vm9365, %v9308, %v9369
    %v9374 = vsel %vm9366, %v9360, %v9370
    %v9375 = vpack.c.bf16 %v9371, %v9371
    %v9376 = vpack.c.bf16 %v9372, %v9372
    %v9377 = vpack.c.bf16 %v9373, %v9373
    %v9378 = vpack.c.bf16 %v9374, %v9374
    %v9379 = vld [vmem:[#allocation14] sm:$0xff]
    %v9380 = vld [vmem:[#allocation14 + $0x8] sm:$0xff]
    %v9381 = vld [vmem:[#allocation14 + $0x10] sm:$0xff]
    %v9382 = vld [vmem:[#allocation14 + $0x18] sm:$0xff]
    %v9383 = vld [vmem:[#allocation14 + $0x20] sm:$0xff]
    %v9384 = vld [vmem:[#allocation14 + $0x28] sm:$0xff]
    %v9385 = vld [vmem:[#allocation14 + $0x30] sm:$0xff]
    %v9386 = vld [vmem:[#allocation14 + $0x38] sm:$0xff]
    %v9387 = vld [vmem:[#allocation14 + $0x40] sm:$0xff]
    %v9388 = vld [vmem:[#allocation14 + $0x48] sm:$0xff]
    %v9389 = vld [vmem:[#allocation14 + $0x50] sm:$0xff]
    %v9390 = vld [vmem:[#allocation14 + $0x58] sm:$0xff]
    %v9391 = vld [vmem:[#allocation14 + $0x60] sm:$0xff]
    %v9392 = vld [vmem:[#allocation14 + $0x68] sm:$0xff]
    %v9393 = vld [vmem:[#allocation14 + $0x70] sm:$0xff]
    %v9394 = vld [vmem:[#allocation14 + $0x78] sm:$0xff]
    %v9395 = vld [vmem:[#allocation14 + $0x80] sm:$0xff]
    %v9396 = vld [vmem:[#allocation14 + $0x88] sm:$0xff]
    %v9397 = vld [vmem:[#allocation14 + $0x90] sm:$0xff]
    %v9398 = vld [vmem:[#allocation14 + $0x98] sm:$0xff]
    %v9399 = vld [vmem:[#allocation14 + $0xa0] sm:$0xff]
    %v9400 = vld [vmem:[#allocation14 + $0xa8] sm:$0xff]
    %v9401 = vld [vmem:[#allocation14 + $0xb0] sm:$0xff]
    %v9402 = vld [vmem:[#allocation14 + $0xb8] sm:$0xff]
    %v9403 = vld [vmem:[#allocation14 + $0xc0] sm:$0xff]
    %v9404 = vld [vmem:[#allocation14 + $0xc8] sm:$0xff]
    %v9405 = vld [vmem:[#allocation14 + $0xd0] sm:$0xff]
    %v9406 = vld [vmem:[#allocation14 + $0xd8] sm:$0xff]
    %v9407 = vld [vmem:[#allocation14 + $0xe0] sm:$0xff]
    %v9408 = vld [vmem:[#allocation14 + $0xe8] sm:$0xff]
    %v9409 = vld [vmem:[#allocation14 + $0xf0] sm:$0xff]
    %v9410 = vld [vmem:[#allocation14 + $0xf8] sm:$0xff]
    %v9411 = vld [vmem:[#allocation14 + $0x100] sm:$0xff]
    %v9412 = vld [vmem:[#allocation14 + $0x108] sm:$0xff]
    %v9413 = vld [vmem:[#allocation14 + $0x110] sm:$0xff]
    %v9414 = vld [vmem:[#allocation14 + $0x118] sm:$0xff]
    %v9415 = vld [vmem:[#allocation14 + $0x120] sm:$0xff]
    %v9416 = vld [vmem:[#allocation14 + $0x128] sm:$0xff]
    %v9417 = vld [vmem:[#allocation14 + $0x130] sm:$0xff]
    %v9418 = vld [vmem:[#allocation14 + $0x138] sm:$0xff]
    %v9419 = vld [vmem:[#allocation14 + $0x140] sm:$0xff]
    %v9420 = vld [vmem:[#allocation14 + $0x148] sm:$0xff]
    %v9421 = vld [vmem:[#allocation14 + $0x150] sm:$0xff]
    %v9422 = vld [vmem:[#allocation14 + $0x158] sm:$0xff]
    %v9423 = vld [vmem:[#allocation14 + $0x160] sm:$0xff]
    %v9424 = vld [vmem:[#allocation14 + $0x168] sm:$0xff]
    %v9425 = vld [vmem:[#allocation14 + $0x170] sm:$0xff]
    %v9426 = vld [vmem:[#allocation14 + $0x178] sm:$0xff]
    %v9427 = vld [vmem:[#allocation14 + $0x180] sm:$0xff]
    %v9428 = vld [vmem:[#allocation14 + $0x188] sm:$0xff]
    %v9429 = vld [vmem:[#allocation14 + $0x190] sm:$0xff]
    %v9430 = vld [vmem:[#allocation14 + $0x198] sm:$0xff]
    %v9431 = vld [vmem:[#allocation14 + $0x1a0] sm:$0xff]
    %v9432 = vld [vmem:[#allocation14 + $0x1a8] sm:$0xff]
    %v9433 = vld [vmem:[#allocation14 + $0x1b0] sm:$0xff]
    %v9434 = vld [vmem:[#allocation14 + $0x1b8] sm:$0xff]
    %v9435 = vld [vmem:[#allocation14 + $0x1c0] sm:$0xff]
    %v9436 = vld [vmem:[#allocation14 + $0x1c8] sm:$0xff]
    %v9437 = vld [vmem:[#allocation14 + $0x1d0] sm:$0xff]
    %v9438 = vld [vmem:[#allocation14 + $0x1d8] sm:$0xff]
    %v9439 = vld [vmem:[#allocation14 + $0x1e0] sm:$0xff]
    %v9440 = vld [vmem:[#allocation14 + $0x1e8] sm:$0xff]
    %v9441 = vld [vmem:[#allocation14 + $0x1f0] sm:$0xff]
    %v9442 = vld [vmem:[#allocation14 + $0x1f8] sm:$0xff]
    %v9443 = vld [vmem:[#allocation14 + $0x200] sm:$0xff]
    %v9444 = vld [vmem:[#allocation14 + $0x208] sm:$0xff]
    %v9445 = vld [vmem:[#allocation14 + $0x210] sm:$0xff]
    %v9446 = vld [vmem:[#allocation14 + $0x218] sm:$0xff]
    %v9447 = vld [vmem:[#allocation14 + $0x220] sm:$0xff]
    %v9448 = vld [vmem:[#allocation14 + $0x228] sm:$0xff]
    %v9449 = vld [vmem:[#allocation14 + $0x230] sm:$0xff]
    %v9450 = vld [vmem:[#allocation14 + $0x238] sm:$0xff]
    %v9451 = vld [vmem:[#allocation14 + $0x240] sm:$0xff]
    %v9452 = vld [vmem:[#allocation14 + $0x248] sm:$0xff]
    %v9453 = vld [vmem:[#allocation14 + $0x250] sm:$0xff]
    %v9454 = vld [vmem:[#allocation14 + $0x258] sm:$0xff]
    %v9455 = vld [vmem:[#allocation14 + $0x260] sm:$0xff]
    %v9456 = vld [vmem:[#allocation14 + $0x268] sm:$0xff]
    %v9457 = vld [vmem:[#allocation14 + $0x270] sm:$0xff]
    %v9458 = vld [vmem:[#allocation14 + $0x278] sm:$0xff]
    %v9459 = vld [vmem:[#allocation14 + $0x280] sm:$0xff]
    %v9460 = vld [vmem:[#allocation14 + $0x288] sm:$0xff]
    %v9461 = vld [vmem:[#allocation14 + $0x290] sm:$0xff]
    %v9462 = vld [vmem:[#allocation14 + $0x298] sm:$0xff]
    %v9463 = vld [vmem:[#allocation14 + $0x2a0] sm:$0xff]
    %v9464 = vld [vmem:[#allocation14 + $0x2a8] sm:$0xff]
    %v9465 = vld [vmem:[#allocation14 + $0x2b0] sm:$0xff]
    %v9466 = vld [vmem:[#allocation14 + $0x2b8] sm:$0xff]
    %v9467 = vld [vmem:[#allocation14 + $0x2c0] sm:$0xff]
    %v9468 = vld [vmem:[#allocation14 + $0x2c8] sm:$0xff]
    %v9469 = vld [vmem:[#allocation14 + $0x2d0] sm:$0xff]
    %v9470 = vld [vmem:[#allocation14 + $0x2d8] sm:$0xff]
    %v9471 = vld [vmem:[#allocation14 + $0x2e0] sm:$0xff]
    %v9472 = vld [vmem:[#allocation14 + $0x2e8] sm:$0xff]
    %v9473 = vld [vmem:[#allocation14 + $0x2f0] sm:$0xff]
    %v9474 = vld [vmem:[#allocation14 + $0x2f8] sm:$0xff]
    %v9475 = vld [vmem:[#allocation14 + $0x300] sm:$0xff]
    %v9476 = vld [vmem:[#allocation14 + $0x308] sm:$0xff]
    %v9477 = vld [vmem:[#allocation14 + $0x310] sm:$0xff]
    %v9478 = vld [vmem:[#allocation14 + $0x318] sm:$0xff]
    %v9479 = vld [vmem:[#allocation14 + $0x320] sm:$0xff]
    %v9480 = vld [vmem:[#allocation14 + $0x328] sm:$0xff]
    %v9481 = vld [vmem:[#allocation14 + $0x330] sm:$0xff]
    %v9482 = vld [vmem:[#allocation14 + $0x338] sm:$0xff]
    %v9483 = vld [vmem:[#allocation14 + $0x340] sm:$0xff]
    %v9484 = vld [vmem:[#allocation14 + $0x348] sm:$0xff]
    %v9485 = vld [vmem:[#allocation14 + $0x350] sm:$0xff]
    %v9486 = vld [vmem:[#allocation14 + $0x358] sm:$0xff]
    %v9487 = vld [vmem:[#allocation14 + $0x360] sm:$0xff]
    %v9488 = vld [vmem:[#allocation14 + $0x368] sm:$0xff]
    %v9489 = vld [vmem:[#allocation14 + $0x370] sm:$0xff]
    %v9490 = vld [vmem:[#allocation14 + $0x378] sm:$0xff]
    %v9491 = vld [vmem:[#allocation14 + $0x380] sm:$0xff]
    %v9492 = vld [vmem:[#allocation14 + $0x388] sm:$0xff]
    %v9493 = vld [vmem:[#allocation14 + $0x390] sm:$0xff]
    %v9494 = vld [vmem:[#allocation14 + $0x398] sm:$0xff]
    %v9495 = vld [vmem:[#allocation14 + $0x3a0] sm:$0xff]
    %v9496 = vld [vmem:[#allocation14 + $0x3a8] sm:$0xff]
    %v9497 = vld [vmem:[#allocation14 + $0x3b0] sm:$0xff]
    %v9498 = vld [vmem:[#allocation14 + $0x3b8] sm:$0xff]
    %v9499 = vld [vmem:[#allocation14 + $0x3c0] sm:$0xff]
    %v9500 = vld [vmem:[#allocation14 + $0x3c8] sm:$0xff]
    %v9501 = vld [vmem:[#allocation14 + $0x3d0] sm:$0xff]
    %v9502 = vld [vmem:[#allocation14 + $0x3d8] sm:$0xff]
    %v9503 = vld [vmem:[#allocation14 + $0x3e0] sm:$0xff]
    %v9504 = vld [vmem:[#allocation14 + $0x3e8] sm:$0xff]
    %v9505 = vld [vmem:[#allocation14 + $0x3f0] sm:$0xff]
    %v9506 = vld [vmem:[#allocation14 + $0x3f8] sm:$0xff]
    %v9507 = vld [vmem:[#allocation16] sm:$0xf]
    %v9509 = vperm.slane %v9507, 0
    %v9510 = vperm.slane %v9507, 1
    %v9511 = vperm.slane %v9507, 2
    %v9512 = vperm.slane %v9507, 3
    %v9645 = vunpack.c.l.b16 %v9379
    %v9646 = vunpack.c.h.b16 %v9379
    %v9647 = vunpack.c.l.b16 %v9380
    %v9648 = vunpack.c.h.b16 %v9380
    %v9649 = vunpack.c.l.b16 %v9381
    %v9650 = vunpack.c.h.b16 %v9381
    %v9651 = vunpack.c.l.b16 %v9382
    %v9652 = vunpack.c.h.b16 %v9382
    %v9653 = vunpack.c.l.b16 %v9383
    %v9654 = vunpack.c.h.b16 %v9383
    %v9655 = vunpack.c.l.b16 %v9384
    %v9656 = vunpack.c.h.b16 %v9384
    %v9657 = vunpack.c.l.b16 %v9385
    %v9658 = vunpack.c.h.b16 %v9385
    %v9659 = vunpack.c.l.b16 %v9386
    %v9660 = vunpack.c.h.b16 %v9386
    %v9661 = vunpack.c.l.b16 %v9387
    %v9662 = vunpack.c.h.b16 %v9387
    %v9663 = vunpack.c.l.b16 %v9388
    %v9664 = vunpack.c.h.b16 %v9388
    %v9665 = vunpack.c.l.b16 %v9389
    %v9666 = vunpack.c.h.b16 %v9389
    %v9667 = vunpack.c.l.b16 %v9390
    %v9668 = vunpack.c.h.b16 %v9390
    %v9669 = vunpack.c.l.b16 %v9391
    %v9670 = vunpack.c.h.b16 %v9391
    %v9671 = vunpack.c.l.b16 %v9392
    %v9672 = vunpack.c.h.b16 %v9392
    %v9673 = vunpack.c.l.b16 %v9393
    %v9674 = vunpack.c.h.b16 %v9393
    %v9675 = vunpack.c.l.b16 %v9394
    %v9676 = vunpack.c.h.b16 %v9394
    %v9677 = vunpack.c.l.b16 %v9395
    %v9678 = vunpack.c.h.b16 %v9395
    %v9679 = vunpack.c.l.b16 %v9396
    %v9680 = vunpack.c.h.b16 %v9396
    %v9681 = vunpack.c.l.b16 %v9397
    %v9682 = vunpack.c.h.b16 %v9397
    %v9683 = vunpack.c.l.b16 %v9398
    %v9684 = vunpack.c.h.b16 %v9398
    %v9685 = vunpack.c.l.b16 %v9399
    %v9686 = vunpack.c.h.b16 %v9399
    %v9687 = vunpack.c.l.b16 %v9400
    %v9688 = vunpack.c.h.b16 %v9400
    %v9689 = vunpack.c.l.b16 %v9401
    %v9690 = vunpack.c.h.b16 %v9401
    %v9691 = vunpack.c.l.b16 %v9402
    %v9692 = vunpack.c.h.b16 %v9402
    %v9693 = vunpack.c.l.b16 %v9403
    %v9694 = vunpack.c.h.b16 %v9403
    %v9695 = vunpack.c.l.b16 %v9404
    %v9696 = vunpack.c.h.b16 %v9404
    %v9697 = vunpack.c.l.b16 %v9405
    %v9698 = vunpack.c.h.b16 %v9405
    %v9699 = vunpack.c.l.b16 %v9406
    %v9700 = vunpack.c.h.b16 %v9406
    %v9701 = vunpack.c.l.b16 %v9407
    %v9702 = vunpack.c.h.b16 %v9407
    %v9703 = vunpack.c.l.b16 %v9408
    %v9704 = vunpack.c.h.b16 %v9408
    %v9705 = vunpack.c.l.b16 %v9409
    %v9706 = vunpack.c.h.b16 %v9409
    %v9707 = vunpack.c.l.b16 %v9410
    %v9708 = vunpack.c.h.b16 %v9410
    %v9709 = vunpack.c.l.b16 %v9411
    %v9710 = vunpack.c.h.b16 %v9411
    %v9711 = vunpack.c.l.b16 %v9412
    %v9712 = vunpack.c.h.b16 %v9412
    %v9713 = vunpack.c.l.b16 %v9413
    %v9714 = vunpack.c.h.b16 %v9413
    %v9715 = vunpack.c.l.b16 %v9414
    %v9716 = vunpack.c.h.b16 %v9414
    %v9717 = vunpack.c.l.b16 %v9415
    %v9718 = vunpack.c.h.b16 %v9415
    %v9719 = vunpack.c.l.b16 %v9416
    %v9720 = vunpack.c.h.b16 %v9416
    %v9721 = vunpack.c.l.b16 %v9417
    %v9722 = vunpack.c.h.b16 %v9417
    %v9723 = vunpack.c.l.b16 %v9418
    %v9724 = vunpack.c.h.b16 %v9418
    %v9725 = vunpack.c.l.b16 %v9419
    %v9726 = vunpack.c.h.b16 %v9419
    %v9727 = vunpack.c.l.b16 %v9420
    %v9728 = vunpack.c.h.b16 %v9420
    %v9729 = vunpack.c.l.b16 %v9421
    %v9730 = vunpack.c.h.b16 %v9421
    %v9731 = vunpack.c.l.b16 %v9422
    %v9732 = vunpack.c.h.b16 %v9422
    %v9733 = vunpack.c.l.b16 %v9423
    %v9734 = vunpack.c.h.b16 %v9423
    %v9735 = vunpack.c.l.b16 %v9424
    %v9736 = vunpack.c.h.b16 %v9424
    %v9737 = vunpack.c.l.b16 %v9425
    %v9738 = vunpack.c.h.b16 %v9425
    %v9739 = vunpack.c.l.b16 %v9426
    %v9740 = vunpack.c.h.b16 %v9426
    %v9741 = vunpack.c.l.b16 %v9427
    %v9742 = vunpack.c.h.b16 %v9427
    %v9743 = vunpack.c.l.b16 %v9428
    %v9744 = vunpack.c.h.b16 %v9428
    %v9745 = vunpack.c.l.b16 %v9429
    %v9746 = vunpack.c.h.b16 %v9429
    %v9747 = vunpack.c.l.b16 %v9430
    %v9748 = vunpack.c.h.b16 %v9430
    %v9749 = vunpack.c.l.b16 %v9431
    %v9750 = vunpack.c.h.b16 %v9431
    %v9751 = vunpack.c.l.b16 %v9432
    %v9752 = vunpack.c.h.b16 %v9432
    %v9753 = vunpack.c.l.b16 %v9433
    %v9754 = vunpack.c.h.b16 %v9433
    %v9755 = vunpack.c.l.b16 %v9434
    %v9756 = vunpack.c.h.b16 %v9434
    %v9757 = vunpack.c.l.b16 %v9435
    %v9758 = vunpack.c.h.b16 %v9435
    %v9759 = vunpack.c.l.b16 %v9436
    %v9760 = vunpack.c.h.b16 %v9436
    %v9761 = vunpack.c.l.b16 %v9437
    %v9762 = vunpack.c.h.b16 %v9437
    %v9763 = vunpack.c.l.b16 %v9438
    %v9764 = vunpack.c.h.b16 %v9438
    %v9765 = vunpack.c.l.b16 %v9439
    %v9766 = vunpack.c.h.b16 %v9439
    %v9767 = vunpack.c.l.b16 %v9440
    %v9768 = vunpack.c.h.b16 %v9440
    %v9769 = vunpack.c.l.b16 %v9441
    %v9770 = vunpack.c.h.b16 %v9441
    %v9771 = vunpack.c.l.b16 %v9442
    %v9772 = vunpack.c.h.b16 %v9442
    %v9773 = vunpack.c.l.b16 %v9443
    %v9774 = vunpack.c.h.b16 %v9443
    %v9775 = vunpack.c.l.b16 %v9444
    %v9776 = vunpack.c.h.b16 %v9444
    %v9777 = vunpack.c.l.b16 %v9445
    %v9778 = vunpack.c.h.b16 %v9445
    %v9779 = vunpack.c.l.b16 %v9446
    %v9780 = vunpack.c.h.b16 %v9446
    %v9781 = vunpack.c.l.b16 %v9447
    %v9782 = vunpack.c.h.b16 %v9447
    %v9783 = vunpack.c.l.b16 %v9448
    %v9784 = vunpack.c.h.b16 %v9448
    %v9785 = vunpack.c.l.b16 %v9449
    %v9786 = vunpack.c.h.b16 %v9449
    %v9787 = vunpack.c.l.b16 %v9450
    %v9788 = vunpack.c.h.b16 %v9450
    %v9789 = vunpack.c.l.b16 %v9451
    %v9790 = vunpack.c.h.b16 %v9451
    %v9791 = vunpack.c.l.b16 %v9452
    %v9792 = vunpack.c.h.b16 %v9452
    %v9793 = vunpack.c.l.b16 %v9453
    %v9794 = vunpack.c.h.b16 %v9453
    %v9795 = vunpack.c.l.b16 %v9454
    %v9796 = vunpack.c.h.b16 %v9454
    %v9797 = vunpack.c.l.b16 %v9455
    %v9798 = vunpack.c.h.b16 %v9455
    %v9799 = vunpack.c.l.b16 %v9456
    %v9800 = vunpack.c.h.b16 %v9456
    %v9801 = vunpack.c.l.b16 %v9457
    %v9802 = vunpack.c.h.b16 %v9457
    %v9803 = vunpack.c.l.b16 %v9458
    %v9804 = vunpack.c.h.b16 %v9458
    %v9805 = vunpack.c.l.b16 %v9459
    %v9806 = vunpack.c.h.b16 %v9459
    %v9807 = vunpack.c.l.b16 %v9460
    %v9808 = vunpack.c.h.b16 %v9460
    %v9809 = vunpack.c.l.b16 %v9461
    %v9810 = vunpack.c.h.b16 %v9461
    %v9811 = vunpack.c.l.b16 %v9462
    %v9812 = vunpack.c.h.b16 %v9462
    %v9813 = vunpack.c.l.b16 %v9463
    %v9814 = vunpack.c.h.b16 %v9463
    %v9815 = vunpack.c.l.b16 %v9464
    %v9816 = vunpack.c.h.b16 %v9464
    %v9817 = vunpack.c.l.b16 %v9465
    %v9818 = vunpack.c.h.b16 %v9465
    %v9819 = vunpack.c.l.b16 %v9466
    %v9820 = vunpack.c.h.b16 %v9466
    %v9821 = vunpack.c.l.b16 %v9467
    %v9822 = vunpack.c.h.b16 %v9467
    %v9823 = vunpack.c.l.b16 %v9468
    %v9824 = vunpack.c.h.b16 %v9468
    %v9825 = vunpack.c.l.b16 %v9469
    %v9826 = vunpack.c.h.b16 %v9469
    %v9827 = vunpack.c.l.b16 %v9470
    %v9828 = vunpack.c.h.b16 %v9470
    %v9829 = vunpack.c.l.b16 %v9471
    %v9830 = vunpack.c.h.b16 %v9471
    %v9831 = vunpack.c.l.b16 %v9472
    %v9832 = vunpack.c.h.b16 %v9472
    %v9833 = vunpack.c.l.b16 %v9473
    %v9834 = vunpack.c.h.b16 %v9473
    %v9835 = vunpack.c.l.b16 %v9474
    %v9836 = vunpack.c.h.b16 %v9474
    %v9837 = vunpack.c.l.b16 %v9475
    %v9838 = vunpack.c.h.b16 %v9475
    %v9839 = vunpack.c.l.b16 %v9476
    %v9840 = vunpack.c.h.b16 %v9476
    %v9841 = vunpack.c.l.b16 %v9477
    %v9842 = vunpack.c.h.b16 %v9477
    %v9843 = vunpack.c.l.b16 %v9478
    %v9844 = vunpack.c.h.b16 %v9478
    %v9845 = vunpack.c.l.b16 %v9479
    %v9846 = vunpack.c.h.b16 %v9479
    %v9847 = vunpack.c.l.b16 %v9480
    %v9848 = vunpack.c.h.b16 %v9480
    %v9849 = vunpack.c.l.b16 %v9481
    %v9850 = vunpack.c.h.b16 %v9481
    %v9851 = vunpack.c.l.b16 %v9482
    %v9852 = vunpack.c.h.b16 %v9482
    %v9853 = vunpack.c.l.b16 %v9483
    %v9854 = vunpack.c.h.b16 %v9483
    %v9855 = vunpack.c.l.b16 %v9484
    %v9856 = vunpack.c.h.b16 %v9484
    %v9857 = vunpack.c.l.b16 %v9485
    %v9858 = vunpack.c.h.b16 %v9485
    %v9859 = vunpack.c.l.b16 %v9486
    %v9860 = vunpack.c.h.b16 %v9486
    %v9861 = vunpack.c.l.b16 %v9487
    %v9862 = vunpack.c.h.b16 %v9487
    %v9863 = vunpack.c.l.b16 %v9488
    %v9864 = vunpack.c.h.b16 %v9488
    %v9865 = vunpack.c.l.b16 %v9489
    %v9866 = vunpack.c.h.b16 %v9489
    %v9867 = vunpack.c.l.b16 %v9490
    %v9868 = vunpack.c.h.b16 %v9490
    %v9869 = vunpack.c.l.b16 %v9491
    %v9870 = vunpack.c.h.b16 %v9491
    %v9871 = vunpack.c.l.b16 %v9492
    %v9872 = vunpack.c.h.b16 %v9492
    %v9873 = vunpack.c.l.b16 %v9493
    %v9874 = vunpack.c.h.b16 %v9493
    %v9875 = vunpack.c.l.b16 %v9494
    %v9876 = vunpack.c.h.b16 %v9494
    %v9877 = vunpack.c.l.b16 %v9495
    %v9878 = vunpack.c.h.b16 %v9495
    %v9879 = vunpack.c.l.b16 %v9496
    %v9880 = vunpack.c.h.b16 %v9496
    %v9881 = vunpack.c.l.b16 %v9497
    %v9882 = vunpack.c.h.b16 %v9497
    %v9883 = vunpack.c.l.b16 %v9498
    %v9884 = vunpack.c.h.b16 %v9498
    %v9885 = vunpack.c.l.b16 %v9499
    %v9886 = vunpack.c.h.b16 %v9499
    %v9887 = vunpack.c.l.b16 %v9500
    %v9888 = vunpack.c.h.b16 %v9500
    %v9889 = vunpack.c.l.b16 %v9501
    %v9890 = vunpack.c.h.b16 %v9501
    %v9891 = vunpack.c.l.b16 %v9502
    %v9892 = vunpack.c.h.b16 %v9502
    %v9893 = vunpack.c.l.b16 %v9503
    %v9894 = vunpack.c.h.b16 %v9503
    %v9895 = vunpack.c.l.b16 %v9504
    %v9896 = vunpack.c.h.b16 %v9504
    %v9897 = vunpack.c.l.b16 %v9505
    %v9898 = vunpack.c.h.b16 %v9505
    %v9899 = vunpack.c.l.b16 %v9506
    %v9900 = vunpack.c.h.b16 %v9506
    %v9901 = vpack.c.b16 %v9649, %v9645
    %v9902 = vpack.c.b16 %v9650, %v9646
    %v9903 = vpack.c.b16 %v9651, %v9647
    %v9904 = vpack.c.b16 %v9652, %v9648
    %v9905 = vpack.c.b16 %v9657, %v9653
    %v9906 = vpack.c.b16 %v9658, %v9654
    %v9907 = vpack.c.b16 %v9659, %v9655
    %v9908 = vpack.c.b16 %v9660, %v9656
    %v9909 = vpack.c.b16 %v9665, %v9661
    %v9910 = vpack.c.b16 %v9666, %v9662
    %v9911 = vpack.c.b16 %v9667, %v9663
    %v9912 = vpack.c.b16 %v9668, %v9664
    %v9913 = vpack.c.b16 %v9673, %v9669
    %v9914 = vpack.c.b16 %v9674, %v9670
    %v9915 = vpack.c.b16 %v9675, %v9671
    %v9916 = vpack.c.b16 %v9676, %v9672
    %v9917 = vpack.c.b16 %v9681, %v9677
    %v9918 = vpack.c.b16 %v9682, %v9678
    %v9919 = vpack.c.b16 %v9683, %v9679
    %v9920 = vpack.c.b16 %v9684, %v9680
    %v9921 = vpack.c.b16 %v9689, %v9685
    %v9922 = vpack.c.b16 %v9690, %v9686
    %v9923 = vpack.c.b16 %v9691, %v9687
    %v9924 = vpack.c.b16 %v9692, %v9688
    %v9925 = vpack.c.b16 %v9697, %v9693
    %v9926 = vpack.c.b16 %v9698, %v9694
    %v9927 = vpack.c.b16 %v9699, %v9695
    %v9928 = vpack.c.b16 %v9700, %v9696
    %v9929 = vpack.c.b16 %v9705, %v9701
    %v9930 = vpack.c.b16 %v9706, %v9702
    %v9931 = vpack.c.b16 %v9707, %v9703
    %v9932 = vpack.c.b16 %v9708, %v9704
    %v9933 = vpack.c.b16 %v9713, %v9709
    %v9934 = vpack.c.b16 %v9714, %v9710
    %v9935 = vpack.c.b16 %v9715, %v9711
    %v9936 = vpack.c.b16 %v9716, %v9712
    %v9937 = vpack.c.b16 %v9721, %v9717
    %v9938 = vpack.c.b16 %v9722, %v9718
    %v9939 = vpack.c.b16 %v9723, %v9719
    %v9940 = vpack.c.b16 %v9724, %v9720
    %v9941 = vpack.c.b16 %v9729, %v9725
    %v9942 = vpack.c.b16 %v9730, %v9726
    %v9943 = vpack.c.b16 %v9731, %v9727
    %v9944 = vpack.c.b16 %v9732, %v9728
    %v9945 = vpack.c.b16 %v9737, %v9733
    %v9946 = vpack.c.b16 %v9738, %v9734
    %v9947 = vpack.c.b16 %v9739, %v9735
    %v9948 = vpack.c.b16 %v9740, %v9736
    %v9949 = vpack.c.b16 %v9745, %v9741
    %v9950 = vpack.c.b16 %v9746, %v9742
    %v9951 = vpack.c.b16 %v9747, %v9743
    %v9952 = vpack.c.b16 %v9748, %v9744
    %v9953 = vpack.c.b16 %v9753, %v9749
    %v9954 = vpack.c.b16 %v9754, %v9750
    %v9955 = vpack.c.b16 %v9755, %v9751
    %v9956 = vpack.c.b16 %v9756, %v9752
    %v9957 = vpack.c.b16 %v9761, %v9757
    %v9958 = vpack.c.b16 %v9762, %v9758
    %v9959 = vpack.c.b16 %v9763, %v9759
    %v9960 = vpack.c.b16 %v9764, %v9760
    %v9961 = vpack.c.b16 %v9769, %v9765
    %v9962 = vpack.c.b16 %v9770, %v9766
    %v9963 = vpack.c.b16 %v9771, %v9767
    %v9964 = vpack.c.b16 %v9772, %v9768
    %v9965 = vpack.c.b16 %v9777, %v9773
    %v9966 = vpack.c.b16 %v9778, %v9774
    %v9967 = vpack.c.b16 %v9779, %v9775
    %v9968 = vpack.c.b16 %v9780, %v9776
    %v9969 = vpack.c.b16 %v9785, %v9781
    %v9970 = vpack.c.b16 %v9786, %v9782
    %v9971 = vpack.c.b16 %v9787, %v9783
    %v9972 = vpack.c.b16 %v9788, %v9784
    %v9973 = vpack.c.b16 %v9793, %v9789
    %v9974 = vpack.c.b16 %v9794, %v9790
    %v9975 = vpack.c.b16 %v9795, %v9791
    %v9976 = vpack.c.b16 %v9796, %v9792
    %v9977 = vpack.c.b16 %v9801, %v9797
    %v9978 = vpack.c.b16 %v9802, %v9798
    %v9979 = vpack.c.b16 %v9803, %v9799
    %v9980 = vpack.c.b16 %v9804, %v9800
    %v9981 = vpack.c.b16 %v9809, %v9805
    %v9982 = vpack.c.b16 %v9810, %v9806
    %v9983 = vpack.c.b16 %v9811, %v9807
    %v9984 = vpack.c.b16 %v9812, %v9808
    %v9985 = vpack.c.b16 %v9817, %v9813
    %v9986 = vpack.c.b16 %v9818, %v9814
    %v9987 = vpack.c.b16 %v9819, %v9815
    %v9988 = vpack.c.b16 %v9820, %v9816
    %v9989 = vpack.c.b16 %v9825, %v9821
    %v9990 = vpack.c.b16 %v9826, %v9822
    %v9991 = vpack.c.b16 %v9827, %v9823
    %v9992 = vpack.c.b16 %v9828, %v9824
    %v9993 = vpack.c.b16 %v9833, %v9829
    %v9994 = vpack.c.b16 %v9834, %v9830
    %v9995 = vpack.c.b16 %v9835, %v9831
    %v9996 = vpack.c.b16 %v9836, %v9832
    %v9997 = vpack.c.b16 %v9841, %v9837
    %v9998 = vpack.c.b16 %v9842, %v9838
    %v9999 = vpack.c.b16 %v9843, %v9839
    %v10000 = vpack.c.b16 %v9844, %v9840
    %v10001 = vpack.c.b16 %v9849, %v9845
    %v10002 = vpack.c.b16 %v9850, %v9846
    %v10003 = vpack.c.b16 %v9851, %v9847
    %v10004 = vpack.c.b16 %v9852, %v9848
    %v10005 = vpack.c.b16 %v9857, %v9853
    %v10006 = vpack.c.b16 %v9858, %v9854
    %v10007 = vpack.c.b16 %v9859, %v9855
    %v10008 = vpack.c.b16 %v9860, %v9856
    %v10009 = vpack.c.b16 %v9865, %v9861
    %v10010 = vpack.c.b16 %v9866, %v9862
    %v10011 = vpack.c.b16 %v9867, %v9863
    %v10012 = vpack.c.b16 %v9868, %v9864
    %v10013 = vpack.c.b16 %v9873, %v9869
    %v10014 = vpack.c.b16 %v9874, %v9870
    %v10015 = vpack.c.b16 %v9875, %v9871
    %v10016 = vpack.c.b16 %v9876, %v9872
    %v10017 = vpack.c.b16 %v9881, %v9877
    %v10018 = vpack.c.b16 %v9882, %v9878
    %v10019 = vpack.c.b16 %v9883, %v9879
    %v10020 = vpack.c.b16 %v9884, %v9880
    %v10021 = vpack.c.b16 %v9889, %v9885
    %v10022 = vpack.c.b16 %v9890, %v9886
    %v10023 = vpack.c.b16 %v9891, %v9887
    %v10024 = vpack.c.b16 %v9892, %v9888
    %v10025 = vpack.c.b16 %v9897, %v9893
    %v10026 = vpack.c.b16 %v9898, %v9894
    %v10027 = vpack.c.b16 %v9899, %v9895
    %v10028 = vpack.c.b16 %v9900, %v9896
    %10157 = vmatpush.bf16.msra.mxu0 %v9929
    %10158 = vmatpush.bf16.msra.mxu0 %v9925
    %10159 = vmatpush.bf16.msra.mxu0 %v9921
    %10160 = vmatpush.bf16.msra.mxu0 %v9917
    %10161 = vmatpush.bf16.msra.mxu0 %v9913
    %10162 = vmatpush.bf16.msra.mxu0 %v9909
    %10163 = vmatpush.bf16.msra.mxu0 %v9905
    %10164 = vmatpush.bf16.msra.mxu0 %v9901
    %10165 = vmatmul.bf16.gmra.mxu0 %v9375
    %v10166 = vpop.f32.mrf.mxu0
    %v10167 = vadd.f32 %v9509, %v10166
    %v10168 = vpop.f32.mrf.mxu0
    %10169 = vdwg.mxu0
    %10170 = vmatpush.bf16.msra.mxu0 %v9961
    %10171 = vmatpush.bf16.msra.mxu0 %v9957
    %10172 = vmatpush.bf16.msra.mxu0 %v9953
    %10173 = vmatpush.bf16.msra.mxu0 %v9949
    %10174 = vmatpush.bf16.msra.mxu0 %v9945
    %10175 = vmatpush.bf16.msra.mxu0 %v9941
    %10176 = vmatpush.bf16.msra.mxu0 %v9937
    %10177 = vmatpush.bf16.msra.mxu0 %v9933
    %10178 = vmatmul.bf16.gmra.mxu0 %v9376
    %v10179 = vpop.f32.mrf.mxu0
    %v10180 = vadd.f32 %v10167, %v10179
    %v10181 = vpop.f32.mrf.mxu0
    %10182 = vdwg.mxu0
    %10183 = vmatpush.bf16.msra.mxu0 %v9993
    %10184 = vmatpush.bf16.msra.mxu0 %v9989
    %10185 = vmatpush.bf16.msra.mxu0 %v9985
    %10186 = vmatpush.bf16.msra.mxu0 %v9981
    %10187 = vmatpush.bf16.msra.mxu0 %v9977
    %10188 = vmatpush.bf16.msra.mxu0 %v9973
    %10189 = vmatpush.bf16.msra.mxu0 %v9969
    %10190 = vmatpush.bf16.msra.mxu0 %v9965
    %10191 = vmatmul.bf16.gmra.mxu0 %v9377
    %v10192 = vpop.f32.mrf.mxu0
    %v10193 = vadd.f32 %v10180, %v10192
    %v10194 = vpop.f32.mrf.mxu0
    %10195 = vdwg.mxu0
    %10196 = vmatpush.bf16.msra.mxu0 %v10025
    %10197 = vmatpush.bf16.msra.mxu0 %v10021
    %10198 = vmatpush.bf16.msra.mxu0 %v10017
    %10199 = vmatpush.bf16.msra.mxu0 %v10013
    %10200 = vmatpush.bf16.msra.mxu0 %v10009
    %10201 = vmatpush.bf16.msra.mxu0 %v10005
    %10202 = vmatpush.bf16.msra.mxu0 %v10001
    %10203 = vmatpush.bf16.msra.mxu0 %v9997
    %10204 = vmatmul.bf16.gmra.mxu0 %v9378
    %v10205 = vpop.f32.mrf.mxu0
    %v10206 = vadd.f32 %v10193, %v10205
    %v10207 = vpop.f32.mrf.mxu0
    %10208 = vdwg.mxu0
    %10209 = vmatpush.bf16.msra.mxu0 %v9930
    %10210 = vmatpush.bf16.msra.mxu0 %v9926
    %10211 = vmatpush.bf16.msra.mxu0 %v9922
    %10212 = vmatpush.bf16.msra.mxu0 %v9918
    %10213 = vmatpush.bf16.msra.mxu0 %v9914
    %10214 = vmatpush.bf16.msra.mxu0 %v9910
    %10215 = vmatpush.bf16.msra.mxu0 %v9906
    %10216 = vmatpush.bf16.msra.mxu0 %v9902
    %10217 = vmatmul.bf16.gmra.mxu0 %v9375
    %v10218 = vpop.f32.mrf.mxu0
    %v10219 = vadd.f32 %v9510, %v10218
    %v10220 = vpop.f32.mrf.mxu0
    %10221 = vdwg.mxu0
    %10222 = vmatpush.bf16.msra.mxu0 %v9962
    %10223 = vmatpush.bf16.msra.mxu0 %v9958
    %10224 = vmatpush.bf16.msra.mxu0 %v9954
    %10225 = vmatpush.bf16.msra.mxu0 %v9950
    %10226 = vmatpush.bf16.msra.mxu0 %v9946
    %10227 = vmatpush.bf16.msra.mxu0 %v9942
    %10228 = vmatpush.bf16.msra.mxu0 %v9938
    %10229 = vmatpush.bf16.msra.mxu0 %v9934
    %10230 = vmatmul.bf16.gmra.mxu0 %v9376
    %v10231 = vpop.f32.mrf.mxu0
    %v10232 = vadd.f32 %v10219, %v10231
    %v10233 = vpop.f32.mrf.mxu0
    %10234 = vdwg.mxu0
    %10235 = vmatpush.bf16.msra.mxu0 %v9994
    %10236 = vmatpush.bf16.msra.mxu0 %v9990
    %10237 = vmatpush.bf16.msra.mxu0 %v9986
    %10238 = vmatpush.bf16.msra.mxu0 %v9982
    %10239 = vmatpush.bf16.msra.mxu0 %v9978
    %10240 = vmatpush.bf16.msra.mxu0 %v9974
    %10241 = vmatpush.bf16.msra.mxu0 %v9970
    %10242 = vmatpush.bf16.msra.mxu0 %v9966
    %10243 = vmatmul.bf16.gmra.mxu0 %v9377
    %v10244 = vpop.f32.mrf.mxu0
    %v10245 = vadd.f32 %v10232, %v10244
    %v10246 = vpop.f32.mrf.mxu0
    %10247 = vdwg.mxu0
    %10248 = vmatpush.bf16.msra.mxu0 %v10026
    %10249 = vmatpush.bf16.msra.mxu0 %v10022
    %10250 = vmatpush.bf16.msra.mxu0 %v10018
    %10251 = vmatpush.bf16.msra.mxu0 %v10014
    %10252 = vmatpush.bf16.msra.mxu0 %v10010
    %10253 = vmatpush.bf16.msra.mxu0 %v10006
    %10254 = vmatpush.bf16.msra.mxu0 %v10002
    %10255 = vmatpush.bf16.msra.mxu0 %v9998
    %10256 = vmatmul.bf16.gmra.mxu0 %v9378
    %v10257 = vpop.f32.mrf.mxu0
    %v10258 = vadd.f32 %v10245, %v10257
    %v10259 = vpop.f32.mrf.mxu0
    %10260 = vdwg.mxu0
    %10261 = vmatpush.bf16.msra.mxu0 %v9931
    %10262 = vmatpush.bf16.msra.mxu0 %v9927
    %10263 = vmatpush.bf16.msra.mxu0 %v9923
    %10264 = vmatpush.bf16.msra.mxu0 %v9919
    %10265 = vmatpush.bf16.msra.mxu0 %v9915
    %10266 = vmatpush.bf16.msra.mxu0 %v9911
    %10267 = vmatpush.bf16.msra.mxu0 %v9907
    %10268 = vmatpush.bf16.msra.mxu0 %v9903
    %10269 = vmatmul.bf16.gmra.mxu0 %v9375
    %v10270 = vpop.f32.mrf.mxu0
    %v10271 = vadd.f32 %v9511, %v10270
    %v10272 = vpop.f32.mrf.mxu0
    %10273 = vdwg.mxu0
    %10274 = vmatpush.bf16.msra.mxu0 %v9963
    %10275 = vmatpush.bf16.msra.mxu0 %v9959
    %10276 = vmatpush.bf16.msra.mxu0 %v9955
    %10277 = vmatpush.bf16.msra.mxu0 %v9951
    %10278 = vmatpush.bf16.msra.mxu0 %v9947
    %10279 = vmatpush.bf16.msra.mxu0 %v9943
    %10280 = vmatpush.bf16.msra.mxu0 %v9939
    %10281 = vmatpush.bf16.msra.mxu0 %v9935
    %10282 = vmatmul.bf16.gmra.mxu0 %v9376
    %v10283 = vpop.f32.mrf.mxu0
    %v10284 = vadd.f32 %v10271, %v10283
    %v10285 = vpop.f32.mrf.mxu0
    %10286 = vdwg.mxu0
    %10287 = vmatpush.bf16.msra.mxu0 %v9995
    %10288 = vmatpush.bf16.msra.mxu0 %v9991
    %10289 = vmatpush.bf16.msra.mxu0 %v9987
    %10290 = vmatpush.bf16.msra.mxu0 %v9983
    %10291 = vmatpush.bf16.msra.mxu0 %v9979
    %10292 = vmatpush.bf16.msra.mxu0 %v9975
    %10293 = vmatpush.bf16.msra.mxu0 %v9971
    %10294 = vmatpush.bf16.msra.mxu0 %v9967
    %10295 = vmatmul.bf16.gmra.mxu0 %v9377
    %v10296 = vpop.f32.mrf.mxu0
    %v10297 = vadd.f32 %v10284, %v10296
    %v10298 = vpop.f32.mrf.mxu0
    %10299 = vdwg.mxu0
    %10300 = vmatpush.bf16.msra.mxu0 %v10027
    %10301 = vmatpush.bf16.msra.mxu0 %v10023
    %10302 = vmatpush.bf16.msra.mxu0 %v10019
    %10303 = vmatpush.bf16.msra.mxu0 %v10015
    %10304 = vmatpush.bf16.msra.mxu0 %v10011
    %10305 = vmatpush.bf16.msra.mxu0 %v10007
    %10306 = vmatpush.bf16.msra.mxu0 %v10003
    %10307 = vmatpush.bf16.msra.mxu0 %v9999
    %10308 = vmatmul.bf16.gmra.mxu0 %v9378
    %v10309 = vpop.f32.mrf.mxu0
    %v10310 = vadd.f32 %v10297, %v10309
    %v10311 = vpop.f32.mrf.mxu0
    %10312 = vdwg.mxu0
    %10313 = vmatpush.bf16.msra.mxu0 %v9932
    %10314 = vmatpush.bf16.msra.mxu0 %v9928
    %10315 = vmatpush.bf16.msra.mxu0 %v9924
    %10316 = vmatpush.bf16.msra.mxu0 %v9920
    %10317 = vmatpush.bf16.msra.mxu0 %v9916
    %10318 = vmatpush.bf16.msra.mxu0 %v9912
    %10319 = vmatpush.bf16.msra.mxu0 %v9908
    %10320 = vmatpush.bf16.msra.mxu0 %v9904
    %10321 = vmatmul.bf16.gmra.mxu0 %v9375
    %v10322 = vpop.f32.mrf.mxu0
    %v10323 = vadd.f32 %v9512, %v10322
    %v10324 = vpop.f32.mrf.mxu0
    %10325 = vdwg.mxu0
    %10326 = vmatpush.bf16.msra.mxu0 %v9964
    %10327 = vmatpush.bf16.msra.mxu0 %v9960
    %10328 = vmatpush.bf16.msra.mxu0 %v9956
    %10329 = vmatpush.bf16.msra.mxu0 %v9952
    %10330 = vmatpush.bf16.msra.mxu0 %v9948
    %10331 = vmatpush.bf16.msra.mxu0 %v9944
    %10332 = vmatpush.bf16.msra.mxu0 %v9940
    %10333 = vmatpush.bf16.msra.mxu0 %v9936
    %10334 = vmatmul.bf16.gmra.mxu0 %v9376
    %v10335 = vpop.f32.mrf.mxu0
    %v10336 = vadd.f32 %v10323, %v10335
    %v10337 = vpop.f32.mrf.mxu0
    %10338 = vdwg.mxu0
    %10339 = vmatpush.bf16.msra.mxu0 %v9996
    %10340 = vmatpush.bf16.msra.mxu0 %v9992
    %10341 = vmatpush.bf16.msra.mxu0 %v9988
    %10342 = vmatpush.bf16.msra.mxu0 %v9984
    %10343 = vmatpush.bf16.msra.mxu0 %v9980
    %10344 = vmatpush.bf16.msra.mxu0 %v9976
    %10345 = vmatpush.bf16.msra.mxu0 %v9972
    %10346 = vmatpush.bf16.msra.mxu0 %v9968
    %10347 = vmatmul.bf16.gmra.mxu0 %v9377
    %v10348 = vpop.f32.mrf.mxu0
    %v10349 = vadd.f32 %v10336, %v10348
    %v10350 = vpop.f32.mrf.mxu0
    %10351 = vdwg.mxu0
    %10352 = vmatpush.bf16.msra.mxu0 %v10028
    %10353 = vmatpush.bf16.msra.mxu0 %v10024
    %10354 = vmatpush.bf16.msra.mxu0 %v10020
    %10355 = vmatpush.bf16.msra.mxu0 %v10016
    %10356 = vmatpush.bf16.msra.mxu0 %v10012
    %10357 = vmatpush.bf16.msra.mxu0 %v10008
    %10358 = vmatpush.bf16.msra.mxu0 %v10004
    %10359 = vmatpush.bf16.msra.mxu0 %v10000
    %10360 = vmatmul.bf16.gmra.mxu0 %v9378
    %v10361 = vpop.f32.mrf.mxu0
    %v10362 = vadd.f32 %v10349, %v10361
    %v10363 = vpop.f32.mrf.mxu0
    %10364 = vdwg.mxu0
    %vm10365 = vcmp.gt.f32.partialorder %v10206, 0.0
    %vm10366 = vcmp.gt.f32.partialorder %v10258, 0.0
    %vm10367 = vcmp.gt.f32.partialorder %v10310, 0.0
    %vm10368 = vcmp.gt.f32.partialorder %v10362, 0.0
    %v10369 = vmul.f32 %v10206, 0.2
    %v10370 = vmul.f32 %v10258, 0.2
    %v10371 = vmul.f32 %v10310, 0.2
    %v10372 = vmul.f32 %v10362, 0.2
    %v10373 = vsel %vm10365, %v10206, %v10369
    %v10374 = vsel %vm10366, %v10258, %v10370
    %v10375 = vsel %vm10367, %v10310, %v10371
    %v10376 = vsel %vm10368, %v10362, %v10372
    %v10377 = vld [vmem:[#allocation17] sm:$0xf]
    %v10378 = vunpack.c.l.bf16 %v10377
    %v10380 = vperm.slane %v10378, 0
    %v10381 = vperm.slane %v10378, 2
    %v10382 = vperm.slane %v10378, 4
    %v10383 = vperm.slane %v10378, 6
    %v10388 = vperm.slane %v10380, 0
    %v10389 = vperm.slane %v10381, 0
    %v10390 = vperm.slane %v10382, 0
    %v10391 = vperm.slane %v10383, 0
    %v10392 = vmul.f32 %v10373, %v10388
    %v10393 = vmul.f32 %v10374, %v10389
    %v10394 = vmul.f32 %v10375, %v10390
    %v10395 = vmul.f32 %v10376, %v10391
    %v10396 = vadd.f32 %v10392, %v10393
    %v10397 = vadd.f32 %v10396, %v10394
    %v10398 = vadd.f32 %v10397, %v10395
    %10399 = vadd.xlane.f32.xlu0 %v10398
    %v10400 = vpop.xlane.xlu0 %10399
    %v10401 = vld [vmem:[#allocation2] sm:$0x1]
    %v10403 = vperm.slane %v10401, 0
    %v10405 = vadd.f32 %v10400, %v10403
    %v10406 = vxor.u32 %v10405, 2147483648
    %v10407 = vmul.f32 %v10406, 1.442695
    %v10408 = vpow.pop %v10407
    %v10409 = vadd.f32 %v10408, 1.0
    %v10410 = vrcp.pop %v10409
    %v10411 = vmul.f32 %v10409, %v10410
    %v10412 = vsub.f32 1.0, %v10411
    %v10413 = vmul.f32 %v10410, %v10412
    %v10414 = vadd.f32 %v10410, %v10413
    %vm10415 = vweird.f32 %v10409
    %vm10416 = vweird.f32 %v10410
    %vm10417 = vmor %vm10415, %vm10416
    %v10418 = vsel %vm10417, %v10410, %v10414
    %v10419 = vand.u32 2147483647, %v10409
    %vm10420 = vcmp.eq.f32.partialorder %v10419, 8.507059e+37
    %v10421 = vand.u32 %v10409, 2147483648
    %v10422 = vor.u32 1.1754944e-38, %v10421
    %v10423 = vsel %vm10420, %v10422, %v10418
    %v10424 = vmul.f32 1.0, %v10423
    %vm10425 = vcmask 7168
    %10426 = vst.msk [vmem:[%s11] sm:$0xff] %vm10425, %v10424
    // Predicated region
    $region86: #{tpu_custom_call.1} parent=1 // pred_check
      _
    $region87: #{tpu_custom_call.1} parent=1 // pred_check_branch
      %10428 = sbr.rel (0) target = $region89
    $region88: #{tpu_custom_call.1} parent=1 // pred_region
      _
    $region89: #{tpu_custom_call.1} parent=1 // pred_fallthru
      _
    // Predicated region
    $region90: #{tpu_custom_call.1} parent=1 // pred_check
      _
    $region91: #{tpu_custom_call.1} parent=1 // pred_check_branch
      %10430 = sbr.rel (0) target = $region93
    $region92: #{tpu_custom_call.1} parent=1 // pred_region
      _
    $region93: #{tpu_custom_call.1} parent=1 // pred_fallthru
      _
    %10431 = vsyncpa [#allocation4], 1
    %10432 = vsyncpa [#allocation6], 1
    %10433 = vsyncpa [#allocation9], 1
    %10434 = vsyncpa [#allocation12], 1
    %10435 = vsyncpa [#allocation15], 1
    %10436 = vsyncpa [#allocation18], 1

</llo_original>
